<compile_context>
chip_gen: v5e
topology: v5e:2x2
jax: 0.10.0
libtpu: 0.0.40
codegen_flags: <defaults>
</compile_context>

<pallas_src>
import numpy as np
import jax
import jax.numpy as jnp
from jax.experimental import pallas as pl
from jax.experimental.pallas import tpu as pltpu

# --- problem sizes (small, consistent with the module's forward) ---
B, C_IN, H, W = 2, 4, 16, 16
C_OUT = 8          # backbone feature dim
HIDDEN = 32        # projection hidden dim
PROJ = 16          # projection output dim
KH = KW = 3        # conv kernel
EPS = 1e-12        # F.normalize eps

# --- packed-slab layout constants ---
RH = C_OUT * H               # 128 : conv-output rows per batch (co*H + h)
CK = C_IN * H                # 64  : contraction length (c*H + h')
ROW_S = 2 * RH               # 256 : shift matrices + ones column
ROW_G = ROW_S + W            # 272 : GAP row selector
ROW_W1 = ROW_G + C_OUT       # 280
ROW_W2 = ROW_W1 + C_OUT      # 288
ROW_BIAS = ROW_W2 + HIDDEN   # 320
SLAB_ROWS = 328              # padded to a multiple of 8


def _mm(a, b):
    return jnp.dot(a, b, preferred_element_type=jnp.float32,
                   precision=jax.lax.Precision.HIGHEST)


# ---------------- fused kernel: conv3x3 + ReLU + GAP + MLP + L2 normalize ----------------
def fused_forward_kernel(x_ref, slab_ref, out_ref):
    # x_ref   : (B, C_IN, H, W)  raw NCHW input, whole array resident in VMEM
    # slab_ref: (SLAB_ROWS, 128) packed parameter/operator slab (built at init)
    # out_ref : (B, PROJ)        normalized projections, one full-tile store

    # --- static slices of the packed slab (no per-call weight relayout) ---
    l0 = slab_ref[0:RH, 0:CK]                    # (128, 64) banded conv op, kw=0
    l1 = slab_ref[0:RH, CK:2 * CK]               # (128, 64) banded conv op, kw=1
    l2 = slab_ref[RH:2 * RH, 0:CK]               # (128, 64) banded conv op, kw=2
    brow = slab_ref[RH:2 * RH, CK:CK + 1]        # (128, 1)  conv bias per (co, h) row
    s0 = slab_ref[ROW_S:ROW_S + W, 0:W]          # (16, 16)  lane shift  w-1
    s2 = slab_ref[ROW_S:ROW_S + W, W:2 * W]      # (16, 16)  lane shift  w+1
    onesw = slab_ref[ROW_S:ROW_S + W, 2 * W:2 * W + 1]       # (16, 1) ones
    gmat = slab_ref[ROW_G:ROW_G + C_OUT, 0:RH]                # (8, 128) GAP selector / (H*W)
    w1 = slab_ref[ROW_W1:ROW_W1 + C_OUT, 0:HIDDEN]            # (8, 32)
    w2 = slab_ref[ROW_W2:ROW_W2 + HIDDEN, 0:PROJ]             # (32, 16)
    b1 = slab_ref[ROW_BIAS:ROW_BIAS + 1, 0:HIDDEN]            # (1, 32)
    b2 = slab_ref[ROW_BIAS:ROW_BIAS + 1, HIDDEN:HIDDEN + PROJ]  # (1, 16)

    x = x_ref[...]                               # (B, C_IN, H, W)

    feat_cols = []
    for b in range(B):                           # B = 2, unrolled
        # Free view of the NCHW slab: rows = c*H + h, lanes = w (no relayout).
        xb = x[b].reshape(CK, W)                 # (64, 16)
        # Conv: (kh, c_in) contraction + h zero-padding are baked into l_kw.
        z0 = _mm(l0, xb)                         # (128, 16)
        z1 = _mm(l1, xb)
        z2 = _mm(l2, xb)
        # kw shifts (+ w zero-padding) via banded 16x16 matrices on the MXU.
        conv = _mm(z0, s0) + z1 + _mm(z2, s2)    # rows co*H + h, lanes w
        act = jnp.maximum(conv + brow, 0.0)      # bias + ReLU
        # Global average pool on the MXU: sum lanes (w), then select/scale rows.
        feat_cols.append(_mm(gmat, _mm(act, onesw)))   # (C_OUT, 1)

    featT = jnp.concatenate(feat_cols, axis=1)   # (C_OUT, B)
    feat = jnp.transpose(featT)                  # (B, C_OUT)  -- 16-value relayout

    # --- projection MLP ---
    h1 = jnp.maximum(_mm(feat, w1) + b1, 0.0)    # (B, HIDDEN)
    p = _mm(h1, w2) + b2                         # (B, PROJ)

    # --- L2 normalize: p * rsqrt(max(||p||^2, EPS^2)) == p / max(||p||, EPS) ---
    n2 = jnp.sum(p * p, axis=1, keepdims=True)
    out_ref[...] = p * jax.lax.rsqrt(jnp.maximum(n2, EPS * EPS))


# ---------------- init-time parameter packing (outside the jitted hot path) ----------------
def build_param_slab(params):
    """Pack all parameters (+ structured conv/pool operators) into one
    lane-dense (SLAB_ROWS, 128) f32 slab.  Runs once, host side."""
    wc = np.asarray(params["conv_w"], np.float32)   # (KH, KW, C_IN, C_OUT)  HWIO
    bc = np.asarray(params["conv_b"], np.float32).reshape(-1)
    w1 = np.asarray(params["w1"], np.float32)
    b1 = np.asarray(params["b1"], np.float32).reshape(-1)
    w2 = np.asarray(params["w2"], np.float32)
    b2 = np.asarray(params["b2"], np.float32).reshape(-1)

    # Banded conv operators: L[kw, co*H + h, c*H + h'] = wc[h'-h+1, kw, c, co]
    # (h' outside [0, H) falls off the band -> implicit SAME zero padding in h).
    L = np.zeros((KW, RH, CK), np.float32)
    for kw in range(KW):
        for kh in range(KH):
            for h in range(H):
                hp = h + kh - 1
                if 0 <= hp < H:
                    L[kw, h::H, hp::H] = wc[kh, kw].T       # (C_OUT, C_IN) block

    # Lane shift matrices for the kw direction (implicit SAME zero padding in w).
    s0 = np.eye(W, k=1, dtype=np.float32)    # picks Z0[:, w-1]
    s2 = np.eye(W, k=-1, dtype=np.float32)   # picks Z2[:, w+1]

    # Global-average-pool row selector (includes the 1/(H*W) scale).
    gmat = np.zeros((C_OUT, RH), np.float32)
    for co in range(C_OUT):
        gmat[co, co * H:(co + 1) * H] = 1.0 / (H * W)

    slab = np.zeros((SLAB_ROWS, 128), np.float32)
    slab[0:RH, 0:CK] = L[0]
    slab[0:RH, CK:2 * CK] = L[1]
    slab[RH:2 * RH, 0:CK] = L[2]
    slab[RH:2 * RH, CK] = np.repeat(bc, H)       # conv bias per (co, h) row
    slab[ROW_S:ROW_S + W, 0:W] = s0
    slab[ROW_S:ROW_S + W, W:2 * W] = s2
    slab[ROW_S:ROW_S + W, 2 * W] = 1.0           # ones column (w-sum)
    slab[ROW_G:ROW_G + C_OUT, 0:RH] = gmat
    slab[ROW_W1:ROW_W1 + C_OUT, 0:HIDDEN] = w1
    slab[ROW_W2:ROW_W2 + HIDDEN, 0:PROJ] = w2
    slab[ROW_BIAS, 0:HIDDEN] = b1
    slab[ROW_BIAS, HIDDEN:HIDDEN + PROJ] = b2
    return jnp.asarray(slab)


# ---------------- wrapper ----------------
@jax.jit
def contrastive_forward(x_nchw, slab):
    # One pallas_call, empty grid, all operands whole-array resident in VMEM.
    # The wrapper issues no other device ops (the unsqueeze below is a bitcast).
    # TODO(synk): on v7x with large batches, add a leading "parallel" batch
    # grid axis so both TensorCores are used.
    proj = pl.pallas_call(
        fused_forward_kernel,
        out_shape=jax.ShapeDtypeStruct((B, PROJ), jnp.float32),
        in_specs=[pl.BlockSpec(memory_space=pltpu.MemorySpace.VMEM),
                  pl.BlockSpec(memory_space=pltpu.MemorySpace.VMEM)],
        out_specs=pl.BlockSpec(memory_space=pltpu.MemorySpace.VMEM),
    )(x_nchw, slab)
    return proj[:, None, :]                      # unsqueeze(1)


# ---------------- pure-JAX reference for correctness ----------------
def reference(x_nchw, params):
    hi = jax.lax.Precision.HIGHEST
    x = jnp.transpose(x_nchw, (0, 2, 3, 1))
    y = jax.lax.conv_general_dilated(
        x, params["conv_w"], window_strides=(1, 1), padding="SAME",
        dimension_numbers=("NHWC", "HWIO", "NHWC"), precision=hi)
    y = jnp.maximum(y + params["conv_b"].reshape(1, 1, 1, -1), 0.0)
    feat = jnp.mean(y, axis=(1, 2))
    h = jnp.maximum(jnp.dot(feat, params["w1"], precision=hi)
                    + params["b1"].reshape(-1), 0.0)
    p = jnp.dot(h, params["w2"], precision=hi) + params["b2"].reshape(-1)
    n = jnp.maximum(jnp.linalg.norm(p, axis=1, keepdims=True), EPS)
    return (p / n)[:, None, :]


def make_params(key):
    ks = jax.random.split(key, 5)
    return {
        "conv_w": jax.random.normal(ks[0], (KH, KW, C_IN, C_OUT), jnp.float32)
                  * (2.0 / (KH * KW * C_IN)) ** 0.5,
        "conv_b": jax.random.normal(ks[1], (1, C_OUT), jnp.float32) * 0.01,
        "w1": jax.random.normal(ks[2], (C_OUT, HIDDEN), jnp.float32)
              * (2.0 / C_OUT) ** 0.5,
        "b1": jnp.zeros((1, HIDDEN), jnp.float32),
        "w2": jax.random.normal(ks[3], (HIDDEN, PROJ), jnp.float32)
              * (2.0 / HIDDEN) ** 0.5,
        "b2": jnp.zeros((1, PROJ), jnp.float32),
    }


if __name__ == "__main__":
    key = jax.random.PRNGKey(0)
    kx, kp = jax.random.split(key)
    x = jax.random.normal(kx, (B, C_IN, H, W), jnp.float32)   # PyTorch NCHW input
    params = make_params(kp)
    slab = build_param_slab(params)                            # once, outside jit

    out = jax.block_until_ready(contrastive_forward(x, slab))
    ref = jax.block_until_ready(reference(x, params))

    assert out.shape == (B, 1, PROJ), out.shape
    assert jnp.allclose(out, ref, rtol=1e-4, atol=1e-4), "mismatch vs reference"
    # rows are unit-norm
    assert jnp.allclose(jnp.linalg.norm(out[:, 0, :], axis=1),
                        jnp.ones((B,)), atol=1e-5)
    print("KERNEL_OK")
</pallas_src>

<mosaic_0001>
module attributes {stable_mosaic.version = 11 : i64} {
  func.func @fused_forward_kernel(%arg0: memref<2x4x16x16xf32, #tpu.memory_space<vmem>>, %arg1: memref<328x128xf32, #tpu.memory_space<vmem>>, %arg2: memref<2x16xf32, #tpu.memory_space<vmem>>) attributes {dimension_semantics = [], scalar_prefetch = 0 : i64, scratch_operands = 0 : i64, tpu.core_type = #tpu.core_type<tc>} {
    %c0 = arith.constant 0 : index
    %c0_0 = arith.constant 0 : index
    %0 = vector.load %arg1[%c0, %c0_0] : memref<328x128xf32, #tpu.memory_space<vmem>>, vector<128x64xf32>
    %c0_1 = arith.constant 0 : index
    %c64 = arith.constant 64 : index
    %1 = vector.load %arg1[%c0_1, %c64] : memref<328x128xf32, #tpu.memory_space<vmem>>, vector<128x64xf32>
    %c128 = arith.constant 128 : index
    %c0_2 = arith.constant 0 : index
    %2 = vector.load %arg1[%c128, %c0_2] : memref<328x128xf32, #tpu.memory_space<vmem>>, vector<128x64xf32>
    %c128_3 = arith.constant 128 : index
    %c64_4 = arith.constant 64 : index
    %3 = vector.load %arg1[%c128_3, %c64_4] : memref<328x128xf32, #tpu.memory_space<vmem>>, vector<128x1xf32>
    %c256 = arith.constant 256 : index
    %c0_5 = arith.constant 0 : index
    %4 = vector.load %arg1[%c256, %c0_5] : memref<328x128xf32, #tpu.memory_space<vmem>>, vector<16x16xf32>
    %c256_6 = arith.constant 256 : index
    %c16 = arith.constant 16 : index
    %5 = vector.load %arg1[%c256_6, %c16] : memref<328x128xf32, #tpu.memory_space<vmem>>, vector<16x16xf32>
    %c256_7 = arith.constant 256 : index
    %c32 = arith.constant 32 : index
    %6 = vector.load %arg1[%c256_7, %c32] : memref<328x128xf32, #tpu.memory_space<vmem>>, vector<16x1xf32>
    %c272 = arith.constant 272 : index
    %c0_8 = arith.constant 0 : index
    %7 = vector.load %arg1[%c272, %c0_8] : memref<328x128xf32, #tpu.memory_space<vmem>>, vector<8x128xf32>
    %c280 = arith.constant 280 : index
    %c0_9 = arith.constant 0 : index
    %8 = vector.load %arg1[%c280, %c0_9] : memref<328x128xf32, #tpu.memory_space<vmem>>, vector<8x32xf32>
    %c288 = arith.constant 288 : index
    %c0_10 = arith.constant 0 : index
    %9 = vector.load %arg1[%c288, %c0_10] : memref<328x128xf32, #tpu.memory_space<vmem>>, vector<32x16xf32>
    %c320 = arith.constant 320 : index
    %c0_11 = arith.constant 0 : index
    %10 = vector.load %arg1[%c320, %c0_11] : memref<328x128xf32, #tpu.memory_space<vmem>>, vector<1x32xf32>
    %c320_12 = arith.constant 320 : index
    %c32_13 = arith.constant 32 : index
    %11 = vector.load %arg1[%c320_12, %c32_13] : memref<328x128xf32, #tpu.memory_space<vmem>>, vector<1x16xf32>
    %c0_14 = arith.constant 0 : index
    %c0_15 = arith.constant 0 : index
    %c0_16 = arith.constant 0 : index
    %c0_17 = arith.constant 0 : index
    %12 = vector.load %arg0[%c0_14, %c0_15, %c0_16, %c0_17] : memref<2x4x16x16xf32, #tpu.memory_space<vmem>>, vector<2x4x16x16xf32>
    %13 = vector.extract_strided_slice %12 {offsets = [0, 0, 0, 0], sizes = [1, 4, 16, 16], strides = [1, 1, 1, 1]} : vector<2x4x16x16xf32> to vector<1x4x16x16xf32>
    %14 = vector.shape_cast %13 : vector<1x4x16x16xf32> to vector<4x16x16xf32>
    %15 = vector.shape_cast %14 : vector<4x16x16xf32> to vector<64x16xf32>
    %cst = arith.constant dense<0.000000e+00> : vector<128x16xf32>
    %16 = tpu.matmul %0, %15, %cst {dimension_numbers = #tpu.dot_dimension_numbers<[1], [0], [0], [1], [0, 0, 1, 1], [], []>, precision = #tpu.contract_precision<fp32>} : vector<128x64xf32>, vector<64x16xf32>, vector<128x16xf32> -> vector<128x16xf32>
    %cst_18 = arith.constant dense<0.000000e+00> : vector<128x16xf32>
    %17 = tpu.matmul %1, %15, %cst_18 {dimension_numbers = #tpu.dot_dimension_numbers<[1], [0], [0], [1], [0, 0, 1, 1], [], []>, precision = #tpu.contract_precision<fp32>} : vector<128x64xf32>, vector<64x16xf32>, vector<128x16xf32> -> vector<128x16xf32>
    %cst_19 = arith.constant dense<0.000000e+00> : vector<128x16xf32>
    %18 = tpu.matmul %2, %15, %cst_19 {dimension_numbers = #tpu.dot_dimension_numbers<[1], [0], [0], [1], [0, 0, 1, 1], [], []>, precision = #tpu.contract_precision<fp32>} : vector<128x64xf32>, vector<64x16xf32>, vector<128x16xf32> -> vector<128x16xf32>
    %cst_20 = arith.constant dense<0.000000e+00> : vector<128x16xf32>
    %19 = tpu.matmul %16, %4, %cst_20 {dimension_numbers = #tpu.dot_dimension_numbers<[1], [0], [0], [1], [0, 0, 1, 1], [], []>, precision = #tpu.contract_precision<fp32>} : vector<128x16xf32>, vector<16x16xf32>, vector<128x16xf32> -> vector<128x16xf32>
    %20 = arith.addf %19, %17 : vector<128x16xf32>
    %cst_21 = arith.constant dense<0.000000e+00> : vector<128x16xf32>
    %21 = tpu.matmul %18, %5, %cst_21 {dimension_numbers = #tpu.dot_dimension_numbers<[1], [0], [0], [1], [0, 0, 1, 1], [], []>, precision = #tpu.contract_precision<fp32>} : vector<128x16xf32>, vector<16x16xf32>, vector<128x16xf32> -> vector<128x16xf32>
    %22 = arith.addf %20, %21 : vector<128x16xf32>
    %23 = vector.broadcast %3 : vector<128x1xf32> to vector<128x16xf32>
    %24 = arith.addf %22, %23 : vector<128x16xf32>
    %cst_22 = arith.constant 0.000000e+00 : f32
    %25 = vector.broadcast %cst_22 : f32 to vector<128x16xf32>
    %26 = arith.maximumf %24, %25 : vector<128x16xf32>
    %cst_23 = arith.constant dense<0.000000e+00> : vector<128x1xf32>
    %27 = tpu.matmul %26, %6, %cst_23 {dimension_numbers = #tpu.dot_dimension_numbers<[1], [0], [0], [1], [0, 0, 1, 1], [], []>, precision = #tpu.contract_precision<fp32>} : vector<128x16xf32>, vector<16x1xf32>, vector<128x1xf32> -> vector<128x1xf32>
    %cst_24 = arith.constant dense<0.000000e+00> : vector<8x1xf32>
    %28 = tpu.matmul %7, %27, %cst_24 {dimension_numbers = #tpu.dot_dimension_numbers<[1], [0], [0], [1], [0, 0, 1, 1], [], []>, precision = #tpu.contract_precision<fp32>} : vector<8x128xf32>, vector<128x1xf32>, vector<8x1xf32> -> vector<8x1xf32>
    %29 = vector.extract_strided_slice %12 {offsets = [1, 0, 0, 0], sizes = [1, 4, 16, 16], strides = [1, 1, 1, 1]} : vector<2x4x16x16xf32> to vector<1x4x16x16xf32>
    %30 = vector.shape_cast %29 : vector<1x4x16x16xf32> to vector<4x16x16xf32>
    %31 = vector.shape_cast %30 : vector<4x16x16xf32> to vector<64x16xf32>
    %cst_25 = arith.constant dense<0.000000e+00> : vector<128x16xf32>
    %32 = tpu.matmul %0, %31, %cst_25 {dimension_numbers = #tpu.dot_dimension_numbers<[1], [0], [0], [1], [0, 0, 1, 1], [], []>, precision = #tpu.contract_precision<fp32>} : vector<128x64xf32>, vector<64x16xf32>, vector<128x16xf32> -> vector<128x16xf32>
    %cst_26 = arith.constant dense<0.000000e+00> : vector<128x16xf32>
    %33 = tpu.matmul %1, %31, %cst_26 {dimension_numbers = #tpu.dot_dimension_numbers<[1], [0], [0], [1], [0, 0, 1, 1], [], []>, precision = #tpu.contract_precision<fp32>} : vector<128x64xf32>, vector<64x16xf32>, vector<128x16xf32> -> vector<128x16xf32>
    %cst_27 = arith.constant dense<0.000000e+00> : vector<128x16xf32>
    %34 = tpu.matmul %2, %31, %cst_27 {dimension_numbers = #tpu.dot_dimension_numbers<[1], [0], [0], [1], [0, 0, 1, 1], [], []>, precision = #tpu.contract_precision<fp32>} : vector<128x64xf32>, vector<64x16xf32>, vector<128x16xf32> -> vector<128x16xf32>
    %cst_28 = arith.constant dense<0.000000e+00> : vector<128x16xf32>
    %35 = tpu.matmul %32, %4, %cst_28 {dimension_numbers = #tpu.dot_dimension_numbers<[1], [0], [0], [1], [0, 0, 1, 1], [], []>, precision = #tpu.contract_precision<fp32>} : vector<128x16xf32>, vector<16x16xf32>, vector<128x16xf32> -> vector<128x16xf32>
    %36 = arith.addf %35, %33 : vector<128x16xf32>
    %cst_29 = arith.constant dense<0.000000e+00> : vector<128x16xf32>
    %37 = tpu.matmul %34, %5, %cst_29 {dimension_numbers = #tpu.dot_dimension_numbers<[1], [0], [0], [1], [0, 0, 1, 1], [], []>, precision = #tpu.contract_precision<fp32>} : vector<128x16xf32>, vector<16x16xf32>, vector<128x16xf32> -> vector<128x16xf32>
    %38 = arith.addf %36, %37 : vector<128x16xf32>
    %39 = vector.broadcast %3 : vector<128x1xf32> to vector<128x16xf32>
    %40 = arith.addf %38, %39 : vector<128x16xf32>
    %cst_30 = arith.constant 0.000000e+00 : f32
    %41 = vector.broadcast %cst_30 : f32 to vector<128x16xf32>
    %42 = arith.maximumf %40, %41 : vector<128x16xf32>
    %cst_31 = arith.constant dense<0.000000e+00> : vector<128x1xf32>
    %43 = tpu.matmul %42, %6, %cst_31 {dimension_numbers = #tpu.dot_dimension_numbers<[1], [0], [0], [1], [0, 0, 1, 1], [], []>, precision = #tpu.contract_precision<fp32>} : vector<128x16xf32>, vector<16x1xf32>, vector<128x1xf32> -> vector<128x1xf32>
    %cst_32 = arith.constant dense<0.000000e+00> : vector<8x1xf32>
    %44 = tpu.matmul %7, %43, %cst_32 {dimension_numbers = #tpu.dot_dimension_numbers<[1], [0], [0], [1], [0, 0, 1, 1], [], []>, precision = #tpu.contract_precision<fp32>} : vector<8x128xf32>, vector<128x1xf32>, vector<8x1xf32> -> vector<8x1xf32>
    %45 = tpu.concatenate %28, %44 in 1 : vector<8x1xf32>, vector<8x1xf32> -> vector<8x2xf32>
    %46 = tpu.transpose %45, [1, 0] : vector<8x2xf32> -> vector<2x8xf32>
    %cst_33 = arith.constant dense<0.000000e+00> : vector<2x32xf32>
    %47 = tpu.matmul %46, %8, %cst_33 {dimension_numbers = #tpu.dot_dimension_numbers<[1], [0], [0], [1], [0, 0, 1, 1], [], []>, precision = #tpu.contract_precision<fp32>} : vector<2x8xf32>, vector<8x32xf32>, vector<2x32xf32> -> vector<2x32xf32>
    %48 = vector.broadcast %10 : vector<1x32xf32> to vector<2x32xf32>
    %49 = arith.addf %47, %48 : vector<2x32xf32>
    %cst_34 = arith.constant 0.000000e+00 : f32
    %50 = vector.broadcast %cst_34 : f32 to vector<2x32xf32>
    %51 = arith.maximumf %49, %50 : vector<2x32xf32>
    %cst_35 = arith.constant dense<0.000000e+00> : vector<2x16xf32>
    %52 = tpu.matmul %51, %9, %cst_35 {dimension_numbers = #tpu.dot_dimension_numbers<[1], [0], [0], [1], [0, 0, 1, 1], [], []>, precision = #tpu.contract_precision<fp32>} : vector<2x32xf32>, vector<32x16xf32>, vector<2x16xf32> -> vector<2x16xf32>
    %53 = vector.broadcast %11 : vector<1x16xf32> to vector<2x16xf32>
    %54 = arith.addf %52, %53 : vector<2x16xf32>
    %55 = arith.mulf %54, %54 : vector<2x16xf32>
    %cst_36 = arith.constant dense<0.000000e+00> : vector<2xf32>
    %56 = vector.multi_reduction <add>, %55, %cst_36 [1] : vector<2x16xf32> to vector<2xf32>
    %57 = vector.shape_cast %56 : vector<2xf32> to vector<2x1xf32>
    %cst_37 = arith.constant 1.000000e-24 : f32
    %58 = vector.broadcast %cst_37 : f32 to vector<2x1xf32>
    %59 = arith.maximumf %57, %58 : vector<2x1xf32>
    %60 = math.rsqrt %59 : vector<2x1xf32>
    %61 = vector.broadcast %60 : vector<2x1xf32> to vector<2x16xf32>
    %62 = arith.mulf %54, %61 : vector<2x16xf32>
    %c0_38 = arith.constant 0 : index
    %c0_39 = arith.constant 0 : index
    %63 = vector.load %arg2[%c0_38, %c0_39] : memref<2x16xf32, #tpu.memory_space<vmem>>, vector<2x16xf32>
    tpu.vector_store %arg2[%c0_38, %c0_39], %62 {strides = array<i32>} : memref<2x16xf32, #tpu.memory_space<vmem>>, vector<2x16xf32>,
    return
  }
}

</mosaic_0001>

<llo_original>
// kernel: contrastive_forward.1
$region0: #{contrastive_forward.1}
  #allocation0 [shape = 'u32[]', space=smem, size = 0x4, offset = 0x4, fixed_abs, tag = 'smem constant byte address 0x4 - core index']
  #allocation1 [shape = 'u32[72,128]{1,0:T(1,128)}', space=vmem, size = 0x9000, scoped, tag = 'internal scratch']
  %s0 = inlined_call_operand.hbm [shape: f32[2,4,16,16], index: 0, kind: input, shape index: {}]
  %s1 = inlined_call_operand.hbm [shape: f32[328,128], index: 1, kind: input, shape index: {}]
  %s2 = inlined_call_operand.hbm [shape: f32[2,16], index: 2, kind: output, shape index: {}]
  %s3 = sld [smem:[#allocation0]]
  $region26: #{contrastive_forward.1} parent=0
    _
  %s5 = ssub.s32 1, %s3
  %s6 = scalar_select 0, %s5, %s3
  $region1: #{contrastive_forward.1} parent=0
    #allocation2 [shape = 'u8[65536]{0}', space=vmem, size = 0x10000, scoped, tag = 'input window, operand 0, single buffered']
    #allocation3 [shape = 's32[1]{0}', space=sflag, size = 0x4, scoped, tag = 'scoped memory for contrastive_forward.1']
    #allocation4 [shape = 's32[1]{0}', space=sflag, size = 0x4, scoped, tag = 'scoped memory for contrastive_forward.1']
    #allocation5 [shape = 'u8[167936]{0}', space=vmem, size = 0x29000, scoped, tag = 'input window, operand 1, single buffered']
    #allocation6 [shape = 's32[1]{0}', space=sflag, size = 0x4, scoped, tag = 'scoped memory for contrastive_forward.1']
    #allocation7 [shape = 'u8[1024]{0}', space=vmem, size = 0x400, scoped, tag = 'output window, operand 0, single buffered']
    %7 = vsyncpa [#allocation3], 0
    %8 = vsyncpa [#allocation6], 0
    %9 = vsyncpa [#allocation4], 0
    // Predicated region
    $region2: #{contrastive_forward.1} parent=1 // pred_check
      _
    $region3: #{contrastive_forward.1} parent=1 // pred_check_branch
      %11 = sbr.rel (0) target = $region5
    $region4: #{contrastive_forward.1} parent=1 // pred_region
      %13 = vsyncadd [#allocation3], 0
      %s14 = sshll.u32 %s0, 4
      %s15 = int_to_ptr.hbm [resolvable:$true] %s14
      %s16 = sshll.u32 [#allocation2], 4
      %s17 = int_to_ptr.vmem [resolvable:$true] %s16
      %22 = dma.hbm_to_vmem [thread:$0]  %s15, 2048, %s17, [#allocation3], 128, 128, 8
    $region5: #{contrastive_forward.1} parent=1 // pred_fallthru
      _
    // Predicated region
    $region6: #{contrastive_forward.1} parent=1 // pred_check
      _
    $region7: #{contrastive_forward.1} parent=1 // pred_check_branch
      %24 = sbr.rel (0) target = $region9
    $region8: #{contrastive_forward.1} parent=1 // pred_region
      %26 = vsyncadd [#allocation6], 0
      %s27 = sshll.u32 %s1, 4
      %s28 = int_to_ptr.hbm [resolvable:$true] %s27
      %s29 = sshll.u32 [#allocation5], 4
      %s30 = int_to_ptr.vmem [resolvable:$true] %s29
      %35 = dma.hbm_to_vmem [thread:$0]  %s28, 5248, %s30, [#allocation6], 128, 128, 8
    $region9: #{contrastive_forward.1} parent=1 // pred_fallthru
      _
    // Predicated region
    $region10: #{contrastive_forward.1} parent=1 // pred_check
      _
    $region11: #{contrastive_forward.1} parent=1 // pred_check_branch
      %37 = sbr.rel (0) target = $region13
    $region12: #{contrastive_forward.1} parent=1 // pred_region
      %39 = dma.done [#allocation3], 2048
    $region13: #{contrastive_forward.1} parent=1 // pred_fallthru
      _
    // Predicated region
    $region14: #{contrastive_forward.1} parent=1 // pred_check
      _
    $region15: #{contrastive_forward.1} parent=1 // pred_check_branch
      %41 = sbr.rel (0) target = $region17
    $region16: #{contrastive_forward.1} parent=1 // pred_region
      %43 = dma.done [#allocation6], 5248
    $region17: #{contrastive_forward.1} parent=1 // pred_fallthru
      _
    %v44 = vld [vmem:[#allocation5] sm:$0xff]
    %v45 = vld [vmem:[#allocation5 + $0x8] sm:$0xff]
    %v46 = vld [vmem:[#allocation5 + $0x10] sm:$0xff]
    %v47 = vld [vmem:[#allocation5 + $0x18] sm:$0xff]
    %v48 = vld [vmem:[#allocation5 + $0x20] sm:$0xff]
    %v49 = vld [vmem:[#allocation5 + $0x28] sm:$0xff]
    %v50 = vld [vmem:[#allocation5 + $0x30] sm:$0xff]
    %v51 = vld [vmem:[#allocation5 + $0x38] sm:$0xff]
    %v52 = vld [vmem:[#allocation5 + $0x40] sm:$0xff]
    %v53 = vld [vmem:[#allocation5 + $0x48] sm:$0xff]
    %v54 = vld [vmem:[#allocation5 + $0x50] sm:$0xff]
    %v55 = vld [vmem:[#allocation5 + $0x58] sm:$0xff]
    %v56 = vld [vmem:[#allocation5 + $0x60] sm:$0xff]
    %v57 = vld [vmem:[#allocation5 + $0x68] sm:$0xff]
    %v58 = vld [vmem:[#allocation5 + $0x70] sm:$0xff]
    %v59 = vld [vmem:[#allocation5 + $0x78] sm:$0xff]
    %v60 = vld [vmem:[#allocation5 + $0x80] sm:$0xff]
    %v61 = vld [vmem:[#allocation5 + $0x88] sm:$0xff]
    %v62 = vld [vmem:[#allocation5 + $0x90] sm:$0xff]
    %v63 = vld [vmem:[#allocation5 + $0x98] sm:$0xff]
    %v64 = vld [vmem:[#allocation5 + $0xa0] sm:$0xff]
    %v65 = vld [vmem:[#allocation5 + $0xa8] sm:$0xff]
    %v66 = vld [vmem:[#allocation5 + $0xb0] sm:$0xff]
    %v67 = vld [vmem:[#allocation5 + $0xb8] sm:$0xff]
    %v68 = vld [vmem:[#allocation5 + $0xc0] sm:$0xff]
    %v69 = vld [vmem:[#allocation5 + $0xc8] sm:$0xff]
    %v70 = vld [vmem:[#allocation5 + $0xd0] sm:$0xff]
    %v71 = vld [vmem:[#allocation5 + $0xd8] sm:$0xff]
    %v72 = vld [vmem:[#allocation5 + $0xe0] sm:$0xff]
    %v73 = vld [vmem:[#allocation5 + $0xe8] sm:$0xff]
    %v74 = vld [vmem:[#allocation5 + $0xf0] sm:$0xff]
    %v75 = vld [vmem:[#allocation5 + $0xf8] sm:$0xff]
    %v76 = vld [vmem:[#allocation5 + $0x100] sm:$0xff]
    %v77 = vld [vmem:[#allocation5 + $0x108] sm:$0xff]
    %v78 = vld [vmem:[#allocation5 + $0x110] sm:$0xff]
    %v79 = vld [vmem:[#allocation5 + $0x118] sm:$0xff]
    %v80 = vld [vmem:[#allocation5 + $0x120] sm:$0xff]
    %v81 = vld [vmem:[#allocation5 + $0x128] sm:$0xff]
    %v82 = vld [vmem:[#allocation5 + $0x130] sm:$0xff]
    %v83 = vld [vmem:[#allocation5 + $0x138] sm:$0xff]
    %v84 = vld [vmem:[#allocation5 + $0x140] sm:$0x1]
    %v85 = vld [vmem:[#allocation2] sm:$0xff]
    %v86 = vld [vmem:[#allocation2 + $0x8] sm:$0xff]
    %v87 = vld [vmem:[#allocation2 + $0x10] sm:$0xff]
    %v88 = vld [vmem:[#allocation2 + $0x18] sm:$0xff]
    %v89 = vld [vmem:[#allocation2 + $0x20] sm:$0xff]
    %v90 = vld [vmem:[#allocation2 + $0x28] sm:$0xff]
    %v91 = vld [vmem:[#allocation2 + $0x30] sm:$0xff]
    %v92 = vld [vmem:[#allocation2 + $0x38] sm:$0xff]
    %v93 = vld [vmem:[#allocation2 + $0x40] sm:$0xff]
    %v94 = vld [vmem:[#allocation2 + $0x48] sm:$0xff]
    %v95 = vld [vmem:[#allocation2 + $0x50] sm:$0xff]
    %v96 = vld [vmem:[#allocation2 + $0x58] sm:$0xff]
    %v97 = vld [vmem:[#allocation2 + $0x60] sm:$0xff]
    %v98 = vld [vmem:[#allocation2 + $0x68] sm:$0xff]
    %v99 = vld [vmem:[#allocation2 + $0x70] sm:$0xff]
    %v100 = vld [vmem:[#allocation2 + $0x78] sm:$0xff]
    %vm101 = vcmask 523264
    %v103 = vsel %vm101, %v44, 0
    %v106 = vsel %vm101, %v45, 0
    %v109 = vsel %vm101, %v46, 0
    %v112 = vsel %vm101, %v47, 0
    %v115 = vsel %vm101, %v48, 0
    %v118 = vsel %vm101, %v49, 0
    %v121 = vsel %vm101, %v50, 0
    %v124 = vsel %vm101, %v51, 0
    %v127 = vsel %vm101, %v52, 0
    %v130 = vsel %vm101, %v53, 0
    %v133 = vsel %vm101, %v54, 0
    %v136 = vsel %vm101, %v55, 0
    %v139 = vsel %vm101, %v56, 0
    %v142 = vsel %vm101, %v57, 0
    %v145 = vsel %vm101, %v58, 0
    %v148 = vsel %vm101, %v59, 0
    %150 = vmatpush.msra.mxu0 0.0
    %151 = vmatpush.msra.mxu0 0.0
    %152 = vmatpush.msra.mxu0 0.0
    %153 = vmatpush.msra.mxu0 0.0
    %154 = vmatpush.msra.mxu0 0.0
    %155 = vmatpush.msra.mxu0 0.0
    %156 = vmatpush.msra.mxu0 0.0
    %157 = vmatpush.msra.mxu0 0.0
    %v158 = vand.u32 %v92, 4294901760
    %159 = vmatpush.msra.mxu0 %v158
    %v160 = vand.u32 %v91, 4294901760
    %161 = vmatpush.msra.mxu0 %v160
    %v162 = vand.u32 %v90, 4294901760
    %163 = vmatpush.msra.mxu0 %v162
    %v164 = vand.u32 %v89, 4294901760
    %165 = vmatpush.msra.mxu0 %v164
    %v166 = vand.u32 %v88, 4294901760
    %167 = vmatpush.msra.mxu0 %v166
    %v168 = vand.u32 %v87, 4294901760
    %169 = vmatpush.msra.mxu0 %v168
    %v170 = vand.u32 %v86, 4294901760
    %171 = vmatpush.msra.mxu0 %v170
    %v172 = vand.u32 %v85, 4294901760
    %173 = vmatpush.msra.mxu0 %v172
    %v174 = vand.u32 %v103, 4294901760
    %v175 = vsub.f32 %v103, %v174
    %v176 = vand.u32 %v175, 4294901760
    %v177 = vsub.f32 %v175, %v176
    %v178 = vand.u32 %v177, 4294901760
    %179 = vmatmul.f32.gmra.mxu0 %v178
    %v180 = vpop.f32.mrf.mxu0
    %v181 = vadd.f32 0.0, %v180
    %v182 = vand.u32 %v106, 4294901760
    %v183 = vsub.f32 %v106, %v182
    %v184 = vand.u32 %v183, 4294901760
    %v185 = vsub.f32 %v183, %v184
    %v186 = vand.u32 %v185, 4294901760
    %187 = vmatmul.f32.gmra.mxu0 %v186
    %v188 = vpop.f32.mrf.mxu0
    %v189 = vadd.f32 0.0, %v188
    %v190 = vand.u32 %v109, 4294901760
    %v191 = vsub.f32 %v109, %v190
    %v192 = vand.u32 %v191, 4294901760
    %v193 = vsub.f32 %v191, %v192
    %v194 = vand.u32 %v193, 4294901760
    %195 = vmatmul.f32.gmra.mxu0 %v194
    %v196 = vpop.f32.mrf.mxu0
    %v197 = vadd.f32 0.0, %v196
    %v198 = vand.u32 %v112, 4294901760
    %v199 = vsub.f32 %v112, %v198
    %v200 = vand.u32 %v199, 4294901760
    %v201 = vsub.f32 %v199, %v200
    %v202 = vand.u32 %v201, 4294901760
    %203 = vmatmul.f32.gmra.mxu0 %v202
    %v204 = vpop.f32.mrf.mxu0
    %v205 = vadd.f32 0.0, %v204
    %v206 = vand.u32 %v115, 4294901760
    %v207 = vsub.f32 %v115, %v206
    %v208 = vand.u32 %v207, 4294901760
    %v209 = vsub.f32 %v207, %v208
    %v210 = vand.u32 %v209, 4294901760
    %211 = vmatmul.f32.gmra.mxu0 %v210
    %v212 = vpop.f32.mrf.mxu0
    %v213 = vadd.f32 0.0, %v212
    %v214 = vand.u32 %v118, 4294901760
    %v215 = vsub.f32 %v118, %v214
    %v216 = vand.u32 %v215, 4294901760
    %v217 = vsub.f32 %v215, %v216
    %v218 = vand.u32 %v217, 4294901760
    %219 = vmatmul.f32.gmra.mxu0 %v218
    %v220 = vpop.f32.mrf.mxu0
    %v221 = vadd.f32 0.0, %v220
    %v222 = vand.u32 %v121, 4294901760
    %v223 = vsub.f32 %v121, %v222
    %v224 = vand.u32 %v223, 4294901760
    %v225 = vsub.f32 %v223, %v224
    %v226 = vand.u32 %v225, 4294901760
    %227 = vmatmul.f32.gmra.mxu0 %v226
    %v228 = vpop.f32.mrf.mxu0
    %v229 = vadd.f32 0.0, %v228
    %v230 = vand.u32 %v124, 4294901760
    %v231 = vsub.f32 %v124, %v230
    %v232 = vand.u32 %v231, 4294901760
    %v233 = vsub.f32 %v231, %v232
    %v234 = vand.u32 %v233, 4294901760
    %235 = vmatmul.f32.gmra.mxu0 %v234
    %v236 = vpop.f32.mrf.mxu0
    %v237 = vadd.f32 0.0, %v236
    %v238 = vand.u32 %v127, 4294901760
    %v239 = vsub.f32 %v127, %v238
    %v240 = vand.u32 %v239, 4294901760
    %v241 = vsub.f32 %v239, %v240
    %v242 = vand.u32 %v241, 4294901760
    %243 = vmatmul.f32.gmra.mxu0 %v242
    %v244 = vpop.f32.mrf.mxu0
    %v245 = vadd.f32 0.0, %v244
    %v246 = vand.u32 %v130, 4294901760
    %v247 = vsub.f32 %v130, %v246
    %v248 = vand.u32 %v247, 4294901760
    %v249 = vsub.f32 %v247, %v248
    %v250 = vand.u32 %v249, 4294901760
    %251 = vmatmul.f32.gmra.mxu0 %v250
    %v252 = vpop.f32.mrf.mxu0
    %v253 = vadd.f32 0.0, %v252
    %v254 = vand.u32 %v133, 4294901760
    %v255 = vsub.f32 %v133, %v254
    %v256 = vand.u32 %v255, 4294901760
    %v257 = vsub.f32 %v255, %v256
    %v258 = vand.u32 %v257, 4294901760
    %259 = vmatmul.f32.gmra.mxu0 %v258
    %v260 = vpop.f32.mrf.mxu0
    %v261 = vadd.f32 0.0, %v260
    %v262 = vand.u32 %v136, 4294901760
    %v263 = vsub.f32 %v136, %v262
    %v264 = vand.u32 %v263, 4294901760
    %v265 = vsub.f32 %v263, %v264
    %v266 = vand.u32 %v265, 4294901760
    %267 = vmatmul.f32.gmra.mxu0 %v266
    %v268 = vpop.f32.mrf.mxu0
    %v269 = vadd.f32 0.0, %v268
    %v270 = vand.u32 %v139, 4294901760
    %v271 = vsub.f32 %v139, %v270
    %v272 = vand.u32 %v271, 4294901760
    %v273 = vsub.f32 %v271, %v272
    %v274 = vand.u32 %v273, 4294901760
    %275 = vmatmul.f32.gmra.mxu0 %v274
    %v276 = vpop.f32.mrf.mxu0
    %v277 = vadd.f32 0.0, %v276
    %v278 = vand.u32 %v142, 4294901760
    %v279 = vsub.f32 %v142, %v278
    %v280 = vand.u32 %v279, 4294901760
    %v281 = vsub.f32 %v279, %v280
    %v282 = vand.u32 %v281, 4294901760
    %283 = vmatmul.f32.gmra.mxu0 %v282
    %v284 = vpop.f32.mrf.mxu0
    %v285 = vadd.f32 0.0, %v284
    %v286 = vand.u32 %v145, 4294901760
    %v287 = vsub.f32 %v145, %v286
    %v288 = vand.u32 %v287, 4294901760
    %v289 = vsub.f32 %v287, %v288
    %v290 = vand.u32 %v289, 4294901760
    %291 = vmatmul.f32.gmra.mxu0 %v290
    %v292 = vpop.f32.mrf.mxu0
    %v293 = vadd.f32 0.0, %v292
    %v294 = vand.u32 %v148, 4294901760
    %v295 = vsub.f32 %v148, %v294
    %v296 = vand.u32 %v295, 4294901760
    %v297 = vsub.f32 %v295, %v296
    %v298 = vand.u32 %v297, 4294901760
    %299 = vmatmul.f32.gmra.mxu0 %v298
    %v300 = vpop.f32.mrf.mxu0
    %v301 = vadd.f32 0.0, %v300
    %302 = vdwg.mxu0
    %303 = vmatpush.msra.mxu0 0.0
    %304 = vmatpush.msra.mxu0 0.0
    %305 = vmatpush.msra.mxu0 0.0
    %306 = vmatpush.msra.mxu0 0.0
    %307 = vmatpush.msra.mxu0 0.0
    %308 = vmatpush.msra.mxu0 0.0
    %309 = vmatpush.msra.mxu0 0.0
    %310 = vmatpush.msra.mxu0 0.0
    %v311 = vand.u32 %v92, 4294901760
    %v312 = vsub.f32 %v92, %v311
    %v313 = vand.u32 %v312, 4294901760
    %v314 = vsub.f32 %v312, %v313
    %v315 = vand.u32 %v314, 4294901760
    %316 = vmatpush.msra.mxu0 %v315
    %v317 = vand.u32 %v91, 4294901760
    %v318 = vsub.f32 %v91, %v317
    %v319 = vand.u32 %v318, 4294901760
    %v320 = vsub.f32 %v318, %v319
    %v321 = vand.u32 %v320, 4294901760
    %322 = vmatpush.msra.mxu0 %v321
    %v323 = vand.u32 %v90, 4294901760
    %v324 = vsub.f32 %v90, %v323
    %v325 = vand.u32 %v324, 4294901760
    %v326 = vsub.f32 %v324, %v325
    %v327 = vand.u32 %v326, 4294901760
    %328 = vmatpush.msra.mxu0 %v327
    %v329 = vand.u32 %v89, 4294901760
    %v330 = vsub.f32 %v89, %v329
    %v331 = vand.u32 %v330, 4294901760
    %v332 = vsub.f32 %v330, %v331
    %v333 = vand.u32 %v332, 4294901760
    %334 = vmatpush.msra.mxu0 %v333
    %v335 = vand.u32 %v88, 4294901760
    %v336 = vsub.f32 %v88, %v335
    %v337 = vand.u32 %v336, 4294901760
    %v338 = vsub.f32 %v336, %v337
    %v339 = vand.u32 %v338, 4294901760
    %340 = vmatpush.msra.mxu0 %v339
    %v341 = vand.u32 %v87, 4294901760
    %v342 = vsub.f32 %v87, %v341
    %v343 = vand.u32 %v342, 4294901760
    %v344 = vsub.f32 %v342, %v343
    %v345 = vand.u32 %v344, 4294901760
    %346 = vmatpush.msra.mxu0 %v345
    %v347 = vand.u32 %v86, 4294901760
    %v348 = vsub.f32 %v86, %v347
    %v349 = vand.u32 %v348, 4294901760
    %v350 = vsub.f32 %v348, %v349
    %v351 = vand.u32 %v350, 4294901760
    %352 = vmatpush.msra.mxu0 %v351
    %v353 = vand.u32 %v85, 4294901760
    %v354 = vsub.f32 %v85, %v353
    %v355 = vand.u32 %v354, 4294901760
    %v356 = vsub.f32 %v354, %v355
    %v357 = vand.u32 %v356, 4294901760
    %358 = vmatpush.msra.mxu0 %v357
    %v359 = vand.u32 %v103, 4294901760
    %360 = vmatmul.f32.gmra.mxu0 %v359
    %v361 = vpop.f32.mrf.mxu0
    %v362 = vadd.f32 %v181, %v361
    %v363 = vand.u32 %v106, 4294901760
    %364 = vmatmul.f32.gmra.mxu0 %v363
    %v365 = vpop.f32.mrf.mxu0
    %v366 = vadd.f32 %v189, %v365
    %v367 = vand.u32 %v109, 4294901760
    %368 = vmatmul.f32.gmra.mxu0 %v367
    %v369 = vpop.f32.mrf.mxu0
    %v370 = vadd.f32 %v197, %v369
    %v371 = vand.u32 %v112, 4294901760
    %372 = vmatmul.f32.gmra.mxu0 %v371
    %v373 = vpop.f32.mrf.mxu0
    %v374 = vadd.f32 %v205, %v373
    %v375 = vand.u32 %v115, 4294901760
    %376 = vmatmul.f32.gmra.mxu0 %v375
    %v377 = vpop.f32.mrf.mxu0
    %v378 = vadd.f32 %v213, %v377
    %v379 = vand.u32 %v118, 4294901760
    %380 = vmatmul.f32.gmra.mxu0 %v379
    %v381 = vpop.f32.mrf.mxu0
    %v382 = vadd.f32 %v221, %v381
    %v383 = vand.u32 %v121, 4294901760
    %384 = vmatmul.f32.gmra.mxu0 %v383
    %v385 = vpop.f32.mrf.mxu0
    %v386 = vadd.f32 %v229, %v385
    %v387 = vand.u32 %v124, 4294901760
    %388 = vmatmul.f32.gmra.mxu0 %v387
    %v389 = vpop.f32.mrf.mxu0
    %v390 = vadd.f32 %v237, %v389
    %v391 = vand.u32 %v127, 4294901760
    %392 = vmatmul.f32.gmra.mxu0 %v391
    %v393 = vpop.f32.mrf.mxu0
    %v394 = vadd.f32 %v245, %v393
    %v395 = vand.u32 %v130, 4294901760
    %396 = vmatmul.f32.gmra.mxu0 %v395
    %v397 = vpop.f32.mrf.mxu0
    %v398 = vadd.f32 %v253, %v397
    %v399 = vand.u32 %v133, 4294901760
    %400 = vmatmul.f32.gmra.mxu0 %v399
    %v401 = vpop.f32.mrf.mxu0
    %v402 = vadd.f32 %v261, %v401
    %v403 = vand.u32 %v136, 4294901760
    %404 = vmatmul.f32.gmra.mxu0 %v403
    %v405 = vpop.f32.mrf.mxu0
    %v406 = vadd.f32 %v269, %v405
    %v407 = vand.u32 %v139, 4294901760
    %408 = vmatmul.f32.gmra.mxu0 %v407
    %v409 = vpop.f32.mrf.mxu0
    %v410 = vadd.f32 %v277, %v409
    %v411 = vand.u32 %v142, 4294901760
    %412 = vmatmul.f32.gmra.mxu0 %v411
    %v413 = vpop.f32.mrf.mxu0
    %v414 = vadd.f32 %v285, %v413
    %v415 = vand.u32 %v145, 4294901760
    %416 = vmatmul.f32.gmra.mxu0 %v415
    %v417 = vpop.f32.mrf.mxu0
    %v418 = vadd.f32 %v293, %v417
    %v419 = vand.u32 %v148, 4294901760
    %420 = vmatmul.f32.gmra.mxu0 %v419
    %v421 = vpop.f32.mrf.mxu0
    %v422 = vadd.f32 %v301, %v421
    %423 = vdwg.mxu0
    %424 = vmatpush.msra.mxu0 0.0
    %425 = vmatpush.msra.mxu0 0.0
    %426 = vmatpush.msra.mxu0 0.0
    %427 = vmatpush.msra.mxu0 0.0
    %428 = vmatpush.msra.mxu0 0.0
    %429 = vmatpush.msra.mxu0 0.0
    %430 = vmatpush.msra.mxu0 0.0
    %431 = vmatpush.msra.mxu0 0.0
    %v432 = vand.u32 %v92, 4294901760
    %v433 = vsub.f32 %v92, %v432
    %434 = vmatpush.msra.mxu0 %v433
    %v435 = vand.u32 %v91, 4294901760
    %v436 = vsub.f32 %v91, %v435
    %437 = vmatpush.msra.mxu0 %v436
    %v438 = vand.u32 %v90, 4294901760
    %v439 = vsub.f32 %v90, %v438
    %440 = vmatpush.msra.mxu0 %v439
    %v441 = vand.u32 %v89, 4294901760
    %v442 = vsub.f32 %v89, %v441
    %443 = vmatpush.msra.mxu0 %v442
    %v444 = vand.u32 %v88, 4294901760
    %v445 = vsub.f32 %v88, %v444
    %446 = vmatpush.msra.mxu0 %v445
    %v447 = vand.u32 %v87, 4294901760
    %v448 = vsub.f32 %v87, %v447
    %449 = vmatpush.msra.mxu0 %v448
    %v450 = vand.u32 %v86, 4294901760
    %v451 = vsub.f32 %v86, %v450
    %452 = vmatpush.msra.mxu0 %v451
    %v453 = vand.u32 %v85, 4294901760
    %v454 = vsub.f32 %v85, %v453
    %455 = vmatpush.msra.mxu0 %v454
    %v456 = vand.u32 %v103, 4294901760
    %v457 = vsub.f32 %v103, %v456
    %458 = vmatmul.f32.gmra.mxu0 %v457
    %v459 = vpop.f32.mrf.mxu0
    %v460 = vadd.f32 %v362, %v459
    %v461 = vand.u32 %v106, 4294901760
    %v462 = vsub.f32 %v106, %v461
    %463 = vmatmul.f32.gmra.mxu0 %v462
    %v464 = vpop.f32.mrf.mxu0
    %v465 = vadd.f32 %v366, %v464
    %v466 = vand.u32 %v109, 4294901760
    %v467 = vsub.f32 %v109, %v466
    %468 = vmatmul.f32.gmra.mxu0 %v467
    %v469 = vpop.f32.mrf.mxu0
    %v470 = vadd.f32 %v370, %v469
    %v471 = vand.u32 %v112, 4294901760
    %v472 = vsub.f32 %v112, %v471
    %473 = vmatmul.f32.gmra.mxu0 %v472
    %v474 = vpop.f32.mrf.mxu0
    %v475 = vadd.f32 %v374, %v474
    %v476 = vand.u32 %v115, 4294901760
    %v477 = vsub.f32 %v115, %v476
    %478 = vmatmul.f32.gmra.mxu0 %v477
    %v479 = vpop.f32.mrf.mxu0
    %v480 = vadd.f32 %v378, %v479
    %v481 = vand.u32 %v118, 4294901760
    %v482 = vsub.f32 %v118, %v481
    %483 = vmatmul.f32.gmra.mxu0 %v482
    %v484 = vpop.f32.mrf.mxu0
    %v485 = vadd.f32 %v382, %v484
    %v486 = vand.u32 %v121, 4294901760
    %v487 = vsub.f32 %v121, %v486
    %488 = vmatmul.f32.gmra.mxu0 %v487
    %v489 = vpop.f32.mrf.mxu0
    %v490 = vadd.f32 %v386, %v489
    %v491 = vand.u32 %v124, 4294901760
    %v492 = vsub.f32 %v124, %v491
    %493 = vmatmul.f32.gmra.mxu0 %v492
    %v494 = vpop.f32.mrf.mxu0
    %v495 = vadd.f32 %v390, %v494
    %v496 = vand.u32 %v127, 4294901760
    %v497 = vsub.f32 %v127, %v496
    %498 = vmatmul.f32.gmra.mxu0 %v497
    %v499 = vpop.f32.mrf.mxu0
    %v500 = vadd.f32 %v394, %v499
    %v501 = vand.u32 %v130, 4294901760
    %v502 = vsub.f32 %v130, %v501
    %503 = vmatmul.f32.gmra.mxu0 %v502
    %v504 = vpop.f32.mrf.mxu0
    %v505 = vadd.f32 %v398, %v504
    %v506 = vand.u32 %v133, 4294901760
    %v507 = vsub.f32 %v133, %v506
    %508 = vmatmul.f32.gmra.mxu0 %v507
    %v509 = vpop.f32.mrf.mxu0
    %v510 = vadd.f32 %v402, %v509
    %v511 = vand.u32 %v136, 4294901760
    %v512 = vsub.f32 %v136, %v511
    %513 = vmatmul.f32.gmra.mxu0 %v512
    %v514 = vpop.f32.mrf.mxu0
    %v515 = vadd.f32 %v406, %v514
    %v516 = vand.u32 %v139, 4294901760
    %v517 = vsub.f32 %v139, %v516
    %518 = vmatmul.f32.gmra.mxu0 %v517
    %v519 = vpop.f32.mrf.mxu0
    %v520 = vadd.f32 %v410, %v519
    %v521 = vand.u32 %v142, 4294901760
    %v522 = vsub.f32 %v142, %v521
    %523 = vmatmul.f32.gmra.mxu0 %v522
    %v524 = vpop.f32.mrf.mxu0
    %v525 = vadd.f32 %v414, %v524
    %v526 = vand.u32 %v145, 4294901760
    %v527 = vsub.f32 %v145, %v526
    %528 = vmatmul.f32.gmra.mxu0 %v527
    %v529 = vpop.f32.mrf.mxu0
    %v530 = vadd.f32 %v418, %v529
    %v531 = vand.u32 %v148, 4294901760
    %v532 = vsub.f32 %v148, %v531
    %533 = vmatmul.f32.gmra.mxu0 %v532
    %v534 = vpop.f32.mrf.mxu0
    %v535 = vadd.f32 %v422, %v534
    %536 = vdwg.mxu0
    %537 = vmatpush.msra.mxu0 0.0
    %538 = vmatpush.msra.mxu0 0.0
    %539 = vmatpush.msra.mxu0 0.0
    %540 = vmatpush.msra.mxu0 0.0
    %541 = vmatpush.msra.mxu0 0.0
    %542 = vmatpush.msra.mxu0 0.0
    %543 = vmatpush.msra.mxu0 0.0
    %544 = vmatpush.msra.mxu0 0.0
    %v545 = vand.u32 %v92, 4294901760
    %546 = vmatpush.msra.mxu0 %v545
    %v547 = vand.u32 %v91, 4294901760
    %548 = vmatpush.msra.mxu0 %v547
    %v549 = vand.u32 %v90, 4294901760
    %550 = vmatpush.msra.mxu0 %v549
    %v551 = vand.u32 %v89, 4294901760
    %552 = vmatpush.msra.mxu0 %v551
    %v553 = vand.u32 %v88, 4294901760
    %554 = vmatpush.msra.mxu0 %v553
    %v555 = vand.u32 %v87, 4294901760
    %556 = vmatpush.msra.mxu0 %v555
    %v557 = vand.u32 %v86, 4294901760
    %558 = vmatpush.msra.mxu0 %v557
    %v559 = vand.u32 %v85, 4294901760
    %560 = vmatpush.msra.mxu0 %v559
    %v561 = vand.u32 %v103, 4294901760
    %v562 = vsub.f32 %v103, %v561
    %v563 = vand.u32 %v562, 4294901760
    %564 = vmatmul.f32.gmra.mxu0 %v563
    %v565 = vpop.f32.mrf.mxu0
    %v566 = vadd.f32 %v460, %v565
    %v567 = vand.u32 %v106, 4294901760
    %v568 = vsub.f32 %v106, %v567
    %v569 = vand.u32 %v568, 4294901760
    %570 = vmatmul.f32.gmra.mxu0 %v569
    %v571 = vpop.f32.mrf.mxu0
    %v572 = vadd.f32 %v465, %v571
    %v573 = vand.u32 %v109, 4294901760
    %v574 = vsub.f32 %v109, %v573
    %v575 = vand.u32 %v574, 4294901760
    %576 = vmatmul.f32.gmra.mxu0 %v575
    %v577 = vpop.f32.mrf.mxu0
    %v578 = vadd.f32 %v470, %v577
    %v579 = vand.u32 %v112, 4294901760
    %v580 = vsub.f32 %v112, %v579
    %v581 = vand.u32 %v580, 4294901760
    %582 = vmatmul.f32.gmra.mxu0 %v581
    %v583 = vpop.f32.mrf.mxu0
    %v584 = vadd.f32 %v475, %v583
    %v585 = vand.u32 %v115, 4294901760
    %v586 = vsub.f32 %v115, %v585
    %v587 = vand.u32 %v586, 4294901760
    %588 = vmatmul.f32.gmra.mxu0 %v587
    %v589 = vpop.f32.mrf.mxu0
    %v590 = vadd.f32 %v480, %v589
    %v591 = vand.u32 %v118, 4294901760
    %v592 = vsub.f32 %v118, %v591
    %v593 = vand.u32 %v592, 4294901760
    %594 = vmatmul.f32.gmra.mxu0 %v593
    %v595 = vpop.f32.mrf.mxu0
    %v596 = vadd.f32 %v485, %v595
    %v597 = vand.u32 %v121, 4294901760
    %v598 = vsub.f32 %v121, %v597
    %v599 = vand.u32 %v598, 4294901760
    %600 = vmatmul.f32.gmra.mxu0 %v599
    %v601 = vpop.f32.mrf.mxu0
    %v602 = vadd.f32 %v490, %v601
    %v603 = vand.u32 %v124, 4294901760
    %v604 = vsub.f32 %v124, %v603
    %v605 = vand.u32 %v604, 4294901760
    %606 = vmatmul.f32.gmra.mxu0 %v605
    %v607 = vpop.f32.mrf.mxu0
    %v608 = vadd.f32 %v495, %v607
    %v609 = vand.u32 %v127, 4294901760
    %v610 = vsub.f32 %v127, %v609
    %v611 = vand.u32 %v610, 4294901760
    %612 = vmatmul.f32.gmra.mxu0 %v611
    %v613 = vpop.f32.mrf.mxu0
    %v614 = vadd.f32 %v500, %v613
    %v615 = vand.u32 %v130, 4294901760
    %v616 = vsub.f32 %v130, %v615
    %v617 = vand.u32 %v616, 4294901760
    %618 = vmatmul.f32.gmra.mxu0 %v617
    %v619 = vpop.f32.mrf.mxu0
    %v620 = vadd.f32 %v505, %v619
    %v621 = vand.u32 %v133, 4294901760
    %v622 = vsub.f32 %v133, %v621
    %v623 = vand.u32 %v622, 4294901760
    %624 = vmatmul.f32.gmra.mxu0 %v623
    %v625 = vpop.f32.mrf.mxu0
    %v626 = vadd.f32 %v510, %v625
    %v627 = vand.u32 %v136, 4294901760
    %v628 = vsub.f32 %v136, %v627
    %v629 = vand.u32 %v628, 4294901760
    %630 = vmatmul.f32.gmra.mxu0 %v629
    %v631 = vpop.f32.mrf.mxu0
    %v632 = vadd.f32 %v515, %v631
    %v633 = vand.u32 %v139, 4294901760
    %v634 = vsub.f32 %v139, %v633
    %v635 = vand.u32 %v634, 4294901760
    %636 = vmatmul.f32.gmra.mxu0 %v635
    %v637 = vpop.f32.mrf.mxu0
    %v638 = vadd.f32 %v520, %v637
    %v639 = vand.u32 %v142, 4294901760
    %v640 = vsub.f32 %v142, %v639
    %v641 = vand.u32 %v640, 4294901760
    %642 = vmatmul.f32.gmra.mxu0 %v641
    %v643 = vpop.f32.mrf.mxu0
    %v644 = vadd.f32 %v525, %v643
    %v645 = vand.u32 %v145, 4294901760
    %v646 = vsub.f32 %v145, %v645
    %v647 = vand.u32 %v646, 4294901760
    %648 = vmatmul.f32.gmra.mxu0 %v647
    %v649 = vpop.f32.mrf.mxu0
    %v650 = vadd.f32 %v530, %v649
    %v651 = vand.u32 %v148, 4294901760
    %v652 = vsub.f32 %v148, %v651
    %v653 = vand.u32 %v652, 4294901760
    %654 = vmatmul.f32.gmra.mxu0 %v653
    %v655 = vpop.f32.mrf.mxu0
    %v656 = vadd.f32 %v535, %v655
    %657 = vdwg.mxu0
    %658 = vmatpush.msra.mxu0 0.0
    %659 = vmatpush.msra.mxu0 0.0
    %660 = vmatpush.msra.mxu0 0.0
    %661 = vmatpush.msra.mxu0 0.0
    %662 = vmatpush.msra.mxu0 0.0
    %663 = vmatpush.msra.mxu0 0.0
    %664 = vmatpush.msra.mxu0 0.0
    %665 = vmatpush.msra.mxu0 0.0
    %v666 = vand.u32 %v92, 4294901760
    %v667 = vsub.f32 %v92, %v666
    %v668 = vand.u32 %v667, 4294901760
    %669 = vmatpush.msra.mxu0 %v668
    %v670 = vand.u32 %v91, 4294901760
    %v671 = vsub.f32 %v91, %v670
    %v672 = vand.u32 %v671, 4294901760
    %673 = vmatpush.msra.mxu0 %v672
    %v674 = vand.u32 %v90, 4294901760
    %v675 = vsub.f32 %v90, %v674
    %v676 = vand.u32 %v675, 4294901760
    %677 = vmatpush.msra.mxu0 %v676
    %v678 = vand.u32 %v89, 4294901760
    %v679 = vsub.f32 %v89, %v678
    %v680 = vand.u32 %v679, 4294901760
    %681 = vmatpush.msra.mxu0 %v680
    %v682 = vand.u32 %v88, 4294901760
    %v683 = vsub.f32 %v88, %v682
    %v684 = vand.u32 %v683, 4294901760
    %685 = vmatpush.msra.mxu0 %v684
    %v686 = vand.u32 %v87, 4294901760
    %v687 = vsub.f32 %v87, %v686
    %v688 = vand.u32 %v687, 4294901760
    %689 = vmatpush.msra.mxu0 %v688
    %v690 = vand.u32 %v86, 4294901760
    %v691 = vsub.f32 %v86, %v690
    %v692 = vand.u32 %v691, 4294901760
    %693 = vmatpush.msra.mxu0 %v692
    %v694 = vand.u32 %v85, 4294901760
    %v695 = vsub.f32 %v85, %v694
    %v696 = vand.u32 %v695, 4294901760
    %697 = vmatpush.msra.mxu0 %v696
    %v698 = vand.u32 %v103, 4294901760
    %699 = vmatmul.f32.gmra.mxu0 %v698
    %v700 = vpop.f32.mrf.mxu0
    %v701 = vadd.f32 %v566, %v700
    %v702 = vand.u32 %v106, 4294901760
    %703 = vmatmul.f32.gmra.mxu0 %v702
    %v704 = vpop.f32.mrf.mxu0
    %v705 = vadd.f32 %v572, %v704
    %v706 = vand.u32 %v109, 4294901760
    %707 = vmatmul.f32.gmra.mxu0 %v706
    %v708 = vpop.f32.mrf.mxu0
    %v709 = vadd.f32 %v578, %v708
    %v710 = vand.u32 %v112, 4294901760
    %711 = vmatmul.f32.gmra.mxu0 %v710
    %v712 = vpop.f32.mrf.mxu0
    %v713 = vadd.f32 %v584, %v712
    %v714 = vand.u32 %v115, 4294901760
    %715 = vmatmul.f32.gmra.mxu0 %v714
    %v716 = vpop.f32.mrf.mxu0
    %v717 = vadd.f32 %v590, %v716
    %v718 = vand.u32 %v118, 4294901760
    %719 = vmatmul.f32.gmra.mxu0 %v718
    %v720 = vpop.f32.mrf.mxu0
    %v721 = vadd.f32 %v596, %v720
    %v722 = vand.u32 %v121, 4294901760
    %723 = vmatmul.f32.gmra.mxu0 %v722
    %v724 = vpop.f32.mrf.mxu0
    %v725 = vadd.f32 %v602, %v724
    %v726 = vand.u32 %v124, 4294901760
    %727 = vmatmul.f32.gmra.mxu0 %v726
    %v728 = vpop.f32.mrf.mxu0
    %v729 = vadd.f32 %v608, %v728
    %v730 = vand.u32 %v127, 4294901760
    %731 = vmatmul.f32.gmra.mxu0 %v730
    %v732 = vpop.f32.mrf.mxu0
    %v733 = vadd.f32 %v614, %v732
    %v734 = vand.u32 %v130, 4294901760
    %735 = vmatmul.f32.gmra.mxu0 %v734
    %v736 = vpop.f32.mrf.mxu0
    %v737 = vadd.f32 %v620, %v736
    %v738 = vand.u32 %v133, 4294901760
    %739 = vmatmul.f32.gmra.mxu0 %v738
    %v740 = vpop.f32.mrf.mxu0
    %v741 = vadd.f32 %v626, %v740
    %v742 = vand.u32 %v136, 4294901760
    %743 = vmatmul.f32.gmra.mxu0 %v742
    %v744 = vpop.f32.mrf.mxu0
    %v745 = vadd.f32 %v632, %v744
    %v746 = vand.u32 %v139, 4294901760
    %747 = vmatmul.f32.gmra.mxu0 %v746
    %v748 = vpop.f32.mrf.mxu0
    %v749 = vadd.f32 %v638, %v748
    %v750 = vand.u32 %v142, 4294901760
    %751 = vmatmul.f32.gmra.mxu0 %v750
    %v752 = vpop.f32.mrf.mxu0
    %v753 = vadd.f32 %v644, %v752
    %v754 = vand.u32 %v145, 4294901760
    %755 = vmatmul.f32.gmra.mxu0 %v754
    %v756 = vpop.f32.mrf.mxu0
    %v757 = vadd.f32 %v650, %v756
    %v758 = vand.u32 %v148, 4294901760
    %759 = vmatmul.f32.gmra.mxu0 %v758
    %v760 = vpop.f32.mrf.mxu0
    %v761 = vadd.f32 %v656, %v760
    %762 = vdwg.mxu0
    %763 = vmatpush.msra.mxu0 0.0
    %764 = vmatpush.msra.mxu0 0.0
    %765 = vmatpush.msra.mxu0 0.0
    %766 = vmatpush.msra.mxu0 0.0
    %767 = vmatpush.msra.mxu0 0.0
    %768 = vmatpush.msra.mxu0 0.0
    %769 = vmatpush.msra.mxu0 0.0
    %770 = vmatpush.msra.mxu0 0.0
    %v771 = vand.u32 %v92, 4294901760
    %772 = vmatpush.msra.mxu0 %v771
    %v773 = vand.u32 %v91, 4294901760
    %774 = vmatpush.msra.mxu0 %v773
    %v775 = vand.u32 %v90, 4294901760
    %776 = vmatpush.msra.mxu0 %v775
    %v777 = vand.u32 %v89, 4294901760
    %778 = vmatpush.msra.mxu0 %v777
    %v779 = vand.u32 %v88, 4294901760
    %780 = vmatpush.msra.mxu0 %v779
    %v781 = vand.u32 %v87, 4294901760
    %782 = vmatpush.msra.mxu0 %v781
    %v783 = vand.u32 %v86, 4294901760
    %784 = vmatpush.msra.mxu0 %v783
    %v785 = vand.u32 %v85, 4294901760
    %786 = vmatpush.msra.mxu0 %v785
    %v787 = vand.u32 %v103, 4294901760
    %788 = vmatmul.f32.gmra.mxu0 %v787
    %v789 = vpop.f32.mrf.mxu0
    %v790 = vadd.f32 %v701, %v789
    %v791 = vand.u32 %v106, 4294901760
    %792 = vmatmul.f32.gmra.mxu0 %v791
    %v793 = vpop.f32.mrf.mxu0
    %v794 = vadd.f32 %v705, %v793
    %v795 = vand.u32 %v109, 4294901760
    %796 = vmatmul.f32.gmra.mxu0 %v795
    %v797 = vpop.f32.mrf.mxu0
    %v798 = vadd.f32 %v709, %v797
    %v799 = vand.u32 %v112, 4294901760
    %800 = vmatmul.f32.gmra.mxu0 %v799
    %v801 = vpop.f32.mrf.mxu0
    %v802 = vadd.f32 %v713, %v801
    %v803 = vand.u32 %v115, 4294901760
    %804 = vmatmul.f32.gmra.mxu0 %v803
    %v805 = vpop.f32.mrf.mxu0
    %v806 = vadd.f32 %v717, %v805
    %v807 = vand.u32 %v118, 4294901760
    %808 = vmatmul.f32.gmra.mxu0 %v807
    %v809 = vpop.f32.mrf.mxu0
    %v810 = vadd.f32 %v721, %v809
    %v811 = vand.u32 %v121, 4294901760
    %812 = vmatmul.f32.gmra.mxu0 %v811
    %v813 = vpop.f32.mrf.mxu0
    %v814 = vadd.f32 %v725, %v813
    %v815 = vand.u32 %v124, 4294901760
    %816 = vmatmul.f32.gmra.mxu0 %v815
    %v817 = vpop.f32.mrf.mxu0
    %v818 = vadd.f32 %v729, %v817
    %v819 = vand.u32 %v127, 4294901760
    %820 = vmatmul.f32.gmra.mxu0 %v819
    %v821 = vpop.f32.mrf.mxu0
    %v822 = vadd.f32 %v733, %v821
    %v823 = vand.u32 %v130, 4294901760
    %824 = vmatmul.f32.gmra.mxu0 %v823
    %v825 = vpop.f32.mrf.mxu0
    %v826 = vadd.f32 %v737, %v825
    %v827 = vand.u32 %v133, 4294901760
    %828 = vmatmul.f32.gmra.mxu0 %v827
    %v829 = vpop.f32.mrf.mxu0
    %v830 = vadd.f32 %v741, %v829
    %v831 = vand.u32 %v136, 4294901760
    %832 = vmatmul.f32.gmra.mxu0 %v831
    %v833 = vpop.f32.mrf.mxu0
    %v834 = vadd.f32 %v745, %v833
    %v835 = vand.u32 %v139, 4294901760
    %836 = vmatmul.f32.gmra.mxu0 %v835
    %v837 = vpop.f32.mrf.mxu0
    %v838 = vadd.f32 %v749, %v837
    %v839 = vand.u32 %v142, 4294901760
    %840 = vmatmul.f32.gmra.mxu0 %v839
    %v841 = vpop.f32.mrf.mxu0
    %v842 = vadd.f32 %v753, %v841
    %v843 = vand.u32 %v145, 4294901760
    %844 = vmatmul.f32.gmra.mxu0 %v843
    %v845 = vpop.f32.mrf.mxu0
    %v846 = vadd.f32 %v757, %v845
    %v847 = vand.u32 %v148, 4294901760
    %848 = vmatmul.f32.gmra.mxu0 %v847
    %v849 = vpop.f32.mrf.mxu0
    %v850 = vadd.f32 %v761, %v849
    %851 = vdwg.mxu0
    %852 = vrot.lane.b32.xlu0 %v44, 64
    %v853 = vpop.permute.xlu0 %852
    %854 = vrot.lane.b32.xlu0 %v45, 64
    %v855 = vpop.permute.xlu0 %854
    %856 = vrot.lane.b32.xlu0 %v46, 64
    %v857 = vpop.permute.xlu0 %856
    %858 = vrot.lane.b32.xlu0 %v47, 64
    %v859 = vpop.permute.xlu0 %858
    %860 = vrot.lane.b32.xlu0 %v48, 64
    %v861 = vpop.permute.xlu0 %860
    %862 = vrot.lane.b32.xlu0 %v49, 64
    %v863 = vpop.permute.xlu0 %862
    %864 = vrot.lane.b32.xlu0 %v50, 64
    %v865 = vpop.permute.xlu0 %864
    %866 = vrot.lane.b32.xlu0 %v51, 64
    %v867 = vpop.permute.xlu0 %866
    %868 = vrot.lane.b32.xlu0 %v52, 64
    %v869 = vpop.permute.xlu0 %868
    %870 = vrot.lane.b32.xlu0 %v53, 64
    %v871 = vpop.permute.xlu0 %870
    %872 = vrot.lane.b32.xlu0 %v54, 64
    %v873 = vpop.permute.xlu0 %872
    %874 = vrot.lane.b32.xlu0 %v55, 64
    %v875 = vpop.permute.xlu0 %874
    %876 = vrot.lane.b32.xlu0 %v56, 64
    %v877 = vpop.permute.xlu0 %876
    %878 = vrot.lane.b32.xlu0 %v57, 64
    %v879 = vpop.permute.xlu0 %878
    %880 = vrot.lane.b32.xlu0 %v58, 64
    %v881 = vpop.permute.xlu0 %880
    %882 = vrot.lane.b32.xlu0 %v59, 64
    %v883 = vpop.permute.xlu0 %882
    %v884 = vsel %vm101, %v853, 0
    %v886 = vsel %vm101, %v855, 0
    %v888 = vsel %vm101, %v857, 0
    %v890 = vsel %vm101, %v859, 0
    %v892 = vsel %vm101, %v861, 0
    %v894 = vsel %vm101, %v863, 0
    %v896 = vsel %vm101, %v865, 0
    %v898 = vsel %vm101, %v867, 0
    %v900 = vsel %vm101, %v869, 0
    %v902 = vsel %vm101, %v871, 0
    %v904 = vsel %vm101, %v873, 0
    %v906 = vsel %vm101, %v875, 0
    %v908 = vsel %vm101, %v877, 0
    %v910 = vsel %vm101, %v879, 0
    %v912 = vsel %vm101, %v881, 0
    %v914 = vsel %vm101, %v883, 0
    %916 = vmatpush.msra.mxu0 0.0
    %917 = vmatpush.msra.mxu0 0.0
    %918 = vmatpush.msra.mxu0 0.0
    %919 = vmatpush.msra.mxu0 0.0
    %920 = vmatpush.msra.mxu0 0.0
    %921 = vmatpush.msra.mxu0 0.0
    %922 = vmatpush.msra.mxu0 0.0
    %923 = vmatpush.msra.mxu0 0.0
    %v924 = vand.u32 %v92, 4294901760
    %925 = vmatpush.msra.mxu0 %v924
    %v926 = vand.u32 %v91, 4294901760
    %927 = vmatpush.msra.mxu0 %v926
    %v928 = vand.u32 %v90, 4294901760
    %929 = vmatpush.msra.mxu0 %v928
    %v930 = vand.u32 %v89, 4294901760
    %931 = vmatpush.msra.mxu0 %v930
    %v932 = vand.u32 %v88, 4294901760
    %933 = vmatpush.msra.mxu0 %v932
    %v934 = vand.u32 %v87, 4294901760
    %935 = vmatpush.msra.mxu0 %v934
    %v936 = vand.u32 %v86, 4294901760
    %937 = vmatpush.msra.mxu0 %v936
    %v938 = vand.u32 %v85, 4294901760
    %939 = vmatpush.msra.mxu0 %v938
    %v940 = vand.u32 %v884, 4294901760
    %v941 = vsub.f32 %v884, %v940
    %v942 = vand.u32 %v941, 4294901760
    %v943 = vsub.f32 %v941, %v942
    %v944 = vand.u32 %v943, 4294901760
    %945 = vmatmul.f32.gmra.mxu0 %v944
    %v946 = vpop.f32.mrf.mxu0
    %v947 = vadd.f32 0.0, %v946
    %v948 = vand.u32 %v886, 4294901760
    %v949 = vsub.f32 %v886, %v948
    %v950 = vand.u32 %v949, 4294901760
    %v951 = vsub.f32 %v949, %v950
    %v952 = vand.u32 %v951, 4294901760
    %953 = vmatmul.f32.gmra.mxu0 %v952
    %v954 = vpop.f32.mrf.mxu0
    %v955 = vadd.f32 0.0, %v954
    %v956 = vand.u32 %v888, 4294901760
    %v957 = vsub.f32 %v888, %v956
    %v958 = vand.u32 %v957, 4294901760
    %v959 = vsub.f32 %v957, %v958
    %v960 = vand.u32 %v959, 4294901760
    %961 = vmatmul.f32.gmra.mxu0 %v960
    %v962 = vpop.f32.mrf.mxu0
    %v963 = vadd.f32 0.0, %v962
    %v964 = vand.u32 %v890, 4294901760
    %v965 = vsub.f32 %v890, %v964
    %v966 = vand.u32 %v965, 4294901760
    %v967 = vsub.f32 %v965, %v966
    %v968 = vand.u32 %v967, 4294901760
    %969 = vmatmul.f32.gmra.mxu0 %v968
    %v970 = vpop.f32.mrf.mxu0
    %v971 = vadd.f32 0.0, %v970
    %v972 = vand.u32 %v892, 4294901760
    %v973 = vsub.f32 %v892, %v972
    %v974 = vand.u32 %v973, 4294901760
    %v975 = vsub.f32 %v973, %v974
    %v976 = vand.u32 %v975, 4294901760
    %977 = vmatmul.f32.gmra.mxu0 %v976
    %v978 = vpop.f32.mrf.mxu0
    %v979 = vadd.f32 0.0, %v978
    %v980 = vand.u32 %v894, 4294901760
    %v981 = vsub.f32 %v894, %v980
    %v982 = vand.u32 %v981, 4294901760
    %v983 = vsub.f32 %v981, %v982
    %v984 = vand.u32 %v983, 4294901760
    %985 = vmatmul.f32.gmra.mxu0 %v984
    %v986 = vpop.f32.mrf.mxu0
    %v987 = vadd.f32 0.0, %v986
    %v988 = vand.u32 %v896, 4294901760
    %v989 = vsub.f32 %v896, %v988
    %v990 = vand.u32 %v989, 4294901760
    %v991 = vsub.f32 %v989, %v990
    %v992 = vand.u32 %v991, 4294901760
    %993 = vmatmul.f32.gmra.mxu0 %v992
    %v994 = vpop.f32.mrf.mxu0
    %v995 = vadd.f32 0.0, %v994
    %v996 = vand.u32 %v898, 4294901760
    %v997 = vsub.f32 %v898, %v996
    %v998 = vand.u32 %v997, 4294901760
    %v999 = vsub.f32 %v997, %v998
    %v1000 = vand.u32 %v999, 4294901760
    %1001 = vmatmul.f32.gmra.mxu0 %v1000
    %v1002 = vpop.f32.mrf.mxu0
    %v1003 = vadd.f32 0.0, %v1002
    %v1004 = vand.u32 %v900, 4294901760
    %v1005 = vsub.f32 %v900, %v1004
    %v1006 = vand.u32 %v1005, 4294901760
    %v1007 = vsub.f32 %v1005, %v1006
    %v1008 = vand.u32 %v1007, 4294901760
    %1009 = vmatmul.f32.gmra.mxu0 %v1008
    %v1010 = vpop.f32.mrf.mxu0
    %v1011 = vadd.f32 0.0, %v1010
    %v1012 = vand.u32 %v902, 4294901760
    %v1013 = vsub.f32 %v902, %v1012
    %v1014 = vand.u32 %v1013, 4294901760
    %v1015 = vsub.f32 %v1013, %v1014
    %v1016 = vand.u32 %v1015, 4294901760
    %1017 = vmatmul.f32.gmra.mxu0 %v1016
    %v1018 = vpop.f32.mrf.mxu0
    %v1019 = vadd.f32 0.0, %v1018
    %v1020 = vand.u32 %v904, 4294901760
    %v1021 = vsub.f32 %v904, %v1020
    %v1022 = vand.u32 %v1021, 4294901760
    %v1023 = vsub.f32 %v1021, %v1022
    %v1024 = vand.u32 %v1023, 4294901760
    %1025 = vmatmul.f32.gmra.mxu0 %v1024
    %v1026 = vpop.f32.mrf.mxu0
    %v1027 = vadd.f32 0.0, %v1026
    %v1028 = vand.u32 %v906, 4294901760
    %v1029 = vsub.f32 %v906, %v1028
    %v1030 = vand.u32 %v1029, 4294901760
    %v1031 = vsub.f32 %v1029, %v1030
    %v1032 = vand.u32 %v1031, 4294901760
    %1033 = vmatmul.f32.gmra.mxu0 %v1032
    %v1034 = vpop.f32.mrf.mxu0
    %v1035 = vadd.f32 0.0, %v1034
    %v1036 = vand.u32 %v908, 4294901760
    %v1037 = vsub.f32 %v908, %v1036
    %v1038 = vand.u32 %v1037, 4294901760
    %v1039 = vsub.f32 %v1037, %v1038
    %v1040 = vand.u32 %v1039, 4294901760
    %1041 = vmatmul.f32.gmra.mxu0 %v1040
    %v1042 = vpop.f32.mrf.mxu0
    %v1043 = vadd.f32 0.0, %v1042
    %v1044 = vand.u32 %v910, 4294901760
    %v1045 = vsub.f32 %v910, %v1044
    %v1046 = vand.u32 %v1045, 4294901760
    %v1047 = vsub.f32 %v1045, %v1046
    %v1048 = vand.u32 %v1047, 4294901760
    %1049 = vmatmul.f32.gmra.mxu0 %v1048
    %v1050 = vpop.f32.mrf.mxu0
    %v1051 = vadd.f32 0.0, %v1050
    %v1052 = vand.u32 %v912, 4294901760
    %v1053 = vsub.f32 %v912, %v1052
    %v1054 = vand.u32 %v1053, 4294901760
    %v1055 = vsub.f32 %v1053, %v1054
    %v1056 = vand.u32 %v1055, 4294901760
    %1057 = vmatmul.f32.gmra.mxu0 %v1056
    %v1058 = vpop.f32.mrf.mxu0
    %v1059 = vadd.f32 0.0, %v1058
    %v1060 = vand.u32 %v914, 4294901760
    %v1061 = vsub.f32 %v914, %v1060
    %v1062 = vand.u32 %v1061, 4294901760
    %v1063 = vsub.f32 %v1061, %v1062
    %v1064 = vand.u32 %v1063, 4294901760
    %1065 = vmatmul.f32.gmra.mxu0 %v1064
    %v1066 = vpop.f32.mrf.mxu0
    %v1067 = vadd.f32 0.0, %v1066
    %1068 = vdwg.mxu0
    %1069 = vmatpush.msra.mxu0 0.0
    %1070 = vmatpush.msra.mxu0 0.0
    %1071 = vmatpush.msra.mxu0 0.0
    %1072 = vmatpush.msra.mxu0 0.0
    %1073 = vmatpush.msra.mxu0 0.0
    %1074 = vmatpush.msra.mxu0 0.0
    %1075 = vmatpush.msra.mxu0 0.0
    %1076 = vmatpush.msra.mxu0 0.0
    %v1077 = vand.u32 %v92, 4294901760
    %v1078 = vsub.f32 %v92, %v1077
    %v1079 = vand.u32 %v1078, 4294901760
    %v1080 = vsub.f32 %v1078, %v1079
    %v1081 = vand.u32 %v1080, 4294901760
    %1082 = vmatpush.msra.mxu0 %v1081
    %v1083 = vand.u32 %v91, 4294901760
    %v1084 = vsub.f32 %v91, %v1083
    %v1085 = vand.u32 %v1084, 4294901760
    %v1086 = vsub.f32 %v1084, %v1085
    %v1087 = vand.u32 %v1086, 4294901760
    %1088 = vmatpush.msra.mxu0 %v1087
    %v1089 = vand.u32 %v90, 4294901760
    %v1090 = vsub.f32 %v90, %v1089
    %v1091 = vand.u32 %v1090, 4294901760
    %v1092 = vsub.f32 %v1090, %v1091
    %v1093 = vand.u32 %v1092, 4294901760
    %1094 = vmatpush.msra.mxu0 %v1093
    %v1095 = vand.u32 %v89, 4294901760
    %v1096 = vsub.f32 %v89, %v1095
    %v1097 = vand.u32 %v1096, 4294901760
    %v1098 = vsub.f32 %v1096, %v1097
    %v1099 = vand.u32 %v1098, 4294901760
    %1100 = vmatpush.msra.mxu0 %v1099
    %v1101 = vand.u32 %v88, 4294901760
    %v1102 = vsub.f32 %v88, %v1101
    %v1103 = vand.u32 %v1102, 4294901760
    %v1104 = vsub.f32 %v1102, %v1103
    %v1105 = vand.u32 %v1104, 4294901760
    %1106 = vmatpush.msra.mxu0 %v1105
    %v1107 = vand.u32 %v87, 4294901760
    %v1108 = vsub.f32 %v87, %v1107
    %v1109 = vand.u32 %v1108, 4294901760
    %v1110 = vsub.f32 %v1108, %v1109
    %v1111 = vand.u32 %v1110, 4294901760
    %1112 = vmatpush.msra.mxu0 %v1111
    %v1113 = vand.u32 %v86, 4294901760
    %v1114 = vsub.f32 %v86, %v1113
    %v1115 = vand.u32 %v1114, 4294901760
    %v1116 = vsub.f32 %v1114, %v1115
    %v1117 = vand.u32 %v1116, 4294901760
    %1118 = vmatpush.msra.mxu0 %v1117
    %v1119 = vand.u32 %v85, 4294901760
    %v1120 = vsub.f32 %v85, %v1119
    %v1121 = vand.u32 %v1120, 4294901760
    %v1122 = vsub.f32 %v1120, %v1121
    %v1123 = vand.u32 %v1122, 4294901760
    %1124 = vmatpush.msra.mxu0 %v1123
    %v1125 = vand.u32 %v884, 4294901760
    %1126 = vmatmul.f32.gmra.mxu0 %v1125
    %v1127 = vpop.f32.mrf.mxu0
    %v1128 = vadd.f32 %v947, %v1127
    %v1129 = vand.u32 %v886, 4294901760
    %1130 = vmatmul.f32.gmra.mxu0 %v1129
    %v1131 = vpop.f32.mrf.mxu0
    %v1132 = vadd.f32 %v955, %v1131
    %v1133 = vand.u32 %v888, 4294901760
    %1134 = vmatmul.f32.gmra.mxu0 %v1133
    %v1135 = vpop.f32.mrf.mxu0
    %v1136 = vadd.f32 %v963, %v1135
    %v1137 = vand.u32 %v890, 4294901760
    %1138 = vmatmul.f32.gmra.mxu0 %v1137
    %v1139 = vpop.f32.mrf.mxu0
    %v1140 = vadd.f32 %v971, %v1139
    %v1141 = vand.u32 %v892, 4294901760
    %1142 = vmatmul.f32.gmra.mxu0 %v1141
    %v1143 = vpop.f32.mrf.mxu0
    %v1144 = vadd.f32 %v979, %v1143
    %v1145 = vand.u32 %v894, 4294901760
    %1146 = vmatmul.f32.gmra.mxu0 %v1145
    %v1147 = vpop.f32.mrf.mxu0
    %v1148 = vadd.f32 %v987, %v1147
    %v1149 = vand.u32 %v896, 4294901760
    %1150 = vmatmul.f32.gmra.mxu0 %v1149
    %v1151 = vpop.f32.mrf.mxu0
    %v1152 = vadd.f32 %v995, %v1151
    %v1153 = vand.u32 %v898, 4294901760
    %1154 = vmatmul.f32.gmra.mxu0 %v1153
    %v1155 = vpop.f32.mrf.mxu0
    %v1156 = vadd.f32 %v1003, %v1155
    %v1157 = vand.u32 %v900, 4294901760
    %1158 = vmatmul.f32.gmra.mxu0 %v1157
    %v1159 = vpop.f32.mrf.mxu0
    %v1160 = vadd.f32 %v1011, %v1159
    %v1161 = vand.u32 %v902, 4294901760
    %1162 = vmatmul.f32.gmra.mxu0 %v1161
    %v1163 = vpop.f32.mrf.mxu0
    %v1164 = vadd.f32 %v1019, %v1163
    %v1165 = vand.u32 %v904, 4294901760
    %1166 = vmatmul.f32.gmra.mxu0 %v1165
    %v1167 = vpop.f32.mrf.mxu0
    %v1168 = vadd.f32 %v1027, %v1167
    %v1169 = vand.u32 %v906, 4294901760
    %1170 = vmatmul.f32.gmra.mxu0 %v1169
    %v1171 = vpop.f32.mrf.mxu0
    %v1172 = vadd.f32 %v1035, %v1171
    %v1173 = vand.u32 %v908, 4294901760
    %1174 = vmatmul.f32.gmra.mxu0 %v1173
    %v1175 = vpop.f32.mrf.mxu0
    %v1176 = vadd.f32 %v1043, %v1175
    %v1177 = vand.u32 %v910, 4294901760
    %1178 = vmatmul.f32.gmra.mxu0 %v1177
    %v1179 = vpop.f32.mrf.mxu0
    %v1180 = vadd.f32 %v1051, %v1179
    %v1181 = vand.u32 %v912, 4294901760
    %1182 = vmatmul.f32.gmra.mxu0 %v1181
    %v1183 = vpop.f32.mrf.mxu0
    %v1184 = vadd.f32 %v1059, %v1183
    %v1185 = vand.u32 %v914, 4294901760
    %1186 = vmatmul.f32.gmra.mxu0 %v1185
    %v1187 = vpop.f32.mrf.mxu0
    %v1188 = vadd.f32 %v1067, %v1187
    %1189 = vdwg.mxu0
    %1190 = vmatpush.msra.mxu0 0.0
    %1191 = vmatpush.msra.mxu0 0.0
    %1192 = vmatpush.msra.mxu0 0.0
    %1193 = vmatpush.msra.mxu0 0.0
    %1194 = vmatpush.msra.mxu0 0.0
    %1195 = vmatpush.msra.mxu0 0.0
    %1196 = vmatpush.msra.mxu0 0.0
    %1197 = vmatpush.msra.mxu0 0.0
    %v1198 = vand.u32 %v92, 4294901760
    %v1199 = vsub.f32 %v92, %v1198
    %1200 = vmatpush.msra.mxu0 %v1199
    %v1201 = vand.u32 %v91, 4294901760
    %v1202 = vsub.f32 %v91, %v1201
    %1203 = vmatpush.msra.mxu0 %v1202
    %v1204 = vand.u32 %v90, 4294901760
    %v1205 = vsub.f32 %v90, %v1204
    %1206 = vmatpush.msra.mxu0 %v1205
    %v1207 = vand.u32 %v89, 4294901760
    %v1208 = vsub.f32 %v89, %v1207
    %1209 = vmatpush.msra.mxu0 %v1208
    %v1210 = vand.u32 %v88, 4294901760
    %v1211 = vsub.f32 %v88, %v1210
    %1212 = vmatpush.msra.mxu0 %v1211
    %v1213 = vand.u32 %v87, 4294901760
    %v1214 = vsub.f32 %v87, %v1213
    %1215 = vmatpush.msra.mxu0 %v1214
    %v1216 = vand.u32 %v86, 4294901760
    %v1217 = vsub.f32 %v86, %v1216
    %1218 = vmatpush.msra.mxu0 %v1217
    %v1219 = vand.u32 %v85, 4294901760
    %v1220 = vsub.f32 %v85, %v1219
    %1221 = vmatpush.msra.mxu0 %v1220
    %v1222 = vand.u32 %v884, 4294901760
    %v1223 = vsub.f32 %v884, %v1222
    %1224 = vmatmul.f32.gmra.mxu0 %v1223
    %v1225 = vpop.f32.mrf.mxu0
    %v1226 = vadd.f32 %v1128, %v1225
    %v1227 = vand.u32 %v886, 4294901760
    %v1228 = vsub.f32 %v886, %v1227
    %1229 = vmatmul.f32.gmra.mxu0 %v1228
    %v1230 = vpop.f32.mrf.mxu0
    %v1231 = vadd.f32 %v1132, %v1230
    %v1232 = vand.u32 %v888, 4294901760
    %v1233 = vsub.f32 %v888, %v1232
    %1234 = vmatmul.f32.gmra.mxu0 %v1233
    %v1235 = vpop.f32.mrf.mxu0
    %v1236 = vadd.f32 %v1136, %v1235
    %v1237 = vand.u32 %v890, 4294901760
    %v1238 = vsub.f32 %v890, %v1237
    %1239 = vmatmul.f32.gmra.mxu0 %v1238
    %v1240 = vpop.f32.mrf.mxu0
    %v1241 = vadd.f32 %v1140, %v1240
    %v1242 = vand.u32 %v892, 4294901760
    %v1243 = vsub.f32 %v892, %v1242
    %1244 = vmatmul.f32.gmra.mxu0 %v1243
    %v1245 = vpop.f32.mrf.mxu0
    %v1246 = vadd.f32 %v1144, %v1245
    %v1247 = vand.u32 %v894, 4294901760
    %v1248 = vsub.f32 %v894, %v1247
    %1249 = vmatmul.f32.gmra.mxu0 %v1248
    %v1250 = vpop.f32.mrf.mxu0
    %v1251 = vadd.f32 %v1148, %v1250
    %v1252 = vand.u32 %v896, 4294901760
    %v1253 = vsub.f32 %v896, %v1252
    %1254 = vmatmul.f32.gmra.mxu0 %v1253
    %v1255 = vpop.f32.mrf.mxu0
    %v1256 = vadd.f32 %v1152, %v1255
    %v1257 = vand.u32 %v898, 4294901760
    %v1258 = vsub.f32 %v898, %v1257
    %1259 = vmatmul.f32.gmra.mxu0 %v1258
    %v1260 = vpop.f32.mrf.mxu0
    %v1261 = vadd.f32 %v1156, %v1260
    %v1262 = vand.u32 %v900, 4294901760
    %v1263 = vsub.f32 %v900, %v1262
    %1264 = vmatmul.f32.gmra.mxu0 %v1263
    %v1265 = vpop.f32.mrf.mxu0
    %v1266 = vadd.f32 %v1160, %v1265
    %v1267 = vand.u32 %v902, 4294901760
    %v1268 = vsub.f32 %v902, %v1267
    %1269 = vmatmul.f32.gmra.mxu0 %v1268
    %v1270 = vpop.f32.mrf.mxu0
    %v1271 = vadd.f32 %v1164, %v1270
    %v1272 = vand.u32 %v904, 4294901760
    %v1273 = vsub.f32 %v904, %v1272
    %1274 = vmatmul.f32.gmra.mxu0 %v1273
    %v1275 = vpop.f32.mrf.mxu0
    %v1276 = vadd.f32 %v1168, %v1275
    %v1277 = vand.u32 %v906, 4294901760
    %v1278 = vsub.f32 %v906, %v1277
    %1279 = vmatmul.f32.gmra.mxu0 %v1278
    %v1280 = vpop.f32.mrf.mxu0
    %v1281 = vadd.f32 %v1172, %v1280
    %v1282 = vand.u32 %v908, 4294901760
    %v1283 = vsub.f32 %v908, %v1282
    %1284 = vmatmul.f32.gmra.mxu0 %v1283
    %v1285 = vpop.f32.mrf.mxu0
    %v1286 = vadd.f32 %v1176, %v1285
    %v1287 = vand.u32 %v910, 4294901760
    %v1288 = vsub.f32 %v910, %v1287
    %1289 = vmatmul.f32.gmra.mxu0 %v1288
    %v1290 = vpop.f32.mrf.mxu0
    %v1291 = vadd.f32 %v1180, %v1290
    %v1292 = vand.u32 %v912, 4294901760
    %v1293 = vsub.f32 %v912, %v1292
    %1294 = vmatmul.f32.gmra.mxu0 %v1293
    %v1295 = vpop.f32.mrf.mxu0
    %v1296 = vadd.f32 %v1184, %v1295
    %v1297 = vand.u32 %v914, 4294901760
    %v1298 = vsub.f32 %v914, %v1297
    %1299 = vmatmul.f32.gmra.mxu0 %v1298
    %v1300 = vpop.f32.mrf.mxu0
    %v1301 = vadd.f32 %v1188, %v1300
    %1302 = vdwg.mxu0
    %1303 = vmatpush.msra.mxu0 0.0
    %1304 = vmatpush.msra.mxu0 0.0
    %1305 = vmatpush.msra.mxu0 0.0
    %1306 = vmatpush.msra.mxu0 0.0
    %1307 = vmatpush.msra.mxu0 0.0
    %1308 = vmatpush.msra.mxu0 0.0
    %1309 = vmatpush.msra.mxu0 0.0
    %1310 = vmatpush.msra.mxu0 0.0
    %v1311 = vand.u32 %v92, 4294901760
    %1312 = vmatpush.msra.mxu0 %v1311
    %v1313 = vand.u32 %v91, 4294901760
    %1314 = vmatpush.msra.mxu0 %v1313
    %v1315 = vand.u32 %v90, 4294901760
    %1316 = vmatpush.msra.mxu0 %v1315
    %v1317 = vand.u32 %v89, 4294901760
    %1318 = vmatpush.msra.mxu0 %v1317
    %v1319 = vand.u32 %v88, 4294901760
    %1320 = vmatpush.msra.mxu0 %v1319
    %v1321 = vand.u32 %v87, 4294901760
    %1322 = vmatpush.msra.mxu0 %v1321
    %v1323 = vand.u32 %v86, 4294901760
    %1324 = vmatpush.msra.mxu0 %v1323
    %v1325 = vand.u32 %v85, 4294901760
    %1326 = vmatpush.msra.mxu0 %v1325
    %v1327 = vand.u32 %v884, 4294901760
    %v1328 = vsub.f32 %v884, %v1327
    %v1329 = vand.u32 %v1328, 4294901760
    %1330 = vmatmul.f32.gmra.mxu0 %v1329
    %v1331 = vpop.f32.mrf.mxu0
    %v1332 = vadd.f32 %v1226, %v1331
    %v1333 = vand.u32 %v886, 4294901760
    %v1334 = vsub.f32 %v886, %v1333
    %v1335 = vand.u32 %v1334, 4294901760
    %1336 = vmatmul.f32.gmra.mxu0 %v1335
    %v1337 = vpop.f32.mrf.mxu0
    %v1338 = vadd.f32 %v1231, %v1337
    %v1339 = vand.u32 %v888, 4294901760
    %v1340 = vsub.f32 %v888, %v1339
    %v1341 = vand.u32 %v1340, 4294901760
    %1342 = vmatmul.f32.gmra.mxu0 %v1341
    %v1343 = vpop.f32.mrf.mxu0
    %v1344 = vadd.f32 %v1236, %v1343
    %v1345 = vand.u32 %v890, 4294901760
    %v1346 = vsub.f32 %v890, %v1345
    %v1347 = vand.u32 %v1346, 4294901760
    %1348 = vmatmul.f32.gmra.mxu0 %v1347
    %v1349 = vpop.f32.mrf.mxu0
    %v1350 = vadd.f32 %v1241, %v1349
    %v1351 = vand.u32 %v892, 4294901760
    %v1352 = vsub.f32 %v892, %v1351
    %v1353 = vand.u32 %v1352, 4294901760
    %1354 = vmatmul.f32.gmra.mxu0 %v1353
    %v1355 = vpop.f32.mrf.mxu0
    %v1356 = vadd.f32 %v1246, %v1355
    %v1357 = vand.u32 %v894, 4294901760
    %v1358 = vsub.f32 %v894, %v1357
    %v1359 = vand.u32 %v1358, 4294901760
    %1360 = vmatmul.f32.gmra.mxu0 %v1359
    %v1361 = vpop.f32.mrf.mxu0
    %v1362 = vadd.f32 %v1251, %v1361
    %v1363 = vand.u32 %v896, 4294901760
    %v1364 = vsub.f32 %v896, %v1363
    %v1365 = vand.u32 %v1364, 4294901760
    %1366 = vmatmul.f32.gmra.mxu0 %v1365
    %v1367 = vpop.f32.mrf.mxu0
    %v1368 = vadd.f32 %v1256, %v1367
    %v1369 = vand.u32 %v898, 4294901760
    %v1370 = vsub.f32 %v898, %v1369
    %v1371 = vand.u32 %v1370, 4294901760
    %1372 = vmatmul.f32.gmra.mxu0 %v1371
    %v1373 = vpop.f32.mrf.mxu0
    %v1374 = vadd.f32 %v1261, %v1373
    %v1375 = vand.u32 %v900, 4294901760
    %v1376 = vsub.f32 %v900, %v1375
    %v1377 = vand.u32 %v1376, 4294901760
    %1378 = vmatmul.f32.gmra.mxu0 %v1377
    %v1379 = vpop.f32.mrf.mxu0
    %v1380 = vadd.f32 %v1266, %v1379
    %v1381 = vand.u32 %v902, 4294901760
    %v1382 = vsub.f32 %v902, %v1381
    %v1383 = vand.u32 %v1382, 4294901760
    %1384 = vmatmul.f32.gmra.mxu0 %v1383
    %v1385 = vpop.f32.mrf.mxu0
    %v1386 = vadd.f32 %v1271, %v1385
    %v1387 = vand.u32 %v904, 4294901760
    %v1388 = vsub.f32 %v904, %v1387
    %v1389 = vand.u32 %v1388, 4294901760
    %1390 = vmatmul.f32.gmra.mxu0 %v1389
    %v1391 = vpop.f32.mrf.mxu0
    %v1392 = vadd.f32 %v1276, %v1391
    %v1393 = vand.u32 %v906, 4294901760
    %v1394 = vsub.f32 %v906, %v1393
    %v1395 = vand.u32 %v1394, 4294901760
    %1396 = vmatmul.f32.gmra.mxu0 %v1395
    %v1397 = vpop.f32.mrf.mxu0
    %v1398 = vadd.f32 %v1281, %v1397
    %v1399 = vand.u32 %v908, 4294901760
    %v1400 = vsub.f32 %v908, %v1399
    %v1401 = vand.u32 %v1400, 4294901760
    %1402 = vmatmul.f32.gmra.mxu0 %v1401
    %v1403 = vpop.f32.mrf.mxu0
    %v1404 = vadd.f32 %v1286, %v1403
    %v1405 = vand.u32 %v910, 4294901760
    %v1406 = vsub.f32 %v910, %v1405
    %v1407 = vand.u32 %v1406, 4294901760
    %1408 = vmatmul.f32.gmra.mxu0 %v1407
    %v1409 = vpop.f32.mrf.mxu0
    %v1410 = vadd.f32 %v1291, %v1409
    %v1411 = vand.u32 %v912, 4294901760
    %v1412 = vsub.f32 %v912, %v1411
    %v1413 = vand.u32 %v1412, 4294901760
    %1414 = vmatmul.f32.gmra.mxu0 %v1413
    %v1415 = vpop.f32.mrf.mxu0
    %v1416 = vadd.f32 %v1296, %v1415
    %v1417 = vand.u32 %v914, 4294901760
    %v1418 = vsub.f32 %v914, %v1417
    %v1419 = vand.u32 %v1418, 4294901760
    %1420 = vmatmul.f32.gmra.mxu0 %v1419
    %v1421 = vpop.f32.mrf.mxu0
    %v1422 = vadd.f32 %v1301, %v1421
    %1423 = vdwg.mxu0
    %1424 = vmatpush.msra.mxu0 0.0
    %1425 = vmatpush.msra.mxu0 0.0
    %1426 = vmatpush.msra.mxu0 0.0
    %1427 = vmatpush.msra.mxu0 0.0
    %1428 = vmatpush.msra.mxu0 0.0
    %1429 = vmatpush.msra.mxu0 0.0
    %1430 = vmatpush.msra.mxu0 0.0
    %1431 = vmatpush.msra.mxu0 0.0
    %v1432 = vand.u32 %v92, 4294901760
    %v1433 = vsub.f32 %v92, %v1432
    %v1434 = vand.u32 %v1433, 4294901760
    %1435 = vmatpush.msra.mxu0 %v1434
    %v1436 = vand.u32 %v91, 4294901760
    %v1437 = vsub.f32 %v91, %v1436
    %v1438 = vand.u32 %v1437, 4294901760
    %1439 = vmatpush.msra.mxu0 %v1438
    %v1440 = vand.u32 %v90, 4294901760
    %v1441 = vsub.f32 %v90, %v1440
    %v1442 = vand.u32 %v1441, 4294901760
    %1443 = vmatpush.msra.mxu0 %v1442
    %v1444 = vand.u32 %v89, 4294901760
    %v1445 = vsub.f32 %v89, %v1444
    %v1446 = vand.u32 %v1445, 4294901760
    %1447 = vmatpush.msra.mxu0 %v1446
    %v1448 = vand.u32 %v88, 4294901760
    %v1449 = vsub.f32 %v88, %v1448
    %v1450 = vand.u32 %v1449, 4294901760
    %1451 = vmatpush.msra.mxu0 %v1450
    %v1452 = vand.u32 %v87, 4294901760
    %v1453 = vsub.f32 %v87, %v1452
    %v1454 = vand.u32 %v1453, 4294901760
    %1455 = vmatpush.msra.mxu0 %v1454
    %v1456 = vand.u32 %v86, 4294901760
    %v1457 = vsub.f32 %v86, %v1456
    %v1458 = vand.u32 %v1457, 4294901760
    %1459 = vmatpush.msra.mxu0 %v1458
    %v1460 = vand.u32 %v85, 4294901760
    %v1461 = vsub.f32 %v85, %v1460
    %v1462 = vand.u32 %v1461, 4294901760
    %1463 = vmatpush.msra.mxu0 %v1462
    %v1464 = vand.u32 %v884, 4294901760
    %1465 = vmatmul.f32.gmra.mxu0 %v1464
    %v1466 = vpop.f32.mrf.mxu0
    %v1467 = vadd.f32 %v1332, %v1466
    %v1468 = vand.u32 %v886, 4294901760
    %1469 = vmatmul.f32.gmra.mxu0 %v1468
    %v1470 = vpop.f32.mrf.mxu0
    %v1471 = vadd.f32 %v1338, %v1470
    %v1472 = vand.u32 %v888, 4294901760
    %1473 = vmatmul.f32.gmra.mxu0 %v1472
    %v1474 = vpop.f32.mrf.mxu0
    %v1475 = vadd.f32 %v1344, %v1474
    %v1476 = vand.u32 %v890, 4294901760
    %1477 = vmatmul.f32.gmra.mxu0 %v1476
    %v1478 = vpop.f32.mrf.mxu0
    %v1479 = vadd.f32 %v1350, %v1478
    %v1480 = vand.u32 %v892, 4294901760
    %1481 = vmatmul.f32.gmra.mxu0 %v1480
    %v1482 = vpop.f32.mrf.mxu0
    %v1483 = vadd.f32 %v1356, %v1482
    %v1484 = vand.u32 %v894, 4294901760
    %1485 = vmatmul.f32.gmra.mxu0 %v1484
    %v1486 = vpop.f32.mrf.mxu0
    %v1487 = vadd.f32 %v1362, %v1486
    %v1488 = vand.u32 %v896, 4294901760
    %1489 = vmatmul.f32.gmra.mxu0 %v1488
    %v1490 = vpop.f32.mrf.mxu0
    %v1491 = vadd.f32 %v1368, %v1490
    %v1492 = vand.u32 %v898, 4294901760
    %1493 = vmatmul.f32.gmra.mxu0 %v1492
    %v1494 = vpop.f32.mrf.mxu0
    %v1495 = vadd.f32 %v1374, %v1494
    %v1496 = vand.u32 %v900, 4294901760
    %1497 = vmatmul.f32.gmra.mxu0 %v1496
    %v1498 = vpop.f32.mrf.mxu0
    %v1499 = vadd.f32 %v1380, %v1498
    %v1500 = vand.u32 %v902, 4294901760
    %1501 = vmatmul.f32.gmra.mxu0 %v1500
    %v1502 = vpop.f32.mrf.mxu0
    %v1503 = vadd.f32 %v1386, %v1502
    %v1504 = vand.u32 %v904, 4294901760
    %1505 = vmatmul.f32.gmra.mxu0 %v1504
    %v1506 = vpop.f32.mrf.mxu0
    %v1507 = vadd.f32 %v1392, %v1506
    %v1508 = vand.u32 %v906, 4294901760
    %1509 = vmatmul.f32.gmra.mxu0 %v1508
    %v1510 = vpop.f32.mrf.mxu0
    %v1511 = vadd.f32 %v1398, %v1510
    %v1512 = vand.u32 %v908, 4294901760
    %1513 = vmatmul.f32.gmra.mxu0 %v1512
    %v1514 = vpop.f32.mrf.mxu0
    %v1515 = vadd.f32 %v1404, %v1514
    %v1516 = vand.u32 %v910, 4294901760
    %1517 = vmatmul.f32.gmra.mxu0 %v1516
    %v1518 = vpop.f32.mrf.mxu0
    %v1519 = vadd.f32 %v1410, %v1518
    %v1520 = vand.u32 %v912, 4294901760
    %1521 = vmatmul.f32.gmra.mxu0 %v1520
    %v1522 = vpop.f32.mrf.mxu0
    %v1523 = vadd.f32 %v1416, %v1522
    %v1524 = vand.u32 %v914, 4294901760
    %1525 = vmatmul.f32.gmra.mxu0 %v1524
    %v1526 = vpop.f32.mrf.mxu0
    %v1527 = vadd.f32 %v1422, %v1526
    %1528 = vdwg.mxu0
    %1529 = vmatpush.msra.mxu0 0.0
    %1530 = vmatpush.msra.mxu0 0.0
    %1531 = vmatpush.msra.mxu0 0.0
    %1532 = vmatpush.msra.mxu0 0.0
    %1533 = vmatpush.msra.mxu0 0.0
    %1534 = vmatpush.msra.mxu0 0.0
    %1535 = vmatpush.msra.mxu0 0.0
    %1536 = vmatpush.msra.mxu0 0.0
    %v1537 = vand.u32 %v92, 4294901760
    %1538 = vmatpush.msra.mxu0 %v1537
    %v1539 = vand.u32 %v91, 4294901760
    %1540 = vmatpush.msra.mxu0 %v1539
    %v1541 = vand.u32 %v90, 4294901760
    %1542 = vmatpush.msra.mxu0 %v1541
    %v1543 = vand.u32 %v89, 4294901760
    %1544 = vmatpush.msra.mxu0 %v1543
    %v1545 = vand.u32 %v88, 4294901760
    %1546 = vmatpush.msra.mxu0 %v1545
    %v1547 = vand.u32 %v87, 4294901760
    %1548 = vmatpush.msra.mxu0 %v1547
    %v1549 = vand.u32 %v86, 4294901760
    %1550 = vmatpush.msra.mxu0 %v1549
    %v1551 = vand.u32 %v85, 4294901760
    %1552 = vmatpush.msra.mxu0 %v1551
    %v1553 = vand.u32 %v884, 4294901760
    %1554 = vmatmul.f32.gmra.mxu0 %v1553
    %v1555 = vpop.f32.mrf.mxu0
    %v1556 = vadd.f32 %v1467, %v1555
    %v1557 = vand.u32 %v886, 4294901760
    %1558 = vmatmul.f32.gmra.mxu0 %v1557
    %v1559 = vpop.f32.mrf.mxu0
    %v1560 = vadd.f32 %v1471, %v1559
    %v1561 = vand.u32 %v888, 4294901760
    %1562 = vmatmul.f32.gmra.mxu0 %v1561
    %v1563 = vpop.f32.mrf.mxu0
    %v1564 = vadd.f32 %v1475, %v1563
    %v1565 = vand.u32 %v890, 4294901760
    %1566 = vmatmul.f32.gmra.mxu0 %v1565
    %v1567 = vpop.f32.mrf.mxu0
    %v1568 = vadd.f32 %v1479, %v1567
    %v1569 = vand.u32 %v892, 4294901760
    %1570 = vmatmul.f32.gmra.mxu0 %v1569
    %v1571 = vpop.f32.mrf.mxu0
    %v1572 = vadd.f32 %v1483, %v1571
    %v1573 = vand.u32 %v894, 4294901760
    %1574 = vmatmul.f32.gmra.mxu0 %v1573
    %v1575 = vpop.f32.mrf.mxu0
    %v1576 = vadd.f32 %v1487, %v1575
    %v1577 = vand.u32 %v896, 4294901760
    %1578 = vmatmul.f32.gmra.mxu0 %v1577
    %v1579 = vpop.f32.mrf.mxu0
    %v1580 = vadd.f32 %v1491, %v1579
    %v1581 = vand.u32 %v898, 4294901760
    %1582 = vmatmul.f32.gmra.mxu0 %v1581
    %v1583 = vpop.f32.mrf.mxu0
    %v1584 = vadd.f32 %v1495, %v1583
    %v1585 = vand.u32 %v900, 4294901760
    %1586 = vmatmul.f32.gmra.mxu0 %v1585
    %v1587 = vpop.f32.mrf.mxu0
    %v1588 = vadd.f32 %v1499, %v1587
    %v1589 = vand.u32 %v902, 4294901760
    %1590 = vmatmul.f32.gmra.mxu0 %v1589
    %v1591 = vpop.f32.mrf.mxu0
    %v1592 = vadd.f32 %v1503, %v1591
    %v1593 = vand.u32 %v904, 4294901760
    %1594 = vmatmul.f32.gmra.mxu0 %v1593
    %v1595 = vpop.f32.mrf.mxu0
    %v1596 = vadd.f32 %v1507, %v1595
    %v1597 = vand.u32 %v906, 4294901760
    %1598 = vmatmul.f32.gmra.mxu0 %v1597
    %v1599 = vpop.f32.mrf.mxu0
    %v1600 = vadd.f32 %v1511, %v1599
    %v1601 = vand.u32 %v908, 4294901760
    %1602 = vmatmul.f32.gmra.mxu0 %v1601
    %v1603 = vpop.f32.mrf.mxu0
    %v1604 = vadd.f32 %v1515, %v1603
    %v1605 = vand.u32 %v910, 4294901760
    %1606 = vmatmul.f32.gmra.mxu0 %v1605
    %v1607 = vpop.f32.mrf.mxu0
    %v1608 = vadd.f32 %v1519, %v1607
    %v1609 = vand.u32 %v912, 4294901760
    %1610 = vmatmul.f32.gmra.mxu0 %v1609
    %v1611 = vpop.f32.mrf.mxu0
    %v1612 = vadd.f32 %v1523, %v1611
    %v1613 = vand.u32 %v914, 4294901760
    %1614 = vmatmul.f32.gmra.mxu0 %v1613
    %v1615 = vpop.f32.mrf.mxu0
    %v1616 = vadd.f32 %v1527, %v1615
    %1617 = vdwg.mxu0
    %v1619 = vsel %vm101, %v60, 0
    %v1622 = vsel %vm101, %v61, 0
    %v1625 = vsel %vm101, %v62, 0
    %v1628 = vsel %vm101, %v63, 0
    %v1631 = vsel %vm101, %v64, 0
    %v1634 = vsel %vm101, %v65, 0
    %v1637 = vsel %vm101, %v66, 0
    %v1640 = vsel %vm101, %v67, 0
    %v1643 = vsel %vm101, %v68, 0
    %v1646 = vsel %vm101, %v69, 0
    %v1649 = vsel %vm101, %v70, 0
    %v1652 = vsel %vm101, %v71, 0
    %v1655 = vsel %vm101, %v72, 0
    %v1658 = vsel %vm101, %v73, 0
    %v1661 = vsel %vm101, %v74, 0
    %v1664 = vsel %vm101, %v75, 0
    %1666 = vmatpush.msra.mxu0 0.0
    %1667 = vmatpush.msra.mxu0 0.0
    %1668 = vmatpush.msra.mxu0 0.0
    %1669 = vmatpush.msra.mxu0 0.0
    %1670 = vmatpush.msra.mxu0 0.0
    %1671 = vmatpush.msra.mxu0 0.0
    %1672 = vmatpush.msra.mxu0 0.0
    %1673 = vmatpush.msra.mxu0 0.0
    %v1674 = vand.u32 %v92, 4294901760
    %1675 = vmatpush.msra.mxu0 %v1674
    %v1676 = vand.u32 %v91, 4294901760
    %1677 = vmatpush.msra.mxu0 %v1676
    %v1678 = vand.u32 %v90, 4294901760
    %1679 = vmatpush.msra.mxu0 %v1678
    %v1680 = vand.u32 %v89, 4294901760
    %1681 = vmatpush.msra.mxu0 %v1680
    %v1682 = vand.u32 %v88, 4294901760
    %1683 = vmatpush.msra.mxu0 %v1682
    %v1684 = vand.u32 %v87, 4294901760
    %1685 = vmatpush.msra.mxu0 %v1684
    %v1686 = vand.u32 %v86, 4294901760
    %1687 = vmatpush.msra.mxu0 %v1686
    %v1688 = vand.u32 %v85, 4294901760
    %1689 = vmatpush.msra.mxu0 %v1688
    %v1690 = vand.u32 %v1619, 4294901760
    %v1691 = vsub.f32 %v1619, %v1690
    %v1692 = vand.u32 %v1691, 4294901760
    %v1693 = vsub.f32 %v1691, %v1692
    %v1694 = vand.u32 %v1693, 4294901760
    %1695 = vmatmul.f32.gmra.mxu0 %v1694
    %v1696 = vpop.f32.mrf.mxu0
    %v1697 = vadd.f32 0.0, %v1696
    %v1698 = vand.u32 %v1622, 4294901760
    %v1699 = vsub.f32 %v1622, %v1698
    %v1700 = vand.u32 %v1699, 4294901760
    %v1701 = vsub.f32 %v1699, %v1700
    %v1702 = vand.u32 %v1701, 4294901760
    %1703 = vmatmul.f32.gmra.mxu0 %v1702
    %v1704 = vpop.f32.mrf.mxu0
    %v1705 = vadd.f32 0.0, %v1704
    %v1706 = vand.u32 %v1625, 4294901760
    %v1707 = vsub.f32 %v1625, %v1706
    %v1708 = vand.u32 %v1707, 4294901760
    %v1709 = vsub.f32 %v1707, %v1708
    %v1710 = vand.u32 %v1709, 4294901760
    %1711 = vmatmul.f32.gmra.mxu0 %v1710
    %v1712 = vpop.f32.mrf.mxu0
    %v1713 = vadd.f32 0.0, %v1712
    %v1714 = vand.u32 %v1628, 4294901760
    %v1715 = vsub.f32 %v1628, %v1714
    %v1716 = vand.u32 %v1715, 4294901760
    %v1717 = vsub.f32 %v1715, %v1716
    %v1718 = vand.u32 %v1717, 4294901760
    %1719 = vmatmul.f32.gmra.mxu0 %v1718
    %v1720 = vpop.f32.mrf.mxu0
    %v1721 = vadd.f32 0.0, %v1720
    %v1722 = vand.u32 %v1631, 4294901760
    %v1723 = vsub.f32 %v1631, %v1722
    %v1724 = vand.u32 %v1723, 4294901760
    %v1725 = vsub.f32 %v1723, %v1724
    %v1726 = vand.u32 %v1725, 4294901760
    %1727 = vmatmul.f32.gmra.mxu0 %v1726
    %v1728 = vpop.f32.mrf.mxu0
    %v1729 = vadd.f32 0.0, %v1728
    %v1730 = vand.u32 %v1634, 4294901760
    %v1731 = vsub.f32 %v1634, %v1730
    %v1732 = vand.u32 %v1731, 4294901760
    %v1733 = vsub.f32 %v1731, %v1732
    %v1734 = vand.u32 %v1733, 4294901760
    %1735 = vmatmul.f32.gmra.mxu0 %v1734
    %v1736 = vpop.f32.mrf.mxu0
    %v1737 = vadd.f32 0.0, %v1736
    %v1738 = vand.u32 %v1637, 4294901760
    %v1739 = vsub.f32 %v1637, %v1738
    %v1740 = vand.u32 %v1739, 4294901760
    %v1741 = vsub.f32 %v1739, %v1740
    %v1742 = vand.u32 %v1741, 4294901760
    %1743 = vmatmul.f32.gmra.mxu0 %v1742
    %v1744 = vpop.f32.mrf.mxu0
    %v1745 = vadd.f32 0.0, %v1744
    %v1746 = vand.u32 %v1640, 4294901760
    %v1747 = vsub.f32 %v1640, %v1746
    %v1748 = vand.u32 %v1747, 4294901760
    %v1749 = vsub.f32 %v1747, %v1748
    %v1750 = vand.u32 %v1749, 4294901760
    %1751 = vmatmul.f32.gmra.mxu0 %v1750
    %v1752 = vpop.f32.mrf.mxu0
    %v1753 = vadd.f32 0.0, %v1752
    %v1754 = vand.u32 %v1643, 4294901760
    %v1755 = vsub.f32 %v1643, %v1754
    %v1756 = vand.u32 %v1755, 4294901760
    %v1757 = vsub.f32 %v1755, %v1756
    %v1758 = vand.u32 %v1757, 4294901760
    %1759 = vmatmul.f32.gmra.mxu0 %v1758
    %v1760 = vpop.f32.mrf.mxu0
    %v1761 = vadd.f32 0.0, %v1760
    %v1762 = vand.u32 %v1646, 4294901760
    %v1763 = vsub.f32 %v1646, %v1762
    %v1764 = vand.u32 %v1763, 4294901760
    %v1765 = vsub.f32 %v1763, %v1764
    %v1766 = vand.u32 %v1765, 4294901760
    %1767 = vmatmul.f32.gmra.mxu0 %v1766
    %v1768 = vpop.f32.mrf.mxu0
    %v1769 = vadd.f32 0.0, %v1768
    %v1770 = vand.u32 %v1649, 4294901760
    %v1771 = vsub.f32 %v1649, %v1770
    %v1772 = vand.u32 %v1771, 4294901760
    %v1773 = vsub.f32 %v1771, %v1772
    %v1774 = vand.u32 %v1773, 4294901760
    %1775 = vmatmul.f32.gmra.mxu0 %v1774
    %v1776 = vpop.f32.mrf.mxu0
    %v1777 = vadd.f32 0.0, %v1776
    %v1778 = vand.u32 %v1652, 4294901760
    %v1779 = vsub.f32 %v1652, %v1778
    %v1780 = vand.u32 %v1779, 4294901760
    %v1781 = vsub.f32 %v1779, %v1780
    %v1782 = vand.u32 %v1781, 4294901760
    %1783 = vmatmul.f32.gmra.mxu0 %v1782
    %v1784 = vpop.f32.mrf.mxu0
    %v1785 = vadd.f32 0.0, %v1784
    %v1786 = vand.u32 %v1655, 4294901760
    %v1787 = vsub.f32 %v1655, %v1786
    %v1788 = vand.u32 %v1787, 4294901760
    %v1789 = vsub.f32 %v1787, %v1788
    %v1790 = vand.u32 %v1789, 4294901760
    %1791 = vmatmul.f32.gmra.mxu0 %v1790
    %v1792 = vpop.f32.mrf.mxu0
    %v1793 = vadd.f32 0.0, %v1792
    %v1794 = vand.u32 %v1658, 4294901760
    %v1795 = vsub.f32 %v1658, %v1794
    %v1796 = vand.u32 %v1795, 4294901760
    %v1797 = vsub.f32 %v1795, %v1796
    %v1798 = vand.u32 %v1797, 4294901760
    %1799 = vmatmul.f32.gmra.mxu0 %v1798
    %v1800 = vpop.f32.mrf.mxu0
    %v1801 = vadd.f32 0.0, %v1800
    %v1802 = vand.u32 %v1661, 4294901760
    %v1803 = vsub.f32 %v1661, %v1802
    %v1804 = vand.u32 %v1803, 4294901760
    %v1805 = vsub.f32 %v1803, %v1804
    %v1806 = vand.u32 %v1805, 4294901760
    %1807 = vmatmul.f32.gmra.mxu0 %v1806
    %v1808 = vpop.f32.mrf.mxu0
    %v1809 = vadd.f32 0.0, %v1808
    %v1810 = vand.u32 %v1664, 4294901760
    %v1811 = vsub.f32 %v1664, %v1810
    %v1812 = vand.u32 %v1811, 4294901760
    %v1813 = vsub.f32 %v1811, %v1812
    %v1814 = vand.u32 %v1813, 4294901760
    %1815 = vmatmul.f32.gmra.mxu0 %v1814
    %v1816 = vpop.f32.mrf.mxu0
    %v1817 = vadd.f32 0.0, %v1816
    %1818 = vdwg.mxu0
    %1819 = vmatpush.msra.mxu0 0.0
    %1820 = vmatpush.msra.mxu0 0.0
    %1821 = vmatpush.msra.mxu0 0.0
    %1822 = vmatpush.msra.mxu0 0.0
    %1823 = vmatpush.msra.mxu0 0.0
    %1824 = vmatpush.msra.mxu0 0.0
    %1825 = vmatpush.msra.mxu0 0.0
    %1826 = vmatpush.msra.mxu0 0.0
    %v1827 = vand.u32 %v92, 4294901760
    %v1828 = vsub.f32 %v92, %v1827
    %v1829 = vand.u32 %v1828, 4294901760
    %v1830 = vsub.f32 %v1828, %v1829
    %v1831 = vand.u32 %v1830, 4294901760
    %1832 = vmatpush.msra.mxu0 %v1831
    %v1833 = vand.u32 %v91, 4294901760
    %v1834 = vsub.f32 %v91, %v1833
    %v1835 = vand.u32 %v1834, 4294901760
    %v1836 = vsub.f32 %v1834, %v1835
    %v1837 = vand.u32 %v1836, 4294901760
    %1838 = vmatpush.msra.mxu0 %v1837
    %v1839 = vand.u32 %v90, 4294901760
    %v1840 = vsub.f32 %v90, %v1839
    %v1841 = vand.u32 %v1840, 4294901760
    %v1842 = vsub.f32 %v1840, %v1841
    %v1843 = vand.u32 %v1842, 4294901760
    %1844 = vmatpush.msra.mxu0 %v1843
    %v1845 = vand.u32 %v89, 4294901760
    %v1846 = vsub.f32 %v89, %v1845
    %v1847 = vand.u32 %v1846, 4294901760
    %v1848 = vsub.f32 %v1846, %v1847
    %v1849 = vand.u32 %v1848, 4294901760
    %1850 = vmatpush.msra.mxu0 %v1849
    %v1851 = vand.u32 %v88, 4294901760
    %v1852 = vsub.f32 %v88, %v1851
    %v1853 = vand.u32 %v1852, 4294901760
    %v1854 = vsub.f32 %v1852, %v1853
    %v1855 = vand.u32 %v1854, 4294901760
    %1856 = vmatpush.msra.mxu0 %v1855
    %v1857 = vand.u32 %v87, 4294901760
    %v1858 = vsub.f32 %v87, %v1857
    %v1859 = vand.u32 %v1858, 4294901760
    %v1860 = vsub.f32 %v1858, %v1859
    %v1861 = vand.u32 %v1860, 4294901760
    %1862 = vmatpush.msra.mxu0 %v1861
    %v1863 = vand.u32 %v86, 4294901760
    %v1864 = vsub.f32 %v86, %v1863
    %v1865 = vand.u32 %v1864, 4294901760
    %v1866 = vsub.f32 %v1864, %v1865
    %v1867 = vand.u32 %v1866, 4294901760
    %1868 = vmatpush.msra.mxu0 %v1867
    %v1869 = vand.u32 %v85, 4294901760
    %v1870 = vsub.f32 %v85, %v1869
    %v1871 = vand.u32 %v1870, 4294901760
    %v1872 = vsub.f32 %v1870, %v1871
    %v1873 = vand.u32 %v1872, 4294901760
    %1874 = vmatpush.msra.mxu0 %v1873
    %v1875 = vand.u32 %v1619, 4294901760
    %1876 = vmatmul.f32.gmra.mxu0 %v1875
    %v1877 = vpop.f32.mrf.mxu0
    %v1878 = vadd.f32 %v1697, %v1877
    %v1879 = vand.u32 %v1622, 4294901760
    %1880 = vmatmul.f32.gmra.mxu0 %v1879
    %v1881 = vpop.f32.mrf.mxu0
    %v1882 = vadd.f32 %v1705, %v1881
    %v1883 = vand.u32 %v1625, 4294901760
    %1884 = vmatmul.f32.gmra.mxu0 %v1883
    %v1885 = vpop.f32.mrf.mxu0
    %v1886 = vadd.f32 %v1713, %v1885
    %v1887 = vand.u32 %v1628, 4294901760
    %1888 = vmatmul.f32.gmra.mxu0 %v1887
    %v1889 = vpop.f32.mrf.mxu0
    %v1890 = vadd.f32 %v1721, %v1889
    %v1891 = vand.u32 %v1631, 4294901760
    %1892 = vmatmul.f32.gmra.mxu0 %v1891
    %v1893 = vpop.f32.mrf.mxu0
    %v1894 = vadd.f32 %v1729, %v1893
    %v1895 = vand.u32 %v1634, 4294901760
    %1896 = vmatmul.f32.gmra.mxu0 %v1895
    %v1897 = vpop.f32.mrf.mxu0
    %v1898 = vadd.f32 %v1737, %v1897
    %v1899 = vand.u32 %v1637, 4294901760
    %1900 = vmatmul.f32.gmra.mxu0 %v1899
    %v1901 = vpop.f32.mrf.mxu0
    %v1902 = vadd.f32 %v1745, %v1901
    %v1903 = vand.u32 %v1640, 4294901760
    %1904 = vmatmul.f32.gmra.mxu0 %v1903
    %v1905 = vpop.f32.mrf.mxu0
    %v1906 = vadd.f32 %v1753, %v1905
    %v1907 = vand.u32 %v1643, 4294901760
    %1908 = vmatmul.f32.gmra.mxu0 %v1907
    %v1909 = vpop.f32.mrf.mxu0
    %v1910 = vadd.f32 %v1761, %v1909
    %v1911 = vand.u32 %v1646, 4294901760
    %1912 = vmatmul.f32.gmra.mxu0 %v1911
    %v1913 = vpop.f32.mrf.mxu0
    %v1914 = vadd.f32 %v1769, %v1913
    %v1915 = vand.u32 %v1649, 4294901760
    %1916 = vmatmul.f32.gmra.mxu0 %v1915
    %v1917 = vpop.f32.mrf.mxu0
    %v1918 = vadd.f32 %v1777, %v1917
    %v1919 = vand.u32 %v1652, 4294901760
    %1920 = vmatmul.f32.gmra.mxu0 %v1919
    %v1921 = vpop.f32.mrf.mxu0
    %v1922 = vadd.f32 %v1785, %v1921
    %v1923 = vand.u32 %v1655, 4294901760
    %1924 = vmatmul.f32.gmra.mxu0 %v1923
    %v1925 = vpop.f32.mrf.mxu0
    %v1926 = vadd.f32 %v1793, %v1925
    %v1927 = vand.u32 %v1658, 4294901760
    %1928 = vmatmul.f32.gmra.mxu0 %v1927
    %v1929 = vpop.f32.mrf.mxu0
    %v1930 = vadd.f32 %v1801, %v1929
    %v1931 = vand.u32 %v1661, 4294901760
    %1932 = vmatmul.f32.gmra.mxu0 %v1931
    %v1933 = vpop.f32.mrf.mxu0
    %v1934 = vadd.f32 %v1809, %v1933
    %v1935 = vand.u32 %v1664, 4294901760
    %1936 = vmatmul.f32.gmra.mxu0 %v1935
    %v1937 = vpop.f32.mrf.mxu0
    %v1938 = vadd.f32 %v1817, %v1937
    %1939 = vdwg.mxu0
    %1940 = vmatpush.msra.mxu0 0.0
    %1941 = vmatpush.msra.mxu0 0.0
    %1942 = vmatpush.msra.mxu0 0.0
    %1943 = vmatpush.msra.mxu0 0.0
    %1944 = vmatpush.msra.mxu0 0.0
    %1945 = vmatpush.msra.mxu0 0.0
    %1946 = vmatpush.msra.mxu0 0.0
    %1947 = vmatpush.msra.mxu0 0.0
    %v1948 = vand.u32 %v92, 4294901760
    %v1949 = vsub.f32 %v92, %v1948
    %1950 = vmatpush.msra.mxu0 %v1949
    %v1951 = vand.u32 %v91, 4294901760
    %v1952 = vsub.f32 %v91, %v1951
    %1953 = vmatpush.msra.mxu0 %v1952
    %v1954 = vand.u32 %v90, 4294901760
    %v1955 = vsub.f32 %v90, %v1954
    %1956 = vmatpush.msra.mxu0 %v1955
    %v1957 = vand.u32 %v89, 4294901760
    %v1958 = vsub.f32 %v89, %v1957
    %1959 = vmatpush.msra.mxu0 %v1958
    %v1960 = vand.u32 %v88, 4294901760
    %v1961 = vsub.f32 %v88, %v1960
    %1962 = vmatpush.msra.mxu0 %v1961
    %v1963 = vand.u32 %v87, 4294901760
    %v1964 = vsub.f32 %v87, %v1963
    %1965 = vmatpush.msra.mxu0 %v1964
    %v1966 = vand.u32 %v86, 4294901760
    %v1967 = vsub.f32 %v86, %v1966
    %1968 = vmatpush.msra.mxu0 %v1967
    %v1969 = vand.u32 %v85, 4294901760
    %v1970 = vsub.f32 %v85, %v1969
    %1971 = vmatpush.msra.mxu0 %v1970
    %v1972 = vand.u32 %v1619, 4294901760
    %v1973 = vsub.f32 %v1619, %v1972
    %1974 = vmatmul.f32.gmra.mxu0 %v1973
    %v1975 = vpop.f32.mrf.mxu0
    %v1976 = vadd.f32 %v1878, %v1975
    %v1977 = vand.u32 %v1622, 4294901760
    %v1978 = vsub.f32 %v1622, %v1977
    %1979 = vmatmul.f32.gmra.mxu0 %v1978
    %v1980 = vpop.f32.mrf.mxu0
    %v1981 = vadd.f32 %v1882, %v1980
    %v1982 = vand.u32 %v1625, 4294901760
    %v1983 = vsub.f32 %v1625, %v1982
    %1984 = vmatmul.f32.gmra.mxu0 %v1983
    %v1985 = vpop.f32.mrf.mxu0
    %v1986 = vadd.f32 %v1886, %v1985
    %v1987 = vand.u32 %v1628, 4294901760
    %v1988 = vsub.f32 %v1628, %v1987
    %1989 = vmatmul.f32.gmra.mxu0 %v1988
    %v1990 = vpop.f32.mrf.mxu0
    %v1991 = vadd.f32 %v1890, %v1990
    %v1992 = vand.u32 %v1631, 4294901760
    %v1993 = vsub.f32 %v1631, %v1992
    %1994 = vmatmul.f32.gmra.mxu0 %v1993
    %v1995 = vpop.f32.mrf.mxu0
    %v1996 = vadd.f32 %v1894, %v1995
    %v1997 = vand.u32 %v1634, 4294901760
    %v1998 = vsub.f32 %v1634, %v1997
    %1999 = vmatmul.f32.gmra.mxu0 %v1998
    %v2000 = vpop.f32.mrf.mxu0
    %v2001 = vadd.f32 %v1898, %v2000
    %v2002 = vand.u32 %v1637, 4294901760
    %v2003 = vsub.f32 %v1637, %v2002
    %2004 = vmatmul.f32.gmra.mxu0 %v2003
    %v2005 = vpop.f32.mrf.mxu0
    %v2006 = vadd.f32 %v1902, %v2005
    %v2007 = vand.u32 %v1640, 4294901760
    %v2008 = vsub.f32 %v1640, %v2007
    %2009 = vmatmul.f32.gmra.mxu0 %v2008
    %v2010 = vpop.f32.mrf.mxu0
    %v2011 = vadd.f32 %v1906, %v2010
    %v2012 = vand.u32 %v1643, 4294901760
    %v2013 = vsub.f32 %v1643, %v2012
    %2014 = vmatmul.f32.gmra.mxu0 %v2013
    %v2015 = vpop.f32.mrf.mxu0
    %v2016 = vadd.f32 %v1910, %v2015
    %v2017 = vand.u32 %v1646, 4294901760
    %v2018 = vsub.f32 %v1646, %v2017
    %2019 = vmatmul.f32.gmra.mxu0 %v2018
    %v2020 = vpop.f32.mrf.mxu0
    %v2021 = vadd.f32 %v1914, %v2020
    %v2022 = vand.u32 %v1649, 4294901760
    %v2023 = vsub.f32 %v1649, %v2022
    %2024 = vmatmul.f32.gmra.mxu0 %v2023
    %v2025 = vpop.f32.mrf.mxu0
    %v2026 = vadd.f32 %v1918, %v2025
    %v2027 = vand.u32 %v1652, 4294901760
    %v2028 = vsub.f32 %v1652, %v2027
    %2029 = vmatmul.f32.gmra.mxu0 %v2028
    %v2030 = vpop.f32.mrf.mxu0
    %v2031 = vadd.f32 %v1922, %v2030
    %v2032 = vand.u32 %v1655, 4294901760
    %v2033 = vsub.f32 %v1655, %v2032
    %2034 = vmatmul.f32.gmra.mxu0 %v2033
    %v2035 = vpop.f32.mrf.mxu0
    %v2036 = vadd.f32 %v1926, %v2035
    %v2037 = vand.u32 %v1658, 4294901760
    %v2038 = vsub.f32 %v1658, %v2037
    %2039 = vmatmul.f32.gmra.mxu0 %v2038
    %v2040 = vpop.f32.mrf.mxu0
    %v2041 = vadd.f32 %v1930, %v2040
    %v2042 = vand.u32 %v1661, 4294901760
    %v2043 = vsub.f32 %v1661, %v2042
    %2044 = vmatmul.f32.gmra.mxu0 %v2043
    %v2045 = vpop.f32.mrf.mxu0
    %v2046 = vadd.f32 %v1934, %v2045
    %v2047 = vand.u32 %v1664, 4294901760
    %v2048 = vsub.f32 %v1664, %v2047
    %2049 = vmatmul.f32.gmra.mxu0 %v2048
    %v2050 = vpop.f32.mrf.mxu0
    %v2051 = vadd.f32 %v1938, %v2050
    %2052 = vdwg.mxu0
    %2053 = vmatpush.msra.mxu0 0.0
    %2054 = vmatpush.msra.mxu0 0.0
    %2055 = vmatpush.msra.mxu0 0.0
    %2056 = vmatpush.msra.mxu0 0.0
    %2057 = vmatpush.msra.mxu0 0.0
    %2058 = vmatpush.msra.mxu0 0.0
    %2059 = vmatpush.msra.mxu0 0.0
    %2060 = vmatpush.msra.mxu0 0.0
    %v2061 = vand.u32 %v92, 4294901760
    %2062 = vmatpush.msra.mxu0 %v2061
    %v2063 = vand.u32 %v91, 4294901760
    %2064 = vmatpush.msra.mxu0 %v2063
    %v2065 = vand.u32 %v90, 4294901760
    %2066 = vmatpush.msra.mxu0 %v2065
    %v2067 = vand.u32 %v89, 4294901760
    %2068 = vmatpush.msra.mxu0 %v2067
    %v2069 = vand.u32 %v88, 4294901760
    %2070 = vmatpush.msra.mxu0 %v2069
    %v2071 = vand.u32 %v87, 4294901760
    %2072 = vmatpush.msra.mxu0 %v2071
    %v2073 = vand.u32 %v86, 4294901760
    %2074 = vmatpush.msra.mxu0 %v2073
    %v2075 = vand.u32 %v85, 4294901760
    %2076 = vmatpush.msra.mxu0 %v2075
    %v2077 = vand.u32 %v1619, 4294901760
    %v2078 = vsub.f32 %v1619, %v2077
    %v2079 = vand.u32 %v2078, 4294901760
    %2080 = vmatmul.f32.gmra.mxu0 %v2079
    %v2081 = vpop.f32.mrf.mxu0
    %v2082 = vadd.f32 %v1976, %v2081
    %v2083 = vand.u32 %v1622, 4294901760
    %v2084 = vsub.f32 %v1622, %v2083
    %v2085 = vand.u32 %v2084, 4294901760
    %2086 = vmatmul.f32.gmra.mxu0 %v2085
    %v2087 = vpop.f32.mrf.mxu0
    %v2088 = vadd.f32 %v1981, %v2087
    %v2089 = vand.u32 %v1625, 4294901760
    %v2090 = vsub.f32 %v1625, %v2089
    %v2091 = vand.u32 %v2090, 4294901760
    %2092 = vmatmul.f32.gmra.mxu0 %v2091
    %v2093 = vpop.f32.mrf.mxu0
    %v2094 = vadd.f32 %v1986, %v2093
    %v2095 = vand.u32 %v1628, 4294901760
    %v2096 = vsub.f32 %v1628, %v2095
    %v2097 = vand.u32 %v2096, 4294901760
    %2098 = vmatmul.f32.gmra.mxu0 %v2097
    %v2099 = vpop.f32.mrf.mxu0
    %v2100 = vadd.f32 %v1991, %v2099
    %v2101 = vand.u32 %v1631, 4294901760
    %v2102 = vsub.f32 %v1631, %v2101
    %v2103 = vand.u32 %v2102, 4294901760
    %2104 = vmatmul.f32.gmra.mxu0 %v2103
    %v2105 = vpop.f32.mrf.mxu0
    %v2106 = vadd.f32 %v1996, %v2105
    %v2107 = vand.u32 %v1634, 4294901760
    %v2108 = vsub.f32 %v1634, %v2107
    %v2109 = vand.u32 %v2108, 4294901760
    %2110 = vmatmul.f32.gmra.mxu0 %v2109
    %v2111 = vpop.f32.mrf.mxu0
    %v2112 = vadd.f32 %v2001, %v2111
    %v2113 = vand.u32 %v1637, 4294901760
    %v2114 = vsub.f32 %v1637, %v2113
    %v2115 = vand.u32 %v2114, 4294901760
    %2116 = vmatmul.f32.gmra.mxu0 %v2115
    %v2117 = vpop.f32.mrf.mxu0
    %v2118 = vadd.f32 %v2006, %v2117
    %v2119 = vand.u32 %v1640, 4294901760
    %v2120 = vsub.f32 %v1640, %v2119
    %v2121 = vand.u32 %v2120, 4294901760
    %2122 = vmatmul.f32.gmra.mxu0 %v2121
    %v2123 = vpop.f32.mrf.mxu0
    %v2124 = vadd.f32 %v2011, %v2123
    %v2125 = vand.u32 %v1643, 4294901760
    %v2126 = vsub.f32 %v1643, %v2125
    %v2127 = vand.u32 %v2126, 4294901760
    %2128 = vmatmul.f32.gmra.mxu0 %v2127
    %v2129 = vpop.f32.mrf.mxu0
    %v2130 = vadd.f32 %v2016, %v2129
    %v2131 = vand.u32 %v1646, 4294901760
    %v2132 = vsub.f32 %v1646, %v2131
    %v2133 = vand.u32 %v2132, 4294901760
    %2134 = vmatmul.f32.gmra.mxu0 %v2133
    %v2135 = vpop.f32.mrf.mxu0
    %v2136 = vadd.f32 %v2021, %v2135
    %v2137 = vand.u32 %v1649, 4294901760
    %v2138 = vsub.f32 %v1649, %v2137
    %v2139 = vand.u32 %v2138, 4294901760
    %2140 = vmatmul.f32.gmra.mxu0 %v2139
    %v2141 = vpop.f32.mrf.mxu0
    %v2142 = vadd.f32 %v2026, %v2141
    %v2143 = vand.u32 %v1652, 4294901760
    %v2144 = vsub.f32 %v1652, %v2143
    %v2145 = vand.u32 %v2144, 4294901760
    %2146 = vmatmul.f32.gmra.mxu0 %v2145
    %v2147 = vpop.f32.mrf.mxu0
    %v2148 = vadd.f32 %v2031, %v2147
    %v2149 = vand.u32 %v1655, 4294901760
    %v2150 = vsub.f32 %v1655, %v2149
    %v2151 = vand.u32 %v2150, 4294901760
    %2152 = vmatmul.f32.gmra.mxu0 %v2151
    %v2153 = vpop.f32.mrf.mxu0
    %v2154 = vadd.f32 %v2036, %v2153
    %v2155 = vand.u32 %v1658, 4294901760
    %v2156 = vsub.f32 %v1658, %v2155
    %v2157 = vand.u32 %v2156, 4294901760
    %2158 = vmatmul.f32.gmra.mxu0 %v2157
    %v2159 = vpop.f32.mrf.mxu0
    %v2160 = vadd.f32 %v2041, %v2159
    %v2161 = vand.u32 %v1661, 4294901760
    %v2162 = vsub.f32 %v1661, %v2161
    %v2163 = vand.u32 %v2162, 4294901760
    %2164 = vmatmul.f32.gmra.mxu0 %v2163
    %v2165 = vpop.f32.mrf.mxu0
    %v2166 = vadd.f32 %v2046, %v2165
    %v2167 = vand.u32 %v1664, 4294901760
    %v2168 = vsub.f32 %v1664, %v2167
    %v2169 = vand.u32 %v2168, 4294901760
    %2170 = vmatmul.f32.gmra.mxu0 %v2169
    %v2171 = vpop.f32.mrf.mxu0
    %v2172 = vadd.f32 %v2051, %v2171
    %2173 = vdwg.mxu0
    %2174 = vmatpush.msra.mxu0 0.0
    %2175 = vmatpush.msra.mxu0 0.0
    %2176 = vmatpush.msra.mxu0 0.0
    %2177 = vmatpush.msra.mxu0 0.0
    %2178 = vmatpush.msra.mxu0 0.0
    %2179 = vmatpush.msra.mxu0 0.0
    %2180 = vmatpush.msra.mxu0 0.0
    %2181 = vmatpush.msra.mxu0 0.0
    %v2182 = vand.u32 %v92, 4294901760
    %v2183 = vsub.f32 %v92, %v2182
    %v2184 = vand.u32 %v2183, 4294901760
    %2185 = vmatpush.msra.mxu0 %v2184
    %v2186 = vand.u32 %v91, 4294901760
    %v2187 = vsub.f32 %v91, %v2186
    %v2188 = vand.u32 %v2187, 4294901760
    %2189 = vmatpush.msra.mxu0 %v2188
    %v2190 = vand.u32 %v90, 4294901760
    %v2191 = vsub.f32 %v90, %v2190
    %v2192 = vand.u32 %v2191, 4294901760
    %2193 = vmatpush.msra.mxu0 %v2192
    %v2194 = vand.u32 %v89, 4294901760
    %v2195 = vsub.f32 %v89, %v2194
    %v2196 = vand.u32 %v2195, 4294901760
    %2197 = vmatpush.msra.mxu0 %v2196
    %v2198 = vand.u32 %v88, 4294901760
    %v2199 = vsub.f32 %v88, %v2198
    %v2200 = vand.u32 %v2199, 4294901760
    %2201 = vmatpush.msra.mxu0 %v2200
    %v2202 = vand.u32 %v87, 4294901760
    %v2203 = vsub.f32 %v87, %v2202
    %v2204 = vand.u32 %v2203, 4294901760
    %2205 = vmatpush.msra.mxu0 %v2204
    %v2206 = vand.u32 %v86, 4294901760
    %v2207 = vsub.f32 %v86, %v2206
    %v2208 = vand.u32 %v2207, 4294901760
    %2209 = vmatpush.msra.mxu0 %v2208
    %v2210 = vand.u32 %v85, 4294901760
    %v2211 = vsub.f32 %v85, %v2210
    %v2212 = vand.u32 %v2211, 4294901760
    %2213 = vmatpush.msra.mxu0 %v2212
    %v2214 = vand.u32 %v1619, 4294901760
    %2215 = vmatmul.f32.gmra.mxu0 %v2214
    %v2216 = vpop.f32.mrf.mxu0
    %v2217 = vadd.f32 %v2082, %v2216
    %v2218 = vand.u32 %v1622, 4294901760
    %2219 = vmatmul.f32.gmra.mxu0 %v2218
    %v2220 = vpop.f32.mrf.mxu0
    %v2221 = vadd.f32 %v2088, %v2220
    %v2222 = vand.u32 %v1625, 4294901760
    %2223 = vmatmul.f32.gmra.mxu0 %v2222
    %v2224 = vpop.f32.mrf.mxu0
    %v2225 = vadd.f32 %v2094, %v2224
    %v2226 = vand.u32 %v1628, 4294901760
    %2227 = vmatmul.f32.gmra.mxu0 %v2226
    %v2228 = vpop.f32.mrf.mxu0
    %v2229 = vadd.f32 %v2100, %v2228
    %v2230 = vand.u32 %v1631, 4294901760
    %2231 = vmatmul.f32.gmra.mxu0 %v2230
    %v2232 = vpop.f32.mrf.mxu0
    %v2233 = vadd.f32 %v2106, %v2232
    %v2234 = vand.u32 %v1634, 4294901760
    %2235 = vmatmul.f32.gmra.mxu0 %v2234
    %v2236 = vpop.f32.mrf.mxu0
    %v2237 = vadd.f32 %v2112, %v2236
    %v2238 = vand.u32 %v1637, 4294901760
    %2239 = vmatmul.f32.gmra.mxu0 %v2238
    %v2240 = vpop.f32.mrf.mxu0
    %v2241 = vadd.f32 %v2118, %v2240
    %v2242 = vand.u32 %v1640, 4294901760
    %2243 = vmatmul.f32.gmra.mxu0 %v2242
    %v2244 = vpop.f32.mrf.mxu0
    %v2245 = vadd.f32 %v2124, %v2244
    %v2246 = vand.u32 %v1643, 4294901760
    %2247 = vmatmul.f32.gmra.mxu0 %v2246
    %v2248 = vpop.f32.mrf.mxu0
    %v2249 = vadd.f32 %v2130, %v2248
    %v2250 = vand.u32 %v1646, 4294901760
    %2251 = vmatmul.f32.gmra.mxu0 %v2250
    %v2252 = vpop.f32.mrf.mxu0
    %v2253 = vadd.f32 %v2136, %v2252
    %v2254 = vand.u32 %v1649, 4294901760
    %2255 = vmatmul.f32.gmra.mxu0 %v2254
    %v2256 = vpop.f32.mrf.mxu0
    %v2257 = vadd.f32 %v2142, %v2256
    %v2258 = vand.u32 %v1652, 4294901760
    %2259 = vmatmul.f32.gmra.mxu0 %v2258
    %v2260 = vpop.f32.mrf.mxu0
    %v2261 = vadd.f32 %v2148, %v2260
    %v2262 = vand.u32 %v1655, 4294901760
    %2263 = vmatmul.f32.gmra.mxu0 %v2262
    %v2264 = vpop.f32.mrf.mxu0
    %v2265 = vadd.f32 %v2154, %v2264
    %v2266 = vand.u32 %v1658, 4294901760
    %2267 = vmatmul.f32.gmra.mxu0 %v2266
    %v2268 = vpop.f32.mrf.mxu0
    %v2269 = vadd.f32 %v2160, %v2268
    %v2270 = vand.u32 %v1661, 4294901760
    %2271 = vmatmul.f32.gmra.mxu0 %v2270
    %v2272 = vpop.f32.mrf.mxu0
    %v2273 = vadd.f32 %v2166, %v2272
    %v2274 = vand.u32 %v1664, 4294901760
    %2275 = vmatmul.f32.gmra.mxu0 %v2274
    %v2276 = vpop.f32.mrf.mxu0
    %v2277 = vadd.f32 %v2172, %v2276
    %2278 = vdwg.mxu0
    %2279 = vmatpush.msra.mxu0 0.0
    %2280 = vmatpush.msra.mxu0 0.0
    %2281 = vmatpush.msra.mxu0 0.0
    %2282 = vmatpush.msra.mxu0 0.0
    %2283 = vmatpush.msra.mxu0 0.0
    %2284 = vmatpush.msra.mxu0 0.0
    %2285 = vmatpush.msra.mxu0 0.0
    %2286 = vmatpush.msra.mxu0 0.0
    %v2287 = vand.u32 %v92, 4294901760
    %2288 = vmatpush.msra.mxu0 %v2287
    %v2289 = vand.u32 %v91, 4294901760
    %2290 = vmatpush.msra.mxu0 %v2289
    %v2291 = vand.u32 %v90, 4294901760
    %2292 = vmatpush.msra.mxu0 %v2291
    %v2293 = vand.u32 %v89, 4294901760
    %2294 = vmatpush.msra.mxu0 %v2293
    %v2295 = vand.u32 %v88, 4294901760
    %2296 = vmatpush.msra.mxu0 %v2295
    %v2297 = vand.u32 %v87, 4294901760
    %2298 = vmatpush.msra.mxu0 %v2297
    %v2299 = vand.u32 %v86, 4294901760
    %2300 = vmatpush.msra.mxu0 %v2299
    %v2301 = vand.u32 %v85, 4294901760
    %2302 = vmatpush.msra.mxu0 %v2301
    %v2303 = vand.u32 %v1619, 4294901760
    %2304 = vmatmul.f32.gmra.mxu0 %v2303
    %v2305 = vpop.f32.mrf.mxu0
    %v2306 = vadd.f32 %v2217, %v2305
    %v2307 = vand.u32 %v1622, 4294901760
    %2308 = vmatmul.f32.gmra.mxu0 %v2307
    %v2309 = vpop.f32.mrf.mxu0
    %v2310 = vadd.f32 %v2221, %v2309
    %v2311 = vand.u32 %v1625, 4294901760
    %2312 = vmatmul.f32.gmra.mxu0 %v2311
    %v2313 = vpop.f32.mrf.mxu0
    %v2314 = vadd.f32 %v2225, %v2313
    %v2315 = vand.u32 %v1628, 4294901760
    %2316 = vmatmul.f32.gmra.mxu0 %v2315
    %v2317 = vpop.f32.mrf.mxu0
    %v2318 = vadd.f32 %v2229, %v2317
    %v2319 = vand.u32 %v1631, 4294901760
    %2320 = vmatmul.f32.gmra.mxu0 %v2319
    %v2321 = vpop.f32.mrf.mxu0
    %v2322 = vadd.f32 %v2233, %v2321
    %v2323 = vand.u32 %v1634, 4294901760
    %2324 = vmatmul.f32.gmra.mxu0 %v2323
    %v2325 = vpop.f32.mrf.mxu0
    %v2326 = vadd.f32 %v2237, %v2325
    %v2327 = vand.u32 %v1637, 4294901760
    %2328 = vmatmul.f32.gmra.mxu0 %v2327
    %v2329 = vpop.f32.mrf.mxu0
    %v2330 = vadd.f32 %v2241, %v2329
    %v2331 = vand.u32 %v1640, 4294901760
    %2332 = vmatmul.f32.gmra.mxu0 %v2331
    %v2333 = vpop.f32.mrf.mxu0
    %v2334 = vadd.f32 %v2245, %v2333
    %v2335 = vand.u32 %v1643, 4294901760
    %2336 = vmatmul.f32.gmra.mxu0 %v2335
    %v2337 = vpop.f32.mrf.mxu0
    %v2338 = vadd.f32 %v2249, %v2337
    %v2339 = vand.u32 %v1646, 4294901760
    %2340 = vmatmul.f32.gmra.mxu0 %v2339
    %v2341 = vpop.f32.mrf.mxu0
    %v2342 = vadd.f32 %v2253, %v2341
    %v2343 = vand.u32 %v1649, 4294901760
    %2344 = vmatmul.f32.gmra.mxu0 %v2343
    %v2345 = vpop.f32.mrf.mxu0
    %v2346 = vadd.f32 %v2257, %v2345
    %v2347 = vand.u32 %v1652, 4294901760
    %2348 = vmatmul.f32.gmra.mxu0 %v2347
    %v2349 = vpop.f32.mrf.mxu0
    %v2350 = vadd.f32 %v2261, %v2349
    %v2351 = vand.u32 %v1655, 4294901760
    %2352 = vmatmul.f32.gmra.mxu0 %v2351
    %v2353 = vpop.f32.mrf.mxu0
    %v2354 = vadd.f32 %v2265, %v2353
    %v2355 = vand.u32 %v1658, 4294901760
    %2356 = vmatmul.f32.gmra.mxu0 %v2355
    %v2357 = vpop.f32.mrf.mxu0
    %v2358 = vadd.f32 %v2269, %v2357
    %v2359 = vand.u32 %v1661, 4294901760
    %2360 = vmatmul.f32.gmra.mxu0 %v2359
    %v2361 = vpop.f32.mrf.mxu0
    %v2362 = vadd.f32 %v2273, %v2361
    %v2363 = vand.u32 %v1664, 4294901760
    %2364 = vmatmul.f32.gmra.mxu0 %v2363
    %v2365 = vpop.f32.mrf.mxu0
    %v2366 = vadd.f32 %v2277, %v2365
    %2367 = vdwg.mxu0
    %vm2368 = vcmask 130048
    %v2370 = vsel %vm2368, %v790, 0
    %v2373 = vsel %vm2368, %v794, 0
    %v2376 = vsel %vm2368, %v798, 0
    %v2379 = vsel %vm2368, %v802, 0
    %v2382 = vsel %vm2368, %v806, 0
    %v2385 = vsel %vm2368, %v810, 0
    %v2388 = vsel %vm2368, %v814, 0
    %v2391 = vsel %vm2368, %v818, 0
    %v2394 = vsel %vm2368, %v822, 0
    %v2397 = vsel %vm2368, %v826, 0
    %v2400 = vsel %vm2368, %v830, 0
    %v2403 = vsel %vm2368, %v834, 0
    %v2406 = vsel %vm2368, %v838, 0
    %v2409 = vsel %vm2368, %v842, 0
    %v2412 = vsel %vm2368, %v846, 0
    %v2415 = vsel %vm2368, %v850, 0
    %2417 = vmatpush.msra.mxu0 0.0
    %2418 = vmatpush.msra.mxu0 0.0
    %2419 = vmatpush.msra.mxu0 0.0
    %2420 = vmatpush.msra.mxu0 0.0
    %2421 = vmatpush.msra.mxu0 0.0
    %2422 = vmatpush.msra.mxu0 0.0
    %2423 = vmatpush.msra.mxu0 0.0
    %2424 = vmatpush.msra.mxu0 0.0
    %2425 = vmatpush.msra.mxu0 0.0
    %2426 = vmatpush.msra.mxu0 0.0
    %2427 = vmatpush.msra.mxu0 0.0
    %2428 = vmatpush.msra.mxu0 0.0
    %2429 = vmatpush.msra.mxu0 0.0
    %2430 = vmatpush.msra.mxu0 0.0
    %v2431 = vand.u32 %v77, 4294901760
    %2432 = vmatpush.msra.mxu0 %v2431
    %v2433 = vand.u32 %v76, 4294901760
    %2434 = vmatpush.msra.mxu0 %v2433
    %v2435 = vand.u32 %v2370, 4294901760
    %v2436 = vsub.f32 %v2370, %v2435
    %v2437 = vand.u32 %v2436, 4294901760
    %v2438 = vsub.f32 %v2436, %v2437
    %v2439 = vand.u32 %v2438, 4294901760
    %2440 = vmatmul.f32.gmra.mxu0 %v2439
    %v2441 = vpop.f32.mrf.mxu0
    %v2442 = vadd.f32 %v1556, %v2441
    %v2443 = vand.u32 %v2373, 4294901760
    %v2444 = vsub.f32 %v2373, %v2443
    %v2445 = vand.u32 %v2444, 4294901760
    %v2446 = vsub.f32 %v2444, %v2445
    %v2447 = vand.u32 %v2446, 4294901760
    %2448 = vmatmul.f32.gmra.mxu0 %v2447
    %v2449 = vpop.f32.mrf.mxu0
    %v2450 = vadd.f32 %v1560, %v2449
    %v2451 = vand.u32 %v2376, 4294901760
    %v2452 = vsub.f32 %v2376, %v2451
    %v2453 = vand.u32 %v2452, 4294901760
    %v2454 = vsub.f32 %v2452, %v2453
    %v2455 = vand.u32 %v2454, 4294901760
    %2456 = vmatmul.f32.gmra.mxu0 %v2455
    %v2457 = vpop.f32.mrf.mxu0
    %v2458 = vadd.f32 %v1564, %v2457
    %v2459 = vand.u32 %v2379, 4294901760
    %v2460 = vsub.f32 %v2379, %v2459
    %v2461 = vand.u32 %v2460, 4294901760
    %v2462 = vsub.f32 %v2460, %v2461
    %v2463 = vand.u32 %v2462, 4294901760
    %2464 = vmatmul.f32.gmra.mxu0 %v2463
    %v2465 = vpop.f32.mrf.mxu0
    %v2466 = vadd.f32 %v1568, %v2465
    %v2467 = vand.u32 %v2382, 4294901760
    %v2468 = vsub.f32 %v2382, %v2467
    %v2469 = vand.u32 %v2468, 4294901760
    %v2470 = vsub.f32 %v2468, %v2469
    %v2471 = vand.u32 %v2470, 4294901760
    %2472 = vmatmul.f32.gmra.mxu0 %v2471
    %v2473 = vpop.f32.mrf.mxu0
    %v2474 = vadd.f32 %v1572, %v2473
    %v2475 = vand.u32 %v2385, 4294901760
    %v2476 = vsub.f32 %v2385, %v2475
    %v2477 = vand.u32 %v2476, 4294901760
    %v2478 = vsub.f32 %v2476, %v2477
    %v2479 = vand.u32 %v2478, 4294901760
    %2480 = vmatmul.f32.gmra.mxu0 %v2479
    %v2481 = vpop.f32.mrf.mxu0
    %v2482 = vadd.f32 %v1576, %v2481
    %v2483 = vand.u32 %v2388, 4294901760
    %v2484 = vsub.f32 %v2388, %v2483
    %v2485 = vand.u32 %v2484, 4294901760
    %v2486 = vsub.f32 %v2484, %v2485
    %v2487 = vand.u32 %v2486, 4294901760
    %2488 = vmatmul.f32.gmra.mxu0 %v2487
    %v2489 = vpop.f32.mrf.mxu0
    %v2490 = vadd.f32 %v1580, %v2489
    %v2491 = vand.u32 %v2391, 4294901760
    %v2492 = vsub.f32 %v2391, %v2491
    %v2493 = vand.u32 %v2492, 4294901760
    %v2494 = vsub.f32 %v2492, %v2493
    %v2495 = vand.u32 %v2494, 4294901760
    %2496 = vmatmul.f32.gmra.mxu0 %v2495
    %v2497 = vpop.f32.mrf.mxu0
    %v2498 = vadd.f32 %v1584, %v2497
    %v2499 = vand.u32 %v2394, 4294901760
    %v2500 = vsub.f32 %v2394, %v2499
    %v2501 = vand.u32 %v2500, 4294901760
    %v2502 = vsub.f32 %v2500, %v2501
    %v2503 = vand.u32 %v2502, 4294901760
    %2504 = vmatmul.f32.gmra.mxu0 %v2503
    %v2505 = vpop.f32.mrf.mxu0
    %v2506 = vadd.f32 %v1588, %v2505
    %v2507 = vand.u32 %v2397, 4294901760
    %v2508 = vsub.f32 %v2397, %v2507
    %v2509 = vand.u32 %v2508, 4294901760
    %v2510 = vsub.f32 %v2508, %v2509
    %v2511 = vand.u32 %v2510, 4294901760
    %2512 = vmatmul.f32.gmra.mxu0 %v2511
    %v2513 = vpop.f32.mrf.mxu0
    %v2514 = vadd.f32 %v1592, %v2513
    %v2515 = vand.u32 %v2400, 4294901760
    %v2516 = vsub.f32 %v2400, %v2515
    %v2517 = vand.u32 %v2516, 4294901760
    %v2518 = vsub.f32 %v2516, %v2517
    %v2519 = vand.u32 %v2518, 4294901760
    %2520 = vmatmul.f32.gmra.mxu0 %v2519
    %v2521 = vpop.f32.mrf.mxu0
    %v2522 = vadd.f32 %v1596, %v2521
    %v2523 = vand.u32 %v2403, 4294901760
    %v2524 = vsub.f32 %v2403, %v2523
    %v2525 = vand.u32 %v2524, 4294901760
    %v2526 = vsub.f32 %v2524, %v2525
    %v2527 = vand.u32 %v2526, 4294901760
    %2528 = vmatmul.f32.gmra.mxu0 %v2527
    %v2529 = vpop.f32.mrf.mxu0
    %v2530 = vadd.f32 %v1600, %v2529
    %v2531 = vand.u32 %v2406, 4294901760
    %v2532 = vsub.f32 %v2406, %v2531
    %v2533 = vand.u32 %v2532, 4294901760
    %v2534 = vsub.f32 %v2532, %v2533
    %v2535 = vand.u32 %v2534, 4294901760
    %2536 = vmatmul.f32.gmra.mxu0 %v2535
    %v2537 = vpop.f32.mrf.mxu0
    %v2538 = vadd.f32 %v1604, %v2537
    %v2539 = vand.u32 %v2409, 4294901760
    %v2540 = vsub.f32 %v2409, %v2539
    %v2541 = vand.u32 %v2540, 4294901760
    %v2542 = vsub.f32 %v2540, %v2541
    %v2543 = vand.u32 %v2542, 4294901760
    %2544 = vmatmul.f32.gmra.mxu0 %v2543
    %v2545 = vpop.f32.mrf.mxu0
    %v2546 = vadd.f32 %v1608, %v2545
    %v2547 = vand.u32 %v2412, 4294901760
    %v2548 = vsub.f32 %v2412, %v2547
    %v2549 = vand.u32 %v2548, 4294901760
    %v2550 = vsub.f32 %v2548, %v2549
    %v2551 = vand.u32 %v2550, 4294901760
    %2552 = vmatmul.f32.gmra.mxu0 %v2551
    %v2553 = vpop.f32.mrf.mxu0
    %v2554 = vadd.f32 %v1612, %v2553
    %v2555 = vand.u32 %v2415, 4294901760
    %v2556 = vsub.f32 %v2415, %v2555
    %v2557 = vand.u32 %v2556, 4294901760
    %v2558 = vsub.f32 %v2556, %v2557
    %v2559 = vand.u32 %v2558, 4294901760
    %2560 = vmatmul.f32.gmra.mxu0 %v2559
    %v2561 = vpop.f32.mrf.mxu0
    %v2562 = vadd.f32 %v1616, %v2561
    %2563 = vdwg.mxu0
    %2564 = vmatpush.msra.mxu0 0.0
    %2565 = vmatpush.msra.mxu0 0.0
    %2566 = vmatpush.msra.mxu0 0.0
    %2567 = vmatpush.msra.mxu0 0.0
    %2568 = vmatpush.msra.mxu0 0.0
    %2569 = vmatpush.msra.mxu0 0.0
    %2570 = vmatpush.msra.mxu0 0.0
    %2571 = vmatpush.msra.mxu0 0.0
    %2572 = vmatpush.msra.mxu0 0.0
    %2573 = vmatpush.msra.mxu0 0.0
    %2574 = vmatpush.msra.mxu0 0.0
    %2575 = vmatpush.msra.mxu0 0.0
    %2576 = vmatpush.msra.mxu0 0.0
    %2577 = vmatpush.msra.mxu0 0.0
    %v2578 = vand.u32 %v77, 4294901760
    %v2579 = vsub.f32 %v77, %v2578
    %v2580 = vand.u32 %v2579, 4294901760
    %v2581 = vsub.f32 %v2579, %v2580
    %v2582 = vand.u32 %v2581, 4294901760
    %2583 = vmatpush.msra.mxu0 %v2582
    %v2584 = vand.u32 %v76, 4294901760
    %v2585 = vsub.f32 %v76, %v2584
    %v2586 = vand.u32 %v2585, 4294901760
    %v2587 = vsub.f32 %v2585, %v2586
    %v2588 = vand.u32 %v2587, 4294901760
    %2589 = vmatpush.msra.mxu0 %v2588
    %v2590 = vand.u32 %v2370, 4294901760
    %2591 = vmatmul.f32.gmra.mxu0 %v2590
    %v2592 = vpop.f32.mrf.mxu0
    %v2593 = vadd.f32 %v2442, %v2592
    %v2594 = vand.u32 %v2373, 4294901760
    %2595 = vmatmul.f32.gmra.mxu0 %v2594
    %v2596 = vpop.f32.mrf.mxu0
    %v2597 = vadd.f32 %v2450, %v2596
    %v2598 = vand.u32 %v2376, 4294901760
    %2599 = vmatmul.f32.gmra.mxu0 %v2598
    %v2600 = vpop.f32.mrf.mxu0
    %v2601 = vadd.f32 %v2458, %v2600
    %v2602 = vand.u32 %v2379, 4294901760
    %2603 = vmatmul.f32.gmra.mxu0 %v2602
    %v2604 = vpop.f32.mrf.mxu0
    %v2605 = vadd.f32 %v2466, %v2604
    %v2606 = vand.u32 %v2382, 4294901760
    %2607 = vmatmul.f32.gmra.mxu0 %v2606
    %v2608 = vpop.f32.mrf.mxu0
    %v2609 = vadd.f32 %v2474, %v2608
    %v2610 = vand.u32 %v2385, 4294901760
    %2611 = vmatmul.f32.gmra.mxu0 %v2610
    %v2612 = vpop.f32.mrf.mxu0
    %v2613 = vadd.f32 %v2482, %v2612
    %v2614 = vand.u32 %v2388, 4294901760
    %2615 = vmatmul.f32.gmra.mxu0 %v2614
    %v2616 = vpop.f32.mrf.mxu0
    %v2617 = vadd.f32 %v2490, %v2616
    %v2618 = vand.u32 %v2391, 4294901760
    %2619 = vmatmul.f32.gmra.mxu0 %v2618
    %v2620 = vpop.f32.mrf.mxu0
    %v2621 = vadd.f32 %v2498, %v2620
    %v2622 = vand.u32 %v2394, 4294901760
    %2623 = vmatmul.f32.gmra.mxu0 %v2622
    %v2624 = vpop.f32.mrf.mxu0
    %v2625 = vadd.f32 %v2506, %v2624
    %v2626 = vand.u32 %v2397, 4294901760
    %2627 = vmatmul.f32.gmra.mxu0 %v2626
    %v2628 = vpop.f32.mrf.mxu0
    %v2629 = vadd.f32 %v2514, %v2628
    %v2630 = vand.u32 %v2400, 4294901760
    %2631 = vmatmul.f32.gmra.mxu0 %v2630
    %v2632 = vpop.f32.mrf.mxu0
    %v2633 = vadd.f32 %v2522, %v2632
    %v2634 = vand.u32 %v2403, 4294901760
    %2635 = vmatmul.f32.gmra.mxu0 %v2634
    %v2636 = vpop.f32.mrf.mxu0
    %v2637 = vadd.f32 %v2530, %v2636
    %v2638 = vand.u32 %v2406, 4294901760
    %2639 = vmatmul.f32.gmra.mxu0 %v2638
    %v2640 = vpop.f32.mrf.mxu0
    %v2641 = vadd.f32 %v2538, %v2640
    %v2642 = vand.u32 %v2409, 4294901760
    %2643 = vmatmul.f32.gmra.mxu0 %v2642
    %v2644 = vpop.f32.mrf.mxu0
    %v2645 = vadd.f32 %v2546, %v2644
    %v2646 = vand.u32 %v2412, 4294901760
    %2647 = vmatmul.f32.gmra.mxu0 %v2646
    %v2648 = vpop.f32.mrf.mxu0
    %v2649 = vadd.f32 %v2554, %v2648
    %v2650 = vand.u32 %v2415, 4294901760
    %2651 = vmatmul.f32.gmra.mxu0 %v2650
    %v2652 = vpop.f32.mrf.mxu0
    %v2653 = vadd.f32 %v2562, %v2652
    %2654 = vdwg.mxu0
    %2655 = vmatpush.msra.mxu0 0.0
    %2656 = vmatpush.msra.mxu0 0.0
    %2657 = vmatpush.msra.mxu0 0.0
    %2658 = vmatpush.msra.mxu0 0.0
    %2659 = vmatpush.msra.mxu0 0.0
    %2660 = vmatpush.msra.mxu0 0.0
    %2661 = vmatpush.msra.mxu0 0.0
    %2662 = vmatpush.msra.mxu0 0.0
    %2663 = vmatpush.msra.mxu0 0.0
    %2664 = vmatpush.msra.mxu0 0.0
    %2665 = vmatpush.msra.mxu0 0.0
    %2666 = vmatpush.msra.mxu0 0.0
    %2667 = vmatpush.msra.mxu0 0.0
    %2668 = vmatpush.msra.mxu0 0.0
    %v2669 = vand.u32 %v77, 4294901760
    %v2670 = vsub.f32 %v77, %v2669
    %2671 = vmatpush.msra.mxu0 %v2670
    %v2672 = vand.u32 %v76, 4294901760
    %v2673 = vsub.f32 %v76, %v2672
    %2674 = vmatpush.msra.mxu0 %v2673
    %v2675 = vand.u32 %v2370, 4294901760
    %v2676 = vsub.f32 %v2370, %v2675
    %2677 = vmatmul.f32.gmra.mxu0 %v2676
    %v2678 = vpop.f32.mrf.mxu0
    %v2679 = vadd.f32 %v2593, %v2678
    %v2680 = vand.u32 %v2373, 4294901760
    %v2681 = vsub.f32 %v2373, %v2680
    %2682 = vmatmul.f32.gmra.mxu0 %v2681
    %v2683 = vpop.f32.mrf.mxu0
    %v2684 = vadd.f32 %v2597, %v2683
    %v2685 = vand.u32 %v2376, 4294901760
    %v2686 = vsub.f32 %v2376, %v2685
    %2687 = vmatmul.f32.gmra.mxu0 %v2686
    %v2688 = vpop.f32.mrf.mxu0
    %v2689 = vadd.f32 %v2601, %v2688
    %v2690 = vand.u32 %v2379, 4294901760
    %v2691 = vsub.f32 %v2379, %v2690
    %2692 = vmatmul.f32.gmra.mxu0 %v2691
    %v2693 = vpop.f32.mrf.mxu0
    %v2694 = vadd.f32 %v2605, %v2693
    %v2695 = vand.u32 %v2382, 4294901760
    %v2696 = vsub.f32 %v2382, %v2695
    %2697 = vmatmul.f32.gmra.mxu0 %v2696
    %v2698 = vpop.f32.mrf.mxu0
    %v2699 = vadd.f32 %v2609, %v2698
    %v2700 = vand.u32 %v2385, 4294901760
    %v2701 = vsub.f32 %v2385, %v2700
    %2702 = vmatmul.f32.gmra.mxu0 %v2701
    %v2703 = vpop.f32.mrf.mxu0
    %v2704 = vadd.f32 %v2613, %v2703
    %v2705 = vand.u32 %v2388, 4294901760
    %v2706 = vsub.f32 %v2388, %v2705
    %2707 = vmatmul.f32.gmra.mxu0 %v2706
    %v2708 = vpop.f32.mrf.mxu0
    %v2709 = vadd.f32 %v2617, %v2708
    %v2710 = vand.u32 %v2391, 4294901760
    %v2711 = vsub.f32 %v2391, %v2710
    %2712 = vmatmul.f32.gmra.mxu0 %v2711
    %v2713 = vpop.f32.mrf.mxu0
    %v2714 = vadd.f32 %v2621, %v2713
    %v2715 = vand.u32 %v2394, 4294901760
    %v2716 = vsub.f32 %v2394, %v2715
    %2717 = vmatmul.f32.gmra.mxu0 %v2716
    %v2718 = vpop.f32.mrf.mxu0
    %v2719 = vadd.f32 %v2625, %v2718
    %v2720 = vand.u32 %v2397, 4294901760
    %v2721 = vsub.f32 %v2397, %v2720
    %2722 = vmatmul.f32.gmra.mxu0 %v2721
    %v2723 = vpop.f32.mrf.mxu0
    %v2724 = vadd.f32 %v2629, %v2723
    %v2725 = vand.u32 %v2400, 4294901760
    %v2726 = vsub.f32 %v2400, %v2725
    %2727 = vmatmul.f32.gmra.mxu0 %v2726
    %v2728 = vpop.f32.mrf.mxu0
    %v2729 = vadd.f32 %v2633, %v2728
    %v2730 = vand.u32 %v2403, 4294901760
    %v2731 = vsub.f32 %v2403, %v2730
    %2732 = vmatmul.f32.gmra.mxu0 %v2731
    %v2733 = vpop.f32.mrf.mxu0
    %v2734 = vadd.f32 %v2637, %v2733
    %v2735 = vand.u32 %v2406, 4294901760
    %v2736 = vsub.f32 %v2406, %v2735
    %2737 = vmatmul.f32.gmra.mxu0 %v2736
    %v2738 = vpop.f32.mrf.mxu0
    %v2739 = vadd.f32 %v2641, %v2738
    %v2740 = vand.u32 %v2409, 4294901760
    %v2741 = vsub.f32 %v2409, %v2740
    %2742 = vmatmul.f32.gmra.mxu0 %v2741
    %v2743 = vpop.f32.mrf.mxu0
    %v2744 = vadd.f32 %v2645, %v2743
    %v2745 = vand.u32 %v2412, 4294901760
    %v2746 = vsub.f32 %v2412, %v2745
    %2747 = vmatmul.f32.gmra.mxu0 %v2746
    %v2748 = vpop.f32.mrf.mxu0
    %v2749 = vadd.f32 %v2649, %v2748
    %v2750 = vand.u32 %v2415, 4294901760
    %v2751 = vsub.f32 %v2415, %v2750
    %2752 = vmatmul.f32.gmra.mxu0 %v2751
    %v2753 = vpop.f32.mrf.mxu0
    %v2754 = vadd.f32 %v2653, %v2753
    %2755 = vdwg.mxu0
    %2756 = vmatpush.msra.mxu0 0.0
    %2757 = vmatpush.msra.mxu0 0.0
    %2758 = vmatpush.msra.mxu0 0.0
    %2759 = vmatpush.msra.mxu0 0.0
    %2760 = vmatpush.msra.mxu0 0.0
    %2761 = vmatpush.msra.mxu0 0.0
    %2762 = vmatpush.msra.mxu0 0.0
    %2763 = vmatpush.msra.mxu0 0.0
    %2764 = vmatpush.msra.mxu0 0.0
    %2765 = vmatpush.msra.mxu0 0.0
    %2766 = vmatpush.msra.mxu0 0.0
    %2767 = vmatpush.msra.mxu0 0.0
    %2768 = vmatpush.msra.mxu0 0.0
    %2769 = vmatpush.msra.mxu0 0.0
    %v2770 = vand.u32 %v77, 4294901760
    %2771 = vmatpush.msra.mxu0 %v2770
    %v2772 = vand.u32 %v76, 4294901760
    %2773 = vmatpush.msra.mxu0 %v2772
    %v2774 = vand.u32 %v2370, 4294901760
    %v2775 = vsub.f32 %v2370, %v2774
    %v2776 = vand.u32 %v2775, 4294901760
    %2777 = vmatmul.f32.gmra.mxu0 %v2776
    %v2778 = vpop.f32.mrf.mxu0
    %v2779 = vadd.f32 %v2679, %v2778
    %v2780 = vand.u32 %v2373, 4294901760
    %v2781 = vsub.f32 %v2373, %v2780
    %v2782 = vand.u32 %v2781, 4294901760
    %2783 = vmatmul.f32.gmra.mxu0 %v2782
    %v2784 = vpop.f32.mrf.mxu0
    %v2785 = vadd.f32 %v2684, %v2784
    %v2786 = vand.u32 %v2376, 4294901760
    %v2787 = vsub.f32 %v2376, %v2786
    %v2788 = vand.u32 %v2787, 4294901760
    %2789 = vmatmul.f32.gmra.mxu0 %v2788
    %v2790 = vpop.f32.mrf.mxu0
    %v2791 = vadd.f32 %v2689, %v2790
    %v2792 = vand.u32 %v2379, 4294901760
    %v2793 = vsub.f32 %v2379, %v2792
    %v2794 = vand.u32 %v2793, 4294901760
    %2795 = vmatmul.f32.gmra.mxu0 %v2794
    %v2796 = vpop.f32.mrf.mxu0
    %v2797 = vadd.f32 %v2694, %v2796
    %v2798 = vand.u32 %v2382, 4294901760
    %v2799 = vsub.f32 %v2382, %v2798
    %v2800 = vand.u32 %v2799, 4294901760
    %2801 = vmatmul.f32.gmra.mxu0 %v2800
    %v2802 = vpop.f32.mrf.mxu0
    %v2803 = vadd.f32 %v2699, %v2802
    %v2804 = vand.u32 %v2385, 4294901760
    %v2805 = vsub.f32 %v2385, %v2804
    %v2806 = vand.u32 %v2805, 4294901760
    %2807 = vmatmul.f32.gmra.mxu0 %v2806
    %v2808 = vpop.f32.mrf.mxu0
    %v2809 = vadd.f32 %v2704, %v2808
    %v2810 = vand.u32 %v2388, 4294901760
    %v2811 = vsub.f32 %v2388, %v2810
    %v2812 = vand.u32 %v2811, 4294901760
    %2813 = vmatmul.f32.gmra.mxu0 %v2812
    %v2814 = vpop.f32.mrf.mxu0
    %v2815 = vadd.f32 %v2709, %v2814
    %v2816 = vand.u32 %v2391, 4294901760
    %v2817 = vsub.f32 %v2391, %v2816
    %v2818 = vand.u32 %v2817, 4294901760
    %2819 = vmatmul.f32.gmra.mxu0 %v2818
    %v2820 = vpop.f32.mrf.mxu0
    %v2821 = vadd.f32 %v2714, %v2820
    %v2822 = vand.u32 %v2394, 4294901760
    %v2823 = vsub.f32 %v2394, %v2822
    %v2824 = vand.u32 %v2823, 4294901760
    %2825 = vmatmul.f32.gmra.mxu0 %v2824
    %v2826 = vpop.f32.mrf.mxu0
    %v2827 = vadd.f32 %v2719, %v2826
    %v2828 = vand.u32 %v2397, 4294901760
    %v2829 = vsub.f32 %v2397, %v2828
    %v2830 = vand.u32 %v2829, 4294901760
    %2831 = vmatmul.f32.gmra.mxu0 %v2830
    %v2832 = vpop.f32.mrf.mxu0
    %v2833 = vadd.f32 %v2724, %v2832
    %v2834 = vand.u32 %v2400, 4294901760
    %v2835 = vsub.f32 %v2400, %v2834
    %v2836 = vand.u32 %v2835, 4294901760
    %2837 = vmatmul.f32.gmra.mxu0 %v2836
    %v2838 = vpop.f32.mrf.mxu0
    %v2839 = vadd.f32 %v2729, %v2838
    %v2840 = vand.u32 %v2403, 4294901760
    %v2841 = vsub.f32 %v2403, %v2840
    %v2842 = vand.u32 %v2841, 4294901760
    %2843 = vmatmul.f32.gmra.mxu0 %v2842
    %v2844 = vpop.f32.mrf.mxu0
    %v2845 = vadd.f32 %v2734, %v2844
    %v2846 = vand.u32 %v2406, 4294901760
    %v2847 = vsub.f32 %v2406, %v2846
    %v2848 = vand.u32 %v2847, 4294901760
    %2849 = vmatmul.f32.gmra.mxu0 %v2848
    %v2850 = vpop.f32.mrf.mxu0
    %v2851 = vadd.f32 %v2739, %v2850
    %v2852 = vand.u32 %v2409, 4294901760
    %v2853 = vsub.f32 %v2409, %v2852
    %v2854 = vand.u32 %v2853, 4294901760
    %2855 = vmatmul.f32.gmra.mxu0 %v2854
    %v2856 = vpop.f32.mrf.mxu0
    %v2857 = vadd.f32 %v2744, %v2856
    %v2858 = vand.u32 %v2412, 4294901760
    %v2859 = vsub.f32 %v2412, %v2858
    %v2860 = vand.u32 %v2859, 4294901760
    %2861 = vmatmul.f32.gmra.mxu0 %v2860
    %v2862 = vpop.f32.mrf.mxu0
    %v2863 = vadd.f32 %v2749, %v2862
    %v2864 = vand.u32 %v2415, 4294901760
    %v2865 = vsub.f32 %v2415, %v2864
    %v2866 = vand.u32 %v2865, 4294901760
    %2867 = vmatmul.f32.gmra.mxu0 %v2866
    %v2868 = vpop.f32.mrf.mxu0
    %v2869 = vadd.f32 %v2754, %v2868
    %2870 = vdwg.mxu0
    %2871 = vmatpush.msra.mxu0 0.0
    %2872 = vmatpush.msra.mxu0 0.0
    %2873 = vmatpush.msra.mxu0 0.0
    %2874 = vmatpush.msra.mxu0 0.0
    %2875 = vmatpush.msra.mxu0 0.0
    %2876 = vmatpush.msra.mxu0 0.0
    %2877 = vmatpush.msra.mxu0 0.0
    %2878 = vmatpush.msra.mxu0 0.0
    %2879 = vmatpush.msra.mxu0 0.0
    %2880 = vmatpush.msra.mxu0 0.0
    %2881 = vmatpush.msra.mxu0 0.0
    %2882 = vmatpush.msra.mxu0 0.0
    %2883 = vmatpush.msra.mxu0 0.0
    %2884 = vmatpush.msra.mxu0 0.0
    %v2885 = vand.u32 %v77, 4294901760
    %v2886 = vsub.f32 %v77, %v2885
    %v2887 = vand.u32 %v2886, 4294901760
    %2888 = vmatpush.msra.mxu0 %v2887
    %v2889 = vand.u32 %v76, 4294901760
    %v2890 = vsub.f32 %v76, %v2889
    %v2891 = vand.u32 %v2890, 4294901760
    %2892 = vmatpush.msra.mxu0 %v2891
    %v2893 = vand.u32 %v2370, 4294901760
    %2894 = vmatmul.f32.gmra.mxu0 %v2893
    %v2895 = vpop.f32.mrf.mxu0
    %v2896 = vadd.f32 %v2779, %v2895
    %v2897 = vand.u32 %v2373, 4294901760
    %2898 = vmatmul.f32.gmra.mxu0 %v2897
    %v2899 = vpop.f32.mrf.mxu0
    %v2900 = vadd.f32 %v2785, %v2899
    %v2901 = vand.u32 %v2376, 4294901760
    %2902 = vmatmul.f32.gmra.mxu0 %v2901
    %v2903 = vpop.f32.mrf.mxu0
    %v2904 = vadd.f32 %v2791, %v2903
    %v2905 = vand.u32 %v2379, 4294901760
    %2906 = vmatmul.f32.gmra.mxu0 %v2905
    %v2907 = vpop.f32.mrf.mxu0
    %v2908 = vadd.f32 %v2797, %v2907
    %v2909 = vand.u32 %v2382, 4294901760
    %2910 = vmatmul.f32.gmra.mxu0 %v2909
    %v2911 = vpop.f32.mrf.mxu0
    %v2912 = vadd.f32 %v2803, %v2911
    %v2913 = vand.u32 %v2385, 4294901760
    %2914 = vmatmul.f32.gmra.mxu0 %v2913
    %v2915 = vpop.f32.mrf.mxu0
    %v2916 = vadd.f32 %v2809, %v2915
    %v2917 = vand.u32 %v2388, 4294901760
    %2918 = vmatmul.f32.gmra.mxu0 %v2917
    %v2919 = vpop.f32.mrf.mxu0
    %v2920 = vadd.f32 %v2815, %v2919
    %v2921 = vand.u32 %v2391, 4294901760
    %2922 = vmatmul.f32.gmra.mxu0 %v2921
    %v2923 = vpop.f32.mrf.mxu0
    %v2924 = vadd.f32 %v2821, %v2923
    %v2925 = vand.u32 %v2394, 4294901760
    %2926 = vmatmul.f32.gmra.mxu0 %v2925
    %v2927 = vpop.f32.mrf.mxu0
    %v2928 = vadd.f32 %v2827, %v2927
    %v2929 = vand.u32 %v2397, 4294901760
    %2930 = vmatmul.f32.gmra.mxu0 %v2929
    %v2931 = vpop.f32.mrf.mxu0
    %v2932 = vadd.f32 %v2833, %v2931
    %v2933 = vand.u32 %v2400, 4294901760
    %2934 = vmatmul.f32.gmra.mxu0 %v2933
    %v2935 = vpop.f32.mrf.mxu0
    %v2936 = vadd.f32 %v2839, %v2935
    %v2937 = vand.u32 %v2403, 4294901760
    %2938 = vmatmul.f32.gmra.mxu0 %v2937
    %v2939 = vpop.f32.mrf.mxu0
    %v2940 = vadd.f32 %v2845, %v2939
    %v2941 = vand.u32 %v2406, 4294901760
    %2942 = vmatmul.f32.gmra.mxu0 %v2941
    %v2943 = vpop.f32.mrf.mxu0
    %v2944 = vadd.f32 %v2851, %v2943
    %v2945 = vand.u32 %v2409, 4294901760
    %2946 = vmatmul.f32.gmra.mxu0 %v2945
    %v2947 = vpop.f32.mrf.mxu0
    %v2948 = vadd.f32 %v2857, %v2947
    %v2949 = vand.u32 %v2412, 4294901760
    %2950 = vmatmul.f32.gmra.mxu0 %v2949
    %v2951 = vpop.f32.mrf.mxu0
    %v2952 = vadd.f32 %v2863, %v2951
    %v2953 = vand.u32 %v2415, 4294901760
    %2954 = vmatmul.f32.gmra.mxu0 %v2953
    %v2955 = vpop.f32.mrf.mxu0
    %v2956 = vadd.f32 %v2869, %v2955
    %2957 = vdwg.mxu0
    %2958 = vmatpush.msra.mxu0 0.0
    %2959 = vmatpush.msra.mxu0 0.0
    %2960 = vmatpush.msra.mxu0 0.0
    %2961 = vmatpush.msra.mxu0 0.0
    %2962 = vmatpush.msra.mxu0 0.0
    %2963 = vmatpush.msra.mxu0 0.0
    %2964 = vmatpush.msra.mxu0 0.0
    %2965 = vmatpush.msra.mxu0 0.0
    %2966 = vmatpush.msra.mxu0 0.0
    %2967 = vmatpush.msra.mxu0 0.0
    %2968 = vmatpush.msra.mxu0 0.0
    %2969 = vmatpush.msra.mxu0 0.0
    %2970 = vmatpush.msra.mxu0 0.0
    %2971 = vmatpush.msra.mxu0 0.0
    %v2972 = vand.u32 %v77, 4294901760
    %2973 = vmatpush.msra.mxu0 %v2972
    %v2974 = vand.u32 %v76, 4294901760
    %2975 = vmatpush.msra.mxu0 %v2974
    %v2976 = vand.u32 %v2370, 4294901760
    %2977 = vmatmul.f32.gmra.mxu0 %v2976
    %v2978 = vpop.f32.mrf.mxu0
    %v2979 = vadd.f32 %v2896, %v2978
    %v2980 = vand.u32 %v2373, 4294901760
    %2981 = vmatmul.f32.gmra.mxu0 %v2980
    %v2982 = vpop.f32.mrf.mxu0
    %v2983 = vadd.f32 %v2900, %v2982
    %v2984 = vand.u32 %v2376, 4294901760
    %2985 = vmatmul.f32.gmra.mxu0 %v2984
    %v2986 = vpop.f32.mrf.mxu0
    %v2987 = vadd.f32 %v2904, %v2986
    %v2988 = vand.u32 %v2379, 4294901760
    %2989 = vmatmul.f32.gmra.mxu0 %v2988
    %v2990 = vpop.f32.mrf.mxu0
    %v2991 = vadd.f32 %v2908, %v2990
    %v2992 = vand.u32 %v2382, 4294901760
    %2993 = vmatmul.f32.gmra.mxu0 %v2992
    %v2994 = vpop.f32.mrf.mxu0
    %v2995 = vadd.f32 %v2912, %v2994
    %v2996 = vand.u32 %v2385, 4294901760
    %2997 = vmatmul.f32.gmra.mxu0 %v2996
    %v2998 = vpop.f32.mrf.mxu0
    %v2999 = vadd.f32 %v2916, %v2998
    %v3000 = vand.u32 %v2388, 4294901760
    %3001 = vmatmul.f32.gmra.mxu0 %v3000
    %v3002 = vpop.f32.mrf.mxu0
    %v3003 = vadd.f32 %v2920, %v3002
    %v3004 = vand.u32 %v2391, 4294901760
    %3005 = vmatmul.f32.gmra.mxu0 %v3004
    %v3006 = vpop.f32.mrf.mxu0
    %v3007 = vadd.f32 %v2924, %v3006
    %v3008 = vand.u32 %v2394, 4294901760
    %3009 = vmatmul.f32.gmra.mxu0 %v3008
    %v3010 = vpop.f32.mrf.mxu0
    %v3011 = vadd.f32 %v2928, %v3010
    %v3012 = vand.u32 %v2397, 4294901760
    %3013 = vmatmul.f32.gmra.mxu0 %v3012
    %v3014 = vpop.f32.mrf.mxu0
    %v3015 = vadd.f32 %v2932, %v3014
    %v3016 = vand.u32 %v2400, 4294901760
    %3017 = vmatmul.f32.gmra.mxu0 %v3016
    %v3018 = vpop.f32.mrf.mxu0
    %v3019 = vadd.f32 %v2936, %v3018
    %v3020 = vand.u32 %v2403, 4294901760
    %3021 = vmatmul.f32.gmra.mxu0 %v3020
    %v3022 = vpop.f32.mrf.mxu0
    %v3023 = vadd.f32 %v2940, %v3022
    %v3024 = vand.u32 %v2406, 4294901760
    %3025 = vmatmul.f32.gmra.mxu0 %v3024
    %v3026 = vpop.f32.mrf.mxu0
    %v3027 = vadd.f32 %v2944, %v3026
    %v3028 = vand.u32 %v2409, 4294901760
    %3029 = vmatmul.f32.gmra.mxu0 %v3028
    %v3030 = vpop.f32.mrf.mxu0
    %v3031 = vadd.f32 %v2948, %v3030
    %v3032 = vand.u32 %v2412, 4294901760
    %3033 = vmatmul.f32.gmra.mxu0 %v3032
    %v3034 = vpop.f32.mrf.mxu0
    %v3035 = vadd.f32 %v2952, %v3034
    %v3036 = vand.u32 %v2415, 4294901760
    %3037 = vmatmul.f32.gmra.mxu0 %v3036
    %v3038 = vpop.f32.mrf.mxu0
    %v3039 = vadd.f32 %v2956, %v3038
    %3040 = vdwg.mxu0
    %3043 = vrot.lane.b32.xlu0 %v76, 112
    %v3044 = vpop.permute.xlu0 %3043
    %3045 = vrot.lane.b32.xlu0 %v77, 112
    %v3046 = vpop.permute.xlu0 %3045
    %v3050 = vsel %vm2368, %v2306, 0
    %v3053 = vsel %vm2368, %v2310, 0
    %v3056 = vsel %vm2368, %v2314, 0
    %v3059 = vsel %vm2368, %v2318, 0
    %v3062 = vsel %vm2368, %v2322, 0
    %v3065 = vsel %vm2368, %v2326, 0
    %v3068 = vsel %vm2368, %v2330, 0
    %v3071 = vsel %vm2368, %v2334, 0
    %v3074 = vsel %vm2368, %v2338, 0
    %v3077 = vsel %vm2368, %v2342, 0
    %v3080 = vsel %vm2368, %v2346, 0
    %v3083 = vsel %vm2368, %v2350, 0
    %v3086 = vsel %vm2368, %v2354, 0
    %v3089 = vsel %vm2368, %v2358, 0
    %v3092 = vsel %vm2368, %v2362, 0
    %v3095 = vsel %vm2368, %v2366, 0
    %3097 = vmatpush.msra.mxu0 0.0
    %3098 = vmatpush.msra.mxu0 0.0
    %3099 = vmatpush.msra.mxu0 0.0
    %3100 = vmatpush.msra.mxu0 0.0
    %3101 = vmatpush.msra.mxu0 0.0
    %3102 = vmatpush.msra.mxu0 0.0
    %3103 = vmatpush.msra.mxu0 0.0
    %3104 = vmatpush.msra.mxu0 0.0
    %3105 = vmatpush.msra.mxu0 0.0
    %3106 = vmatpush.msra.mxu0 0.0
    %3107 = vmatpush.msra.mxu0 0.0
    %3108 = vmatpush.msra.mxu0 0.0
    %3109 = vmatpush.msra.mxu0 0.0
    %3110 = vmatpush.msra.mxu0 0.0
    %v3111 = vand.u32 %v3046, 4294901760
    %3112 = vmatpush.msra.mxu0 %v3111
    %v3113 = vand.u32 %v3044, 4294901760
    %3114 = vmatpush.msra.mxu0 %v3113
    %v3115 = vand.u32 %v3050, 4294901760
    %v3116 = vsub.f32 %v3050, %v3115
    %v3117 = vand.u32 %v3116, 4294901760
    %v3118 = vsub.f32 %v3116, %v3117
    %v3119 = vand.u32 %v3118, 4294901760
    %3120 = vmatmul.f32.gmra.mxu0 %v3119
    %v3121 = vpop.f32.mrf.mxu0
    %v3122 = vadd.f32 0.0, %v3121
    %v3123 = vand.u32 %v3053, 4294901760
    %v3124 = vsub.f32 %v3053, %v3123
    %v3125 = vand.u32 %v3124, 4294901760
    %v3126 = vsub.f32 %v3124, %v3125
    %v3127 = vand.u32 %v3126, 4294901760
    %3128 = vmatmul.f32.gmra.mxu0 %v3127
    %v3129 = vpop.f32.mrf.mxu0
    %v3130 = vadd.f32 0.0, %v3129
    %v3131 = vand.u32 %v3056, 4294901760
    %v3132 = vsub.f32 %v3056, %v3131
    %v3133 = vand.u32 %v3132, 4294901760
    %v3134 = vsub.f32 %v3132, %v3133
    %v3135 = vand.u32 %v3134, 4294901760
    %3136 = vmatmul.f32.gmra.mxu0 %v3135
    %v3137 = vpop.f32.mrf.mxu0
    %v3138 = vadd.f32 0.0, %v3137
    %v3139 = vand.u32 %v3059, 4294901760
    %v3140 = vsub.f32 %v3059, %v3139
    %v3141 = vand.u32 %v3140, 4294901760
    %v3142 = vsub.f32 %v3140, %v3141
    %v3143 = vand.u32 %v3142, 4294901760
    %3144 = vmatmul.f32.gmra.mxu0 %v3143
    %v3145 = vpop.f32.mrf.mxu0
    %v3146 = vadd.f32 0.0, %v3145
    %v3147 = vand.u32 %v3062, 4294901760
    %v3148 = vsub.f32 %v3062, %v3147
    %v3149 = vand.u32 %v3148, 4294901760
    %v3150 = vsub.f32 %v3148, %v3149
    %v3151 = vand.u32 %v3150, 4294901760
    %3152 = vmatmul.f32.gmra.mxu0 %v3151
    %v3153 = vpop.f32.mrf.mxu0
    %v3154 = vadd.f32 0.0, %v3153
    %v3155 = vand.u32 %v3065, 4294901760
    %v3156 = vsub.f32 %v3065, %v3155
    %v3157 = vand.u32 %v3156, 4294901760
    %v3158 = vsub.f32 %v3156, %v3157
    %v3159 = vand.u32 %v3158, 4294901760
    %3160 = vmatmul.f32.gmra.mxu0 %v3159
    %v3161 = vpop.f32.mrf.mxu0
    %v3162 = vadd.f32 0.0, %v3161
    %v3163 = vand.u32 %v3068, 4294901760
    %v3164 = vsub.f32 %v3068, %v3163
    %v3165 = vand.u32 %v3164, 4294901760
    %v3166 = vsub.f32 %v3164, %v3165
    %v3167 = vand.u32 %v3166, 4294901760
    %3168 = vmatmul.f32.gmra.mxu0 %v3167
    %v3169 = vpop.f32.mrf.mxu0
    %v3170 = vadd.f32 0.0, %v3169
    %v3171 = vand.u32 %v3071, 4294901760
    %v3172 = vsub.f32 %v3071, %v3171
    %v3173 = vand.u32 %v3172, 4294901760
    %v3174 = vsub.f32 %v3172, %v3173
    %v3175 = vand.u32 %v3174, 4294901760
    %3176 = vmatmul.f32.gmra.mxu0 %v3175
    %v3177 = vpop.f32.mrf.mxu0
    %v3178 = vadd.f32 0.0, %v3177
    %v3179 = vand.u32 %v3074, 4294901760
    %v3180 = vsub.f32 %v3074, %v3179
    %v3181 = vand.u32 %v3180, 4294901760
    %v3182 = vsub.f32 %v3180, %v3181
    %v3183 = vand.u32 %v3182, 4294901760
    %3184 = vmatmul.f32.gmra.mxu0 %v3183
    %v3185 = vpop.f32.mrf.mxu0
    %v3186 = vadd.f32 0.0, %v3185
    %v3187 = vand.u32 %v3077, 4294901760
    %v3188 = vsub.f32 %v3077, %v3187
    %v3189 = vand.u32 %v3188, 4294901760
    %v3190 = vsub.f32 %v3188, %v3189
    %v3191 = vand.u32 %v3190, 4294901760
    %3192 = vmatmul.f32.gmra.mxu0 %v3191
    %v3193 = vpop.f32.mrf.mxu0
    %v3194 = vadd.f32 0.0, %v3193
    %v3195 = vand.u32 %v3080, 4294901760
    %v3196 = vsub.f32 %v3080, %v3195
    %v3197 = vand.u32 %v3196, 4294901760
    %v3198 = vsub.f32 %v3196, %v3197
    %v3199 = vand.u32 %v3198, 4294901760
    %3200 = vmatmul.f32.gmra.mxu0 %v3199
    %v3201 = vpop.f32.mrf.mxu0
    %v3202 = vadd.f32 0.0, %v3201
    %v3203 = vand.u32 %v3083, 4294901760
    %v3204 = vsub.f32 %v3083, %v3203
    %v3205 = vand.u32 %v3204, 4294901760
    %v3206 = vsub.f32 %v3204, %v3205
    %v3207 = vand.u32 %v3206, 4294901760
    %3208 = vmatmul.f32.gmra.mxu0 %v3207
    %v3209 = vpop.f32.mrf.mxu0
    %v3210 = vadd.f32 0.0, %v3209
    %v3211 = vand.u32 %v3086, 4294901760
    %v3212 = vsub.f32 %v3086, %v3211
    %v3213 = vand.u32 %v3212, 4294901760
    %v3214 = vsub.f32 %v3212, %v3213
    %v3215 = vand.u32 %v3214, 4294901760
    %3216 = vmatmul.f32.gmra.mxu0 %v3215
    %v3217 = vpop.f32.mrf.mxu0
    %v3218 = vadd.f32 0.0, %v3217
    %v3219 = vand.u32 %v3089, 4294901760
    %v3220 = vsub.f32 %v3089, %v3219
    %v3221 = vand.u32 %v3220, 4294901760
    %v3222 = vsub.f32 %v3220, %v3221
    %v3223 = vand.u32 %v3222, 4294901760
    %3224 = vmatmul.f32.gmra.mxu0 %v3223
    %v3225 = vpop.f32.mrf.mxu0
    %v3226 = vadd.f32 0.0, %v3225
    %v3227 = vand.u32 %v3092, 4294901760
    %v3228 = vsub.f32 %v3092, %v3227
    %v3229 = vand.u32 %v3228, 4294901760
    %v3230 = vsub.f32 %v3228, %v3229
    %v3231 = vand.u32 %v3230, 4294901760
    %3232 = vmatmul.f32.gmra.mxu0 %v3231
    %v3233 = vpop.f32.mrf.mxu0
    %v3234 = vadd.f32 0.0, %v3233
    %v3235 = vand.u32 %v3095, 4294901760
    %v3236 = vsub.f32 %v3095, %v3235
    %v3237 = vand.u32 %v3236, 4294901760
    %v3238 = vsub.f32 %v3236, %v3237
    %v3239 = vand.u32 %v3238, 4294901760
    %3240 = vmatmul.f32.gmra.mxu0 %v3239
    %v3241 = vpop.f32.mrf.mxu0
    %v3242 = vadd.f32 0.0, %v3241
    %3243 = vdwg.mxu0
    %3244 = vmatpush.msra.mxu0 0.0
    %3245 = vmatpush.msra.mxu0 0.0
    %3246 = vmatpush.msra.mxu0 0.0
    %3247 = vmatpush.msra.mxu0 0.0
    %3248 = vmatpush.msra.mxu0 0.0
    %3249 = vmatpush.msra.mxu0 0.0
    %3250 = vmatpush.msra.mxu0 0.0
    %3251 = vmatpush.msra.mxu0 0.0
    %3252 = vmatpush.msra.mxu0 0.0
    %3253 = vmatpush.msra.mxu0 0.0
    %3254 = vmatpush.msra.mxu0 0.0
    %3255 = vmatpush.msra.mxu0 0.0
    %3256 = vmatpush.msra.mxu0 0.0
    %3257 = vmatpush.msra.mxu0 0.0
    %v3258 = vand.u32 %v3046, 4294901760
    %v3259 = vsub.f32 %v3046, %v3258
    %v3260 = vand.u32 %v3259, 4294901760
    %v3261 = vsub.f32 %v3259, %v3260
    %v3262 = vand.u32 %v3261, 4294901760
    %3263 = vmatpush.msra.mxu0 %v3262
    %v3264 = vand.u32 %v3044, 4294901760
    %v3265 = vsub.f32 %v3044, %v3264
    %v3266 = vand.u32 %v3265, 4294901760
    %v3267 = vsub.f32 %v3265, %v3266
    %v3268 = vand.u32 %v3267, 4294901760
    %3269 = vmatpush.msra.mxu0 %v3268
    %v3270 = vand.u32 %v3050, 4294901760
    %3271 = vmatmul.f32.gmra.mxu0 %v3270
    %v3272 = vpop.f32.mrf.mxu0
    %v3273 = vadd.f32 %v3122, %v3272
    %v3274 = vand.u32 %v3053, 4294901760
    %3275 = vmatmul.f32.gmra.mxu0 %v3274
    %v3276 = vpop.f32.mrf.mxu0
    %v3277 = vadd.f32 %v3130, %v3276
    %v3278 = vand.u32 %v3056, 4294901760
    %3279 = vmatmul.f32.gmra.mxu0 %v3278
    %v3280 = vpop.f32.mrf.mxu0
    %v3281 = vadd.f32 %v3138, %v3280
    %v3282 = vand.u32 %v3059, 4294901760
    %3283 = vmatmul.f32.gmra.mxu0 %v3282
    %v3284 = vpop.f32.mrf.mxu0
    %v3285 = vadd.f32 %v3146, %v3284
    %v3286 = vand.u32 %v3062, 4294901760
    %3287 = vmatmul.f32.gmra.mxu0 %v3286
    %v3288 = vpop.f32.mrf.mxu0
    %v3289 = vadd.f32 %v3154, %v3288
    %v3290 = vand.u32 %v3065, 4294901760
    %3291 = vmatmul.f32.gmra.mxu0 %v3290
    %v3292 = vpop.f32.mrf.mxu0
    %v3293 = vadd.f32 %v3162, %v3292
    %v3294 = vand.u32 %v3068, 4294901760
    %3295 = vmatmul.f32.gmra.mxu0 %v3294
    %v3296 = vpop.f32.mrf.mxu0
    %v3297 = vadd.f32 %v3170, %v3296
    %v3298 = vand.u32 %v3071, 4294901760
    %3299 = vmatmul.f32.gmra.mxu0 %v3298
    %v3300 = vpop.f32.mrf.mxu0
    %v3301 = vadd.f32 %v3178, %v3300
    %v3302 = vand.u32 %v3074, 4294901760
    %3303 = vmatmul.f32.gmra.mxu0 %v3302
    %v3304 = vpop.f32.mrf.mxu0
    %v3305 = vadd.f32 %v3186, %v3304
    %v3306 = vand.u32 %v3077, 4294901760
    %3307 = vmatmul.f32.gmra.mxu0 %v3306
    %v3308 = vpop.f32.mrf.mxu0
    %v3309 = vadd.f32 %v3194, %v3308
    %v3310 = vand.u32 %v3080, 4294901760
    %3311 = vmatmul.f32.gmra.mxu0 %v3310
    %v3312 = vpop.f32.mrf.mxu0
    %v3313 = vadd.f32 %v3202, %v3312
    %v3314 = vand.u32 %v3083, 4294901760
    %3315 = vmatmul.f32.gmra.mxu0 %v3314
    %v3316 = vpop.f32.mrf.mxu0
    %v3317 = vadd.f32 %v3210, %v3316
    %v3318 = vand.u32 %v3086, 4294901760
    %3319 = vmatmul.f32.gmra.mxu0 %v3318
    %v3320 = vpop.f32.mrf.mxu0
    %v3321 = vadd.f32 %v3218, %v3320
    %v3322 = vand.u32 %v3089, 4294901760
    %3323 = vmatmul.f32.gmra.mxu0 %v3322
    %v3324 = vpop.f32.mrf.mxu0
    %v3325 = vadd.f32 %v3226, %v3324
    %v3326 = vand.u32 %v3092, 4294901760
    %3327 = vmatmul.f32.gmra.mxu0 %v3326
    %v3328 = vpop.f32.mrf.mxu0
    %v3329 = vadd.f32 %v3234, %v3328
    %v3330 = vand.u32 %v3095, 4294901760
    %3331 = vmatmul.f32.gmra.mxu0 %v3330
    %v3332 = vpop.f32.mrf.mxu0
    %v3333 = vadd.f32 %v3242, %v3332
    %3334 = vdwg.mxu0
    %3335 = vmatpush.msra.mxu0 0.0
    %3336 = vmatpush.msra.mxu0 0.0
    %3337 = vmatpush.msra.mxu0 0.0
    %3338 = vmatpush.msra.mxu0 0.0
    %3339 = vmatpush.msra.mxu0 0.0
    %3340 = vmatpush.msra.mxu0 0.0
    %3341 = vmatpush.msra.mxu0 0.0
    %3342 = vmatpush.msra.mxu0 0.0
    %3343 = vmatpush.msra.mxu0 0.0
    %3344 = vmatpush.msra.mxu0 0.0
    %3345 = vmatpush.msra.mxu0 0.0
    %3346 = vmatpush.msra.mxu0 0.0
    %3347 = vmatpush.msra.mxu0 0.0
    %3348 = vmatpush.msra.mxu0 0.0
    %v3349 = vand.u32 %v3046, 4294901760
    %v3350 = vsub.f32 %v3046, %v3349
    %3351 = vmatpush.msra.mxu0 %v3350
    %v3352 = vand.u32 %v3044, 4294901760
    %v3353 = vsub.f32 %v3044, %v3352
    %3354 = vmatpush.msra.mxu0 %v3353
    %v3355 = vand.u32 %v3050, 4294901760
    %v3356 = vsub.f32 %v3050, %v3355
    %3357 = vmatmul.f32.gmra.mxu0 %v3356
    %v3358 = vpop.f32.mrf.mxu0
    %v3359 = vadd.f32 %v3273, %v3358
    %v3360 = vand.u32 %v3053, 4294901760
    %v3361 = vsub.f32 %v3053, %v3360
    %3362 = vmatmul.f32.gmra.mxu0 %v3361
    %v3363 = vpop.f32.mrf.mxu0
    %v3364 = vadd.f32 %v3277, %v3363
    %v3365 = vand.u32 %v3056, 4294901760
    %v3366 = vsub.f32 %v3056, %v3365
    %3367 = vmatmul.f32.gmra.mxu0 %v3366
    %v3368 = vpop.f32.mrf.mxu0
    %v3369 = vadd.f32 %v3281, %v3368
    %v3370 = vand.u32 %v3059, 4294901760
    %v3371 = vsub.f32 %v3059, %v3370
    %3372 = vmatmul.f32.gmra.mxu0 %v3371
    %v3373 = vpop.f32.mrf.mxu0
    %v3374 = vadd.f32 %v3285, %v3373
    %v3375 = vand.u32 %v3062, 4294901760
    %v3376 = vsub.f32 %v3062, %v3375
    %3377 = vmatmul.f32.gmra.mxu0 %v3376
    %v3378 = vpop.f32.mrf.mxu0
    %v3379 = vadd.f32 %v3289, %v3378
    %v3380 = vand.u32 %v3065, 4294901760
    %v3381 = vsub.f32 %v3065, %v3380
    %3382 = vmatmul.f32.gmra.mxu0 %v3381
    %v3383 = vpop.f32.mrf.mxu0
    %v3384 = vadd.f32 %v3293, %v3383
    %v3385 = vand.u32 %v3068, 4294901760
    %v3386 = vsub.f32 %v3068, %v3385
    %3387 = vmatmul.f32.gmra.mxu0 %v3386
    %v3388 = vpop.f32.mrf.mxu0
    %v3389 = vadd.f32 %v3297, %v3388
    %v3390 = vand.u32 %v3071, 4294901760
    %v3391 = vsub.f32 %v3071, %v3390
    %3392 = vmatmul.f32.gmra.mxu0 %v3391
    %v3393 = vpop.f32.mrf.mxu0
    %v3394 = vadd.f32 %v3301, %v3393
    %v3395 = vand.u32 %v3074, 4294901760
    %v3396 = vsub.f32 %v3074, %v3395
    %3397 = vmatmul.f32.gmra.mxu0 %v3396
    %v3398 = vpop.f32.mrf.mxu0
    %v3399 = vadd.f32 %v3305, %v3398
    %v3400 = vand.u32 %v3077, 4294901760
    %v3401 = vsub.f32 %v3077, %v3400
    %3402 = vmatmul.f32.gmra.mxu0 %v3401
    %v3403 = vpop.f32.mrf.mxu0
    %v3404 = vadd.f32 %v3309, %v3403
    %v3405 = vand.u32 %v3080, 4294901760
    %v3406 = vsub.f32 %v3080, %v3405
    %3407 = vmatmul.f32.gmra.mxu0 %v3406
    %v3408 = vpop.f32.mrf.mxu0
    %v3409 = vadd.f32 %v3313, %v3408
    %v3410 = vand.u32 %v3083, 4294901760
    %v3411 = vsub.f32 %v3083, %v3410
    %3412 = vmatmul.f32.gmra.mxu0 %v3411
    %v3413 = vpop.f32.mrf.mxu0
    %v3414 = vadd.f32 %v3317, %v3413
    %v3415 = vand.u32 %v3086, 4294901760
    %v3416 = vsub.f32 %v3086, %v3415
    %3417 = vmatmul.f32.gmra.mxu0 %v3416
    %v3418 = vpop.f32.mrf.mxu0
    %v3419 = vadd.f32 %v3321, %v3418
    %v3420 = vand.u32 %v3089, 4294901760
    %v3421 = vsub.f32 %v3089, %v3420
    %3422 = vmatmul.f32.gmra.mxu0 %v3421
    %v3423 = vpop.f32.mrf.mxu0
    %v3424 = vadd.f32 %v3325, %v3423
    %v3425 = vand.u32 %v3092, 4294901760
    %v3426 = vsub.f32 %v3092, %v3425
    %3427 = vmatmul.f32.gmra.mxu0 %v3426
    %v3428 = vpop.f32.mrf.mxu0
    %v3429 = vadd.f32 %v3329, %v3428
    %v3430 = vand.u32 %v3095, 4294901760
    %v3431 = vsub.f32 %v3095, %v3430
    %3432 = vmatmul.f32.gmra.mxu0 %v3431
    %v3433 = vpop.f32.mrf.mxu0
    %v3434 = vadd.f32 %v3333, %v3433
    %3435 = vdwg.mxu0
    %3436 = vmatpush.msra.mxu0 0.0
    %3437 = vmatpush.msra.mxu0 0.0
    %3438 = vmatpush.msra.mxu0 0.0
    %3439 = vmatpush.msra.mxu0 0.0
    %3440 = vmatpush.msra.mxu0 0.0
    %3441 = vmatpush.msra.mxu0 0.0
    %3442 = vmatpush.msra.mxu0 0.0
    %3443 = vmatpush.msra.mxu0 0.0
    %3444 = vmatpush.msra.mxu0 0.0
    %3445 = vmatpush.msra.mxu0 0.0
    %3446 = vmatpush.msra.mxu0 0.0
    %3447 = vmatpush.msra.mxu0 0.0
    %3448 = vmatpush.msra.mxu0 0.0
    %3449 = vmatpush.msra.mxu0 0.0
    %v3450 = vand.u32 %v3046, 4294901760
    %3451 = vmatpush.msra.mxu0 %v3450
    %v3452 = vand.u32 %v3044, 4294901760
    %3453 = vmatpush.msra.mxu0 %v3452
    %v3454 = vand.u32 %v3050, 4294901760
    %v3455 = vsub.f32 %v3050, %v3454
    %v3456 = vand.u32 %v3455, 4294901760
    %3457 = vmatmul.f32.gmra.mxu0 %v3456
    %v3458 = vpop.f32.mrf.mxu0
    %v3459 = vadd.f32 %v3359, %v3458
    %v3460 = vand.u32 %v3053, 4294901760
    %v3461 = vsub.f32 %v3053, %v3460
    %v3462 = vand.u32 %v3461, 4294901760
    %3463 = vmatmul.f32.gmra.mxu0 %v3462
    %v3464 = vpop.f32.mrf.mxu0
    %v3465 = vadd.f32 %v3364, %v3464
    %v3466 = vand.u32 %v3056, 4294901760
    %v3467 = vsub.f32 %v3056, %v3466
    %v3468 = vand.u32 %v3467, 4294901760
    %3469 = vmatmul.f32.gmra.mxu0 %v3468
    %v3470 = vpop.f32.mrf.mxu0
    %v3471 = vadd.f32 %v3369, %v3470
    %v3472 = vand.u32 %v3059, 4294901760
    %v3473 = vsub.f32 %v3059, %v3472
    %v3474 = vand.u32 %v3473, 4294901760
    %3475 = vmatmul.f32.gmra.mxu0 %v3474
    %v3476 = vpop.f32.mrf.mxu0
    %v3477 = vadd.f32 %v3374, %v3476
    %v3478 = vand.u32 %v3062, 4294901760
    %v3479 = vsub.f32 %v3062, %v3478
    %v3480 = vand.u32 %v3479, 4294901760
    %3481 = vmatmul.f32.gmra.mxu0 %v3480
    %v3482 = vpop.f32.mrf.mxu0
    %v3483 = vadd.f32 %v3379, %v3482
    %v3484 = vand.u32 %v3065, 4294901760
    %v3485 = vsub.f32 %v3065, %v3484
    %v3486 = vand.u32 %v3485, 4294901760
    %3487 = vmatmul.f32.gmra.mxu0 %v3486
    %v3488 = vpop.f32.mrf.mxu0
    %v3489 = vadd.f32 %v3384, %v3488
    %v3490 = vand.u32 %v3068, 4294901760
    %v3491 = vsub.f32 %v3068, %v3490
    %v3492 = vand.u32 %v3491, 4294901760
    %3493 = vmatmul.f32.gmra.mxu0 %v3492
    %v3494 = vpop.f32.mrf.mxu0
    %v3495 = vadd.f32 %v3389, %v3494
    %v3496 = vand.u32 %v3071, 4294901760
    %v3497 = vsub.f32 %v3071, %v3496
    %v3498 = vand.u32 %v3497, 4294901760
    %3499 = vmatmul.f32.gmra.mxu0 %v3498
    %v3500 = vpop.f32.mrf.mxu0
    %v3501 = vadd.f32 %v3394, %v3500
    %v3502 = vand.u32 %v3074, 4294901760
    %v3503 = vsub.f32 %v3074, %v3502
    %v3504 = vand.u32 %v3503, 4294901760
    %3505 = vmatmul.f32.gmra.mxu0 %v3504
    %v3506 = vpop.f32.mrf.mxu0
    %v3507 = vadd.f32 %v3399, %v3506
    %v3508 = vand.u32 %v3077, 4294901760
    %v3509 = vsub.f32 %v3077, %v3508
    %v3510 = vand.u32 %v3509, 4294901760
    %3511 = vmatmul.f32.gmra.mxu0 %v3510
    %v3512 = vpop.f32.mrf.mxu0
    %v3513 = vadd.f32 %v3404, %v3512
    %v3514 = vand.u32 %v3080, 4294901760
    %v3515 = vsub.f32 %v3080, %v3514
    %v3516 = vand.u32 %v3515, 4294901760
    %3517 = vmatmul.f32.gmra.mxu0 %v3516
    %v3518 = vpop.f32.mrf.mxu0
    %v3519 = vadd.f32 %v3409, %v3518
    %v3520 = vand.u32 %v3083, 4294901760
    %v3521 = vsub.f32 %v3083, %v3520
    %v3522 = vand.u32 %v3521, 4294901760
    %3523 = vmatmul.f32.gmra.mxu0 %v3522
    %v3524 = vpop.f32.mrf.mxu0
    %v3525 = vadd.f32 %v3414, %v3524
    %v3526 = vand.u32 %v3086, 4294901760
    %v3527 = vsub.f32 %v3086, %v3526
    %v3528 = vand.u32 %v3527, 4294901760
    %3529 = vmatmul.f32.gmra.mxu0 %v3528
    %v3530 = vpop.f32.mrf.mxu0
    %v3531 = vadd.f32 %v3419, %v3530
    %v3532 = vand.u32 %v3089, 4294901760
    %v3533 = vsub.f32 %v3089, %v3532
    %v3534 = vand.u32 %v3533, 4294901760
    %3535 = vmatmul.f32.gmra.mxu0 %v3534
    %v3536 = vpop.f32.mrf.mxu0
    %v3537 = vadd.f32 %v3424, %v3536
    %v3538 = vand.u32 %v3092, 4294901760
    %v3539 = vsub.f32 %v3092, %v3538
    %v3540 = vand.u32 %v3539, 4294901760
    %3541 = vmatmul.f32.gmra.mxu0 %v3540
    %v3542 = vpop.f32.mrf.mxu0
    %v3543 = vadd.f32 %v3429, %v3542
    %v3544 = vand.u32 %v3095, 4294901760
    %v3545 = vsub.f32 %v3095, %v3544
    %v3546 = vand.u32 %v3545, 4294901760
    %3547 = vmatmul.f32.gmra.mxu0 %v3546
    %v3548 = vpop.f32.mrf.mxu0
    %v3549 = vadd.f32 %v3434, %v3548
    %3550 = vdwg.mxu0
    %3551 = vmatpush.msra.mxu0 0.0
    %3552 = vmatpush.msra.mxu0 0.0
    %3553 = vmatpush.msra.mxu0 0.0
    %3554 = vmatpush.msra.mxu0 0.0
    %3555 = vmatpush.msra.mxu0 0.0
    %3556 = vmatpush.msra.mxu0 0.0
    %3557 = vmatpush.msra.mxu0 0.0
    %3558 = vmatpush.msra.mxu0 0.0
    %3559 = vmatpush.msra.mxu0 0.0
    %3560 = vmatpush.msra.mxu0 0.0
    %3561 = vmatpush.msra.mxu0 0.0
    %3562 = vmatpush.msra.mxu0 0.0
    %3563 = vmatpush.msra.mxu0 0.0
    %3564 = vmatpush.msra.mxu0 0.0
    %v3565 = vand.u32 %v3046, 4294901760
    %v3566 = vsub.f32 %v3046, %v3565
    %v3567 = vand.u32 %v3566, 4294901760
    %3568 = vmatpush.msra.mxu0 %v3567
    %v3569 = vand.u32 %v3044, 4294901760
    %v3570 = vsub.f32 %v3044, %v3569
    %v3571 = vand.u32 %v3570, 4294901760
    %3572 = vmatpush.msra.mxu0 %v3571
    %v3573 = vand.u32 %v3050, 4294901760
    %3574 = vmatmul.f32.gmra.mxu0 %v3573
    %v3575 = vpop.f32.mrf.mxu0
    %v3576 = vadd.f32 %v3459, %v3575
    %v3577 = vand.u32 %v3053, 4294901760
    %3578 = vmatmul.f32.gmra.mxu0 %v3577
    %v3579 = vpop.f32.mrf.mxu0
    %v3580 = vadd.f32 %v3465, %v3579
    %v3581 = vand.u32 %v3056, 4294901760
    %3582 = vmatmul.f32.gmra.mxu0 %v3581
    %v3583 = vpop.f32.mrf.mxu0
    %v3584 = vadd.f32 %v3471, %v3583
    %v3585 = vand.u32 %v3059, 4294901760
    %3586 = vmatmul.f32.gmra.mxu0 %v3585
    %v3587 = vpop.f32.mrf.mxu0
    %v3588 = vadd.f32 %v3477, %v3587
    %v3589 = vand.u32 %v3062, 4294901760
    %3590 = vmatmul.f32.gmra.mxu0 %v3589
    %v3591 = vpop.f32.mrf.mxu0
    %v3592 = vadd.f32 %v3483, %v3591
    %v3593 = vand.u32 %v3065, 4294901760
    %3594 = vmatmul.f32.gmra.mxu0 %v3593
    %v3595 = vpop.f32.mrf.mxu0
    %v3596 = vadd.f32 %v3489, %v3595
    %v3597 = vand.u32 %v3068, 4294901760
    %3598 = vmatmul.f32.gmra.mxu0 %v3597
    %v3599 = vpop.f32.mrf.mxu0
    %v3600 = vadd.f32 %v3495, %v3599
    %v3601 = vand.u32 %v3071, 4294901760
    %3602 = vmatmul.f32.gmra.mxu0 %v3601
    %v3603 = vpop.f32.mrf.mxu0
    %v3604 = vadd.f32 %v3501, %v3603
    %v3605 = vand.u32 %v3074, 4294901760
    %3606 = vmatmul.f32.gmra.mxu0 %v3605
    %v3607 = vpop.f32.mrf.mxu0
    %v3608 = vadd.f32 %v3507, %v3607
    %v3609 = vand.u32 %v3077, 4294901760
    %3610 = vmatmul.f32.gmra.mxu0 %v3609
    %v3611 = vpop.f32.mrf.mxu0
    %v3612 = vadd.f32 %v3513, %v3611
    %v3613 = vand.u32 %v3080, 4294901760
    %3614 = vmatmul.f32.gmra.mxu0 %v3613
    %v3615 = vpop.f32.mrf.mxu0
    %v3616 = vadd.f32 %v3519, %v3615
    %v3617 = vand.u32 %v3083, 4294901760
    %3618 = vmatmul.f32.gmra.mxu0 %v3617
    %v3619 = vpop.f32.mrf.mxu0
    %v3620 = vadd.f32 %v3525, %v3619
    %v3621 = vand.u32 %v3086, 4294901760
    %3622 = vmatmul.f32.gmra.mxu0 %v3621
    %v3623 = vpop.f32.mrf.mxu0
    %v3624 = vadd.f32 %v3531, %v3623
    %v3625 = vand.u32 %v3089, 4294901760
    %3626 = vmatmul.f32.gmra.mxu0 %v3625
    %v3627 = vpop.f32.mrf.mxu0
    %v3628 = vadd.f32 %v3537, %v3627
    %v3629 = vand.u32 %v3092, 4294901760
    %3630 = vmatmul.f32.gmra.mxu0 %v3629
    %v3631 = vpop.f32.mrf.mxu0
    %v3632 = vadd.f32 %v3543, %v3631
    %v3633 = vand.u32 %v3095, 4294901760
    %3634 = vmatmul.f32.gmra.mxu0 %v3633
    %v3635 = vpop.f32.mrf.mxu0
    %v3636 = vadd.f32 %v3549, %v3635
    %3637 = vdwg.mxu0
    %3638 = vmatpush.msra.mxu0 0.0
    %3639 = vmatpush.msra.mxu0 0.0
    %3640 = vmatpush.msra.mxu0 0.0
    %3641 = vmatpush.msra.mxu0 0.0
    %3642 = vmatpush.msra.mxu0 0.0
    %3643 = vmatpush.msra.mxu0 0.0
    %3644 = vmatpush.msra.mxu0 0.0
    %3645 = vmatpush.msra.mxu0 0.0
    %3646 = vmatpush.msra.mxu0 0.0
    %3647 = vmatpush.msra.mxu0 0.0
    %3648 = vmatpush.msra.mxu0 0.0
    %3649 = vmatpush.msra.mxu0 0.0
    %3650 = vmatpush.msra.mxu0 0.0
    %3651 = vmatpush.msra.mxu0 0.0
    %v3652 = vand.u32 %v3046, 4294901760
    %3653 = vmatpush.msra.mxu0 %v3652
    %v3654 = vand.u32 %v3044, 4294901760
    %3655 = vmatpush.msra.mxu0 %v3654
    %v3656 = vand.u32 %v3050, 4294901760
    %3657 = vmatmul.f32.gmra.mxu0 %v3656
    %v3658 = vpop.f32.mrf.mxu0
    %v3659 = vadd.f32 %v3576, %v3658
    %v3660 = vand.u32 %v3053, 4294901760
    %3661 = vmatmul.f32.gmra.mxu0 %v3660
    %v3662 = vpop.f32.mrf.mxu0
    %v3663 = vadd.f32 %v3580, %v3662
    %v3664 = vand.u32 %v3056, 4294901760
    %3665 = vmatmul.f32.gmra.mxu0 %v3664
    %v3666 = vpop.f32.mrf.mxu0
    %v3667 = vadd.f32 %v3584, %v3666
    %v3668 = vand.u32 %v3059, 4294901760
    %3669 = vmatmul.f32.gmra.mxu0 %v3668
    %v3670 = vpop.f32.mrf.mxu0
    %v3671 = vadd.f32 %v3588, %v3670
    %v3672 = vand.u32 %v3062, 4294901760
    %3673 = vmatmul.f32.gmra.mxu0 %v3672
    %v3674 = vpop.f32.mrf.mxu0
    %v3675 = vadd.f32 %v3592, %v3674
    %v3676 = vand.u32 %v3065, 4294901760
    %3677 = vmatmul.f32.gmra.mxu0 %v3676
    %v3678 = vpop.f32.mrf.mxu0
    %v3679 = vadd.f32 %v3596, %v3678
    %v3680 = vand.u32 %v3068, 4294901760
    %3681 = vmatmul.f32.gmra.mxu0 %v3680
    %v3682 = vpop.f32.mrf.mxu0
    %v3683 = vadd.f32 %v3600, %v3682
    %v3684 = vand.u32 %v3071, 4294901760
    %3685 = vmatmul.f32.gmra.mxu0 %v3684
    %v3686 = vpop.f32.mrf.mxu0
    %v3687 = vadd.f32 %v3604, %v3686
    %v3688 = vand.u32 %v3074, 4294901760
    %3689 = vmatmul.f32.gmra.mxu0 %v3688
    %v3690 = vpop.f32.mrf.mxu0
    %v3691 = vadd.f32 %v3608, %v3690
    %v3692 = vand.u32 %v3077, 4294901760
    %3693 = vmatmul.f32.gmra.mxu0 %v3692
    %v3694 = vpop.f32.mrf.mxu0
    %v3695 = vadd.f32 %v3612, %v3694
    %v3696 = vand.u32 %v3080, 4294901760
    %3697 = vmatmul.f32.gmra.mxu0 %v3696
    %v3698 = vpop.f32.mrf.mxu0
    %v3699 = vadd.f32 %v3616, %v3698
    %v3700 = vand.u32 %v3083, 4294901760
    %3701 = vmatmul.f32.gmra.mxu0 %v3700
    %v3702 = vpop.f32.mrf.mxu0
    %v3703 = vadd.f32 %v3620, %v3702
    %v3704 = vand.u32 %v3086, 4294901760
    %3705 = vmatmul.f32.gmra.mxu0 %v3704
    %v3706 = vpop.f32.mrf.mxu0
    %v3707 = vadd.f32 %v3624, %v3706
    %v3708 = vand.u32 %v3089, 4294901760
    %3709 = vmatmul.f32.gmra.mxu0 %v3708
    %v3710 = vpop.f32.mrf.mxu0
    %v3711 = vadd.f32 %v3628, %v3710
    %v3712 = vand.u32 %v3092, 4294901760
    %3713 = vmatmul.f32.gmra.mxu0 %v3712
    %v3714 = vpop.f32.mrf.mxu0
    %v3715 = vadd.f32 %v3632, %v3714
    %v3716 = vand.u32 %v3095, 4294901760
    %3717 = vmatmul.f32.gmra.mxu0 %v3716
    %v3718 = vpop.f32.mrf.mxu0
    %v3719 = vadd.f32 %v3636, %v3718
    %3720 = vdwg.mxu0
    %v3721 = vadd.f32 %v2979, %v3659
    %v3722 = vadd.f32 %v2983, %v3663
    %v3723 = vadd.f32 %v2987, %v3667
    %v3724 = vadd.f32 %v2991, %v3671
    %v3725 = vadd.f32 %v2995, %v3675
    %v3726 = vadd.f32 %v2999, %v3679
    %v3727 = vadd.f32 %v3003, %v3683
    %v3728 = vadd.f32 %v3007, %v3687
    %v3729 = vadd.f32 %v3011, %v3691
    %v3730 = vadd.f32 %v3015, %v3695
    %v3731 = vadd.f32 %v3019, %v3699
    %v3732 = vadd.f32 %v3023, %v3703
    %v3733 = vadd.f32 %v3027, %v3707
    %v3734 = vadd.f32 %v3031, %v3711
    %v3735 = vadd.f32 %v3035, %v3715
    %v3736 = vadd.f32 %v3039, %v3719
    %3737 = vset.pattern.permute.xlu0 64
    %3738 = vperm.xlu0 %3737, %v60
    %v3739 = vpop.permute.xlu0 %3738
    %3741 = vset.pattern.permute.xlu0 64
    %3742 = vperm.xlu0 %3741, %v61
    %v3743 = vpop.permute.xlu0 %3742
    %3745 = vset.pattern.permute.xlu0 64
    %3746 = vperm.xlu0 %3745, %v62
    %v3747 = vpop.permute.xlu0 %3746
    %3749 = vset.pattern.permute.xlu0 64
    %3750 = vperm.xlu0 %3749, %v63
    %v3751 = vpop.permute.xlu0 %3750
    %3753 = vset.pattern.permute.xlu0 64
    %3754 = vperm.xlu0 %3753, %v64
    %v3755 = vpop.permute.xlu0 %3754
    %3757 = vset.pattern.permute.xlu0 64
    %3758 = vperm.xlu0 %3757, %v65
    %v3759 = vpop.permute.xlu0 %3758
    %3761 = vset.pattern.permute.xlu0 64
    %3762 = vperm.xlu0 %3761, %v66
    %v3763 = vpop.permute.xlu0 %3762
    %3765 = vset.pattern.permute.xlu0 64
    %3766 = vperm.xlu0 %3765, %v67
    %v3767 = vpop.permute.xlu0 %3766
    %3769 = vset.pattern.permute.xlu0 64
    %3770 = vperm.xlu0 %3769, %v68
    %v3771 = vpop.permute.xlu0 %3770
    %3773 = vset.pattern.permute.xlu0 64
    %3774 = vperm.xlu0 %3773, %v69
    %v3775 = vpop.permute.xlu0 %3774
    %3777 = vset.pattern.permute.xlu0 64
    %3778 = vperm.xlu0 %3777, %v70
    %v3779 = vpop.permute.xlu0 %3778
    %3781 = vset.pattern.permute.xlu0 64
    %3782 = vperm.xlu0 %3781, %v71
    %v3783 = vpop.permute.xlu0 %3782
    %3785 = vset.pattern.permute.xlu0 64
    %3786 = vperm.xlu0 %3785, %v72
    %v3787 = vpop.permute.xlu0 %3786
    %3789 = vset.pattern.permute.xlu0 64
    %3790 = vperm.xlu0 %3789, %v73
    %v3791 = vpop.permute.xlu0 %3790
    %3793 = vset.pattern.permute.xlu0 64
    %3794 = vperm.xlu0 %3793, %v74
    %v3795 = vpop.permute.xlu0 %3794
    %3797 = vset.pattern.permute.xlu0 64
    %3798 = vperm.xlu0 %3797, %v75
    %v3799 = vpop.permute.xlu0 %3798
    %v3801 = vadd.f32 %v3721, %v3739
    %v3802 = vadd.f32 %v3722, %v3743
    %v3803 = vadd.f32 %v3723, %v3747
    %v3804 = vadd.f32 %v3724, %v3751
    %v3805 = vadd.f32 %v3725, %v3755
    %v3806 = vadd.f32 %v3726, %v3759
    %v3807 = vadd.f32 %v3727, %v3763
    %v3808 = vadd.f32 %v3728, %v3767
    %v3809 = vadd.f32 %v3729, %v3771
    %v3810 = vadd.f32 %v3730, %v3775
    %v3811 = vadd.f32 %v3731, %v3779
    %v3812 = vadd.f32 %v3732, %v3783
    %v3813 = vadd.f32 %v3733, %v3787
    %v3814 = vadd.f32 %v3734, %v3791
    %v3815 = vadd.f32 %v3735, %v3795
    %v3816 = vadd.f32 %v3736, %v3799
    %v3817 = vmax.f32 %v3801, 0.0
    %v3818 = vmax.f32 %v3802, 0.0
    %v3819 = vmax.f32 %v3803, 0.0
    %v3820 = vmax.f32 %v3804, 0.0
    %v3821 = vmax.f32 %v3805, 0.0
    %v3822 = vmax.f32 %v3806, 0.0
    %v3823 = vmax.f32 %v3807, 0.0
    %v3824 = vmax.f32 %v3808, 0.0
    %v3825 = vmax.f32 %v3809, 0.0
    %v3826 = vmax.f32 %v3810, 0.0
    %v3827 = vmax.f32 %v3811, 0.0
    %v3828 = vmax.f32 %v3812, 0.0
    %v3829 = vmax.f32 %v3813, 0.0
    %v3830 = vmax.f32 %v3814, 0.0
    %v3831 = vmax.f32 %v3815, 0.0
    %v3832 = vmax.f32 %v3816, 0.0
    %3833 = vrot.lane.b32.xlu0 %v76, 96
    %v3834 = vpop.permute.xlu0 %3833
    %3835 = vrot.lane.b32.xlu0 %v77, 96
    %v3836 = vpop.permute.xlu0 %3835
    %v3840 = vsel %vm2368, %v3817, 0
    %v3843 = vsel %vm2368, %v3818, 0
    %v3846 = vsel %vm2368, %v3819, 0
    %v3849 = vsel %vm2368, %v3820, 0
    %v3852 = vsel %vm2368, %v3821, 0
    %v3855 = vsel %vm2368, %v3822, 0
    %v3858 = vsel %vm2368, %v3823, 0
    %v3861 = vsel %vm2368, %v3824, 0
    %v3864 = vsel %vm2368, %v3825, 0
    %v3867 = vsel %vm2368, %v3826, 0
    %v3870 = vsel %vm2368, %v3827, 0
    %v3873 = vsel %vm2368, %v3828, 0
    %v3876 = vsel %vm2368, %v3829, 0
    %v3879 = vsel %vm2368, %v3830, 0
    %v3882 = vsel %vm2368, %v3831, 0
    %v3885 = vsel %vm2368, %v3832, 0
    %3887 = vmatpush.msra.mxu0 0.0
    %3888 = vmatpush.msra.mxu0 0.0
    %3889 = vmatpush.msra.mxu0 0.0
    %3890 = vmatpush.msra.mxu0 0.0
    %3891 = vmatpush.msra.mxu0 0.0
    %3892 = vmatpush.msra.mxu0 0.0
    %3893 = vmatpush.msra.mxu0 0.0
    %3894 = vmatpush.msra.mxu0 0.0
    %3895 = vmatpush.msra.mxu0 0.0
    %3896 = vmatpush.msra.mxu0 0.0
    %3897 = vmatpush.msra.mxu0 0.0
    %3898 = vmatpush.msra.mxu0 0.0
    %3899 = vmatpush.msra.mxu0 0.0
    %3900 = vmatpush.msra.mxu0 0.0
    %v3901 = vand.u32 %v3836, 4294901760
    %3902 = vmatpush.msra.mxu0 %v3901
    %v3903 = vand.u32 %v3834, 4294901760
    %3904 = vmatpush.msra.mxu0 %v3903
    %v3905 = vand.u32 %v3840, 4294901760
    %v3906 = vsub.f32 %v3840, %v3905
    %v3907 = vand.u32 %v3906, 4294901760
    %v3908 = vsub.f32 %v3906, %v3907
    %v3909 = vand.u32 %v3908, 4294901760
    %3910 = vmatmul.f32.gmra.mxu0 %v3909
    %v3911 = vpop.f32.mrf.mxu0
    %v3912 = vadd.f32 0.0, %v3911
    %v3913 = vand.u32 %v3843, 4294901760
    %v3914 = vsub.f32 %v3843, %v3913
    %v3915 = vand.u32 %v3914, 4294901760
    %v3916 = vsub.f32 %v3914, %v3915
    %v3917 = vand.u32 %v3916, 4294901760
    %3918 = vmatmul.f32.gmra.mxu0 %v3917
    %v3919 = vpop.f32.mrf.mxu0
    %v3920 = vadd.f32 0.0, %v3919
    %v3921 = vand.u32 %v3846, 4294901760
    %v3922 = vsub.f32 %v3846, %v3921
    %v3923 = vand.u32 %v3922, 4294901760
    %v3924 = vsub.f32 %v3922, %v3923
    %v3925 = vand.u32 %v3924, 4294901760
    %3926 = vmatmul.f32.gmra.mxu0 %v3925
    %v3927 = vpop.f32.mrf.mxu0
    %v3928 = vadd.f32 0.0, %v3927
    %v3929 = vand.u32 %v3849, 4294901760
    %v3930 = vsub.f32 %v3849, %v3929
    %v3931 = vand.u32 %v3930, 4294901760
    %v3932 = vsub.f32 %v3930, %v3931
    %v3933 = vand.u32 %v3932, 4294901760
    %3934 = vmatmul.f32.gmra.mxu0 %v3933
    %v3935 = vpop.f32.mrf.mxu0
    %v3936 = vadd.f32 0.0, %v3935
    %v3937 = vand.u32 %v3852, 4294901760
    %v3938 = vsub.f32 %v3852, %v3937
    %v3939 = vand.u32 %v3938, 4294901760
    %v3940 = vsub.f32 %v3938, %v3939
    %v3941 = vand.u32 %v3940, 4294901760
    %3942 = vmatmul.f32.gmra.mxu0 %v3941
    %v3943 = vpop.f32.mrf.mxu0
    %v3944 = vadd.f32 0.0, %v3943
    %v3945 = vand.u32 %v3855, 4294901760
    %v3946 = vsub.f32 %v3855, %v3945
    %v3947 = vand.u32 %v3946, 4294901760
    %v3948 = vsub.f32 %v3946, %v3947
    %v3949 = vand.u32 %v3948, 4294901760
    %3950 = vmatmul.f32.gmra.mxu0 %v3949
    %v3951 = vpop.f32.mrf.mxu0
    %v3952 = vadd.f32 0.0, %v3951
    %v3953 = vand.u32 %v3858, 4294901760
    %v3954 = vsub.f32 %v3858, %v3953
    %v3955 = vand.u32 %v3954, 4294901760
    %v3956 = vsub.f32 %v3954, %v3955
    %v3957 = vand.u32 %v3956, 4294901760
    %3958 = vmatmul.f32.gmra.mxu0 %v3957
    %v3959 = vpop.f32.mrf.mxu0
    %v3960 = vadd.f32 0.0, %v3959
    %v3961 = vand.u32 %v3861, 4294901760
    %v3962 = vsub.f32 %v3861, %v3961
    %v3963 = vand.u32 %v3962, 4294901760
    %v3964 = vsub.f32 %v3962, %v3963
    %v3965 = vand.u32 %v3964, 4294901760
    %3966 = vmatmul.f32.gmra.mxu0 %v3965
    %v3967 = vpop.f32.mrf.mxu0
    %v3968 = vadd.f32 0.0, %v3967
    %v3969 = vand.u32 %v3864, 4294901760
    %v3970 = vsub.f32 %v3864, %v3969
    %v3971 = vand.u32 %v3970, 4294901760
    %v3972 = vsub.f32 %v3970, %v3971
    %v3973 = vand.u32 %v3972, 4294901760
    %3974 = vmatmul.f32.gmra.mxu0 %v3973
    %v3975 = vpop.f32.mrf.mxu0
    %v3976 = vadd.f32 0.0, %v3975
    %v3977 = vand.u32 %v3867, 4294901760
    %v3978 = vsub.f32 %v3867, %v3977
    %v3979 = vand.u32 %v3978, 4294901760
    %v3980 = vsub.f32 %v3978, %v3979
    %v3981 = vand.u32 %v3980, 4294901760
    %3982 = vmatmul.f32.gmra.mxu0 %v3981
    %v3983 = vpop.f32.mrf.mxu0
    %v3984 = vadd.f32 0.0, %v3983
    %v3985 = vand.u32 %v3870, 4294901760
    %v3986 = vsub.f32 %v3870, %v3985
    %v3987 = vand.u32 %v3986, 4294901760
    %v3988 = vsub.f32 %v3986, %v3987
    %v3989 = vand.u32 %v3988, 4294901760
    %3990 = vmatmul.f32.gmra.mxu0 %v3989
    %v3991 = vpop.f32.mrf.mxu0
    %v3992 = vadd.f32 0.0, %v3991
    %v3993 = vand.u32 %v3873, 4294901760
    %v3994 = vsub.f32 %v3873, %v3993
    %v3995 = vand.u32 %v3994, 4294901760
    %v3996 = vsub.f32 %v3994, %v3995
    %v3997 = vand.u32 %v3996, 4294901760
    %3998 = vmatmul.f32.gmra.mxu0 %v3997
    %v3999 = vpop.f32.mrf.mxu0
    %v4000 = vadd.f32 0.0, %v3999
    %v4001 = vand.u32 %v3876, 4294901760
    %v4002 = vsub.f32 %v3876, %v4001
    %v4003 = vand.u32 %v4002, 4294901760
    %v4004 = vsub.f32 %v4002, %v4003
    %v4005 = vand.u32 %v4004, 4294901760
    %4006 = vmatmul.f32.gmra.mxu0 %v4005
    %v4007 = vpop.f32.mrf.mxu0
    %v4008 = vadd.f32 0.0, %v4007
    %v4009 = vand.u32 %v3879, 4294901760
    %v4010 = vsub.f32 %v3879, %v4009
    %v4011 = vand.u32 %v4010, 4294901760
    %v4012 = vsub.f32 %v4010, %v4011
    %v4013 = vand.u32 %v4012, 4294901760
    %4014 = vmatmul.f32.gmra.mxu0 %v4013
    %v4015 = vpop.f32.mrf.mxu0
    %v4016 = vadd.f32 0.0, %v4015
    %v4017 = vand.u32 %v3882, 4294901760
    %v4018 = vsub.f32 %v3882, %v4017
    %v4019 = vand.u32 %v4018, 4294901760
    %v4020 = vsub.f32 %v4018, %v4019
    %v4021 = vand.u32 %v4020, 4294901760
    %4022 = vmatmul.f32.gmra.mxu0 %v4021
    %v4023 = vpop.f32.mrf.mxu0
    %v4024 = vadd.f32 0.0, %v4023
    %v4025 = vand.u32 %v3885, 4294901760
    %v4026 = vsub.f32 %v3885, %v4025
    %v4027 = vand.u32 %v4026, 4294901760
    %v4028 = vsub.f32 %v4026, %v4027
    %v4029 = vand.u32 %v4028, 4294901760
    %4030 = vmatmul.f32.gmra.mxu0 %v4029
    %v4031 = vpop.f32.mrf.mxu0
    %v4032 = vadd.f32 0.0, %v4031
    %4033 = vdwg.mxu0
    %4034 = vmatpush.msra.mxu0 0.0
    %4035 = vmatpush.msra.mxu0 0.0
    %4036 = vmatpush.msra.mxu0 0.0
    %4037 = vmatpush.msra.mxu0 0.0
    %4038 = vmatpush.msra.mxu0 0.0
    %4039 = vmatpush.msra.mxu0 0.0
    %4040 = vmatpush.msra.mxu0 0.0
    %4041 = vmatpush.msra.mxu0 0.0
    %4042 = vmatpush.msra.mxu0 0.0
    %4043 = vmatpush.msra.mxu0 0.0
    %4044 = vmatpush.msra.mxu0 0.0
    %4045 = vmatpush.msra.mxu0 0.0
    %4046 = vmatpush.msra.mxu0 0.0
    %4047 = vmatpush.msra.mxu0 0.0
    %v4048 = vand.u32 %v3836, 4294901760
    %v4049 = vsub.f32 %v3836, %v4048
    %v4050 = vand.u32 %v4049, 4294901760
    %v4051 = vsub.f32 %v4049, %v4050
    %v4052 = vand.u32 %v4051, 4294901760
    %4053 = vmatpush.msra.mxu0 %v4052
    %v4054 = vand.u32 %v3834, 4294901760
    %v4055 = vsub.f32 %v3834, %v4054
    %v4056 = vand.u32 %v4055, 4294901760
    %v4057 = vsub.f32 %v4055, %v4056
    %v4058 = vand.u32 %v4057, 4294901760
    %4059 = vmatpush.msra.mxu0 %v4058
    %v4060 = vand.u32 %v3840, 4294901760
    %4061 = vmatmul.f32.gmra.mxu0 %v4060
    %v4062 = vpop.f32.mrf.mxu0
    %v4063 = vadd.f32 %v3912, %v4062
    %v4064 = vand.u32 %v3843, 4294901760
    %4065 = vmatmul.f32.gmra.mxu0 %v4064
    %v4066 = vpop.f32.mrf.mxu0
    %v4067 = vadd.f32 %v3920, %v4066
    %v4068 = vand.u32 %v3846, 4294901760
    %4069 = vmatmul.f32.gmra.mxu0 %v4068
    %v4070 = vpop.f32.mrf.mxu0
    %v4071 = vadd.f32 %v3928, %v4070
    %v4072 = vand.u32 %v3849, 4294901760
    %4073 = vmatmul.f32.gmra.mxu0 %v4072
    %v4074 = vpop.f32.mrf.mxu0
    %v4075 = vadd.f32 %v3936, %v4074
    %v4076 = vand.u32 %v3852, 4294901760
    %4077 = vmatmul.f32.gmra.mxu0 %v4076
    %v4078 = vpop.f32.mrf.mxu0
    %v4079 = vadd.f32 %v3944, %v4078
    %v4080 = vand.u32 %v3855, 4294901760
    %4081 = vmatmul.f32.gmra.mxu0 %v4080
    %v4082 = vpop.f32.mrf.mxu0
    %v4083 = vadd.f32 %v3952, %v4082
    %v4084 = vand.u32 %v3858, 4294901760
    %4085 = vmatmul.f32.gmra.mxu0 %v4084
    %v4086 = vpop.f32.mrf.mxu0
    %v4087 = vadd.f32 %v3960, %v4086
    %v4088 = vand.u32 %v3861, 4294901760
    %4089 = vmatmul.f32.gmra.mxu0 %v4088
    %v4090 = vpop.f32.mrf.mxu0
    %v4091 = vadd.f32 %v3968, %v4090
    %v4092 = vand.u32 %v3864, 4294901760
    %4093 = vmatmul.f32.gmra.mxu0 %v4092
    %v4094 = vpop.f32.mrf.mxu0
    %v4095 = vadd.f32 %v3976, %v4094
    %v4096 = vand.u32 %v3867, 4294901760
    %4097 = vmatmul.f32.gmra.mxu0 %v4096
    %v4098 = vpop.f32.mrf.mxu0
    %v4099 = vadd.f32 %v3984, %v4098
    %v4100 = vand.u32 %v3870, 4294901760
    %4101 = vmatmul.f32.gmra.mxu0 %v4100
    %v4102 = vpop.f32.mrf.mxu0
    %v4103 = vadd.f32 %v3992, %v4102
    %v4104 = vand.u32 %v3873, 4294901760
    %4105 = vmatmul.f32.gmra.mxu0 %v4104
    %v4106 = vpop.f32.mrf.mxu0
    %v4107 = vadd.f32 %v4000, %v4106
    %v4108 = vand.u32 %v3876, 4294901760
    %4109 = vmatmul.f32.gmra.mxu0 %v4108
    %v4110 = vpop.f32.mrf.mxu0
    %v4111 = vadd.f32 %v4008, %v4110
    %v4112 = vand.u32 %v3879, 4294901760
    %4113 = vmatmul.f32.gmra.mxu0 %v4112
    %v4114 = vpop.f32.mrf.mxu0
    %v4115 = vadd.f32 %v4016, %v4114
    %v4116 = vand.u32 %v3882, 4294901760
    %4117 = vmatmul.f32.gmra.mxu0 %v4116
    %v4118 = vpop.f32.mrf.mxu0
    %v4119 = vadd.f32 %v4024, %v4118
    %v4120 = vand.u32 %v3885, 4294901760
    %4121 = vmatmul.f32.gmra.mxu0 %v4120
    %v4122 = vpop.f32.mrf.mxu0
    %v4123 = vadd.f32 %v4032, %v4122
    %4124 = vdwg.mxu0
    %4125 = vmatpush.msra.mxu0 0.0
    %4126 = vmatpush.msra.mxu0 0.0
    %4127 = vmatpush.msra.mxu0 0.0
    %4128 = vmatpush.msra.mxu0 0.0
    %4129 = vmatpush.msra.mxu0 0.0
    %4130 = vmatpush.msra.mxu0 0.0
    %4131 = vmatpush.msra.mxu0 0.0
    %4132 = vmatpush.msra.mxu0 0.0
    %4133 = vmatpush.msra.mxu0 0.0
    %4134 = vmatpush.msra.mxu0 0.0
    %4135 = vmatpush.msra.mxu0 0.0
    %4136 = vmatpush.msra.mxu0 0.0
    %4137 = vmatpush.msra.mxu0 0.0
    %4138 = vmatpush.msra.mxu0 0.0
    %v4139 = vand.u32 %v3836, 4294901760
    %v4140 = vsub.f32 %v3836, %v4139
    %4141 = vmatpush.msra.mxu0 %v4140
    %v4142 = vand.u32 %v3834, 4294901760
    %v4143 = vsub.f32 %v3834, %v4142
    %4144 = vmatpush.msra.mxu0 %v4143
    %v4145 = vand.u32 %v3840, 4294901760
    %v4146 = vsub.f32 %v3840, %v4145
    %4147 = vmatmul.f32.gmra.mxu0 %v4146
    %v4148 = vpop.f32.mrf.mxu0
    %v4149 = vadd.f32 %v4063, %v4148
    %v4150 = vand.u32 %v3843, 4294901760
    %v4151 = vsub.f32 %v3843, %v4150
    %4152 = vmatmul.f32.gmra.mxu0 %v4151
    %v4153 = vpop.f32.mrf.mxu0
    %v4154 = vadd.f32 %v4067, %v4153
    %v4155 = vand.u32 %v3846, 4294901760
    %v4156 = vsub.f32 %v3846, %v4155
    %4157 = vmatmul.f32.gmra.mxu0 %v4156
    %v4158 = vpop.f32.mrf.mxu0
    %v4159 = vadd.f32 %v4071, %v4158
    %v4160 = vand.u32 %v3849, 4294901760
    %v4161 = vsub.f32 %v3849, %v4160
    %4162 = vmatmul.f32.gmra.mxu0 %v4161
    %v4163 = vpop.f32.mrf.mxu0
    %v4164 = vadd.f32 %v4075, %v4163
    %v4165 = vand.u32 %v3852, 4294901760
    %v4166 = vsub.f32 %v3852, %v4165
    %4167 = vmatmul.f32.gmra.mxu0 %v4166
    %v4168 = vpop.f32.mrf.mxu0
    %v4169 = vadd.f32 %v4079, %v4168
    %v4170 = vand.u32 %v3855, 4294901760
    %v4171 = vsub.f32 %v3855, %v4170
    %4172 = vmatmul.f32.gmra.mxu0 %v4171
    %v4173 = vpop.f32.mrf.mxu0
    %v4174 = vadd.f32 %v4083, %v4173
    %v4175 = vand.u32 %v3858, 4294901760
    %v4176 = vsub.f32 %v3858, %v4175
    %4177 = vmatmul.f32.gmra.mxu0 %v4176
    %v4178 = vpop.f32.mrf.mxu0
    %v4179 = vadd.f32 %v4087, %v4178
    %v4180 = vand.u32 %v3861, 4294901760
    %v4181 = vsub.f32 %v3861, %v4180
    %4182 = vmatmul.f32.gmra.mxu0 %v4181
    %v4183 = vpop.f32.mrf.mxu0
    %v4184 = vadd.f32 %v4091, %v4183
    %v4185 = vand.u32 %v3864, 4294901760
    %v4186 = vsub.f32 %v3864, %v4185
    %4187 = vmatmul.f32.gmra.mxu0 %v4186
    %v4188 = vpop.f32.mrf.mxu0
    %v4189 = vadd.f32 %v4095, %v4188
    %v4190 = vand.u32 %v3867, 4294901760
    %v4191 = vsub.f32 %v3867, %v4190
    %4192 = vmatmul.f32.gmra.mxu0 %v4191
    %v4193 = vpop.f32.mrf.mxu0
    %v4194 = vadd.f32 %v4099, %v4193
    %v4195 = vand.u32 %v3870, 4294901760
    %v4196 = vsub.f32 %v3870, %v4195
    %4197 = vmatmul.f32.gmra.mxu0 %v4196
    %v4198 = vpop.f32.mrf.mxu0
    %v4199 = vadd.f32 %v4103, %v4198
    %v4200 = vand.u32 %v3873, 4294901760
    %v4201 = vsub.f32 %v3873, %v4200
    %4202 = vmatmul.f32.gmra.mxu0 %v4201
    %v4203 = vpop.f32.mrf.mxu0
    %v4204 = vadd.f32 %v4107, %v4203
    %v4205 = vand.u32 %v3876, 4294901760
    %v4206 = vsub.f32 %v3876, %v4205
    %4207 = vmatmul.f32.gmra.mxu0 %v4206
    %v4208 = vpop.f32.mrf.mxu0
    %v4209 = vadd.f32 %v4111, %v4208
    %v4210 = vand.u32 %v3879, 4294901760
    %v4211 = vsub.f32 %v3879, %v4210
    %4212 = vmatmul.f32.gmra.mxu0 %v4211
    %v4213 = vpop.f32.mrf.mxu0
    %v4214 = vadd.f32 %v4115, %v4213
    %v4215 = vand.u32 %v3882, 4294901760
    %v4216 = vsub.f32 %v3882, %v4215
    %4217 = vmatmul.f32.gmra.mxu0 %v4216
    %v4218 = vpop.f32.mrf.mxu0
    %v4219 = vadd.f32 %v4119, %v4218
    %v4220 = vand.u32 %v3885, 4294901760
    %v4221 = vsub.f32 %v3885, %v4220
    %4222 = vmatmul.f32.gmra.mxu0 %v4221
    %v4223 = vpop.f32.mrf.mxu0
    %v4224 = vadd.f32 %v4123, %v4223
    %4225 = vdwg.mxu0
    %4226 = vmatpush.msra.mxu0 0.0
    %4227 = vmatpush.msra.mxu0 0.0
    %4228 = vmatpush.msra.mxu0 0.0
    %4229 = vmatpush.msra.mxu0 0.0
    %4230 = vmatpush.msra.mxu0 0.0
    %4231 = vmatpush.msra.mxu0 0.0
    %4232 = vmatpush.msra.mxu0 0.0
    %4233 = vmatpush.msra.mxu0 0.0
    %4234 = vmatpush.msra.mxu0 0.0
    %4235 = vmatpush.msra.mxu0 0.0
    %4236 = vmatpush.msra.mxu0 0.0
    %4237 = vmatpush.msra.mxu0 0.0
    %4238 = vmatpush.msra.mxu0 0.0
    %4239 = vmatpush.msra.mxu0 0.0
    %v4240 = vand.u32 %v3836, 4294901760
    %4241 = vmatpush.msra.mxu0 %v4240
    %v4242 = vand.u32 %v3834, 4294901760
    %4243 = vmatpush.msra.mxu0 %v4242
    %v4244 = vand.u32 %v3840, 4294901760
    %v4245 = vsub.f32 %v3840, %v4244
    %v4246 = vand.u32 %v4245, 4294901760
    %4247 = vmatmul.f32.gmra.mxu0 %v4246
    %v4248 = vpop.f32.mrf.mxu0
    %v4249 = vadd.f32 %v4149, %v4248
    %v4250 = vand.u32 %v3843, 4294901760
    %v4251 = vsub.f32 %v3843, %v4250
    %v4252 = vand.u32 %v4251, 4294901760
    %4253 = vmatmul.f32.gmra.mxu0 %v4252
    %v4254 = vpop.f32.mrf.mxu0
    %v4255 = vadd.f32 %v4154, %v4254
    %v4256 = vand.u32 %v3846, 4294901760
    %v4257 = vsub.f32 %v3846, %v4256
    %v4258 = vand.u32 %v4257, 4294901760
    %4259 = vmatmul.f32.gmra.mxu0 %v4258
    %v4260 = vpop.f32.mrf.mxu0
    %v4261 = vadd.f32 %v4159, %v4260
    %v4262 = vand.u32 %v3849, 4294901760
    %v4263 = vsub.f32 %v3849, %v4262
    %v4264 = vand.u32 %v4263, 4294901760
    %4265 = vmatmul.f32.gmra.mxu0 %v4264
    %v4266 = vpop.f32.mrf.mxu0
    %v4267 = vadd.f32 %v4164, %v4266
    %v4268 = vand.u32 %v3852, 4294901760
    %v4269 = vsub.f32 %v3852, %v4268
    %v4270 = vand.u32 %v4269, 4294901760
    %4271 = vmatmul.f32.gmra.mxu0 %v4270
    %v4272 = vpop.f32.mrf.mxu0
    %v4273 = vadd.f32 %v4169, %v4272
    %v4274 = vand.u32 %v3855, 4294901760
    %v4275 = vsub.f32 %v3855, %v4274
    %v4276 = vand.u32 %v4275, 4294901760
    %4277 = vmatmul.f32.gmra.mxu0 %v4276
    %v4278 = vpop.f32.mrf.mxu0
    %v4279 = vadd.f32 %v4174, %v4278
    %v4280 = vand.u32 %v3858, 4294901760
    %v4281 = vsub.f32 %v3858, %v4280
    %v4282 = vand.u32 %v4281, 4294901760
    %4283 = vmatmul.f32.gmra.mxu0 %v4282
    %v4284 = vpop.f32.mrf.mxu0
    %v4285 = vadd.f32 %v4179, %v4284
    %v4286 = vand.u32 %v3861, 4294901760
    %v4287 = vsub.f32 %v3861, %v4286
    %v4288 = vand.u32 %v4287, 4294901760
    %4289 = vmatmul.f32.gmra.mxu0 %v4288
    %v4290 = vpop.f32.mrf.mxu0
    %v4291 = vadd.f32 %v4184, %v4290
    %v4292 = vand.u32 %v3864, 4294901760
    %v4293 = vsub.f32 %v3864, %v4292
    %v4294 = vand.u32 %v4293, 4294901760
    %4295 = vmatmul.f32.gmra.mxu0 %v4294
    %v4296 = vpop.f32.mrf.mxu0
    %v4297 = vadd.f32 %v4189, %v4296
    %v4298 = vand.u32 %v3867, 4294901760
    %v4299 = vsub.f32 %v3867, %v4298
    %v4300 = vand.u32 %v4299, 4294901760
    %4301 = vmatmul.f32.gmra.mxu0 %v4300
    %v4302 = vpop.f32.mrf.mxu0
    %v4303 = vadd.f32 %v4194, %v4302
    %v4304 = vand.u32 %v3870, 4294901760
    %v4305 = vsub.f32 %v3870, %v4304
    %v4306 = vand.u32 %v4305, 4294901760
    %4307 = vmatmul.f32.gmra.mxu0 %v4306
    %v4308 = vpop.f32.mrf.mxu0
    %v4309 = vadd.f32 %v4199, %v4308
    %v4310 = vand.u32 %v3873, 4294901760
    %v4311 = vsub.f32 %v3873, %v4310
    %v4312 = vand.u32 %v4311, 4294901760
    %4313 = vmatmul.f32.gmra.mxu0 %v4312
    %v4314 = vpop.f32.mrf.mxu0
    %v4315 = vadd.f32 %v4204, %v4314
    %v4316 = vand.u32 %v3876, 4294901760
    %v4317 = vsub.f32 %v3876, %v4316
    %v4318 = vand.u32 %v4317, 4294901760
    %4319 = vmatmul.f32.gmra.mxu0 %v4318
    %v4320 = vpop.f32.mrf.mxu0
    %v4321 = vadd.f32 %v4209, %v4320
    %v4322 = vand.u32 %v3879, 4294901760
    %v4323 = vsub.f32 %v3879, %v4322
    %v4324 = vand.u32 %v4323, 4294901760
    %4325 = vmatmul.f32.gmra.mxu0 %v4324
    %v4326 = vpop.f32.mrf.mxu0
    %v4327 = vadd.f32 %v4214, %v4326
    %v4328 = vand.u32 %v3882, 4294901760
    %v4329 = vsub.f32 %v3882, %v4328
    %v4330 = vand.u32 %v4329, 4294901760
    %4331 = vmatmul.f32.gmra.mxu0 %v4330
    %v4332 = vpop.f32.mrf.mxu0
    %v4333 = vadd.f32 %v4219, %v4332
    %v4334 = vand.u32 %v3885, 4294901760
    %v4335 = vsub.f32 %v3885, %v4334
    %v4336 = vand.u32 %v4335, 4294901760
    %4337 = vmatmul.f32.gmra.mxu0 %v4336
    %v4338 = vpop.f32.mrf.mxu0
    %v4339 = vadd.f32 %v4224, %v4338
    %4340 = vdwg.mxu0
    %4341 = vmatpush.msra.mxu0 0.0
    %4342 = vmatpush.msra.mxu0 0.0
    %4343 = vmatpush.msra.mxu0 0.0
    %4344 = vmatpush.msra.mxu0 0.0
    %4345 = vmatpush.msra.mxu0 0.0
    %4346 = vmatpush.msra.mxu0 0.0
    %4347 = vmatpush.msra.mxu0 0.0
    %4348 = vmatpush.msra.mxu0 0.0
    %4349 = vmatpush.msra.mxu0 0.0
    %4350 = vmatpush.msra.mxu0 0.0
    %4351 = vmatpush.msra.mxu0 0.0
    %4352 = vmatpush.msra.mxu0 0.0
    %4353 = vmatpush.msra.mxu0 0.0
    %4354 = vmatpush.msra.mxu0 0.0
    %v4355 = vand.u32 %v3836, 4294901760
    %v4356 = vsub.f32 %v3836, %v4355
    %v4357 = vand.u32 %v4356, 4294901760
    %4358 = vmatpush.msra.mxu0 %v4357
    %v4359 = vand.u32 %v3834, 4294901760
    %v4360 = vsub.f32 %v3834, %v4359
    %v4361 = vand.u32 %v4360, 4294901760
    %4362 = vmatpush.msra.mxu0 %v4361
    %v4363 = vand.u32 %v3840, 4294901760
    %4364 = vmatmul.f32.gmra.mxu0 %v4363
    %v4365 = vpop.f32.mrf.mxu0
    %v4366 = vadd.f32 %v4249, %v4365
    %v4367 = vand.u32 %v3843, 4294901760
    %4368 = vmatmul.f32.gmra.mxu0 %v4367
    %v4369 = vpop.f32.mrf.mxu0
    %v4370 = vadd.f32 %v4255, %v4369
    %v4371 = vand.u32 %v3846, 4294901760
    %4372 = vmatmul.f32.gmra.mxu0 %v4371
    %v4373 = vpop.f32.mrf.mxu0
    %v4374 = vadd.f32 %v4261, %v4373
    %v4375 = vand.u32 %v3849, 4294901760
    %4376 = vmatmul.f32.gmra.mxu0 %v4375
    %v4377 = vpop.f32.mrf.mxu0
    %v4378 = vadd.f32 %v4267, %v4377
    %v4379 = vand.u32 %v3852, 4294901760
    %4380 = vmatmul.f32.gmra.mxu0 %v4379
    %v4381 = vpop.f32.mrf.mxu0
    %v4382 = vadd.f32 %v4273, %v4381
    %v4383 = vand.u32 %v3855, 4294901760
    %4384 = vmatmul.f32.gmra.mxu0 %v4383
    %v4385 = vpop.f32.mrf.mxu0
    %v4386 = vadd.f32 %v4279, %v4385
    %v4387 = vand.u32 %v3858, 4294901760
    %4388 = vmatmul.f32.gmra.mxu0 %v4387
    %v4389 = vpop.f32.mrf.mxu0
    %v4390 = vadd.f32 %v4285, %v4389
    %v4391 = vand.u32 %v3861, 4294901760
    %4392 = vmatmul.f32.gmra.mxu0 %v4391
    %v4393 = vpop.f32.mrf.mxu0
    %v4394 = vadd.f32 %v4291, %v4393
    %v4395 = vand.u32 %v3864, 4294901760
    %4396 = vmatmul.f32.gmra.mxu0 %v4395
    %v4397 = vpop.f32.mrf.mxu0
    %v4398 = vadd.f32 %v4297, %v4397
    %v4399 = vand.u32 %v3867, 4294901760
    %4400 = vmatmul.f32.gmra.mxu0 %v4399
    %v4401 = vpop.f32.mrf.mxu0
    %v4402 = vadd.f32 %v4303, %v4401
    %v4403 = vand.u32 %v3870, 4294901760
    %4404 = vmatmul.f32.gmra.mxu0 %v4403
    %v4405 = vpop.f32.mrf.mxu0
    %v4406 = vadd.f32 %v4309, %v4405
    %v4407 = vand.u32 %v3873, 4294901760
    %4408 = vmatmul.f32.gmra.mxu0 %v4407
    %v4409 = vpop.f32.mrf.mxu0
    %v4410 = vadd.f32 %v4315, %v4409
    %v4411 = vand.u32 %v3876, 4294901760
    %4412 = vmatmul.f32.gmra.mxu0 %v4411
    %v4413 = vpop.f32.mrf.mxu0
    %v4414 = vadd.f32 %v4321, %v4413
    %v4415 = vand.u32 %v3879, 4294901760
    %4416 = vmatmul.f32.gmra.mxu0 %v4415
    %v4417 = vpop.f32.mrf.mxu0
    %v4418 = vadd.f32 %v4327, %v4417
    %v4419 = vand.u32 %v3882, 4294901760
    %4420 = vmatmul.f32.gmra.mxu0 %v4419
    %v4421 = vpop.f32.mrf.mxu0
    %v4422 = vadd.f32 %v4333, %v4421
    %v4423 = vand.u32 %v3885, 4294901760
    %4424 = vmatmul.f32.gmra.mxu0 %v4423
    %v4425 = vpop.f32.mrf.mxu0
    %v4426 = vadd.f32 %v4339, %v4425
    %4427 = vdwg.mxu0
    %4428 = vmatpush.msra.mxu0 0.0
    %4429 = vmatpush.msra.mxu0 0.0
    %4430 = vmatpush.msra.mxu0 0.0
    %4431 = vmatpush.msra.mxu0 0.0
    %4432 = vmatpush.msra.mxu0 0.0
    %4433 = vmatpush.msra.mxu0 0.0
    %4434 = vmatpush.msra.mxu0 0.0
    %4435 = vmatpush.msra.mxu0 0.0
    %4436 = vmatpush.msra.mxu0 0.0
    %4437 = vmatpush.msra.mxu0 0.0
    %4438 = vmatpush.msra.mxu0 0.0
    %4439 = vmatpush.msra.mxu0 0.0
    %4440 = vmatpush.msra.mxu0 0.0
    %4441 = vmatpush.msra.mxu0 0.0
    %v4442 = vand.u32 %v3836, 4294901760
    %4443 = vmatpush.msra.mxu0 %v4442
    %v4444 = vand.u32 %v3834, 4294901760
    %4445 = vmatpush.msra.mxu0 %v4444
    %v4446 = vand.u32 %v3840, 4294901760
    %4447 = vmatmul.f32.gmra.mxu0 %v4446
    %v4448 = vpop.f32.mrf.mxu0
    %v4449 = vadd.f32 %v4366, %v4448
    %v4450 = vand.u32 %v3843, 4294901760
    %4451 = vmatmul.f32.gmra.mxu0 %v4450
    %v4452 = vpop.f32.mrf.mxu0
    %v4453 = vadd.f32 %v4370, %v4452
    %v4454 = vand.u32 %v3846, 4294901760
    %4455 = vmatmul.f32.gmra.mxu0 %v4454
    %v4456 = vpop.f32.mrf.mxu0
    %v4457 = vadd.f32 %v4374, %v4456
    %v4458 = vand.u32 %v3849, 4294901760
    %4459 = vmatmul.f32.gmra.mxu0 %v4458
    %v4460 = vpop.f32.mrf.mxu0
    %v4461 = vadd.f32 %v4378, %v4460
    %v4462 = vand.u32 %v3852, 4294901760
    %4463 = vmatmul.f32.gmra.mxu0 %v4462
    %v4464 = vpop.f32.mrf.mxu0
    %v4465 = vadd.f32 %v4382, %v4464
    %v4466 = vand.u32 %v3855, 4294901760
    %4467 = vmatmul.f32.gmra.mxu0 %v4466
    %v4468 = vpop.f32.mrf.mxu0
    %v4469 = vadd.f32 %v4386, %v4468
    %v4470 = vand.u32 %v3858, 4294901760
    %4471 = vmatmul.f32.gmra.mxu0 %v4470
    %v4472 = vpop.f32.mrf.mxu0
    %v4473 = vadd.f32 %v4390, %v4472
    %v4474 = vand.u32 %v3861, 4294901760
    %4475 = vmatmul.f32.gmra.mxu0 %v4474
    %v4476 = vpop.f32.mrf.mxu0
    %v4477 = vadd.f32 %v4394, %v4476
    %v4478 = vand.u32 %v3864, 4294901760
    %4479 = vmatmul.f32.gmra.mxu0 %v4478
    %v4480 = vpop.f32.mrf.mxu0
    %v4481 = vadd.f32 %v4398, %v4480
    %v4482 = vand.u32 %v3867, 4294901760
    %4483 = vmatmul.f32.gmra.mxu0 %v4482
    %v4484 = vpop.f32.mrf.mxu0
    %v4485 = vadd.f32 %v4402, %v4484
    %v4486 = vand.u32 %v3870, 4294901760
    %4487 = vmatmul.f32.gmra.mxu0 %v4486
    %v4488 = vpop.f32.mrf.mxu0
    %v4489 = vadd.f32 %v4406, %v4488
    %v4490 = vand.u32 %v3873, 4294901760
    %4491 = vmatmul.f32.gmra.mxu0 %v4490
    %v4492 = vpop.f32.mrf.mxu0
    %v4493 = vadd.f32 %v4410, %v4492
    %v4494 = vand.u32 %v3876, 4294901760
    %4495 = vmatmul.f32.gmra.mxu0 %v4494
    %v4496 = vpop.f32.mrf.mxu0
    %v4497 = vadd.f32 %v4414, %v4496
    %v4498 = vand.u32 %v3879, 4294901760
    %4499 = vmatmul.f32.gmra.mxu0 %v4498
    %v4500 = vpop.f32.mrf.mxu0
    %v4501 = vadd.f32 %v4418, %v4500
    %v4502 = vand.u32 %v3882, 4294901760
    %4503 = vmatmul.f32.gmra.mxu0 %v4502
    %v4504 = vpop.f32.mrf.mxu0
    %v4505 = vadd.f32 %v4422, %v4504
    %v4506 = vand.u32 %v3885, 4294901760
    %4507 = vmatmul.f32.gmra.mxu0 %v4506
    %v4508 = vpop.f32.mrf.mxu0
    %v4509 = vadd.f32 %v4426, %v4508
    %4510 = vdwg.mxu0
    %v4511 = vand.u32 %v4509, 4294901760
    %4512 = vmatpush.msra.mxu0 %v4511
    %v4513 = vand.u32 %v4505, 4294901760
    %4514 = vmatpush.msra.mxu0 %v4513
    %v4515 = vand.u32 %v4501, 4294901760
    %4516 = vmatpush.msra.mxu0 %v4515
    %v4517 = vand.u32 %v4497, 4294901760
    %4518 = vmatpush.msra.mxu0 %v4517
    %v4519 = vand.u32 %v4493, 4294901760
    %4520 = vmatpush.msra.mxu0 %v4519
    %v4521 = vand.u32 %v4489, 4294901760
    %4522 = vmatpush.msra.mxu0 %v4521
    %v4523 = vand.u32 %v4485, 4294901760
    %4524 = vmatpush.msra.mxu0 %v4523
    %v4525 = vand.u32 %v4481, 4294901760
    %4526 = vmatpush.msra.mxu0 %v4525
    %v4527 = vand.u32 %v4477, 4294901760
    %4528 = vmatpush.msra.mxu0 %v4527
    %v4529 = vand.u32 %v4473, 4294901760
    %4530 = vmatpush.msra.mxu0 %v4529
    %v4531 = vand.u32 %v4469, 4294901760
    %4532 = vmatpush.msra.mxu0 %v4531
    %v4533 = vand.u32 %v4465, 4294901760
    %4534 = vmatpush.msra.mxu0 %v4533
    %v4535 = vand.u32 %v4461, 4294901760
    %4536 = vmatpush.msra.mxu0 %v4535
    %v4537 = vand.u32 %v4457, 4294901760
    %4538 = vmatpush.msra.mxu0 %v4537
    %v4539 = vand.u32 %v4453, 4294901760
    %4540 = vmatpush.msra.mxu0 %v4539
    %v4541 = vand.u32 %v4449, 4294901760
    %4542 = vmatpush.msra.mxu0 %v4541
    %v4543 = vand.u32 %v78, 4294901760
    %v4544 = vsub.f32 %v78, %v4543
    %v4545 = vand.u32 %v4544, 4294901760
    %v4546 = vsub.f32 %v4544, %v4545
    %v4547 = vand.u32 %v4546, 4294901760
    %4548 = vmatmul.f32.gmra.mxu0 %v4547
    %v4549 = vpop.f32.mrf.mxu0
    %v4550 = vadd.f32 0.0, %v4549
    %4551 = vdwg.mxu0
    %v4552 = vand.u32 %v4509, 4294901760
    %v4553 = vsub.f32 %v4509, %v4552
    %v4554 = vand.u32 %v4553, 4294901760
    %v4555 = vsub.f32 %v4553, %v4554
    %v4556 = vand.u32 %v4555, 4294901760
    %4557 = vmatpush.msra.mxu0 %v4556
    %v4558 = vand.u32 %v4505, 4294901760
    %v4559 = vsub.f32 %v4505, %v4558
    %v4560 = vand.u32 %v4559, 4294901760
    %v4561 = vsub.f32 %v4559, %v4560
    %v4562 = vand.u32 %v4561, 4294901760
    %4563 = vmatpush.msra.mxu0 %v4562
    %v4564 = vand.u32 %v4501, 4294901760
    %v4565 = vsub.f32 %v4501, %v4564
    %v4566 = vand.u32 %v4565, 4294901760
    %v4567 = vsub.f32 %v4565, %v4566
    %v4568 = vand.u32 %v4567, 4294901760
    %4569 = vmatpush.msra.mxu0 %v4568
    %v4570 = vand.u32 %v4497, 4294901760
    %v4571 = vsub.f32 %v4497, %v4570
    %v4572 = vand.u32 %v4571, 4294901760
    %v4573 = vsub.f32 %v4571, %v4572
    %v4574 = vand.u32 %v4573, 4294901760
    %4575 = vmatpush.msra.mxu0 %v4574
    %v4576 = vand.u32 %v4493, 4294901760
    %v4577 = vsub.f32 %v4493, %v4576
    %v4578 = vand.u32 %v4577, 4294901760
    %v4579 = vsub.f32 %v4577, %v4578
    %v4580 = vand.u32 %v4579, 4294901760
    %4581 = vmatpush.msra.mxu0 %v4580
    %v4582 = vand.u32 %v4489, 4294901760
    %v4583 = vsub.f32 %v4489, %v4582
    %v4584 = vand.u32 %v4583, 4294901760
    %v4585 = vsub.f32 %v4583, %v4584
    %v4586 = vand.u32 %v4585, 4294901760
    %4587 = vmatpush.msra.mxu0 %v4586
    %v4588 = vand.u32 %v4485, 4294901760
    %v4589 = vsub.f32 %v4485, %v4588
    %v4590 = vand.u32 %v4589, 4294901760
    %v4591 = vsub.f32 %v4589, %v4590
    %v4592 = vand.u32 %v4591, 4294901760
    %4593 = vmatpush.msra.mxu0 %v4592
    %v4594 = vand.u32 %v4481, 4294901760
    %v4595 = vsub.f32 %v4481, %v4594
    %v4596 = vand.u32 %v4595, 4294901760
    %v4597 = vsub.f32 %v4595, %v4596
    %v4598 = vand.u32 %v4597, 4294901760
    %4599 = vmatpush.msra.mxu0 %v4598
    %v4600 = vand.u32 %v4477, 4294901760
    %v4601 = vsub.f32 %v4477, %v4600
    %v4602 = vand.u32 %v4601, 4294901760
    %v4603 = vsub.f32 %v4601, %v4602
    %v4604 = vand.u32 %v4603, 4294901760
    %4605 = vmatpush.msra.mxu0 %v4604
    %v4606 = vand.u32 %v4473, 4294901760
    %v4607 = vsub.f32 %v4473, %v4606
    %v4608 = vand.u32 %v4607, 4294901760
    %v4609 = vsub.f32 %v4607, %v4608
    %v4610 = vand.u32 %v4609, 4294901760
    %4611 = vmatpush.msra.mxu0 %v4610
    %v4612 = vand.u32 %v4469, 4294901760
    %v4613 = vsub.f32 %v4469, %v4612
    %v4614 = vand.u32 %v4613, 4294901760
    %v4615 = vsub.f32 %v4613, %v4614
    %v4616 = vand.u32 %v4615, 4294901760
    %4617 = vmatpush.msra.mxu0 %v4616
    %v4618 = vand.u32 %v4465, 4294901760
    %v4619 = vsub.f32 %v4465, %v4618
    %v4620 = vand.u32 %v4619, 4294901760
    %v4621 = vsub.f32 %v4619, %v4620
    %v4622 = vand.u32 %v4621, 4294901760
    %4623 = vmatpush.msra.mxu0 %v4622
    %v4624 = vand.u32 %v4461, 4294901760
    %v4625 = vsub.f32 %v4461, %v4624
    %v4626 = vand.u32 %v4625, 4294901760
    %v4627 = vsub.f32 %v4625, %v4626
    %v4628 = vand.u32 %v4627, 4294901760
    %4629 = vmatpush.msra.mxu0 %v4628
    %v4630 = vand.u32 %v4457, 4294901760
    %v4631 = vsub.f32 %v4457, %v4630
    %v4632 = vand.u32 %v4631, 4294901760
    %v4633 = vsub.f32 %v4631, %v4632
    %v4634 = vand.u32 %v4633, 4294901760
    %4635 = vmatpush.msra.mxu0 %v4634
    %v4636 = vand.u32 %v4453, 4294901760
    %v4637 = vsub.f32 %v4453, %v4636
    %v4638 = vand.u32 %v4637, 4294901760
    %v4639 = vsub.f32 %v4637, %v4638
    %v4640 = vand.u32 %v4639, 4294901760
    %4641 = vmatpush.msra.mxu0 %v4640
    %v4642 = vand.u32 %v4449, 4294901760
    %v4643 = vsub.f32 %v4449, %v4642
    %v4644 = vand.u32 %v4643, 4294901760
    %v4645 = vsub.f32 %v4643, %v4644
    %v4646 = vand.u32 %v4645, 4294901760
    %4647 = vmatpush.msra.mxu0 %v4646
    %v4648 = vand.u32 %v78, 4294901760
    %4649 = vmatmul.f32.gmra.mxu0 %v4648
    %v4650 = vpop.f32.mrf.mxu0
    %v4651 = vadd.f32 %v4550, %v4650
    %4652 = vdwg.mxu0
    %v4653 = vand.u32 %v4509, 4294901760
    %v4654 = vsub.f32 %v4509, %v4653
    %4655 = vmatpush.msra.mxu0 %v4654
    %v4656 = vand.u32 %v4505, 4294901760
    %v4657 = vsub.f32 %v4505, %v4656
    %4658 = vmatpush.msra.mxu0 %v4657
    %v4659 = vand.u32 %v4501, 4294901760
    %v4660 = vsub.f32 %v4501, %v4659
    %4661 = vmatpush.msra.mxu0 %v4660
    %v4662 = vand.u32 %v4497, 4294901760
    %v4663 = vsub.f32 %v4497, %v4662
    %4664 = vmatpush.msra.mxu0 %v4663
    %v4665 = vand.u32 %v4493, 4294901760
    %v4666 = vsub.f32 %v4493, %v4665
    %4667 = vmatpush.msra.mxu0 %v4666
    %v4668 = vand.u32 %v4489, 4294901760
    %v4669 = vsub.f32 %v4489, %v4668
    %4670 = vmatpush.msra.mxu0 %v4669
    %v4671 = vand.u32 %v4485, 4294901760
    %v4672 = vsub.f32 %v4485, %v4671
    %4673 = vmatpush.msra.mxu0 %v4672
    %v4674 = vand.u32 %v4481, 4294901760
    %v4675 = vsub.f32 %v4481, %v4674
    %4676 = vmatpush.msra.mxu0 %v4675
    %v4677 = vand.u32 %v4477, 4294901760
    %v4678 = vsub.f32 %v4477, %v4677
    %4679 = vmatpush.msra.mxu0 %v4678
    %v4680 = vand.u32 %v4473, 4294901760
    %v4681 = vsub.f32 %v4473, %v4680
    %4682 = vmatpush.msra.mxu0 %v4681
    %v4683 = vand.u32 %v4469, 4294901760
    %v4684 = vsub.f32 %v4469, %v4683
    %4685 = vmatpush.msra.mxu0 %v4684
    %v4686 = vand.u32 %v4465, 4294901760
    %v4687 = vsub.f32 %v4465, %v4686
    %4688 = vmatpush.msra.mxu0 %v4687
    %v4689 = vand.u32 %v4461, 4294901760
    %v4690 = vsub.f32 %v4461, %v4689
    %4691 = vmatpush.msra.mxu0 %v4690
    %v4692 = vand.u32 %v4457, 4294901760
    %v4693 = vsub.f32 %v4457, %v4692
    %4694 = vmatpush.msra.mxu0 %v4693
    %v4695 = vand.u32 %v4453, 4294901760
    %v4696 = vsub.f32 %v4453, %v4695
    %4697 = vmatpush.msra.mxu0 %v4696
    %v4698 = vand.u32 %v4449, 4294901760
    %v4699 = vsub.f32 %v4449, %v4698
    %4700 = vmatpush.msra.mxu0 %v4699
    %v4701 = vand.u32 %v78, 4294901760
    %v4702 = vsub.f32 %v78, %v4701
    %4703 = vmatmul.f32.gmra.mxu0 %v4702
    %v4704 = vpop.f32.mrf.mxu0
    %v4705 = vadd.f32 %v4651, %v4704
    %4706 = vdwg.mxu0
    %v4707 = vand.u32 %v4509, 4294901760
    %4708 = vmatpush.msra.mxu0 %v4707
    %v4709 = vand.u32 %v4505, 4294901760
    %4710 = vmatpush.msra.mxu0 %v4709
    %v4711 = vand.u32 %v4501, 4294901760
    %4712 = vmatpush.msra.mxu0 %v4711
    %v4713 = vand.u32 %v4497, 4294901760
    %4714 = vmatpush.msra.mxu0 %v4713
    %v4715 = vand.u32 %v4493, 4294901760
    %4716 = vmatpush.msra.mxu0 %v4715
    %v4717 = vand.u32 %v4489, 4294901760
    %4718 = vmatpush.msra.mxu0 %v4717
    %v4719 = vand.u32 %v4485, 4294901760
    %4720 = vmatpush.msra.mxu0 %v4719
    %v4721 = vand.u32 %v4481, 4294901760
    %4722 = vmatpush.msra.mxu0 %v4721
    %v4723 = vand.u32 %v4477, 4294901760
    %4724 = vmatpush.msra.mxu0 %v4723
    %v4725 = vand.u32 %v4473, 4294901760
    %4726 = vmatpush.msra.mxu0 %v4725
    %v4727 = vand.u32 %v4469, 4294901760
    %4728 = vmatpush.msra.mxu0 %v4727
    %v4729 = vand.u32 %v4465, 4294901760
    %4730 = vmatpush.msra.mxu0 %v4729
    %v4731 = vand.u32 %v4461, 4294901760
    %4732 = vmatpush.msra.mxu0 %v4731
    %v4733 = vand.u32 %v4457, 4294901760
    %4734 = vmatpush.msra.mxu0 %v4733
    %v4735 = vand.u32 %v4453, 4294901760
    %4736 = vmatpush.msra.mxu0 %v4735
    %v4737 = vand.u32 %v4449, 4294901760
    %4738 = vmatpush.msra.mxu0 %v4737
    %v4739 = vand.u32 %v78, 4294901760
    %v4740 = vsub.f32 %v78, %v4739
    %v4741 = vand.u32 %v4740, 4294901760
    %4742 = vmatmul.f32.gmra.mxu0 %v4741
    %v4743 = vpop.f32.mrf.mxu0
    %v4744 = vadd.f32 %v4705, %v4743
    %4745 = vdwg.mxu0
    %v4746 = vand.u32 %v4509, 4294901760
    %v4747 = vsub.f32 %v4509, %v4746
    %v4748 = vand.u32 %v4747, 4294901760
    %4749 = vmatpush.msra.mxu0 %v4748
    %v4750 = vand.u32 %v4505, 4294901760
    %v4751 = vsub.f32 %v4505, %v4750
    %v4752 = vand.u32 %v4751, 4294901760
    %4753 = vmatpush.msra.mxu0 %v4752
    %v4754 = vand.u32 %v4501, 4294901760
    %v4755 = vsub.f32 %v4501, %v4754
    %v4756 = vand.u32 %v4755, 4294901760
    %4757 = vmatpush.msra.mxu0 %v4756
    %v4758 = vand.u32 %v4497, 4294901760
    %v4759 = vsub.f32 %v4497, %v4758
    %v4760 = vand.u32 %v4759, 4294901760
    %4761 = vmatpush.msra.mxu0 %v4760
    %v4762 = vand.u32 %v4493, 4294901760
    %v4763 = vsub.f32 %v4493, %v4762
    %v4764 = vand.u32 %v4763, 4294901760
    %4765 = vmatpush.msra.mxu0 %v4764
    %v4766 = vand.u32 %v4489, 4294901760
    %v4767 = vsub.f32 %v4489, %v4766
    %v4768 = vand.u32 %v4767, 4294901760
    %4769 = vmatpush.msra.mxu0 %v4768
    %v4770 = vand.u32 %v4485, 4294901760
    %v4771 = vsub.f32 %v4485, %v4770
    %v4772 = vand.u32 %v4771, 4294901760
    %4773 = vmatpush.msra.mxu0 %v4772
    %v4774 = vand.u32 %v4481, 4294901760
    %v4775 = vsub.f32 %v4481, %v4774
    %v4776 = vand.u32 %v4775, 4294901760
    %4777 = vmatpush.msra.mxu0 %v4776
    %v4778 = vand.u32 %v4477, 4294901760
    %v4779 = vsub.f32 %v4477, %v4778
    %v4780 = vand.u32 %v4779, 4294901760
    %4781 = vmatpush.msra.mxu0 %v4780
    %v4782 = vand.u32 %v4473, 4294901760
    %v4783 = vsub.f32 %v4473, %v4782
    %v4784 = vand.u32 %v4783, 4294901760
    %4785 = vmatpush.msra.mxu0 %v4784
    %v4786 = vand.u32 %v4469, 4294901760
    %v4787 = vsub.f32 %v4469, %v4786
    %v4788 = vand.u32 %v4787, 4294901760
    %4789 = vmatpush.msra.mxu0 %v4788
    %v4790 = vand.u32 %v4465, 4294901760
    %v4791 = vsub.f32 %v4465, %v4790
    %v4792 = vand.u32 %v4791, 4294901760
    %4793 = vmatpush.msra.mxu0 %v4792
    %v4794 = vand.u32 %v4461, 4294901760
    %v4795 = vsub.f32 %v4461, %v4794
    %v4796 = vand.u32 %v4795, 4294901760
    %4797 = vmatpush.msra.mxu0 %v4796
    %v4798 = vand.u32 %v4457, 4294901760
    %v4799 = vsub.f32 %v4457, %v4798
    %v4800 = vand.u32 %v4799, 4294901760
    %4801 = vmatpush.msra.mxu0 %v4800
    %v4802 = vand.u32 %v4453, 4294901760
    %v4803 = vsub.f32 %v4453, %v4802
    %v4804 = vand.u32 %v4803, 4294901760
    %4805 = vmatpush.msra.mxu0 %v4804
    %v4806 = vand.u32 %v4449, 4294901760
    %v4807 = vsub.f32 %v4449, %v4806
    %v4808 = vand.u32 %v4807, 4294901760
    %4809 = vmatpush.msra.mxu0 %v4808
    %v4810 = vand.u32 %v78, 4294901760
    %4811 = vmatmul.f32.gmra.mxu0 %v4810
    %v4812 = vpop.f32.mrf.mxu0
    %v4813 = vadd.f32 %v4744, %v4812
    %4814 = vdwg.mxu0
    %v4815 = vand.u32 %v4509, 4294901760
    %4816 = vmatpush.msra.mxu0 %v4815
    %v4817 = vand.u32 %v4505, 4294901760
    %4818 = vmatpush.msra.mxu0 %v4817
    %v4819 = vand.u32 %v4501, 4294901760
    %4820 = vmatpush.msra.mxu0 %v4819
    %v4821 = vand.u32 %v4497, 4294901760
    %4822 = vmatpush.msra.mxu0 %v4821
    %v4823 = vand.u32 %v4493, 4294901760
    %4824 = vmatpush.msra.mxu0 %v4823
    %v4825 = vand.u32 %v4489, 4294901760
    %4826 = vmatpush.msra.mxu0 %v4825
    %v4827 = vand.u32 %v4485, 4294901760
    %4828 = vmatpush.msra.mxu0 %v4827
    %v4829 = vand.u32 %v4481, 4294901760
    %4830 = vmatpush.msra.mxu0 %v4829
    %v4831 = vand.u32 %v4477, 4294901760
    %4832 = vmatpush.msra.mxu0 %v4831
    %v4833 = vand.u32 %v4473, 4294901760
    %4834 = vmatpush.msra.mxu0 %v4833
    %v4835 = vand.u32 %v4469, 4294901760
    %4836 = vmatpush.msra.mxu0 %v4835
    %v4837 = vand.u32 %v4465, 4294901760
    %4838 = vmatpush.msra.mxu0 %v4837
    %v4839 = vand.u32 %v4461, 4294901760
    %4840 = vmatpush.msra.mxu0 %v4839
    %v4841 = vand.u32 %v4457, 4294901760
    %4842 = vmatpush.msra.mxu0 %v4841
    %v4843 = vand.u32 %v4453, 4294901760
    %4844 = vmatpush.msra.mxu0 %v4843
    %v4845 = vand.u32 %v4449, 4294901760
    %4846 = vmatpush.msra.mxu0 %v4845
    %v4847 = vand.u32 %v78, 4294901760
    %4848 = vmatmul.f32.gmra.mxu0 %v4847
    %v4849 = vpop.f32.mrf.mxu0
    %v4850 = vadd.f32 %v4813, %v4849
    %4851 = vdwg.mxu0
    %4852 = vmatpush.msra.mxu0 0.0
    %4853 = vmatpush.msra.mxu0 0.0
    %4854 = vmatpush.msra.mxu0 0.0
    %4855 = vmatpush.msra.mxu0 0.0
    %4856 = vmatpush.msra.mxu0 0.0
    %4857 = vmatpush.msra.mxu0 0.0
    %4858 = vmatpush.msra.mxu0 0.0
    %4859 = vmatpush.msra.mxu0 0.0
    %v4860 = vand.u32 %v100, 4294901760
    %4861 = vmatpush.msra.mxu0 %v4860
    %v4862 = vand.u32 %v99, 4294901760
    %4863 = vmatpush.msra.mxu0 %v4862
    %v4864 = vand.u32 %v98, 4294901760
    %4865 = vmatpush.msra.mxu0 %v4864
    %v4866 = vand.u32 %v97, 4294901760
    %4867 = vmatpush.msra.mxu0 %v4866
    %v4868 = vand.u32 %v96, 4294901760
    %4869 = vmatpush.msra.mxu0 %v4868
    %v4870 = vand.u32 %v95, 4294901760
    %4871 = vmatpush.msra.mxu0 %v4870
    %v4872 = vand.u32 %v94, 4294901760
    %4873 = vmatpush.msra.mxu0 %v4872
    %v4874 = vand.u32 %v93, 4294901760
    %4875 = vmatpush.msra.mxu0 %v4874
    %v4876 = vand.u32 %v103, 4294901760
    %v4877 = vsub.f32 %v103, %v4876
    %v4878 = vand.u32 %v4877, 4294901760
    %v4879 = vsub.f32 %v4877, %v4878
    %v4880 = vand.u32 %v4879, 4294901760
    %4881 = vmatmul.f32.gmra.mxu0 %v4880
    %v4882 = vpop.f32.mrf.mxu0
    %v4883 = vadd.f32 0.0, %v4882
    %v4884 = vand.u32 %v106, 4294901760
    %v4885 = vsub.f32 %v106, %v4884
    %v4886 = vand.u32 %v4885, 4294901760
    %v4887 = vsub.f32 %v4885, %v4886
    %v4888 = vand.u32 %v4887, 4294901760
    %4889 = vmatmul.f32.gmra.mxu0 %v4888
    %v4890 = vpop.f32.mrf.mxu0
    %v4891 = vadd.f32 0.0, %v4890
    %v4892 = vand.u32 %v109, 4294901760
    %v4893 = vsub.f32 %v109, %v4892
    %v4894 = vand.u32 %v4893, 4294901760
    %v4895 = vsub.f32 %v4893, %v4894
    %v4896 = vand.u32 %v4895, 4294901760
    %4897 = vmatmul.f32.gmra.mxu0 %v4896
    %v4898 = vpop.f32.mrf.mxu0
    %v4899 = vadd.f32 0.0, %v4898
    %v4900 = vand.u32 %v112, 4294901760
    %v4901 = vsub.f32 %v112, %v4900
    %v4902 = vand.u32 %v4901, 4294901760
    %v4903 = vsub.f32 %v4901, %v4902
    %v4904 = vand.u32 %v4903, 4294901760
    %4905 = vmatmul.f32.gmra.mxu0 %v4904
    %v4906 = vpop.f32.mrf.mxu0
    %v4907 = vadd.f32 0.0, %v4906
    %v4908 = vand.u32 %v115, 4294901760
    %v4909 = vsub.f32 %v115, %v4908
    %v4910 = vand.u32 %v4909, 4294901760
    %v4911 = vsub.f32 %v4909, %v4910
    %v4912 = vand.u32 %v4911, 4294901760
    %4913 = vmatmul.f32.gmra.mxu0 %v4912
    %v4914 = vpop.f32.mrf.mxu0
    %v4915 = vadd.f32 0.0, %v4914
    %v4916 = vand.u32 %v118, 4294901760
    %v4917 = vsub.f32 %v118, %v4916
    %v4918 = vand.u32 %v4917, 4294901760
    %v4919 = vsub.f32 %v4917, %v4918
    %v4920 = vand.u32 %v4919, 4294901760
    %4921 = vmatmul.f32.gmra.mxu0 %v4920
    %v4922 = vpop.f32.mrf.mxu0
    %v4923 = vadd.f32 0.0, %v4922
    %v4924 = vand.u32 %v121, 4294901760
    %v4925 = vsub.f32 %v121, %v4924
    %v4926 = vand.u32 %v4925, 4294901760
    %v4927 = vsub.f32 %v4925, %v4926
    %v4928 = vand.u32 %v4927, 4294901760
    %4929 = vmatmul.f32.gmra.mxu0 %v4928
    %v4930 = vpop.f32.mrf.mxu0
    %v4931 = vadd.f32 0.0, %v4930
    %v4932 = vand.u32 %v124, 4294901760
    %v4933 = vsub.f32 %v124, %v4932
    %v4934 = vand.u32 %v4933, 4294901760
    %v4935 = vsub.f32 %v4933, %v4934
    %v4936 = vand.u32 %v4935, 4294901760
    %4937 = vmatmul.f32.gmra.mxu0 %v4936
    %v4938 = vpop.f32.mrf.mxu0
    %v4939 = vadd.f32 0.0, %v4938
    %v4940 = vand.u32 %v127, 4294901760
    %v4941 = vsub.f32 %v127, %v4940
    %v4942 = vand.u32 %v4941, 4294901760
    %v4943 = vsub.f32 %v4941, %v4942
    %v4944 = vand.u32 %v4943, 4294901760
    %4945 = vmatmul.f32.gmra.mxu0 %v4944
    %v4946 = vpop.f32.mrf.mxu0
    %v4947 = vadd.f32 0.0, %v4946
    %v4948 = vand.u32 %v130, 4294901760
    %v4949 = vsub.f32 %v130, %v4948
    %v4950 = vand.u32 %v4949, 4294901760
    %v4951 = vsub.f32 %v4949, %v4950
    %v4952 = vand.u32 %v4951, 4294901760
    %4953 = vmatmul.f32.gmra.mxu0 %v4952
    %v4954 = vpop.f32.mrf.mxu0
    %v4955 = vadd.f32 0.0, %v4954
    %v4956 = vand.u32 %v133, 4294901760
    %v4957 = vsub.f32 %v133, %v4956
    %v4958 = vand.u32 %v4957, 4294901760
    %v4959 = vsub.f32 %v4957, %v4958
    %v4960 = vand.u32 %v4959, 4294901760
    %4961 = vmatmul.f32.gmra.mxu0 %v4960
    %v4962 = vpop.f32.mrf.mxu0
    %v4963 = vadd.f32 0.0, %v4962
    %v4964 = vand.u32 %v136, 4294901760
    %v4965 = vsub.f32 %v136, %v4964
    %v4966 = vand.u32 %v4965, 4294901760
    %v4967 = vsub.f32 %v4965, %v4966
    %v4968 = vand.u32 %v4967, 4294901760
    %4969 = vmatmul.f32.gmra.mxu0 %v4968
    %v4970 = vpop.f32.mrf.mxu0
    %v4971 = vadd.f32 0.0, %v4970
    %v4972 = vand.u32 %v139, 4294901760
    %v4973 = vsub.f32 %v139, %v4972
    %v4974 = vand.u32 %v4973, 4294901760
    %v4975 = vsub.f32 %v4973, %v4974
    %v4976 = vand.u32 %v4975, 4294901760
    %4977 = vmatmul.f32.gmra.mxu0 %v4976
    %v4978 = vpop.f32.mrf.mxu0
    %v4979 = vadd.f32 0.0, %v4978
    %v4980 = vand.u32 %v142, 4294901760
    %v4981 = vsub.f32 %v142, %v4980
    %v4982 = vand.u32 %v4981, 4294901760
    %v4983 = vsub.f32 %v4981, %v4982
    %v4984 = vand.u32 %v4983, 4294901760
    %4985 = vmatmul.f32.gmra.mxu0 %v4984
    %v4986 = vpop.f32.mrf.mxu0
    %v4987 = vadd.f32 0.0, %v4986
    %v4988 = vand.u32 %v145, 4294901760
    %v4989 = vsub.f32 %v145, %v4988
    %v4990 = vand.u32 %v4989, 4294901760
    %v4991 = vsub.f32 %v4989, %v4990
    %v4992 = vand.u32 %v4991, 4294901760
    %4993 = vmatmul.f32.gmra.mxu0 %v4992
    %v4994 = vpop.f32.mrf.mxu0
    %v4995 = vadd.f32 0.0, %v4994
    %v4996 = vand.u32 %v148, 4294901760
    %v4997 = vsub.f32 %v148, %v4996
    %v4998 = vand.u32 %v4997, 4294901760
    %v4999 = vsub.f32 %v4997, %v4998
    %v5000 = vand.u32 %v4999, 4294901760
    %5001 = vmatmul.f32.gmra.mxu0 %v5000
    %v5002 = vpop.f32.mrf.mxu0
    %v5003 = vadd.f32 0.0, %v5002
    %5004 = vdwg.mxu0
    %5005 = vmatpush.msra.mxu0 0.0
    %5006 = vmatpush.msra.mxu0 0.0
    %5007 = vmatpush.msra.mxu0 0.0
    %5008 = vmatpush.msra.mxu0 0.0
    %5009 = vmatpush.msra.mxu0 0.0
    %5010 = vmatpush.msra.mxu0 0.0
    %5011 = vmatpush.msra.mxu0 0.0
    %5012 = vmatpush.msra.mxu0 0.0
    %v5013 = vand.u32 %v100, 4294901760
    %v5014 = vsub.f32 %v100, %v5013
    %v5015 = vand.u32 %v5014, 4294901760
    %v5016 = vsub.f32 %v5014, %v5015
    %v5017 = vand.u32 %v5016, 4294901760
    %5018 = vmatpush.msra.mxu0 %v5017
    %v5019 = vand.u32 %v99, 4294901760
    %v5020 = vsub.f32 %v99, %v5019
    %v5021 = vand.u32 %v5020, 4294901760
    %v5022 = vsub.f32 %v5020, %v5021
    %v5023 = vand.u32 %v5022, 4294901760
    %5024 = vmatpush.msra.mxu0 %v5023
    %v5025 = vand.u32 %v98, 4294901760
    %v5026 = vsub.f32 %v98, %v5025
    %v5027 = vand.u32 %v5026, 4294901760
    %v5028 = vsub.f32 %v5026, %v5027
    %v5029 = vand.u32 %v5028, 4294901760
    %5030 = vmatpush.msra.mxu0 %v5029
    %v5031 = vand.u32 %v97, 4294901760
    %v5032 = vsub.f32 %v97, %v5031
    %v5033 = vand.u32 %v5032, 4294901760
    %v5034 = vsub.f32 %v5032, %v5033
    %v5035 = vand.u32 %v5034, 4294901760
    %5036 = vmatpush.msra.mxu0 %v5035
    %v5037 = vand.u32 %v96, 4294901760
    %v5038 = vsub.f32 %v96, %v5037
    %v5039 = vand.u32 %v5038, 4294901760
    %v5040 = vsub.f32 %v5038, %v5039
    %v5041 = vand.u32 %v5040, 4294901760
    %5042 = vmatpush.msra.mxu0 %v5041
    %v5043 = vand.u32 %v95, 4294901760
    %v5044 = vsub.f32 %v95, %v5043
    %v5045 = vand.u32 %v5044, 4294901760
    %v5046 = vsub.f32 %v5044, %v5045
    %v5047 = vand.u32 %v5046, 4294901760
    %5048 = vmatpush.msra.mxu0 %v5047
    %v5049 = vand.u32 %v94, 4294901760
    %v5050 = vsub.f32 %v94, %v5049
    %v5051 = vand.u32 %v5050, 4294901760
    %v5052 = vsub.f32 %v5050, %v5051
    %v5053 = vand.u32 %v5052, 4294901760
    %5054 = vmatpush.msra.mxu0 %v5053
    %v5055 = vand.u32 %v93, 4294901760
    %v5056 = vsub.f32 %v93, %v5055
    %v5057 = vand.u32 %v5056, 4294901760
    %v5058 = vsub.f32 %v5056, %v5057
    %v5059 = vand.u32 %v5058, 4294901760
    %5060 = vmatpush.msra.mxu0 %v5059
    %v5061 = vand.u32 %v103, 4294901760
    %5062 = vmatmul.f32.gmra.mxu0 %v5061
    %v5063 = vpop.f32.mrf.mxu0
    %v5064 = vadd.f32 %v4883, %v5063
    %v5065 = vand.u32 %v106, 4294901760
    %5066 = vmatmul.f32.gmra.mxu0 %v5065
    %v5067 = vpop.f32.mrf.mxu0
    %v5068 = vadd.f32 %v4891, %v5067
    %v5069 = vand.u32 %v109, 4294901760
    %5070 = vmatmul.f32.gmra.mxu0 %v5069
    %v5071 = vpop.f32.mrf.mxu0
    %v5072 = vadd.f32 %v4899, %v5071
    %v5073 = vand.u32 %v112, 4294901760
    %5074 = vmatmul.f32.gmra.mxu0 %v5073
    %v5075 = vpop.f32.mrf.mxu0
    %v5076 = vadd.f32 %v4907, %v5075
    %v5077 = vand.u32 %v115, 4294901760
    %5078 = vmatmul.f32.gmra.mxu0 %v5077
    %v5079 = vpop.f32.mrf.mxu0
    %v5080 = vadd.f32 %v4915, %v5079
    %v5081 = vand.u32 %v118, 4294901760
    %5082 = vmatmul.f32.gmra.mxu0 %v5081
    %v5083 = vpop.f32.mrf.mxu0
    %v5084 = vadd.f32 %v4923, %v5083
    %v5085 = vand.u32 %v121, 4294901760
    %5086 = vmatmul.f32.gmra.mxu0 %v5085
    %v5087 = vpop.f32.mrf.mxu0
    %v5088 = vadd.f32 %v4931, %v5087
    %v5089 = vand.u32 %v124, 4294901760
    %5090 = vmatmul.f32.gmra.mxu0 %v5089
    %v5091 = vpop.f32.mrf.mxu0
    %v5092 = vadd.f32 %v4939, %v5091
    %v5093 = vand.u32 %v127, 4294901760
    %5094 = vmatmul.f32.gmra.mxu0 %v5093
    %v5095 = vpop.f32.mrf.mxu0
    %v5096 = vadd.f32 %v4947, %v5095
    %v5097 = vand.u32 %v130, 4294901760
    %5098 = vmatmul.f32.gmra.mxu0 %v5097
    %v5099 = vpop.f32.mrf.mxu0
    %v5100 = vadd.f32 %v4955, %v5099
    %v5101 = vand.u32 %v133, 4294901760
    %5102 = vmatmul.f32.gmra.mxu0 %v5101
    %v5103 = vpop.f32.mrf.mxu0
    %v5104 = vadd.f32 %v4963, %v5103
    %v5105 = vand.u32 %v136, 4294901760
    %5106 = vmatmul.f32.gmra.mxu0 %v5105
    %v5107 = vpop.f32.mrf.mxu0
    %v5108 = vadd.f32 %v4971, %v5107
    %v5109 = vand.u32 %v139, 4294901760
    %5110 = vmatmul.f32.gmra.mxu0 %v5109
    %v5111 = vpop.f32.mrf.mxu0
    %v5112 = vadd.f32 %v4979, %v5111
    %v5113 = vand.u32 %v142, 4294901760
    %5114 = vmatmul.f32.gmra.mxu0 %v5113
    %v5115 = vpop.f32.mrf.mxu0
    %v5116 = vadd.f32 %v4987, %v5115
    %v5117 = vand.u32 %v145, 4294901760
    %5118 = vmatmul.f32.gmra.mxu0 %v5117
    %v5119 = vpop.f32.mrf.mxu0
    %v5120 = vadd.f32 %v4995, %v5119
    %v5121 = vand.u32 %v148, 4294901760
    %5122 = vmatmul.f32.gmra.mxu0 %v5121
    %v5123 = vpop.f32.mrf.mxu0
    %v5124 = vadd.f32 %v5003, %v5123
    %5125 = vdwg.mxu0
    %5126 = vmatpush.msra.mxu0 0.0
    %5127 = vmatpush.msra.mxu0 0.0
    %5128 = vmatpush.msra.mxu0 0.0
    %5129 = vmatpush.msra.mxu0 0.0
    %5130 = vmatpush.msra.mxu0 0.0
    %5131 = vmatpush.msra.mxu0 0.0
    %5132 = vmatpush.msra.mxu0 0.0
    %5133 = vmatpush.msra.mxu0 0.0
    %v5134 = vand.u32 %v100, 4294901760
    %v5135 = vsub.f32 %v100, %v5134
    %5136 = vmatpush.msra.mxu0 %v5135
    %v5137 = vand.u32 %v99, 4294901760
    %v5138 = vsub.f32 %v99, %v5137
    %5139 = vmatpush.msra.mxu0 %v5138
    %v5140 = vand.u32 %v98, 4294901760
    %v5141 = vsub.f32 %v98, %v5140
    %5142 = vmatpush.msra.mxu0 %v5141
    %v5143 = vand.u32 %v97, 4294901760
    %v5144 = vsub.f32 %v97, %v5143
    %5145 = vmatpush.msra.mxu0 %v5144
    %v5146 = vand.u32 %v96, 4294901760
    %v5147 = vsub.f32 %v96, %v5146
    %5148 = vmatpush.msra.mxu0 %v5147
    %v5149 = vand.u32 %v95, 4294901760
    %v5150 = vsub.f32 %v95, %v5149
    %5151 = vmatpush.msra.mxu0 %v5150
    %v5152 = vand.u32 %v94, 4294901760
    %v5153 = vsub.f32 %v94, %v5152
    %5154 = vmatpush.msra.mxu0 %v5153
    %v5155 = vand.u32 %v93, 4294901760
    %v5156 = vsub.f32 %v93, %v5155
    %5157 = vmatpush.msra.mxu0 %v5156
    %v5158 = vand.u32 %v103, 4294901760
    %v5159 = vsub.f32 %v103, %v5158
    %5160 = vmatmul.f32.gmra.mxu0 %v5159
    %v5161 = vpop.f32.mrf.mxu0
    %v5162 = vadd.f32 %v5064, %v5161
    %v5163 = vand.u32 %v106, 4294901760
    %v5164 = vsub.f32 %v106, %v5163
    %5165 = vmatmul.f32.gmra.mxu0 %v5164
    %v5166 = vpop.f32.mrf.mxu0
    %v5167 = vadd.f32 %v5068, %v5166
    %v5168 = vand.u32 %v109, 4294901760
    %v5169 = vsub.f32 %v109, %v5168
    %5170 = vmatmul.f32.gmra.mxu0 %v5169
    %v5171 = vpop.f32.mrf.mxu0
    %v5172 = vadd.f32 %v5072, %v5171
    %v5173 = vand.u32 %v112, 4294901760
    %v5174 = vsub.f32 %v112, %v5173
    %5175 = vmatmul.f32.gmra.mxu0 %v5174
    %v5176 = vpop.f32.mrf.mxu0
    %v5177 = vadd.f32 %v5076, %v5176
    %v5178 = vand.u32 %v115, 4294901760
    %v5179 = vsub.f32 %v115, %v5178
    %5180 = vmatmul.f32.gmra.mxu0 %v5179
    %v5181 = vpop.f32.mrf.mxu0
    %v5182 = vadd.f32 %v5080, %v5181
    %v5183 = vand.u32 %v118, 4294901760
    %v5184 = vsub.f32 %v118, %v5183
    %5185 = vmatmul.f32.gmra.mxu0 %v5184
    %v5186 = vpop.f32.mrf.mxu0
    %v5187 = vadd.f32 %v5084, %v5186
    %v5188 = vand.u32 %v121, 4294901760
    %v5189 = vsub.f32 %v121, %v5188
    %5190 = vmatmul.f32.gmra.mxu0 %v5189
    %v5191 = vpop.f32.mrf.mxu0
    %v5192 = vadd.f32 %v5088, %v5191
    %v5193 = vand.u32 %v124, 4294901760
    %v5194 = vsub.f32 %v124, %v5193
    %5195 = vmatmul.f32.gmra.mxu0 %v5194
    %v5196 = vpop.f32.mrf.mxu0
    %v5197 = vadd.f32 %v5092, %v5196
    %v5198 = vand.u32 %v127, 4294901760
    %v5199 = vsub.f32 %v127, %v5198
    %5200 = vmatmul.f32.gmra.mxu0 %v5199
    %v5201 = vpop.f32.mrf.mxu0
    %v5202 = vadd.f32 %v5096, %v5201
    %v5203 = vand.u32 %v130, 4294901760
    %v5204 = vsub.f32 %v130, %v5203
    %5205 = vmatmul.f32.gmra.mxu0 %v5204
    %v5206 = vpop.f32.mrf.mxu0
    %v5207 = vadd.f32 %v5100, %v5206
    %v5208 = vand.u32 %v133, 4294901760
    %v5209 = vsub.f32 %v133, %v5208
    %5210 = vmatmul.f32.gmra.mxu0 %v5209
    %v5211 = vpop.f32.mrf.mxu0
    %v5212 = vadd.f32 %v5104, %v5211
    %v5213 = vand.u32 %v136, 4294901760
    %v5214 = vsub.f32 %v136, %v5213
    %5215 = vmatmul.f32.gmra.mxu0 %v5214
    %v5216 = vpop.f32.mrf.mxu0
    %v5217 = vadd.f32 %v5108, %v5216
    %v5218 = vand.u32 %v139, 4294901760
    %v5219 = vsub.f32 %v139, %v5218
    %5220 = vmatmul.f32.gmra.mxu0 %v5219
    %v5221 = vpop.f32.mrf.mxu0
    %v5222 = vadd.f32 %v5112, %v5221
    %v5223 = vand.u32 %v142, 4294901760
    %v5224 = vsub.f32 %v142, %v5223
    %5225 = vmatmul.f32.gmra.mxu0 %v5224
    %v5226 = vpop.f32.mrf.mxu0
    %v5227 = vadd.f32 %v5116, %v5226
    %v5228 = vand.u32 %v145, 4294901760
    %v5229 = vsub.f32 %v145, %v5228
    %5230 = vmatmul.f32.gmra.mxu0 %v5229
    %v5231 = vpop.f32.mrf.mxu0
    %v5232 = vadd.f32 %v5120, %v5231
    %v5233 = vand.u32 %v148, 4294901760
    %v5234 = vsub.f32 %v148, %v5233
    %5235 = vmatmul.f32.gmra.mxu0 %v5234
    %v5236 = vpop.f32.mrf.mxu0
    %v5237 = vadd.f32 %v5124, %v5236
    %5238 = vdwg.mxu0
    %5239 = vmatpush.msra.mxu0 0.0
    %5240 = vmatpush.msra.mxu0 0.0
    %5241 = vmatpush.msra.mxu0 0.0
    %5242 = vmatpush.msra.mxu0 0.0
    %5243 = vmatpush.msra.mxu0 0.0
    %5244 = vmatpush.msra.mxu0 0.0
    %5245 = vmatpush.msra.mxu0 0.0
    %5246 = vmatpush.msra.mxu0 0.0
    %v5247 = vand.u32 %v100, 4294901760
    %5248 = vmatpush.msra.mxu0 %v5247
    %v5249 = vand.u32 %v99, 4294901760
    %5250 = vmatpush.msra.mxu0 %v5249
    %v5251 = vand.u32 %v98, 4294901760
    %5252 = vmatpush.msra.mxu0 %v5251
    %v5253 = vand.u32 %v97, 4294901760
    %5254 = vmatpush.msra.mxu0 %v5253
    %v5255 = vand.u32 %v96, 4294901760
    %5256 = vmatpush.msra.mxu0 %v5255
    %v5257 = vand.u32 %v95, 4294901760
    %5258 = vmatpush.msra.mxu0 %v5257
    %v5259 = vand.u32 %v94, 4294901760
    %5260 = vmatpush.msra.mxu0 %v5259
    %v5261 = vand.u32 %v93, 4294901760
    %5262 = vmatpush.msra.mxu0 %v5261
    %v5263 = vand.u32 %v103, 4294901760
    %v5264 = vsub.f32 %v103, %v5263
    %v5265 = vand.u32 %v5264, 4294901760
    %5266 = vmatmul.f32.gmra.mxu0 %v5265
    %v5267 = vpop.f32.mrf.mxu0
    %v5268 = vadd.f32 %v5162, %v5267
    %v5269 = vand.u32 %v106, 4294901760
    %v5270 = vsub.f32 %v106, %v5269
    %v5271 = vand.u32 %v5270, 4294901760
    %5272 = vmatmul.f32.gmra.mxu0 %v5271
    %v5273 = vpop.f32.mrf.mxu0
    %v5274 = vadd.f32 %v5167, %v5273
    %v5275 = vand.u32 %v109, 4294901760
    %v5276 = vsub.f32 %v109, %v5275
    %v5277 = vand.u32 %v5276, 4294901760
    %5278 = vmatmul.f32.gmra.mxu0 %v5277
    %v5279 = vpop.f32.mrf.mxu0
    %v5280 = vadd.f32 %v5172, %v5279
    %v5281 = vand.u32 %v112, 4294901760
    %v5282 = vsub.f32 %v112, %v5281
    %v5283 = vand.u32 %v5282, 4294901760
    %5284 = vmatmul.f32.gmra.mxu0 %v5283
    %v5285 = vpop.f32.mrf.mxu0
    %v5286 = vadd.f32 %v5177, %v5285
    %v5287 = vand.u32 %v115, 4294901760
    %v5288 = vsub.f32 %v115, %v5287
    %v5289 = vand.u32 %v5288, 4294901760
    %5290 = vmatmul.f32.gmra.mxu0 %v5289
    %v5291 = vpop.f32.mrf.mxu0
    %v5292 = vadd.f32 %v5182, %v5291
    %v5293 = vand.u32 %v118, 4294901760
    %v5294 = vsub.f32 %v118, %v5293
    %v5295 = vand.u32 %v5294, 4294901760
    %5296 = vmatmul.f32.gmra.mxu0 %v5295
    %v5297 = vpop.f32.mrf.mxu0
    %v5298 = vadd.f32 %v5187, %v5297
    %v5299 = vand.u32 %v121, 4294901760
    %v5300 = vsub.f32 %v121, %v5299
    %v5301 = vand.u32 %v5300, 4294901760
    %5302 = vmatmul.f32.gmra.mxu0 %v5301
    %v5303 = vpop.f32.mrf.mxu0
    %v5304 = vadd.f32 %v5192, %v5303
    %v5305 = vand.u32 %v124, 4294901760
    %v5306 = vsub.f32 %v124, %v5305
    %v5307 = vand.u32 %v5306, 4294901760
    %5308 = vmatmul.f32.gmra.mxu0 %v5307
    %v5309 = vpop.f32.mrf.mxu0
    %v5310 = vadd.f32 %v5197, %v5309
    %v5311 = vand.u32 %v127, 4294901760
    %v5312 = vsub.f32 %v127, %v5311
    %v5313 = vand.u32 %v5312, 4294901760
    %5314 = vmatmul.f32.gmra.mxu0 %v5313
    %v5315 = vpop.f32.mrf.mxu0
    %v5316 = vadd.f32 %v5202, %v5315
    %v5317 = vand.u32 %v130, 4294901760
    %v5318 = vsub.f32 %v130, %v5317
    %v5319 = vand.u32 %v5318, 4294901760
    %5320 = vmatmul.f32.gmra.mxu0 %v5319
    %v5321 = vpop.f32.mrf.mxu0
    %v5322 = vadd.f32 %v5207, %v5321
    %v5323 = vand.u32 %v133, 4294901760
    %v5324 = vsub.f32 %v133, %v5323
    %v5325 = vand.u32 %v5324, 4294901760
    %5326 = vmatmul.f32.gmra.mxu0 %v5325
    %v5327 = vpop.f32.mrf.mxu0
    %v5328 = vadd.f32 %v5212, %v5327
    %v5329 = vand.u32 %v136, 4294901760
    %v5330 = vsub.f32 %v136, %v5329
    %v5331 = vand.u32 %v5330, 4294901760
    %5332 = vmatmul.f32.gmra.mxu0 %v5331
    %v5333 = vpop.f32.mrf.mxu0
    %v5334 = vadd.f32 %v5217, %v5333
    %v5335 = vand.u32 %v139, 4294901760
    %v5336 = vsub.f32 %v139, %v5335
    %v5337 = vand.u32 %v5336, 4294901760
    %5338 = vmatmul.f32.gmra.mxu0 %v5337
    %v5339 = vpop.f32.mrf.mxu0
    %v5340 = vadd.f32 %v5222, %v5339
    %v5341 = vand.u32 %v142, 4294901760
    %v5342 = vsub.f32 %v142, %v5341
    %v5343 = vand.u32 %v5342, 4294901760
    %5344 = vmatmul.f32.gmra.mxu0 %v5343
    %v5345 = vpop.f32.mrf.mxu0
    %v5346 = vadd.f32 %v5227, %v5345
    %v5347 = vand.u32 %v145, 4294901760
    %v5348 = vsub.f32 %v145, %v5347
    %v5349 = vand.u32 %v5348, 4294901760
    %5350 = vmatmul.f32.gmra.mxu0 %v5349
    %v5351 = vpop.f32.mrf.mxu0
    %v5352 = vadd.f32 %v5232, %v5351
    %v5353 = vand.u32 %v148, 4294901760
    %v5354 = vsub.f32 %v148, %v5353
    %v5355 = vand.u32 %v5354, 4294901760
    %5356 = vmatmul.f32.gmra.mxu0 %v5355
    %v5357 = vpop.f32.mrf.mxu0
    %v5358 = vadd.f32 %v5237, %v5357
    %5359 = vdwg.mxu0
    %5360 = vmatpush.msra.mxu0 0.0
    %5361 = vmatpush.msra.mxu0 0.0
    %5362 = vmatpush.msra.mxu0 0.0
    %5363 = vmatpush.msra.mxu0 0.0
    %5364 = vmatpush.msra.mxu0 0.0
    %5365 = vmatpush.msra.mxu0 0.0
    %5366 = vmatpush.msra.mxu0 0.0
    %5367 = vmatpush.msra.mxu0 0.0
    %v5368 = vand.u32 %v100, 4294901760
    %v5369 = vsub.f32 %v100, %v5368
    %v5370 = vand.u32 %v5369, 4294901760
    %5371 = vmatpush.msra.mxu0 %v5370
    %v5372 = vand.u32 %v99, 4294901760
    %v5373 = vsub.f32 %v99, %v5372
    %v5374 = vand.u32 %v5373, 4294901760
    %5375 = vmatpush.msra.mxu0 %v5374
    %v5376 = vand.u32 %v98, 4294901760
    %v5377 = vsub.f32 %v98, %v5376
    %v5378 = vand.u32 %v5377, 4294901760
    %5379 = vmatpush.msra.mxu0 %v5378
    %v5380 = vand.u32 %v97, 4294901760
    %v5381 = vsub.f32 %v97, %v5380
    %v5382 = vand.u32 %v5381, 4294901760
    %5383 = vmatpush.msra.mxu0 %v5382
    %v5384 = vand.u32 %v96, 4294901760
    %v5385 = vsub.f32 %v96, %v5384
    %v5386 = vand.u32 %v5385, 4294901760
    %5387 = vmatpush.msra.mxu0 %v5386
    %v5388 = vand.u32 %v95, 4294901760
    %v5389 = vsub.f32 %v95, %v5388
    %v5390 = vand.u32 %v5389, 4294901760
    %5391 = vmatpush.msra.mxu0 %v5390
    %v5392 = vand.u32 %v94, 4294901760
    %v5393 = vsub.f32 %v94, %v5392
    %v5394 = vand.u32 %v5393, 4294901760
    %5395 = vmatpush.msra.mxu0 %v5394
    %v5396 = vand.u32 %v93, 4294901760
    %v5397 = vsub.f32 %v93, %v5396
    %v5398 = vand.u32 %v5397, 4294901760
    %5399 = vmatpush.msra.mxu0 %v5398
    %v5400 = vand.u32 %v103, 4294901760
    %5401 = vmatmul.f32.gmra.mxu0 %v5400
    %v5402 = vpop.f32.mrf.mxu0
    %v5403 = vadd.f32 %v5268, %v5402
    %v5404 = vand.u32 %v106, 4294901760
    %5405 = vmatmul.f32.gmra.mxu0 %v5404
    %v5406 = vpop.f32.mrf.mxu0
    %v5407 = vadd.f32 %v5274, %v5406
    %v5408 = vand.u32 %v109, 4294901760
    %5409 = vmatmul.f32.gmra.mxu0 %v5408
    %v5410 = vpop.f32.mrf.mxu0
    %v5411 = vadd.f32 %v5280, %v5410
    %v5412 = vand.u32 %v112, 4294901760
    %5413 = vmatmul.f32.gmra.mxu0 %v5412
    %v5414 = vpop.f32.mrf.mxu0
    %v5415 = vadd.f32 %v5286, %v5414
    %v5416 = vand.u32 %v115, 4294901760
    %5417 = vmatmul.f32.gmra.mxu0 %v5416
    %v5418 = vpop.f32.mrf.mxu0
    %v5419 = vadd.f32 %v5292, %v5418
    %v5420 = vand.u32 %v118, 4294901760
    %5421 = vmatmul.f32.gmra.mxu0 %v5420
    %v5422 = vpop.f32.mrf.mxu0
    %v5423 = vadd.f32 %v5298, %v5422
    %v5424 = vand.u32 %v121, 4294901760
    %5425 = vmatmul.f32.gmra.mxu0 %v5424
    %v5426 = vpop.f32.mrf.mxu0
    %v5427 = vadd.f32 %v5304, %v5426
    %v5428 = vand.u32 %v124, 4294901760
    %5429 = vmatmul.f32.gmra.mxu0 %v5428
    %v5430 = vpop.f32.mrf.mxu0
    %v5431 = vadd.f32 %v5310, %v5430
    %v5432 = vand.u32 %v127, 4294901760
    %5433 = vmatmul.f32.gmra.mxu0 %v5432
    %v5434 = vpop.f32.mrf.mxu0
    %v5435 = vadd.f32 %v5316, %v5434
    %v5436 = vand.u32 %v130, 4294901760
    %5437 = vmatmul.f32.gmra.mxu0 %v5436
    %v5438 = vpop.f32.mrf.mxu0
    %v5439 = vadd.f32 %v5322, %v5438
    %v5440 = vand.u32 %v133, 4294901760
    %5441 = vmatmul.f32.gmra.mxu0 %v5440
    %v5442 = vpop.f32.mrf.mxu0
    %v5443 = vadd.f32 %v5328, %v5442
    %v5444 = vand.u32 %v136, 4294901760
    %5445 = vmatmul.f32.gmra.mxu0 %v5444
    %v5446 = vpop.f32.mrf.mxu0
    %v5447 = vadd.f32 %v5334, %v5446
    %v5448 = vand.u32 %v139, 4294901760
    %5449 = vmatmul.f32.gmra.mxu0 %v5448
    %v5450 = vpop.f32.mrf.mxu0
    %v5451 = vadd.f32 %v5340, %v5450
    %v5452 = vand.u32 %v142, 4294901760
    %5453 = vmatmul.f32.gmra.mxu0 %v5452
    %v5454 = vpop.f32.mrf.mxu0
    %v5455 = vadd.f32 %v5346, %v5454
    %v5456 = vand.u32 %v145, 4294901760
    %5457 = vmatmul.f32.gmra.mxu0 %v5456
    %v5458 = vpop.f32.mrf.mxu0
    %v5459 = vadd.f32 %v5352, %v5458
    %v5460 = vand.u32 %v148, 4294901760
    %5461 = vmatmul.f32.gmra.mxu0 %v5460
    %v5462 = vpop.f32.mrf.mxu0
    %v5463 = vadd.f32 %v5358, %v5462
    %5464 = vdwg.mxu0
    %5465 = vmatpush.msra.mxu0 0.0
    %5466 = vmatpush.msra.mxu0 0.0
    %5467 = vmatpush.msra.mxu0 0.0
    %5468 = vmatpush.msra.mxu0 0.0
    %5469 = vmatpush.msra.mxu0 0.0
    %5470 = vmatpush.msra.mxu0 0.0
    %5471 = vmatpush.msra.mxu0 0.0
    %5472 = vmatpush.msra.mxu0 0.0
    %v5473 = vand.u32 %v100, 4294901760
    %5474 = vmatpush.msra.mxu0 %v5473
    %v5475 = vand.u32 %v99, 4294901760
    %5476 = vmatpush.msra.mxu0 %v5475
    %v5477 = vand.u32 %v98, 4294901760
    %5478 = vmatpush.msra.mxu0 %v5477
    %v5479 = vand.u32 %v97, 4294901760
    %5480 = vmatpush.msra.mxu0 %v5479
    %v5481 = vand.u32 %v96, 4294901760
    %5482 = vmatpush.msra.mxu0 %v5481
    %v5483 = vand.u32 %v95, 4294901760
    %5484 = vmatpush.msra.mxu0 %v5483
    %v5485 = vand.u32 %v94, 4294901760
    %5486 = vmatpush.msra.mxu0 %v5485
    %v5487 = vand.u32 %v93, 4294901760
    %5488 = vmatpush.msra.mxu0 %v5487
    %v5489 = vand.u32 %v103, 4294901760
    %5490 = vmatmul.f32.gmra.mxu0 %v5489
    %v5491 = vpop.f32.mrf.mxu0
    %v5492 = vadd.f32 %v5403, %v5491
    %v5493 = vand.u32 %v106, 4294901760
    %5494 = vmatmul.f32.gmra.mxu0 %v5493
    %v5495 = vpop.f32.mrf.mxu0
    %v5496 = vadd.f32 %v5407, %v5495
    %v5497 = vand.u32 %v109, 4294901760
    %5498 = vmatmul.f32.gmra.mxu0 %v5497
    %v5499 = vpop.f32.mrf.mxu0
    %v5500 = vadd.f32 %v5411, %v5499
    %v5501 = vand.u32 %v112, 4294901760
    %5502 = vmatmul.f32.gmra.mxu0 %v5501
    %v5503 = vpop.f32.mrf.mxu0
    %v5504 = vadd.f32 %v5415, %v5503
    %v5505 = vand.u32 %v115, 4294901760
    %5506 = vmatmul.f32.gmra.mxu0 %v5505
    %v5507 = vpop.f32.mrf.mxu0
    %v5508 = vadd.f32 %v5419, %v5507
    %v5509 = vand.u32 %v118, 4294901760
    %5510 = vmatmul.f32.gmra.mxu0 %v5509
    %v5511 = vpop.f32.mrf.mxu0
    %v5512 = vadd.f32 %v5423, %v5511
    %v5513 = vand.u32 %v121, 4294901760
    %5514 = vmatmul.f32.gmra.mxu0 %v5513
    %v5515 = vpop.f32.mrf.mxu0
    %v5516 = vadd.f32 %v5427, %v5515
    %v5517 = vand.u32 %v124, 4294901760
    %5518 = vmatmul.f32.gmra.mxu0 %v5517
    %v5519 = vpop.f32.mrf.mxu0
    %v5520 = vadd.f32 %v5431, %v5519
    %v5521 = vand.u32 %v127, 4294901760
    %5522 = vmatmul.f32.gmra.mxu0 %v5521
    %v5523 = vpop.f32.mrf.mxu0
    %v5524 = vadd.f32 %v5435, %v5523
    %v5525 = vand.u32 %v130, 4294901760
    %5526 = vmatmul.f32.gmra.mxu0 %v5525
    %v5527 = vpop.f32.mrf.mxu0
    %v5528 = vadd.f32 %v5439, %v5527
    %v5529 = vand.u32 %v133, 4294901760
    %5530 = vmatmul.f32.gmra.mxu0 %v5529
    %v5531 = vpop.f32.mrf.mxu0
    %v5532 = vadd.f32 %v5443, %v5531
    %v5533 = vand.u32 %v136, 4294901760
    %5534 = vmatmul.f32.gmra.mxu0 %v5533
    %v5535 = vpop.f32.mrf.mxu0
    %v5536 = vadd.f32 %v5447, %v5535
    %v5537 = vand.u32 %v139, 4294901760
    %5538 = vmatmul.f32.gmra.mxu0 %v5537
    %v5539 = vpop.f32.mrf.mxu0
    %v5540 = vadd.f32 %v5451, %v5539
    %v5541 = vand.u32 %v142, 4294901760
    %5542 = vmatmul.f32.gmra.mxu0 %v5541
    %v5543 = vpop.f32.mrf.mxu0
    %v5544 = vadd.f32 %v5455, %v5543
    %v5545 = vand.u32 %v145, 4294901760
    %5546 = vmatmul.f32.gmra.mxu0 %v5545
    %v5547 = vpop.f32.mrf.mxu0
    %v5548 = vadd.f32 %v5459, %v5547
    %v5549 = vand.u32 %v148, 4294901760
    %5550 = vmatmul.f32.gmra.mxu0 %v5549
    %v5551 = vpop.f32.mrf.mxu0
    %v5552 = vadd.f32 %v5463, %v5551
    %5553 = vdwg.mxu0
    %5554 = vmatpush.msra.mxu0 0.0
    %5555 = vmatpush.msra.mxu0 0.0
    %5556 = vmatpush.msra.mxu0 0.0
    %5557 = vmatpush.msra.mxu0 0.0
    %5558 = vmatpush.msra.mxu0 0.0
    %5559 = vmatpush.msra.mxu0 0.0
    %5560 = vmatpush.msra.mxu0 0.0
    %5561 = vmatpush.msra.mxu0 0.0
    %v5562 = vand.u32 %v100, 4294901760
    %5563 = vmatpush.msra.mxu0 %v5562
    %v5564 = vand.u32 %v99, 4294901760
    %5565 = vmatpush.msra.mxu0 %v5564
    %v5566 = vand.u32 %v98, 4294901760
    %5567 = vmatpush.msra.mxu0 %v5566
    %v5568 = vand.u32 %v97, 4294901760
    %5569 = vmatpush.msra.mxu0 %v5568
    %v5570 = vand.u32 %v96, 4294901760
    %5571 = vmatpush.msra.mxu0 %v5570
    %v5572 = vand.u32 %v95, 4294901760
    %5573 = vmatpush.msra.mxu0 %v5572
    %v5574 = vand.u32 %v94, 4294901760
    %5575 = vmatpush.msra.mxu0 %v5574
    %v5576 = vand.u32 %v93, 4294901760
    %5577 = vmatpush.msra.mxu0 %v5576
    %v5578 = vand.u32 %v884, 4294901760
    %v5579 = vsub.f32 %v884, %v5578
    %v5580 = vand.u32 %v5579, 4294901760
    %v5581 = vsub.f32 %v5579, %v5580
    %v5582 = vand.u32 %v5581, 4294901760
    %5583 = vmatmul.f32.gmra.mxu0 %v5582
    %v5584 = vpop.f32.mrf.mxu0
    %v5585 = vadd.f32 0.0, %v5584
    %v5586 = vand.u32 %v886, 4294901760
    %v5587 = vsub.f32 %v886, %v5586
    %v5588 = vand.u32 %v5587, 4294901760
    %v5589 = vsub.f32 %v5587, %v5588
    %v5590 = vand.u32 %v5589, 4294901760
    %5591 = vmatmul.f32.gmra.mxu0 %v5590
    %v5592 = vpop.f32.mrf.mxu0
    %v5593 = vadd.f32 0.0, %v5592
    %v5594 = vand.u32 %v888, 4294901760
    %v5595 = vsub.f32 %v888, %v5594
    %v5596 = vand.u32 %v5595, 4294901760
    %v5597 = vsub.f32 %v5595, %v5596
    %v5598 = vand.u32 %v5597, 4294901760
    %5599 = vmatmul.f32.gmra.mxu0 %v5598
    %v5600 = vpop.f32.mrf.mxu0
    %v5601 = vadd.f32 0.0, %v5600
    %v5602 = vand.u32 %v890, 4294901760
    %v5603 = vsub.f32 %v890, %v5602
    %v5604 = vand.u32 %v5603, 4294901760
    %v5605 = vsub.f32 %v5603, %v5604
    %v5606 = vand.u32 %v5605, 4294901760
    %5607 = vmatmul.f32.gmra.mxu0 %v5606
    %v5608 = vpop.f32.mrf.mxu0
    %v5609 = vadd.f32 0.0, %v5608
    %v5610 = vand.u32 %v892, 4294901760
    %v5611 = vsub.f32 %v892, %v5610
    %v5612 = vand.u32 %v5611, 4294901760
    %v5613 = vsub.f32 %v5611, %v5612
    %v5614 = vand.u32 %v5613, 4294901760
    %5615 = vmatmul.f32.gmra.mxu0 %v5614
    %v5616 = vpop.f32.mrf.mxu0
    %v5617 = vadd.f32 0.0, %v5616
    %v5618 = vand.u32 %v894, 4294901760
    %v5619 = vsub.f32 %v894, %v5618
    %v5620 = vand.u32 %v5619, 4294901760
    %v5621 = vsub.f32 %v5619, %v5620
    %v5622 = vand.u32 %v5621, 4294901760
    %5623 = vmatmul.f32.gmra.mxu0 %v5622
    %v5624 = vpop.f32.mrf.mxu0
    %v5625 = vadd.f32 0.0, %v5624
    %v5626 = vand.u32 %v896, 4294901760
    %v5627 = vsub.f32 %v896, %v5626
    %v5628 = vand.u32 %v5627, 4294901760
    %v5629 = vsub.f32 %v5627, %v5628
    %v5630 = vand.u32 %v5629, 4294901760
    %5631 = vmatmul.f32.gmra.mxu0 %v5630
    %v5632 = vpop.f32.mrf.mxu0
    %v5633 = vadd.f32 0.0, %v5632
    %v5634 = vand.u32 %v898, 4294901760
    %v5635 = vsub.f32 %v898, %v5634
    %v5636 = vand.u32 %v5635, 4294901760
    %v5637 = vsub.f32 %v5635, %v5636
    %v5638 = vand.u32 %v5637, 4294901760
    %5639 = vmatmul.f32.gmra.mxu0 %v5638
    %v5640 = vpop.f32.mrf.mxu0
    %v5641 = vadd.f32 0.0, %v5640
    %v5642 = vand.u32 %v900, 4294901760
    %v5643 = vsub.f32 %v900, %v5642
    %v5644 = vand.u32 %v5643, 4294901760
    %v5645 = vsub.f32 %v5643, %v5644
    %v5646 = vand.u32 %v5645, 4294901760
    %5647 = vmatmul.f32.gmra.mxu0 %v5646
    %v5648 = vpop.f32.mrf.mxu0
    %v5649 = vadd.f32 0.0, %v5648
    %v5650 = vand.u32 %v902, 4294901760
    %v5651 = vsub.f32 %v902, %v5650
    %v5652 = vand.u32 %v5651, 4294901760
    %v5653 = vsub.f32 %v5651, %v5652
    %v5654 = vand.u32 %v5653, 4294901760
    %5655 = vmatmul.f32.gmra.mxu0 %v5654
    %v5656 = vpop.f32.mrf.mxu0
    %v5657 = vadd.f32 0.0, %v5656
    %v5658 = vand.u32 %v904, 4294901760
    %v5659 = vsub.f32 %v904, %v5658
    %v5660 = vand.u32 %v5659, 4294901760
    %v5661 = vsub.f32 %v5659, %v5660
    %v5662 = vand.u32 %v5661, 4294901760
    %5663 = vmatmul.f32.gmra.mxu0 %v5662
    %v5664 = vpop.f32.mrf.mxu0
    %v5665 = vadd.f32 0.0, %v5664
    %v5666 = vand.u32 %v906, 4294901760
    %v5667 = vsub.f32 %v906, %v5666
    %v5668 = vand.u32 %v5667, 4294901760
    %v5669 = vsub.f32 %v5667, %v5668
    %v5670 = vand.u32 %v5669, 4294901760
    %5671 = vmatmul.f32.gmra.mxu0 %v5670
    %v5672 = vpop.f32.mrf.mxu0
    %v5673 = vadd.f32 0.0, %v5672
    %v5674 = vand.u32 %v908, 4294901760
    %v5675 = vsub.f32 %v908, %v5674
    %v5676 = vand.u32 %v5675, 4294901760
    %v5677 = vsub.f32 %v5675, %v5676
    %v5678 = vand.u32 %v5677, 4294901760
    %5679 = vmatmul.f32.gmra.mxu0 %v5678
    %v5680 = vpop.f32.mrf.mxu0
    %v5681 = vadd.f32 0.0, %v5680
    %v5682 = vand.u32 %v910, 4294901760
    %v5683 = vsub.f32 %v910, %v5682
    %v5684 = vand.u32 %v5683, 4294901760
    %v5685 = vsub.f32 %v5683, %v5684
    %v5686 = vand.u32 %v5685, 4294901760
    %5687 = vmatmul.f32.gmra.mxu0 %v5686
    %v5688 = vpop.f32.mrf.mxu0
    %v5689 = vadd.f32 0.0, %v5688
    %v5690 = vand.u32 %v912, 4294901760
    %v5691 = vsub.f32 %v912, %v5690
    %v5692 = vand.u32 %v5691, 4294901760
    %v5693 = vsub.f32 %v5691, %v5692
    %v5694 = vand.u32 %v5693, 4294901760
    %5695 = vmatmul.f32.gmra.mxu0 %v5694
    %v5696 = vpop.f32.mrf.mxu0
    %v5697 = vadd.f32 0.0, %v5696
    %v5698 = vand.u32 %v914, 4294901760
    %v5699 = vsub.f32 %v914, %v5698
    %v5700 = vand.u32 %v5699, 4294901760
    %v5701 = vsub.f32 %v5699, %v5700
    %v5702 = vand.u32 %v5701, 4294901760
    %5703 = vmatmul.f32.gmra.mxu0 %v5702
    %v5704 = vpop.f32.mrf.mxu0
    %v5705 = vadd.f32 0.0, %v5704
    %5706 = vdwg.mxu0
    %5707 = vmatpush.msra.mxu0 0.0
    %5708 = vmatpush.msra.mxu0 0.0
    %5709 = vmatpush.msra.mxu0 0.0
    %5710 = vmatpush.msra.mxu0 0.0
    %5711 = vmatpush.msra.mxu0 0.0
    %5712 = vmatpush.msra.mxu0 0.0
    %5713 = vmatpush.msra.mxu0 0.0
    %5714 = vmatpush.msra.mxu0 0.0
    %v5715 = vand.u32 %v100, 4294901760
    %v5716 = vsub.f32 %v100, %v5715
    %v5717 = vand.u32 %v5716, 4294901760
    %v5718 = vsub.f32 %v5716, %v5717
    %v5719 = vand.u32 %v5718, 4294901760
    %5720 = vmatpush.msra.mxu0 %v5719
    %v5721 = vand.u32 %v99, 4294901760
    %v5722 = vsub.f32 %v99, %v5721
    %v5723 = vand.u32 %v5722, 4294901760
    %v5724 = vsub.f32 %v5722, %v5723
    %v5725 = vand.u32 %v5724, 4294901760
    %5726 = vmatpush.msra.mxu0 %v5725
    %v5727 = vand.u32 %v98, 4294901760
    %v5728 = vsub.f32 %v98, %v5727
    %v5729 = vand.u32 %v5728, 4294901760
    %v5730 = vsub.f32 %v5728, %v5729
    %v5731 = vand.u32 %v5730, 4294901760
    %5732 = vmatpush.msra.mxu0 %v5731
    %v5733 = vand.u32 %v97, 4294901760
    %v5734 = vsub.f32 %v97, %v5733
    %v5735 = vand.u32 %v5734, 4294901760
    %v5736 = vsub.f32 %v5734, %v5735
    %v5737 = vand.u32 %v5736, 4294901760
    %5738 = vmatpush.msra.mxu0 %v5737
    %v5739 = vand.u32 %v96, 4294901760
    %v5740 = vsub.f32 %v96, %v5739
    %v5741 = vand.u32 %v5740, 4294901760
    %v5742 = vsub.f32 %v5740, %v5741
    %v5743 = vand.u32 %v5742, 4294901760
    %5744 = vmatpush.msra.mxu0 %v5743
    %v5745 = vand.u32 %v95, 4294901760
    %v5746 = vsub.f32 %v95, %v5745
    %v5747 = vand.u32 %v5746, 4294901760
    %v5748 = vsub.f32 %v5746, %v5747
    %v5749 = vand.u32 %v5748, 4294901760
    %5750 = vmatpush.msra.mxu0 %v5749
    %v5751 = vand.u32 %v94, 4294901760
    %v5752 = vsub.f32 %v94, %v5751
    %v5753 = vand.u32 %v5752, 4294901760
    %v5754 = vsub.f32 %v5752, %v5753
    %v5755 = vand.u32 %v5754, 4294901760
    %5756 = vmatpush.msra.mxu0 %v5755
    %v5757 = vand.u32 %v93, 4294901760
    %v5758 = vsub.f32 %v93, %v5757
    %v5759 = vand.u32 %v5758, 4294901760
    %v5760 = vsub.f32 %v5758, %v5759
    %v5761 = vand.u32 %v5760, 4294901760
    %5762 = vmatpush.msra.mxu0 %v5761
    %v5763 = vand.u32 %v884, 4294901760
    %5764 = vmatmul.f32.gmra.mxu0 %v5763
    %v5765 = vpop.f32.mrf.mxu0
    %v5766 = vadd.f32 %v5585, %v5765
    %v5767 = vand.u32 %v886, 4294901760
    %5768 = vmatmul.f32.gmra.mxu0 %v5767
    %v5769 = vpop.f32.mrf.mxu0
    %v5770 = vadd.f32 %v5593, %v5769
    %v5771 = vand.u32 %v888, 4294901760
    %5772 = vmatmul.f32.gmra.mxu0 %v5771
    %v5773 = vpop.f32.mrf.mxu0
    %v5774 = vadd.f32 %v5601, %v5773
    %v5775 = vand.u32 %v890, 4294901760
    %5776 = vmatmul.f32.gmra.mxu0 %v5775
    %v5777 = vpop.f32.mrf.mxu0
    %v5778 = vadd.f32 %v5609, %v5777
    %v5779 = vand.u32 %v892, 4294901760
    %5780 = vmatmul.f32.gmra.mxu0 %v5779
    %v5781 = vpop.f32.mrf.mxu0
    %v5782 = vadd.f32 %v5617, %v5781
    %v5783 = vand.u32 %v894, 4294901760
    %5784 = vmatmul.f32.gmra.mxu0 %v5783
    %v5785 = vpop.f32.mrf.mxu0
    %v5786 = vadd.f32 %v5625, %v5785
    %v5787 = vand.u32 %v896, 4294901760
    %5788 = vmatmul.f32.gmra.mxu0 %v5787
    %v5789 = vpop.f32.mrf.mxu0
    %v5790 = vadd.f32 %v5633, %v5789
    %v5791 = vand.u32 %v898, 4294901760
    %5792 = vmatmul.f32.gmra.mxu0 %v5791
    %v5793 = vpop.f32.mrf.mxu0
    %v5794 = vadd.f32 %v5641, %v5793
    %v5795 = vand.u32 %v900, 4294901760
    %5796 = vmatmul.f32.gmra.mxu0 %v5795
    %v5797 = vpop.f32.mrf.mxu0
    %v5798 = vadd.f32 %v5649, %v5797
    %v5799 = vand.u32 %v902, 4294901760
    %5800 = vmatmul.f32.gmra.mxu0 %v5799
    %v5801 = vpop.f32.mrf.mxu0
    %v5802 = vadd.f32 %v5657, %v5801
    %v5803 = vand.u32 %v904, 4294901760
    %5804 = vmatmul.f32.gmra.mxu0 %v5803
    %v5805 = vpop.f32.mrf.mxu0
    %v5806 = vadd.f32 %v5665, %v5805
    %v5807 = vand.u32 %v906, 4294901760
    %5808 = vmatmul.f32.gmra.mxu0 %v5807
    %v5809 = vpop.f32.mrf.mxu0
    %v5810 = vadd.f32 %v5673, %v5809
    %v5811 = vand.u32 %v908, 4294901760
    %5812 = vmatmul.f32.gmra.mxu0 %v5811
    %v5813 = vpop.f32.mrf.mxu0
    %v5814 = vadd.f32 %v5681, %v5813
    %v5815 = vand.u32 %v910, 4294901760
    %5816 = vmatmul.f32.gmra.mxu0 %v5815
    %v5817 = vpop.f32.mrf.mxu0
    %v5818 = vadd.f32 %v5689, %v5817
    %v5819 = vand.u32 %v912, 4294901760
    %5820 = vmatmul.f32.gmra.mxu0 %v5819
    %v5821 = vpop.f32.mrf.mxu0
    %v5822 = vadd.f32 %v5697, %v5821
    %v5823 = vand.u32 %v914, 4294901760
    %5824 = vmatmul.f32.gmra.mxu0 %v5823
    %v5825 = vpop.f32.mrf.mxu0
    %v5826 = vadd.f32 %v5705, %v5825
    %5827 = vdwg.mxu0
    %5828 = vmatpush.msra.mxu0 0.0
    %5829 = vmatpush.msra.mxu0 0.0
    %5830 = vmatpush.msra.mxu0 0.0
    %5831 = vmatpush.msra.mxu0 0.0
    %5832 = vmatpush.msra.mxu0 0.0
    %5833 = vmatpush.msra.mxu0 0.0
    %5834 = vmatpush.msra.mxu0 0.0
    %5835 = vmatpush.msra.mxu0 0.0
    %v5836 = vand.u32 %v100, 4294901760
    %v5837 = vsub.f32 %v100, %v5836
    %5838 = vmatpush.msra.mxu0 %v5837
    %v5839 = vand.u32 %v99, 4294901760
    %v5840 = vsub.f32 %v99, %v5839
    %5841 = vmatpush.msra.mxu0 %v5840
    %v5842 = vand.u32 %v98, 4294901760
    %v5843 = vsub.f32 %v98, %v5842
    %5844 = vmatpush.msra.mxu0 %v5843
    %v5845 = vand.u32 %v97, 4294901760
    %v5846 = vsub.f32 %v97, %v5845
    %5847 = vmatpush.msra.mxu0 %v5846
    %v5848 = vand.u32 %v96, 4294901760
    %v5849 = vsub.f32 %v96, %v5848
    %5850 = vmatpush.msra.mxu0 %v5849
    %v5851 = vand.u32 %v95, 4294901760
    %v5852 = vsub.f32 %v95, %v5851
    %5853 = vmatpush.msra.mxu0 %v5852
    %v5854 = vand.u32 %v94, 4294901760
    %v5855 = vsub.f32 %v94, %v5854
    %5856 = vmatpush.msra.mxu0 %v5855
    %v5857 = vand.u32 %v93, 4294901760
    %v5858 = vsub.f32 %v93, %v5857
    %5859 = vmatpush.msra.mxu0 %v5858
    %v5860 = vand.u32 %v884, 4294901760
    %v5861 = vsub.f32 %v884, %v5860
    %5862 = vmatmul.f32.gmra.mxu0 %v5861
    %v5863 = vpop.f32.mrf.mxu0
    %v5864 = vadd.f32 %v5766, %v5863
    %v5865 = vand.u32 %v886, 4294901760
    %v5866 = vsub.f32 %v886, %v5865
    %5867 = vmatmul.f32.gmra.mxu0 %v5866
    %v5868 = vpop.f32.mrf.mxu0
    %v5869 = vadd.f32 %v5770, %v5868
    %v5870 = vand.u32 %v888, 4294901760
    %v5871 = vsub.f32 %v888, %v5870
    %5872 = vmatmul.f32.gmra.mxu0 %v5871
    %v5873 = vpop.f32.mrf.mxu0
    %v5874 = vadd.f32 %v5774, %v5873
    %v5875 = vand.u32 %v890, 4294901760
    %v5876 = vsub.f32 %v890, %v5875
    %5877 = vmatmul.f32.gmra.mxu0 %v5876
    %v5878 = vpop.f32.mrf.mxu0
    %v5879 = vadd.f32 %v5778, %v5878
    %v5880 = vand.u32 %v892, 4294901760
    %v5881 = vsub.f32 %v892, %v5880
    %5882 = vmatmul.f32.gmra.mxu0 %v5881
    %v5883 = vpop.f32.mrf.mxu0
    %v5884 = vadd.f32 %v5782, %v5883
    %v5885 = vand.u32 %v894, 4294901760
    %v5886 = vsub.f32 %v894, %v5885
    %5887 = vmatmul.f32.gmra.mxu0 %v5886
    %v5888 = vpop.f32.mrf.mxu0
    %v5889 = vadd.f32 %v5786, %v5888
    %v5890 = vand.u32 %v896, 4294901760
    %v5891 = vsub.f32 %v896, %v5890
    %5892 = vmatmul.f32.gmra.mxu0 %v5891
    %v5893 = vpop.f32.mrf.mxu0
    %v5894 = vadd.f32 %v5790, %v5893
    %v5895 = vand.u32 %v898, 4294901760
    %v5896 = vsub.f32 %v898, %v5895
    %5897 = vmatmul.f32.gmra.mxu0 %v5896
    %v5898 = vpop.f32.mrf.mxu0
    %v5899 = vadd.f32 %v5794, %v5898
    %v5900 = vand.u32 %v900, 4294901760
    %v5901 = vsub.f32 %v900, %v5900
    %5902 = vmatmul.f32.gmra.mxu0 %v5901
    %v5903 = vpop.f32.mrf.mxu0
    %v5904 = vadd.f32 %v5798, %v5903
    %v5905 = vand.u32 %v902, 4294901760
    %v5906 = vsub.f32 %v902, %v5905
    %5907 = vmatmul.f32.gmra.mxu0 %v5906
    %v5908 = vpop.f32.mrf.mxu0
    %v5909 = vadd.f32 %v5802, %v5908
    %v5910 = vand.u32 %v904, 4294901760
    %v5911 = vsub.f32 %v904, %v5910
    %5912 = vmatmul.f32.gmra.mxu0 %v5911
    %v5913 = vpop.f32.mrf.mxu0
    %v5914 = vadd.f32 %v5806, %v5913
    %v5915 = vand.u32 %v906, 4294901760
    %v5916 = vsub.f32 %v906, %v5915
    %5917 = vmatmul.f32.gmra.mxu0 %v5916
    %v5918 = vpop.f32.mrf.mxu0
    %v5919 = vadd.f32 %v5810, %v5918
    %v5920 = vand.u32 %v908, 4294901760
    %v5921 = vsub.f32 %v908, %v5920
    %5922 = vmatmul.f32.gmra.mxu0 %v5921
    %v5923 = vpop.f32.mrf.mxu0
    %v5924 = vadd.f32 %v5814, %v5923
    %v5925 = vand.u32 %v910, 4294901760
    %v5926 = vsub.f32 %v910, %v5925
    %5927 = vmatmul.f32.gmra.mxu0 %v5926
    %v5928 = vpop.f32.mrf.mxu0
    %v5929 = vadd.f32 %v5818, %v5928
    %v5930 = vand.u32 %v912, 4294901760
    %v5931 = vsub.f32 %v912, %v5930
    %5932 = vmatmul.f32.gmra.mxu0 %v5931
    %v5933 = vpop.f32.mrf.mxu0
    %v5934 = vadd.f32 %v5822, %v5933
    %v5935 = vand.u32 %v914, 4294901760
    %v5936 = vsub.f32 %v914, %v5935
    %5937 = vmatmul.f32.gmra.mxu0 %v5936
    %v5938 = vpop.f32.mrf.mxu0
    %v5939 = vadd.f32 %v5826, %v5938
    %5940 = vdwg.mxu0
    %5941 = vmatpush.msra.mxu0 0.0
    %5942 = vmatpush.msra.mxu0 0.0
    %5943 = vmatpush.msra.mxu0 0.0
    %5944 = vmatpush.msra.mxu0 0.0
    %5945 = vmatpush.msra.mxu0 0.0
    %5946 = vmatpush.msra.mxu0 0.0
    %5947 = vmatpush.msra.mxu0 0.0
    %5948 = vmatpush.msra.mxu0 0.0
    %v5949 = vand.u32 %v100, 4294901760
    %5950 = vmatpush.msra.mxu0 %v5949
    %v5951 = vand.u32 %v99, 4294901760
    %5952 = vmatpush.msra.mxu0 %v5951
    %v5953 = vand.u32 %v98, 4294901760
    %5954 = vmatpush.msra.mxu0 %v5953
    %v5955 = vand.u32 %v97, 4294901760
    %5956 = vmatpush.msra.mxu0 %v5955
    %v5957 = vand.u32 %v96, 4294901760
    %5958 = vmatpush.msra.mxu0 %v5957
    %v5959 = vand.u32 %v95, 4294901760
    %5960 = vmatpush.msra.mxu0 %v5959
    %v5961 = vand.u32 %v94, 4294901760
    %5962 = vmatpush.msra.mxu0 %v5961
    %v5963 = vand.u32 %v93, 4294901760
    %5964 = vmatpush.msra.mxu0 %v5963
    %v5965 = vand.u32 %v884, 4294901760
    %v5966 = vsub.f32 %v884, %v5965
    %v5967 = vand.u32 %v5966, 4294901760
    %5968 = vmatmul.f32.gmra.mxu0 %v5967
    %v5969 = vpop.f32.mrf.mxu0
    %v5970 = vadd.f32 %v5864, %v5969
    %v5971 = vand.u32 %v886, 4294901760
    %v5972 = vsub.f32 %v886, %v5971
    %v5973 = vand.u32 %v5972, 4294901760
    %5974 = vmatmul.f32.gmra.mxu0 %v5973
    %v5975 = vpop.f32.mrf.mxu0
    %v5976 = vadd.f32 %v5869, %v5975
    %v5977 = vand.u32 %v888, 4294901760
    %v5978 = vsub.f32 %v888, %v5977
    %v5979 = vand.u32 %v5978, 4294901760
    %5980 = vmatmul.f32.gmra.mxu0 %v5979
    %v5981 = vpop.f32.mrf.mxu0
    %v5982 = vadd.f32 %v5874, %v5981
    %v5983 = vand.u32 %v890, 4294901760
    %v5984 = vsub.f32 %v890, %v5983
    %v5985 = vand.u32 %v5984, 4294901760
    %5986 = vmatmul.f32.gmra.mxu0 %v5985
    %v5987 = vpop.f32.mrf.mxu0
    %v5988 = vadd.f32 %v5879, %v5987
    %v5989 = vand.u32 %v892, 4294901760
    %v5990 = vsub.f32 %v892, %v5989
    %v5991 = vand.u32 %v5990, 4294901760
    %5992 = vmatmul.f32.gmra.mxu0 %v5991
    %v5993 = vpop.f32.mrf.mxu0
    %v5994 = vadd.f32 %v5884, %v5993
    %v5995 = vand.u32 %v894, 4294901760
    %v5996 = vsub.f32 %v894, %v5995
    %v5997 = vand.u32 %v5996, 4294901760
    %5998 = vmatmul.f32.gmra.mxu0 %v5997
    %v5999 = vpop.f32.mrf.mxu0
    %v6000 = vadd.f32 %v5889, %v5999
    %v6001 = vand.u32 %v896, 4294901760
    %v6002 = vsub.f32 %v896, %v6001
    %v6003 = vand.u32 %v6002, 4294901760
    %6004 = vmatmul.f32.gmra.mxu0 %v6003
    %v6005 = vpop.f32.mrf.mxu0
    %v6006 = vadd.f32 %v5894, %v6005
    %v6007 = vand.u32 %v898, 4294901760
    %v6008 = vsub.f32 %v898, %v6007
    %v6009 = vand.u32 %v6008, 4294901760
    %6010 = vmatmul.f32.gmra.mxu0 %v6009
    %v6011 = vpop.f32.mrf.mxu0
    %v6012 = vadd.f32 %v5899, %v6011
    %v6013 = vand.u32 %v900, 4294901760
    %v6014 = vsub.f32 %v900, %v6013
    %v6015 = vand.u32 %v6014, 4294901760
    %6016 = vmatmul.f32.gmra.mxu0 %v6015
    %v6017 = vpop.f32.mrf.mxu0
    %v6018 = vadd.f32 %v5904, %v6017
    %v6019 = vand.u32 %v902, 4294901760
    %v6020 = vsub.f32 %v902, %v6019
    %v6021 = vand.u32 %v6020, 4294901760
    %6022 = vmatmul.f32.gmra.mxu0 %v6021
    %v6023 = vpop.f32.mrf.mxu0
    %v6024 = vadd.f32 %v5909, %v6023
    %v6025 = vand.u32 %v904, 4294901760
    %v6026 = vsub.f32 %v904, %v6025
    %v6027 = vand.u32 %v6026, 4294901760
    %6028 = vmatmul.f32.gmra.mxu0 %v6027
    %v6029 = vpop.f32.mrf.mxu0
    %v6030 = vadd.f32 %v5914, %v6029
    %v6031 = vand.u32 %v906, 4294901760
    %v6032 = vsub.f32 %v906, %v6031
    %v6033 = vand.u32 %v6032, 4294901760
    %6034 = vmatmul.f32.gmra.mxu0 %v6033
    %v6035 = vpop.f32.mrf.mxu0
    %v6036 = vadd.f32 %v5919, %v6035
    %v6037 = vand.u32 %v908, 4294901760
    %v6038 = vsub.f32 %v908, %v6037
    %v6039 = vand.u32 %v6038, 4294901760
    %6040 = vmatmul.f32.gmra.mxu0 %v6039
    %v6041 = vpop.f32.mrf.mxu0
    %v6042 = vadd.f32 %v5924, %v6041
    %v6043 = vand.u32 %v910, 4294901760
    %v6044 = vsub.f32 %v910, %v6043
    %v6045 = vand.u32 %v6044, 4294901760
    %6046 = vmatmul.f32.gmra.mxu0 %v6045
    %v6047 = vpop.f32.mrf.mxu0
    %v6048 = vadd.f32 %v5929, %v6047
    %v6049 = vand.u32 %v912, 4294901760
    %v6050 = vsub.f32 %v912, %v6049
    %v6051 = vand.u32 %v6050, 4294901760
    %6052 = vmatmul.f32.gmra.mxu0 %v6051
    %v6053 = vpop.f32.mrf.mxu0
    %v6054 = vadd.f32 %v5934, %v6053
    %v6055 = vand.u32 %v914, 4294901760
    %v6056 = vsub.f32 %v914, %v6055
    %v6057 = vand.u32 %v6056, 4294901760
    %6058 = vmatmul.f32.gmra.mxu0 %v6057
    %v6059 = vpop.f32.mrf.mxu0
    %v6060 = vadd.f32 %v5939, %v6059
    %6061 = vdwg.mxu0
    %6062 = vmatpush.msra.mxu0 0.0
    %6063 = vmatpush.msra.mxu0 0.0
    %6064 = vmatpush.msra.mxu0 0.0
    %6065 = vmatpush.msra.mxu0 0.0
    %6066 = vmatpush.msra.mxu0 0.0
    %6067 = vmatpush.msra.mxu0 0.0
    %6068 = vmatpush.msra.mxu0 0.0
    %6069 = vmatpush.msra.mxu0 0.0
    %v6070 = vand.u32 %v100, 4294901760
    %v6071 = vsub.f32 %v100, %v6070
    %v6072 = vand.u32 %v6071, 4294901760
    %6073 = vmatpush.msra.mxu0 %v6072
    %v6074 = vand.u32 %v99, 4294901760
    %v6075 = vsub.f32 %v99, %v6074
    %v6076 = vand.u32 %v6075, 4294901760
    %6077 = vmatpush.msra.mxu0 %v6076
    %v6078 = vand.u32 %v98, 4294901760
    %v6079 = vsub.f32 %v98, %v6078
    %v6080 = vand.u32 %v6079, 4294901760
    %6081 = vmatpush.msra.mxu0 %v6080
    %v6082 = vand.u32 %v97, 4294901760
    %v6083 = vsub.f32 %v97, %v6082
    %v6084 = vand.u32 %v6083, 4294901760
    %6085 = vmatpush.msra.mxu0 %v6084
    %v6086 = vand.u32 %v96, 4294901760
    %v6087 = vsub.f32 %v96, %v6086
    %v6088 = vand.u32 %v6087, 4294901760
    %6089 = vmatpush.msra.mxu0 %v6088
    %v6090 = vand.u32 %v95, 4294901760
    %v6091 = vsub.f32 %v95, %v6090
    %v6092 = vand.u32 %v6091, 4294901760
    %6093 = vmatpush.msra.mxu0 %v6092
    %v6094 = vand.u32 %v94, 4294901760
    %v6095 = vsub.f32 %v94, %v6094
    %v6096 = vand.u32 %v6095, 4294901760
    %6097 = vmatpush.msra.mxu0 %v6096
    %v6098 = vand.u32 %v93, 4294901760
    %v6099 = vsub.f32 %v93, %v6098
    %v6100 = vand.u32 %v6099, 4294901760
    %6101 = vmatpush.msra.mxu0 %v6100
    %v6102 = vand.u32 %v884, 4294901760
    %6103 = vmatmul.f32.gmra.mxu0 %v6102
    %v6104 = vpop.f32.mrf.mxu0
    %v6105 = vadd.f32 %v5970, %v6104
    %v6106 = vand.u32 %v886, 4294901760
    %6107 = vmatmul.f32.gmra.mxu0 %v6106
    %v6108 = vpop.f32.mrf.mxu0
    %v6109 = vadd.f32 %v5976, %v6108
    %v6110 = vand.u32 %v888, 4294901760
    %6111 = vmatmul.f32.gmra.mxu0 %v6110
    %v6112 = vpop.f32.mrf.mxu0
    %v6113 = vadd.f32 %v5982, %v6112
    %v6114 = vand.u32 %v890, 4294901760
    %6115 = vmatmul.f32.gmra.mxu0 %v6114
    %v6116 = vpop.f32.mrf.mxu0
    %v6117 = vadd.f32 %v5988, %v6116
    %v6118 = vand.u32 %v892, 4294901760
    %6119 = vmatmul.f32.gmra.mxu0 %v6118
    %v6120 = vpop.f32.mrf.mxu0
    %v6121 = vadd.f32 %v5994, %v6120
    %v6122 = vand.u32 %v894, 4294901760
    %6123 = vmatmul.f32.gmra.mxu0 %v6122
    %v6124 = vpop.f32.mrf.mxu0
    %v6125 = vadd.f32 %v6000, %v6124
    %v6126 = vand.u32 %v896, 4294901760
    %6127 = vmatmul.f32.gmra.mxu0 %v6126
    %v6128 = vpop.f32.mrf.mxu0
    %v6129 = vadd.f32 %v6006, %v6128
    %v6130 = vand.u32 %v898, 4294901760
    %6131 = vmatmul.f32.gmra.mxu0 %v6130
    %v6132 = vpop.f32.mrf.mxu0
    %v6133 = vadd.f32 %v6012, %v6132
    %v6134 = vand.u32 %v900, 4294901760
    %6135 = vmatmul.f32.gmra.mxu0 %v6134
    %v6136 = vpop.f32.mrf.mxu0
    %v6137 = vadd.f32 %v6018, %v6136
    %v6138 = vand.u32 %v902, 4294901760
    %6139 = vmatmul.f32.gmra.mxu0 %v6138
    %v6140 = vpop.f32.mrf.mxu0
    %v6141 = vadd.f32 %v6024, %v6140
    %v6142 = vand.u32 %v904, 4294901760
    %6143 = vmatmul.f32.gmra.mxu0 %v6142
    %v6144 = vpop.f32.mrf.mxu0
    %v6145 = vadd.f32 %v6030, %v6144
    %v6146 = vand.u32 %v906, 4294901760
    %6147 = vmatmul.f32.gmra.mxu0 %v6146
    %v6148 = vpop.f32.mrf.mxu0
    %v6149 = vadd.f32 %v6036, %v6148
    %v6150 = vand.u32 %v908, 4294901760
    %6151 = vmatmul.f32.gmra.mxu0 %v6150
    %v6152 = vpop.f32.mrf.mxu0
    %v6153 = vadd.f32 %v6042, %v6152
    %v6154 = vand.u32 %v910, 4294901760
    %6155 = vmatmul.f32.gmra.mxu0 %v6154
    %v6156 = vpop.f32.mrf.mxu0
    %v6157 = vadd.f32 %v6048, %v6156
    %v6158 = vand.u32 %v912, 4294901760
    %6159 = vmatmul.f32.gmra.mxu0 %v6158
    %v6160 = vpop.f32.mrf.mxu0
    %v6161 = vadd.f32 %v6054, %v6160
    %v6162 = vand.u32 %v914, 4294901760
    %6163 = vmatmul.f32.gmra.mxu0 %v6162
    %v6164 = vpop.f32.mrf.mxu0
    %v6165 = vadd.f32 %v6060, %v6164
    %6166 = vdwg.mxu0
    %6167 = vmatpush.msra.mxu0 0.0
    %6168 = vmatpush.msra.mxu0 0.0
    %6169 = vmatpush.msra.mxu0 0.0
    %6170 = vmatpush.msra.mxu0 0.0
    %6171 = vmatpush.msra.mxu0 0.0
    %6172 = vmatpush.msra.mxu0 0.0
    %6173 = vmatpush.msra.mxu0 0.0
    %6174 = vmatpush.msra.mxu0 0.0
    %v6175 = vand.u32 %v100, 4294901760
    %6176 = vmatpush.msra.mxu0 %v6175
    %v6177 = vand.u32 %v99, 4294901760
    %6178 = vmatpush.msra.mxu0 %v6177
    %v6179 = vand.u32 %v98, 4294901760
    %6180 = vmatpush.msra.mxu0 %v6179
    %v6181 = vand.u32 %v97, 4294901760
    %6182 = vmatpush.msra.mxu0 %v6181
    %v6183 = vand.u32 %v96, 4294901760
    %6184 = vmatpush.msra.mxu0 %v6183
    %v6185 = vand.u32 %v95, 4294901760
    %6186 = vmatpush.msra.mxu0 %v6185
    %v6187 = vand.u32 %v94, 4294901760
    %6188 = vmatpush.msra.mxu0 %v6187
    %v6189 = vand.u32 %v93, 4294901760
    %6190 = vmatpush.msra.mxu0 %v6189
    %v6191 = vand.u32 %v884, 4294901760
    %6192 = vmatmul.f32.gmra.mxu0 %v6191
    %v6193 = vpop.f32.mrf.mxu0
    %v6194 = vadd.f32 %v6105, %v6193
    %v6195 = vand.u32 %v886, 4294901760
    %6196 = vmatmul.f32.gmra.mxu0 %v6195
    %v6197 = vpop.f32.mrf.mxu0
    %v6198 = vadd.f32 %v6109, %v6197
    %v6199 = vand.u32 %v888, 4294901760
    %6200 = vmatmul.f32.gmra.mxu0 %v6199
    %v6201 = vpop.f32.mrf.mxu0
    %v6202 = vadd.f32 %v6113, %v6201
    %v6203 = vand.u32 %v890, 4294901760
    %6204 = vmatmul.f32.gmra.mxu0 %v6203
    %v6205 = vpop.f32.mrf.mxu0
    %v6206 = vadd.f32 %v6117, %v6205
    %v6207 = vand.u32 %v892, 4294901760
    %6208 = vmatmul.f32.gmra.mxu0 %v6207
    %v6209 = vpop.f32.mrf.mxu0
    %v6210 = vadd.f32 %v6121, %v6209
    %v6211 = vand.u32 %v894, 4294901760
    %6212 = vmatmul.f32.gmra.mxu0 %v6211
    %v6213 = vpop.f32.mrf.mxu0
    %v6214 = vadd.f32 %v6125, %v6213
    %v6215 = vand.u32 %v896, 4294901760
    %6216 = vmatmul.f32.gmra.mxu0 %v6215
    %v6217 = vpop.f32.mrf.mxu0
    %v6218 = vadd.f32 %v6129, %v6217
    %v6219 = vand.u32 %v898, 4294901760
    %6220 = vmatmul.f32.gmra.mxu0 %v6219
    %v6221 = vpop.f32.mrf.mxu0
    %v6222 = vadd.f32 %v6133, %v6221
    %v6223 = vand.u32 %v900, 4294901760
    %6224 = vmatmul.f32.gmra.mxu0 %v6223
    %v6225 = vpop.f32.mrf.mxu0
    %v6226 = vadd.f32 %v6137, %v6225
    %v6227 = vand.u32 %v902, 4294901760
    %6228 = vmatmul.f32.gmra.mxu0 %v6227
    %v6229 = vpop.f32.mrf.mxu0
    %v6230 = vadd.f32 %v6141, %v6229
    %v6231 = vand.u32 %v904, 4294901760
    %6232 = vmatmul.f32.gmra.mxu0 %v6231
    %v6233 = vpop.f32.mrf.mxu0
    %v6234 = vadd.f32 %v6145, %v6233
    %v6235 = vand.u32 %v906, 4294901760
    %6236 = vmatmul.f32.gmra.mxu0 %v6235
    %v6237 = vpop.f32.mrf.mxu0
    %v6238 = vadd.f32 %v6149, %v6237
    %v6239 = vand.u32 %v908, 4294901760
    %6240 = vmatmul.f32.gmra.mxu0 %v6239
    %v6241 = vpop.f32.mrf.mxu0
    %v6242 = vadd.f32 %v6153, %v6241
    %v6243 = vand.u32 %v910, 4294901760
    %6244 = vmatmul.f32.gmra.mxu0 %v6243
    %v6245 = vpop.f32.mrf.mxu0
    %v6246 = vadd.f32 %v6157, %v6245
    %v6247 = vand.u32 %v912, 4294901760
    %6248 = vmatmul.f32.gmra.mxu0 %v6247
    %v6249 = vpop.f32.mrf.mxu0
    %v6250 = vadd.f32 %v6161, %v6249
    %v6251 = vand.u32 %v914, 4294901760
    %6252 = vmatmul.f32.gmra.mxu0 %v6251
    %v6253 = vpop.f32.mrf.mxu0
    %v6254 = vadd.f32 %v6165, %v6253
    %6255 = vdwg.mxu0
    %6256 = vmatpush.msra.mxu0 0.0
    %6257 = vmatpush.msra.mxu0 0.0
    %6258 = vmatpush.msra.mxu0 0.0
    %6259 = vmatpush.msra.mxu0 0.0
    %6260 = vmatpush.msra.mxu0 0.0
    %6261 = vmatpush.msra.mxu0 0.0
    %6262 = vmatpush.msra.mxu0 0.0
    %6263 = vmatpush.msra.mxu0 0.0
    %v6264 = vand.u32 %v100, 4294901760
    %6265 = vmatpush.msra.mxu0 %v6264
    %v6266 = vand.u32 %v99, 4294901760
    %6267 = vmatpush.msra.mxu0 %v6266
    %v6268 = vand.u32 %v98, 4294901760
    %6269 = vmatpush.msra.mxu0 %v6268
    %v6270 = vand.u32 %v97, 4294901760
    %6271 = vmatpush.msra.mxu0 %v6270
    %v6272 = vand.u32 %v96, 4294901760
    %6273 = vmatpush.msra.mxu0 %v6272
    %v6274 = vand.u32 %v95, 4294901760
    %6275 = vmatpush.msra.mxu0 %v6274
    %v6276 = vand.u32 %v94, 4294901760
    %6277 = vmatpush.msra.mxu0 %v6276
    %v6278 = vand.u32 %v93, 4294901760
    %6279 = vmatpush.msra.mxu0 %v6278
    %v6280 = vand.u32 %v1619, 4294901760
    %v6281 = vsub.f32 %v1619, %v6280
    %v6282 = vand.u32 %v6281, 4294901760
    %v6283 = vsub.f32 %v6281, %v6282
    %v6284 = vand.u32 %v6283, 4294901760
    %6285 = vmatmul.f32.gmra.mxu0 %v6284
    %v6286 = vpop.f32.mrf.mxu0
    %v6287 = vadd.f32 0.0, %v6286
    %v6288 = vand.u32 %v1622, 4294901760
    %v6289 = vsub.f32 %v1622, %v6288
    %v6290 = vand.u32 %v6289, 4294901760
    %v6291 = vsub.f32 %v6289, %v6290
    %v6292 = vand.u32 %v6291, 4294901760
    %6293 = vmatmul.f32.gmra.mxu0 %v6292
    %v6294 = vpop.f32.mrf.mxu0
    %v6295 = vadd.f32 0.0, %v6294
    %v6296 = vand.u32 %v1625, 4294901760
    %v6297 = vsub.f32 %v1625, %v6296
    %v6298 = vand.u32 %v6297, 4294901760
    %v6299 = vsub.f32 %v6297, %v6298
    %v6300 = vand.u32 %v6299, 4294901760
    %6301 = vmatmul.f32.gmra.mxu0 %v6300
    %v6302 = vpop.f32.mrf.mxu0
    %v6303 = vadd.f32 0.0, %v6302
    %v6304 = vand.u32 %v1628, 4294901760
    %v6305 = vsub.f32 %v1628, %v6304
    %v6306 = vand.u32 %v6305, 4294901760
    %v6307 = vsub.f32 %v6305, %v6306
    %v6308 = vand.u32 %v6307, 4294901760
    %6309 = vmatmul.f32.gmra.mxu0 %v6308
    %v6310 = vpop.f32.mrf.mxu0
    %v6311 = vadd.f32 0.0, %v6310
    %v6312 = vand.u32 %v1631, 4294901760
    %v6313 = vsub.f32 %v1631, %v6312
    %v6314 = vand.u32 %v6313, 4294901760
    %v6315 = vsub.f32 %v6313, %v6314
    %v6316 = vand.u32 %v6315, 4294901760
    %6317 = vmatmul.f32.gmra.mxu0 %v6316
    %v6318 = vpop.f32.mrf.mxu0
    %v6319 = vadd.f32 0.0, %v6318
    %v6320 = vand.u32 %v1634, 4294901760
    %v6321 = vsub.f32 %v1634, %v6320
    %v6322 = vand.u32 %v6321, 4294901760
    %v6323 = vsub.f32 %v6321, %v6322
    %v6324 = vand.u32 %v6323, 4294901760
    %6325 = vmatmul.f32.gmra.mxu0 %v6324
    %v6326 = vpop.f32.mrf.mxu0
    %v6327 = vadd.f32 0.0, %v6326
    %v6328 = vand.u32 %v1637, 4294901760
    %v6329 = vsub.f32 %v1637, %v6328
    %v6330 = vand.u32 %v6329, 4294901760
    %v6331 = vsub.f32 %v6329, %v6330
    %v6332 = vand.u32 %v6331, 4294901760
    %6333 = vmatmul.f32.gmra.mxu0 %v6332
    %v6334 = vpop.f32.mrf.mxu0
    %v6335 = vadd.f32 0.0, %v6334
    %v6336 = vand.u32 %v1640, 4294901760
    %v6337 = vsub.f32 %v1640, %v6336
    %v6338 = vand.u32 %v6337, 4294901760
    %v6339 = vsub.f32 %v6337, %v6338
    %v6340 = vand.u32 %v6339, 4294901760
    %6341 = vmatmul.f32.gmra.mxu0 %v6340
    %v6342 = vpop.f32.mrf.mxu0
    %v6343 = vadd.f32 0.0, %v6342
    %v6344 = vand.u32 %v1643, 4294901760
    %v6345 = vsub.f32 %v1643, %v6344
    %v6346 = vand.u32 %v6345, 4294901760
    %v6347 = vsub.f32 %v6345, %v6346
    %v6348 = vand.u32 %v6347, 4294901760
    %6349 = vmatmul.f32.gmra.mxu0 %v6348
    %v6350 = vpop.f32.mrf.mxu0
    %v6351 = vadd.f32 0.0, %v6350
    %v6352 = vand.u32 %v1646, 4294901760
    %v6353 = vsub.f32 %v1646, %v6352
    %v6354 = vand.u32 %v6353, 4294901760
    %v6355 = vsub.f32 %v6353, %v6354
    %v6356 = vand.u32 %v6355, 4294901760
    %6357 = vmatmul.f32.gmra.mxu0 %v6356
    %v6358 = vpop.f32.mrf.mxu0
    %v6359 = vadd.f32 0.0, %v6358
    %v6360 = vand.u32 %v1649, 4294901760
    %v6361 = vsub.f32 %v1649, %v6360
    %v6362 = vand.u32 %v6361, 4294901760
    %v6363 = vsub.f32 %v6361, %v6362
    %v6364 = vand.u32 %v6363, 4294901760
    %6365 = vmatmul.f32.gmra.mxu0 %v6364
    %v6366 = vpop.f32.mrf.mxu0
    %v6367 = vadd.f32 0.0, %v6366
    %v6368 = vand.u32 %v1652, 4294901760
    %v6369 = vsub.f32 %v1652, %v6368
    %v6370 = vand.u32 %v6369, 4294901760
    %v6371 = vsub.f32 %v6369, %v6370
    %v6372 = vand.u32 %v6371, 4294901760
    %6373 = vmatmul.f32.gmra.mxu0 %v6372
    %v6374 = vpop.f32.mrf.mxu0
    %v6375 = vadd.f32 0.0, %v6374
    %v6376 = vand.u32 %v1655, 4294901760
    %v6377 = vsub.f32 %v1655, %v6376
    %v6378 = vand.u32 %v6377, 4294901760
    %v6379 = vsub.f32 %v6377, %v6378
    %v6380 = vand.u32 %v6379, 4294901760
    %6381 = vmatmul.f32.gmra.mxu0 %v6380
    %v6382 = vpop.f32.mrf.mxu0
    %v6383 = vadd.f32 0.0, %v6382
    %v6384 = vand.u32 %v1658, 4294901760
    %v6385 = vsub.f32 %v1658, %v6384
    %v6386 = vand.u32 %v6385, 4294901760
    %v6387 = vsub.f32 %v6385, %v6386
    %v6388 = vand.u32 %v6387, 4294901760
    %6389 = vmatmul.f32.gmra.mxu0 %v6388
    %v6390 = vpop.f32.mrf.mxu0
    %v6391 = vadd.f32 0.0, %v6390
    %v6392 = vand.u32 %v1661, 4294901760
    %v6393 = vsub.f32 %v1661, %v6392
    %v6394 = vand.u32 %v6393, 4294901760
    %v6395 = vsub.f32 %v6393, %v6394
    %v6396 = vand.u32 %v6395, 4294901760
    %6397 = vmatmul.f32.gmra.mxu0 %v6396
    %v6398 = vpop.f32.mrf.mxu0
    %v6399 = vadd.f32 0.0, %v6398
    %v6400 = vand.u32 %v1664, 4294901760
    %v6401 = vsub.f32 %v1664, %v6400
    %v6402 = vand.u32 %v6401, 4294901760
    %v6403 = vsub.f32 %v6401, %v6402
    %v6404 = vand.u32 %v6403, 4294901760
    %6405 = vmatmul.f32.gmra.mxu0 %v6404
    %v6406 = vpop.f32.mrf.mxu0
    %v6407 = vadd.f32 0.0, %v6406
    %6408 = vdwg.mxu0
    %6409 = vmatpush.msra.mxu0 0.0
    %6410 = vmatpush.msra.mxu0 0.0
    %6411 = vmatpush.msra.mxu0 0.0
    %6412 = vmatpush.msra.mxu0 0.0
    %6413 = vmatpush.msra.mxu0 0.0
    %6414 = vmatpush.msra.mxu0 0.0
    %6415 = vmatpush.msra.mxu0 0.0
    %6416 = vmatpush.msra.mxu0 0.0
    %v6417 = vand.u32 %v100, 4294901760
    %v6418 = vsub.f32 %v100, %v6417
    %v6419 = vand.u32 %v6418, 4294901760
    %v6420 = vsub.f32 %v6418, %v6419
    %v6421 = vand.u32 %v6420, 4294901760
    %6422 = vmatpush.msra.mxu0 %v6421
    %v6423 = vand.u32 %v99, 4294901760
    %v6424 = vsub.f32 %v99, %v6423
    %v6425 = vand.u32 %v6424, 4294901760
    %v6426 = vsub.f32 %v6424, %v6425
    %v6427 = vand.u32 %v6426, 4294901760
    %6428 = vmatpush.msra.mxu0 %v6427
    %v6429 = vand.u32 %v98, 4294901760
    %v6430 = vsub.f32 %v98, %v6429
    %v6431 = vand.u32 %v6430, 4294901760
    %v6432 = vsub.f32 %v6430, %v6431
    %v6433 = vand.u32 %v6432, 4294901760
    %6434 = vmatpush.msra.mxu0 %v6433
    %v6435 = vand.u32 %v97, 4294901760
    %v6436 = vsub.f32 %v97, %v6435
    %v6437 = vand.u32 %v6436, 4294901760
    %v6438 = vsub.f32 %v6436, %v6437
    %v6439 = vand.u32 %v6438, 4294901760
    %6440 = vmatpush.msra.mxu0 %v6439
    %v6441 = vand.u32 %v96, 4294901760
    %v6442 = vsub.f32 %v96, %v6441
    %v6443 = vand.u32 %v6442, 4294901760
    %v6444 = vsub.f32 %v6442, %v6443
    %v6445 = vand.u32 %v6444, 4294901760
    %6446 = vmatpush.msra.mxu0 %v6445
    %v6447 = vand.u32 %v95, 4294901760
    %v6448 = vsub.f32 %v95, %v6447
    %v6449 = vand.u32 %v6448, 4294901760
    %v6450 = vsub.f32 %v6448, %v6449
    %v6451 = vand.u32 %v6450, 4294901760
    %6452 = vmatpush.msra.mxu0 %v6451
    %v6453 = vand.u32 %v94, 4294901760
    %v6454 = vsub.f32 %v94, %v6453
    %v6455 = vand.u32 %v6454, 4294901760
    %v6456 = vsub.f32 %v6454, %v6455
    %v6457 = vand.u32 %v6456, 4294901760
    %6458 = vmatpush.msra.mxu0 %v6457
    %v6459 = vand.u32 %v93, 4294901760
    %v6460 = vsub.f32 %v93, %v6459
    %v6461 = vand.u32 %v6460, 4294901760
    %v6462 = vsub.f32 %v6460, %v6461
    %v6463 = vand.u32 %v6462, 4294901760
    %6464 = vmatpush.msra.mxu0 %v6463
    %v6465 = vand.u32 %v1619, 4294901760
    %6466 = vmatmul.f32.gmra.mxu0 %v6465
    %v6467 = vpop.f32.mrf.mxu0
    %v6468 = vadd.f32 %v6287, %v6467
    %v6469 = vand.u32 %v1622, 4294901760
    %6470 = vmatmul.f32.gmra.mxu0 %v6469
    %v6471 = vpop.f32.mrf.mxu0
    %v6472 = vadd.f32 %v6295, %v6471
    %v6473 = vand.u32 %v1625, 4294901760
    %6474 = vmatmul.f32.gmra.mxu0 %v6473
    %v6475 = vpop.f32.mrf.mxu0
    %v6476 = vadd.f32 %v6303, %v6475
    %v6477 = vand.u32 %v1628, 4294901760
    %6478 = vmatmul.f32.gmra.mxu0 %v6477
    %v6479 = vpop.f32.mrf.mxu0
    %v6480 = vadd.f32 %v6311, %v6479
    %v6481 = vand.u32 %v1631, 4294901760
    %6482 = vmatmul.f32.gmra.mxu0 %v6481
    %v6483 = vpop.f32.mrf.mxu0
    %v6484 = vadd.f32 %v6319, %v6483
    %v6485 = vand.u32 %v1634, 4294901760
    %6486 = vmatmul.f32.gmra.mxu0 %v6485
    %v6487 = vpop.f32.mrf.mxu0
    %v6488 = vadd.f32 %v6327, %v6487
    %v6489 = vand.u32 %v1637, 4294901760
    %6490 = vmatmul.f32.gmra.mxu0 %v6489
    %v6491 = vpop.f32.mrf.mxu0
    %v6492 = vadd.f32 %v6335, %v6491
    %v6493 = vand.u32 %v1640, 4294901760
    %6494 = vmatmul.f32.gmra.mxu0 %v6493
    %v6495 = vpop.f32.mrf.mxu0
    %v6496 = vadd.f32 %v6343, %v6495
    %v6497 = vand.u32 %v1643, 4294901760
    %6498 = vmatmul.f32.gmra.mxu0 %v6497
    %v6499 = vpop.f32.mrf.mxu0
    %v6500 = vadd.f32 %v6351, %v6499
    %v6501 = vand.u32 %v1646, 4294901760
    %6502 = vmatmul.f32.gmra.mxu0 %v6501
    %v6503 = vpop.f32.mrf.mxu0
    %v6504 = vadd.f32 %v6359, %v6503
    %v6505 = vand.u32 %v1649, 4294901760
    %6506 = vmatmul.f32.gmra.mxu0 %v6505
    %v6507 = vpop.f32.mrf.mxu0
    %v6508 = vadd.f32 %v6367, %v6507
    %v6509 = vand.u32 %v1652, 4294901760
    %6510 = vmatmul.f32.gmra.mxu0 %v6509
    %v6511 = vpop.f32.mrf.mxu0
    %v6512 = vadd.f32 %v6375, %v6511
    %v6513 = vand.u32 %v1655, 4294901760
    %6514 = vmatmul.f32.gmra.mxu0 %v6513
    %v6515 = vpop.f32.mrf.mxu0
    %v6516 = vadd.f32 %v6383, %v6515
    %v6517 = vand.u32 %v1658, 4294901760
    %6518 = vmatmul.f32.gmra.mxu0 %v6517
    %v6519 = vpop.f32.mrf.mxu0
    %v6520 = vadd.f32 %v6391, %v6519
    %v6521 = vand.u32 %v1661, 4294901760
    %6522 = vmatmul.f32.gmra.mxu0 %v6521
    %v6523 = vpop.f32.mrf.mxu0
    %v6524 = vadd.f32 %v6399, %v6523
    %v6525 = vand.u32 %v1664, 4294901760
    %6526 = vmatmul.f32.gmra.mxu0 %v6525
    %v6527 = vpop.f32.mrf.mxu0
    %v6528 = vadd.f32 %v6407, %v6527
    %6529 = vdwg.mxu0
    %6530 = vmatpush.msra.mxu0 0.0
    %6531 = vmatpush.msra.mxu0 0.0
    %6532 = vmatpush.msra.mxu0 0.0
    %6533 = vmatpush.msra.mxu0 0.0
    %6534 = vmatpush.msra.mxu0 0.0
    %6535 = vmatpush.msra.mxu0 0.0
    %6536 = vmatpush.msra.mxu0 0.0
    %6537 = vmatpush.msra.mxu0 0.0
    %v6538 = vand.u32 %v100, 4294901760
    %v6539 = vsub.f32 %v100, %v6538
    %6540 = vmatpush.msra.mxu0 %v6539
    %v6541 = vand.u32 %v99, 4294901760
    %v6542 = vsub.f32 %v99, %v6541
    %6543 = vmatpush.msra.mxu0 %v6542
    %v6544 = vand.u32 %v98, 4294901760
    %v6545 = vsub.f32 %v98, %v6544
    %6546 = vmatpush.msra.mxu0 %v6545
    %v6547 = vand.u32 %v97, 4294901760
    %v6548 = vsub.f32 %v97, %v6547
    %6549 = vmatpush.msra.mxu0 %v6548
    %v6550 = vand.u32 %v96, 4294901760
    %v6551 = vsub.f32 %v96, %v6550
    %6552 = vmatpush.msra.mxu0 %v6551
    %v6553 = vand.u32 %v95, 4294901760
    %v6554 = vsub.f32 %v95, %v6553
    %6555 = vmatpush.msra.mxu0 %v6554
    %v6556 = vand.u32 %v94, 4294901760
    %v6557 = vsub.f32 %v94, %v6556
    %6558 = vmatpush.msra.mxu0 %v6557
    %v6559 = vand.u32 %v93, 4294901760
    %v6560 = vsub.f32 %v93, %v6559
    %6561 = vmatpush.msra.mxu0 %v6560
    %v6562 = vand.u32 %v1619, 4294901760
    %v6563 = vsub.f32 %v1619, %v6562
    %6564 = vmatmul.f32.gmra.mxu0 %v6563
    %v6565 = vpop.f32.mrf.mxu0
    %v6566 = vadd.f32 %v6468, %v6565
    %v6567 = vand.u32 %v1622, 4294901760
    %v6568 = vsub.f32 %v1622, %v6567
    %6569 = vmatmul.f32.gmra.mxu0 %v6568
    %v6570 = vpop.f32.mrf.mxu0
    %v6571 = vadd.f32 %v6472, %v6570
    %v6572 = vand.u32 %v1625, 4294901760
    %v6573 = vsub.f32 %v1625, %v6572
    %6574 = vmatmul.f32.gmra.mxu0 %v6573
    %v6575 = vpop.f32.mrf.mxu0
    %v6576 = vadd.f32 %v6476, %v6575
    %v6577 = vand.u32 %v1628, 4294901760
    %v6578 = vsub.f32 %v1628, %v6577
    %6579 = vmatmul.f32.gmra.mxu0 %v6578
    %v6580 = vpop.f32.mrf.mxu0
    %v6581 = vadd.f32 %v6480, %v6580
    %v6582 = vand.u32 %v1631, 4294901760
    %v6583 = vsub.f32 %v1631, %v6582
    %6584 = vmatmul.f32.gmra.mxu0 %v6583
    %v6585 = vpop.f32.mrf.mxu0
    %v6586 = vadd.f32 %v6484, %v6585
    %v6587 = vand.u32 %v1634, 4294901760
    %v6588 = vsub.f32 %v1634, %v6587
    %6589 = vmatmul.f32.gmra.mxu0 %v6588
    %v6590 = vpop.f32.mrf.mxu0
    %v6591 = vadd.f32 %v6488, %v6590
    %v6592 = vand.u32 %v1637, 4294901760
    %v6593 = vsub.f32 %v1637, %v6592
    %6594 = vmatmul.f32.gmra.mxu0 %v6593
    %v6595 = vpop.f32.mrf.mxu0
    %v6596 = vadd.f32 %v6492, %v6595
    %v6597 = vand.u32 %v1640, 4294901760
    %v6598 = vsub.f32 %v1640, %v6597
    %6599 = vmatmul.f32.gmra.mxu0 %v6598
    %v6600 = vpop.f32.mrf.mxu0
    %v6601 = vadd.f32 %v6496, %v6600
    %v6602 = vand.u32 %v1643, 4294901760
    %v6603 = vsub.f32 %v1643, %v6602
    %6604 = vmatmul.f32.gmra.mxu0 %v6603
    %v6605 = vpop.f32.mrf.mxu0
    %v6606 = vadd.f32 %v6500, %v6605
    %v6607 = vand.u32 %v1646, 4294901760
    %v6608 = vsub.f32 %v1646, %v6607
    %6609 = vmatmul.f32.gmra.mxu0 %v6608
    %v6610 = vpop.f32.mrf.mxu0
    %v6611 = vadd.f32 %v6504, %v6610
    %v6612 = vand.u32 %v1649, 4294901760
    %v6613 = vsub.f32 %v1649, %v6612
    %6614 = vmatmul.f32.gmra.mxu0 %v6613
    %v6615 = vpop.f32.mrf.mxu0
    %v6616 = vadd.f32 %v6508, %v6615
    %v6617 = vand.u32 %v1652, 4294901760
    %v6618 = vsub.f32 %v1652, %v6617
    %6619 = vmatmul.f32.gmra.mxu0 %v6618
    %v6620 = vpop.f32.mrf.mxu0
    %v6621 = vadd.f32 %v6512, %v6620
    %v6622 = vand.u32 %v1655, 4294901760
    %v6623 = vsub.f32 %v1655, %v6622
    %6624 = vmatmul.f32.gmra.mxu0 %v6623
    %v6625 = vpop.f32.mrf.mxu0
    %v6626 = vadd.f32 %v6516, %v6625
    %v6627 = vand.u32 %v1658, 4294901760
    %v6628 = vsub.f32 %v1658, %v6627
    %6629 = vmatmul.f32.gmra.mxu0 %v6628
    %v6630 = vpop.f32.mrf.mxu0
    %v6631 = vadd.f32 %v6520, %v6630
    %v6632 = vand.u32 %v1661, 4294901760
    %v6633 = vsub.f32 %v1661, %v6632
    %6634 = vmatmul.f32.gmra.mxu0 %v6633
    %v6635 = vpop.f32.mrf.mxu0
    %v6636 = vadd.f32 %v6524, %v6635
    %v6637 = vand.u32 %v1664, 4294901760
    %v6638 = vsub.f32 %v1664, %v6637
    %6639 = vmatmul.f32.gmra.mxu0 %v6638
    %v6640 = vpop.f32.mrf.mxu0
    %v6641 = vadd.f32 %v6528, %v6640
    %6642 = vdwg.mxu0
    %6643 = vmatpush.msra.mxu0 0.0
    %6644 = vmatpush.msra.mxu0 0.0
    %6645 = vmatpush.msra.mxu0 0.0
    %6646 = vmatpush.msra.mxu0 0.0
    %6647 = vmatpush.msra.mxu0 0.0
    %6648 = vmatpush.msra.mxu0 0.0
    %6649 = vmatpush.msra.mxu0 0.0
    %6650 = vmatpush.msra.mxu0 0.0
    %v6651 = vand.u32 %v100, 4294901760
    %6652 = vmatpush.msra.mxu0 %v6651
    %v6653 = vand.u32 %v99, 4294901760
    %6654 = vmatpush.msra.mxu0 %v6653
    %v6655 = vand.u32 %v98, 4294901760
    %6656 = vmatpush.msra.mxu0 %v6655
    %v6657 = vand.u32 %v97, 4294901760
    %6658 = vmatpush.msra.mxu0 %v6657
    %v6659 = vand.u32 %v96, 4294901760
    %6660 = vmatpush.msra.mxu0 %v6659
    %v6661 = vand.u32 %v95, 4294901760
    %6662 = vmatpush.msra.mxu0 %v6661
    %v6663 = vand.u32 %v94, 4294901760
    %6664 = vmatpush.msra.mxu0 %v6663
    %v6665 = vand.u32 %v93, 4294901760
    %6666 = vmatpush.msra.mxu0 %v6665
    %v6667 = vand.u32 %v1619, 4294901760
    %v6668 = vsub.f32 %v1619, %v6667
    %v6669 = vand.u32 %v6668, 4294901760
    %6670 = vmatmul.f32.gmra.mxu0 %v6669
    %v6671 = vpop.f32.mrf.mxu0
    %v6672 = vadd.f32 %v6566, %v6671
    %v6673 = vand.u32 %v1622, 4294901760
    %v6674 = vsub.f32 %v1622, %v6673
    %v6675 = vand.u32 %v6674, 4294901760
    %6676 = vmatmul.f32.gmra.mxu0 %v6675
    %v6677 = vpop.f32.mrf.mxu0
    %v6678 = vadd.f32 %v6571, %v6677
    %v6679 = vand.u32 %v1625, 4294901760
    %v6680 = vsub.f32 %v1625, %v6679
    %v6681 = vand.u32 %v6680, 4294901760
    %6682 = vmatmul.f32.gmra.mxu0 %v6681
    %v6683 = vpop.f32.mrf.mxu0
    %v6684 = vadd.f32 %v6576, %v6683
    %v6685 = vand.u32 %v1628, 4294901760
    %v6686 = vsub.f32 %v1628, %v6685
    %v6687 = vand.u32 %v6686, 4294901760
    %6688 = vmatmul.f32.gmra.mxu0 %v6687
    %v6689 = vpop.f32.mrf.mxu0
    %v6690 = vadd.f32 %v6581, %v6689
    %v6691 = vand.u32 %v1631, 4294901760
    %v6692 = vsub.f32 %v1631, %v6691
    %v6693 = vand.u32 %v6692, 4294901760
    %6694 = vmatmul.f32.gmra.mxu0 %v6693
    %v6695 = vpop.f32.mrf.mxu0
    %v6696 = vadd.f32 %v6586, %v6695
    %v6697 = vand.u32 %v1634, 4294901760
    %v6698 = vsub.f32 %v1634, %v6697
    %v6699 = vand.u32 %v6698, 4294901760
    %6700 = vmatmul.f32.gmra.mxu0 %v6699
    %v6701 = vpop.f32.mrf.mxu0
    %v6702 = vadd.f32 %v6591, %v6701
    %v6703 = vand.u32 %v1637, 4294901760
    %v6704 = vsub.f32 %v1637, %v6703
    %v6705 = vand.u32 %v6704, 4294901760
    %6706 = vmatmul.f32.gmra.mxu0 %v6705
    %v6707 = vpop.f32.mrf.mxu0
    %v6708 = vadd.f32 %v6596, %v6707
    %v6709 = vand.u32 %v1640, 4294901760
    %v6710 = vsub.f32 %v1640, %v6709
    %v6711 = vand.u32 %v6710, 4294901760
    %6712 = vmatmul.f32.gmra.mxu0 %v6711
    %v6713 = vpop.f32.mrf.mxu0
    %v6714 = vadd.f32 %v6601, %v6713
    %v6715 = vand.u32 %v1643, 4294901760
    %v6716 = vsub.f32 %v1643, %v6715
    %v6717 = vand.u32 %v6716, 4294901760
    %6718 = vmatmul.f32.gmra.mxu0 %v6717
    %v6719 = vpop.f32.mrf.mxu0
    %v6720 = vadd.f32 %v6606, %v6719
    %v6721 = vand.u32 %v1646, 4294901760
    %v6722 = vsub.f32 %v1646, %v6721
    %v6723 = vand.u32 %v6722, 4294901760
    %6724 = vmatmul.f32.gmra.mxu0 %v6723
    %v6725 = vpop.f32.mrf.mxu0
    %v6726 = vadd.f32 %v6611, %v6725
    %v6727 = vand.u32 %v1649, 4294901760
    %v6728 = vsub.f32 %v1649, %v6727
    %v6729 = vand.u32 %v6728, 4294901760
    %6730 = vmatmul.f32.gmra.mxu0 %v6729
    %v6731 = vpop.f32.mrf.mxu0
    %v6732 = vadd.f32 %v6616, %v6731
    %v6733 = vand.u32 %v1652, 4294901760
    %v6734 = vsub.f32 %v1652, %v6733
    %v6735 = vand.u32 %v6734, 4294901760
    %6736 = vmatmul.f32.gmra.mxu0 %v6735
    %v6737 = vpop.f32.mrf.mxu0
    %v6738 = vadd.f32 %v6621, %v6737
    %v6739 = vand.u32 %v1655, 4294901760
    %v6740 = vsub.f32 %v1655, %v6739
    %v6741 = vand.u32 %v6740, 4294901760
    %6742 = vmatmul.f32.gmra.mxu0 %v6741
    %v6743 = vpop.f32.mrf.mxu0
    %v6744 = vadd.f32 %v6626, %v6743
    %v6745 = vand.u32 %v1658, 4294901760
    %v6746 = vsub.f32 %v1658, %v6745
    %v6747 = vand.u32 %v6746, 4294901760
    %6748 = vmatmul.f32.gmra.mxu0 %v6747
    %v6749 = vpop.f32.mrf.mxu0
    %v6750 = vadd.f32 %v6631, %v6749
    %v6751 = vand.u32 %v1661, 4294901760
    %v6752 = vsub.f32 %v1661, %v6751
    %v6753 = vand.u32 %v6752, 4294901760
    %6754 = vmatmul.f32.gmra.mxu0 %v6753
    %v6755 = vpop.f32.mrf.mxu0
    %v6756 = vadd.f32 %v6636, %v6755
    %v6757 = vand.u32 %v1664, 4294901760
    %v6758 = vsub.f32 %v1664, %v6757
    %v6759 = vand.u32 %v6758, 4294901760
    %6760 = vmatmul.f32.gmra.mxu0 %v6759
    %v6761 = vpop.f32.mrf.mxu0
    %v6762 = vadd.f32 %v6641, %v6761
    %6763 = vdwg.mxu0
    %6764 = vmatpush.msra.mxu0 0.0
    %6765 = vmatpush.msra.mxu0 0.0
    %6766 = vmatpush.msra.mxu0 0.0
    %6767 = vmatpush.msra.mxu0 0.0
    %6768 = vmatpush.msra.mxu0 0.0
    %6769 = vmatpush.msra.mxu0 0.0
    %6770 = vmatpush.msra.mxu0 0.0
    %6771 = vmatpush.msra.mxu0 0.0
    %v6772 = vand.u32 %v100, 4294901760
    %v6773 = vsub.f32 %v100, %v6772
    %v6774 = vand.u32 %v6773, 4294901760
    %6775 = vmatpush.msra.mxu0 %v6774
    %v6776 = vand.u32 %v99, 4294901760
    %v6777 = vsub.f32 %v99, %v6776
    %v6778 = vand.u32 %v6777, 4294901760
    %6779 = vmatpush.msra.mxu0 %v6778
    %v6780 = vand.u32 %v98, 4294901760
    %v6781 = vsub.f32 %v98, %v6780
    %v6782 = vand.u32 %v6781, 4294901760
    %6783 = vmatpush.msra.mxu0 %v6782
    %v6784 = vand.u32 %v97, 4294901760
    %v6785 = vsub.f32 %v97, %v6784
    %v6786 = vand.u32 %v6785, 4294901760
    %6787 = vmatpush.msra.mxu0 %v6786
    %v6788 = vand.u32 %v96, 4294901760
    %v6789 = vsub.f32 %v96, %v6788
    %v6790 = vand.u32 %v6789, 4294901760
    %6791 = vmatpush.msra.mxu0 %v6790
    %v6792 = vand.u32 %v95, 4294901760
    %v6793 = vsub.f32 %v95, %v6792
    %v6794 = vand.u32 %v6793, 4294901760
    %6795 = vmatpush.msra.mxu0 %v6794
    %v6796 = vand.u32 %v94, 4294901760
    %v6797 = vsub.f32 %v94, %v6796
    %v6798 = vand.u32 %v6797, 4294901760
    %6799 = vmatpush.msra.mxu0 %v6798
    %v6800 = vand.u32 %v93, 4294901760
    %v6801 = vsub.f32 %v93, %v6800
    %v6802 = vand.u32 %v6801, 4294901760
    %6803 = vmatpush.msra.mxu0 %v6802
    %v6804 = vand.u32 %v1619, 4294901760
    %6805 = vmatmul.f32.gmra.mxu0 %v6804
    %v6806 = vpop.f32.mrf.mxu0
    %v6807 = vadd.f32 %v6672, %v6806
    %v6808 = vand.u32 %v1622, 4294901760
    %6809 = vmatmul.f32.gmra.mxu0 %v6808
    %v6810 = vpop.f32.mrf.mxu0
    %v6811 = vadd.f32 %v6678, %v6810
    %v6812 = vand.u32 %v1625, 4294901760
    %6813 = vmatmul.f32.gmra.mxu0 %v6812
    %v6814 = vpop.f32.mrf.mxu0
    %v6815 = vadd.f32 %v6684, %v6814
    %v6816 = vand.u32 %v1628, 4294901760
    %6817 = vmatmul.f32.gmra.mxu0 %v6816
    %v6818 = vpop.f32.mrf.mxu0
    %v6819 = vadd.f32 %v6690, %v6818
    %v6820 = vand.u32 %v1631, 4294901760
    %6821 = vmatmul.f32.gmra.mxu0 %v6820
    %v6822 = vpop.f32.mrf.mxu0
    %v6823 = vadd.f32 %v6696, %v6822
    %v6824 = vand.u32 %v1634, 4294901760
    %6825 = vmatmul.f32.gmra.mxu0 %v6824
    %v6826 = vpop.f32.mrf.mxu0
    %v6827 = vadd.f32 %v6702, %v6826
    %v6828 = vand.u32 %v1637, 4294901760
    %6829 = vmatmul.f32.gmra.mxu0 %v6828
    %v6830 = vpop.f32.mrf.mxu0
    %v6831 = vadd.f32 %v6708, %v6830
    %v6832 = vand.u32 %v1640, 4294901760
    %6833 = vmatmul.f32.gmra.mxu0 %v6832
    %v6834 = vpop.f32.mrf.mxu0
    %v6835 = vadd.f32 %v6714, %v6834
    %v6836 = vand.u32 %v1643, 4294901760
    %6837 = vmatmul.f32.gmra.mxu0 %v6836
    %v6838 = vpop.f32.mrf.mxu0
    %v6839 = vadd.f32 %v6720, %v6838
    %v6840 = vand.u32 %v1646, 4294901760
    %6841 = vmatmul.f32.gmra.mxu0 %v6840
    %v6842 = vpop.f32.mrf.mxu0
    %v6843 = vadd.f32 %v6726, %v6842
    %v6844 = vand.u32 %v1649, 4294901760
    %6845 = vmatmul.f32.gmra.mxu0 %v6844
    %v6846 = vpop.f32.mrf.mxu0
    %v6847 = vadd.f32 %v6732, %v6846
    %v6848 = vand.u32 %v1652, 4294901760
    %6849 = vmatmul.f32.gmra.mxu0 %v6848
    %v6850 = vpop.f32.mrf.mxu0
    %v6851 = vadd.f32 %v6738, %v6850
    %v6852 = vand.u32 %v1655, 4294901760
    %6853 = vmatmul.f32.gmra.mxu0 %v6852
    %v6854 = vpop.f32.mrf.mxu0
    %v6855 = vadd.f32 %v6744, %v6854
    %v6856 = vand.u32 %v1658, 4294901760
    %6857 = vmatmul.f32.gmra.mxu0 %v6856
    %v6858 = vpop.f32.mrf.mxu0
    %v6859 = vadd.f32 %v6750, %v6858
    %v6860 = vand.u32 %v1661, 4294901760
    %6861 = vmatmul.f32.gmra.mxu0 %v6860
    %v6862 = vpop.f32.mrf.mxu0
    %v6863 = vadd.f32 %v6756, %v6862
    %v6864 = vand.u32 %v1664, 4294901760
    %6865 = vmatmul.f32.gmra.mxu0 %v6864
    %v6866 = vpop.f32.mrf.mxu0
    %v6867 = vadd.f32 %v6762, %v6866
    %6868 = vdwg.mxu0
    %6869 = vmatpush.msra.mxu0 0.0
    %6870 = vmatpush.msra.mxu0 0.0
    %6871 = vmatpush.msra.mxu0 0.0
    %6872 = vmatpush.msra.mxu0 0.0
    %6873 = vmatpush.msra.mxu0 0.0
    %6874 = vmatpush.msra.mxu0 0.0
    %6875 = vmatpush.msra.mxu0 0.0
    %6876 = vmatpush.msra.mxu0 0.0
    %v6877 = vand.u32 %v100, 4294901760
    %6878 = vmatpush.msra.mxu0 %v6877
    %v6879 = vand.u32 %v99, 4294901760
    %6880 = vmatpush.msra.mxu0 %v6879
    %v6881 = vand.u32 %v98, 4294901760
    %6882 = vmatpush.msra.mxu0 %v6881
    %v6883 = vand.u32 %v97, 4294901760
    %6884 = vmatpush.msra.mxu0 %v6883
    %v6885 = vand.u32 %v96, 4294901760
    %6886 = vmatpush.msra.mxu0 %v6885
    %v6887 = vand.u32 %v95, 4294901760
    %6888 = vmatpush.msra.mxu0 %v6887
    %v6889 = vand.u32 %v94, 4294901760
    %6890 = vmatpush.msra.mxu0 %v6889
    %v6891 = vand.u32 %v93, 4294901760
    %6892 = vmatpush.msra.mxu0 %v6891
    %v6893 = vand.u32 %v1619, 4294901760
    %6894 = vmatmul.f32.gmra.mxu0 %v6893
    %v6895 = vpop.f32.mrf.mxu0
    %v6896 = vadd.f32 %v6807, %v6895
    %v6897 = vand.u32 %v1622, 4294901760
    %6898 = vmatmul.f32.gmra.mxu0 %v6897
    %v6899 = vpop.f32.mrf.mxu0
    %v6900 = vadd.f32 %v6811, %v6899
    %v6901 = vand.u32 %v1625, 4294901760
    %6902 = vmatmul.f32.gmra.mxu0 %v6901
    %v6903 = vpop.f32.mrf.mxu0
    %v6904 = vadd.f32 %v6815, %v6903
    %v6905 = vand.u32 %v1628, 4294901760
    %6906 = vmatmul.f32.gmra.mxu0 %v6905
    %v6907 = vpop.f32.mrf.mxu0
    %v6908 = vadd.f32 %v6819, %v6907
    %v6909 = vand.u32 %v1631, 4294901760
    %6910 = vmatmul.f32.gmra.mxu0 %v6909
    %v6911 = vpop.f32.mrf.mxu0
    %v6912 = vadd.f32 %v6823, %v6911
    %v6913 = vand.u32 %v1634, 4294901760
    %6914 = vmatmul.f32.gmra.mxu0 %v6913
    %v6915 = vpop.f32.mrf.mxu0
    %v6916 = vadd.f32 %v6827, %v6915
    %v6917 = vand.u32 %v1637, 4294901760
    %6918 = vmatmul.f32.gmra.mxu0 %v6917
    %v6919 = vpop.f32.mrf.mxu0
    %v6920 = vadd.f32 %v6831, %v6919
    %v6921 = vand.u32 %v1640, 4294901760
    %6922 = vmatmul.f32.gmra.mxu0 %v6921
    %v6923 = vpop.f32.mrf.mxu0
    %v6924 = vadd.f32 %v6835, %v6923
    %v6925 = vand.u32 %v1643, 4294901760
    %6926 = vmatmul.f32.gmra.mxu0 %v6925
    %v6927 = vpop.f32.mrf.mxu0
    %v6928 = vadd.f32 %v6839, %v6927
    %v6929 = vand.u32 %v1646, 4294901760
    %6930 = vmatmul.f32.gmra.mxu0 %v6929
    %v6931 = vpop.f32.mrf.mxu0
    %v6932 = vadd.f32 %v6843, %v6931
    %v6933 = vand.u32 %v1649, 4294901760
    %6934 = vmatmul.f32.gmra.mxu0 %v6933
    %v6935 = vpop.f32.mrf.mxu0
    %v6936 = vadd.f32 %v6847, %v6935
    %v6937 = vand.u32 %v1652, 4294901760
    %6938 = vmatmul.f32.gmra.mxu0 %v6937
    %v6939 = vpop.f32.mrf.mxu0
    %v6940 = vadd.f32 %v6851, %v6939
    %v6941 = vand.u32 %v1655, 4294901760
    %6942 = vmatmul.f32.gmra.mxu0 %v6941
    %v6943 = vpop.f32.mrf.mxu0
    %v6944 = vadd.f32 %v6855, %v6943
    %v6945 = vand.u32 %v1658, 4294901760
    %6946 = vmatmul.f32.gmra.mxu0 %v6945
    %v6947 = vpop.f32.mrf.mxu0
    %v6948 = vadd.f32 %v6859, %v6947
    %v6949 = vand.u32 %v1661, 4294901760
    %6950 = vmatmul.f32.gmra.mxu0 %v6949
    %v6951 = vpop.f32.mrf.mxu0
    %v6952 = vadd.f32 %v6863, %v6951
    %v6953 = vand.u32 %v1664, 4294901760
    %6954 = vmatmul.f32.gmra.mxu0 %v6953
    %v6955 = vpop.f32.mrf.mxu0
    %v6956 = vadd.f32 %v6867, %v6955
    %6957 = vdwg.mxu0
    %v6959 = vsel %vm2368, %v5492, 0
    %v6962 = vsel %vm2368, %v5496, 0
    %v6965 = vsel %vm2368, %v5500, 0
    %v6968 = vsel %vm2368, %v5504, 0
    %v6971 = vsel %vm2368, %v5508, 0
    %v6974 = vsel %vm2368, %v5512, 0
    %v6977 = vsel %vm2368, %v5516, 0
    %v6980 = vsel %vm2368, %v5520, 0
    %v6983 = vsel %vm2368, %v5524, 0
    %v6986 = vsel %vm2368, %v5528, 0
    %v6989 = vsel %vm2368, %v5532, 0
    %v6992 = vsel %vm2368, %v5536, 0
    %v6995 = vsel %vm2368, %v5540, 0
    %v6998 = vsel %vm2368, %v5544, 0
    %v7001 = vsel %vm2368, %v5548, 0
    %v7004 = vsel %vm2368, %v5552, 0
    %7006 = vmatpush.msra.mxu0 0.0
    %7007 = vmatpush.msra.mxu0 0.0
    %7008 = vmatpush.msra.mxu0 0.0
    %7009 = vmatpush.msra.mxu0 0.0
    %7010 = vmatpush.msra.mxu0 0.0
    %7011 = vmatpush.msra.mxu0 0.0
    %7012 = vmatpush.msra.mxu0 0.0
    %7013 = vmatpush.msra.mxu0 0.0
    %7014 = vmatpush.msra.mxu0 0.0
    %7015 = vmatpush.msra.mxu0 0.0
    %7016 = vmatpush.msra.mxu0 0.0
    %7017 = vmatpush.msra.mxu0 0.0
    %7018 = vmatpush.msra.mxu0 0.0
    %7019 = vmatpush.msra.mxu0 0.0
    %v7020 = vand.u32 %v77, 4294901760
    %7021 = vmatpush.msra.mxu0 %v7020
    %v7022 = vand.u32 %v76, 4294901760
    %7023 = vmatpush.msra.mxu0 %v7022
    %v7024 = vand.u32 %v6959, 4294901760
    %v7025 = vsub.f32 %v6959, %v7024
    %v7026 = vand.u32 %v7025, 4294901760
    %v7027 = vsub.f32 %v7025, %v7026
    %v7028 = vand.u32 %v7027, 4294901760
    %7029 = vmatmul.f32.gmra.mxu0 %v7028
    %v7030 = vpop.f32.mrf.mxu0
    %v7031 = vadd.f32 %v6194, %v7030
    %v7032 = vand.u32 %v6962, 4294901760
    %v7033 = vsub.f32 %v6962, %v7032
    %v7034 = vand.u32 %v7033, 4294901760
    %v7035 = vsub.f32 %v7033, %v7034
    %v7036 = vand.u32 %v7035, 4294901760
    %7037 = vmatmul.f32.gmra.mxu0 %v7036
    %v7038 = vpop.f32.mrf.mxu0
    %v7039 = vadd.f32 %v6198, %v7038
    %v7040 = vand.u32 %v6965, 4294901760
    %v7041 = vsub.f32 %v6965, %v7040
    %v7042 = vand.u32 %v7041, 4294901760
    %v7043 = vsub.f32 %v7041, %v7042
    %v7044 = vand.u32 %v7043, 4294901760
    %7045 = vmatmul.f32.gmra.mxu0 %v7044
    %v7046 = vpop.f32.mrf.mxu0
    %v7047 = vadd.f32 %v6202, %v7046
    %v7048 = vand.u32 %v6968, 4294901760
    %v7049 = vsub.f32 %v6968, %v7048
    %v7050 = vand.u32 %v7049, 4294901760
    %v7051 = vsub.f32 %v7049, %v7050
    %v7052 = vand.u32 %v7051, 4294901760
    %7053 = vmatmul.f32.gmra.mxu0 %v7052
    %v7054 = vpop.f32.mrf.mxu0
    %v7055 = vadd.f32 %v6206, %v7054
    %v7056 = vand.u32 %v6971, 4294901760
    %v7057 = vsub.f32 %v6971, %v7056
    %v7058 = vand.u32 %v7057, 4294901760
    %v7059 = vsub.f32 %v7057, %v7058
    %v7060 = vand.u32 %v7059, 4294901760
    %7061 = vmatmul.f32.gmra.mxu0 %v7060
    %v7062 = vpop.f32.mrf.mxu0
    %v7063 = vadd.f32 %v6210, %v7062
    %v7064 = vand.u32 %v6974, 4294901760
    %v7065 = vsub.f32 %v6974, %v7064
    %v7066 = vand.u32 %v7065, 4294901760
    %v7067 = vsub.f32 %v7065, %v7066
    %v7068 = vand.u32 %v7067, 4294901760
    %7069 = vmatmul.f32.gmra.mxu0 %v7068
    %v7070 = vpop.f32.mrf.mxu0
    %v7071 = vadd.f32 %v6214, %v7070
    %v7072 = vand.u32 %v6977, 4294901760
    %v7073 = vsub.f32 %v6977, %v7072
    %v7074 = vand.u32 %v7073, 4294901760
    %v7075 = vsub.f32 %v7073, %v7074
    %v7076 = vand.u32 %v7075, 4294901760
    %7077 = vmatmul.f32.gmra.mxu0 %v7076
    %v7078 = vpop.f32.mrf.mxu0
    %v7079 = vadd.f32 %v6218, %v7078
    %v7080 = vand.u32 %v6980, 4294901760
    %v7081 = vsub.f32 %v6980, %v7080
    %v7082 = vand.u32 %v7081, 4294901760
    %v7083 = vsub.f32 %v7081, %v7082
    %v7084 = vand.u32 %v7083, 4294901760
    %7085 = vmatmul.f32.gmra.mxu0 %v7084
    %v7086 = vpop.f32.mrf.mxu0
    %v7087 = vadd.f32 %v6222, %v7086
    %v7088 = vand.u32 %v6983, 4294901760
    %v7089 = vsub.f32 %v6983, %v7088
    %v7090 = vand.u32 %v7089, 4294901760
    %v7091 = vsub.f32 %v7089, %v7090
    %v7092 = vand.u32 %v7091, 4294901760
    %7093 = vmatmul.f32.gmra.mxu0 %v7092
    %v7094 = vpop.f32.mrf.mxu0
    %v7095 = vadd.f32 %v6226, %v7094
    %v7096 = vand.u32 %v6986, 4294901760
    %v7097 = vsub.f32 %v6986, %v7096
    %v7098 = vand.u32 %v7097, 4294901760
    %v7099 = vsub.f32 %v7097, %v7098
    %v7100 = vand.u32 %v7099, 4294901760
    %7101 = vmatmul.f32.gmra.mxu0 %v7100
    %v7102 = vpop.f32.mrf.mxu0
    %v7103 = vadd.f32 %v6230, %v7102
    %v7104 = vand.u32 %v6989, 4294901760
    %v7105 = vsub.f32 %v6989, %v7104
    %v7106 = vand.u32 %v7105, 4294901760
    %v7107 = vsub.f32 %v7105, %v7106
    %v7108 = vand.u32 %v7107, 4294901760
    %7109 = vmatmul.f32.gmra.mxu0 %v7108
    %v7110 = vpop.f32.mrf.mxu0
    %v7111 = vadd.f32 %v6234, %v7110
    %v7112 = vand.u32 %v6992, 4294901760
    %v7113 = vsub.f32 %v6992, %v7112
    %v7114 = vand.u32 %v7113, 4294901760
    %v7115 = vsub.f32 %v7113, %v7114
    %v7116 = vand.u32 %v7115, 4294901760
    %7117 = vmatmul.f32.gmra.mxu0 %v7116
    %v7118 = vpop.f32.mrf.mxu0
    %v7119 = vadd.f32 %v6238, %v7118
    %v7120 = vand.u32 %v6995, 4294901760
    %v7121 = vsub.f32 %v6995, %v7120
    %v7122 = vand.u32 %v7121, 4294901760
    %v7123 = vsub.f32 %v7121, %v7122
    %v7124 = vand.u32 %v7123, 4294901760
    %7125 = vmatmul.f32.gmra.mxu0 %v7124
    %v7126 = vpop.f32.mrf.mxu0
    %v7127 = vadd.f32 %v6242, %v7126
    %v7128 = vand.u32 %v6998, 4294901760
    %v7129 = vsub.f32 %v6998, %v7128
    %v7130 = vand.u32 %v7129, 4294901760
    %v7131 = vsub.f32 %v7129, %v7130
    %v7132 = vand.u32 %v7131, 4294901760
    %7133 = vmatmul.f32.gmra.mxu0 %v7132
    %v7134 = vpop.f32.mrf.mxu0
    %v7135 = vadd.f32 %v6246, %v7134
    %v7136 = vand.u32 %v7001, 4294901760
    %v7137 = vsub.f32 %v7001, %v7136
    %v7138 = vand.u32 %v7137, 4294901760
    %v7139 = vsub.f32 %v7137, %v7138
    %v7140 = vand.u32 %v7139, 4294901760
    %7141 = vmatmul.f32.gmra.mxu0 %v7140
    %v7142 = vpop.f32.mrf.mxu0
    %v7143 = vadd.f32 %v6250, %v7142
    %v7144 = vand.u32 %v7004, 4294901760
    %v7145 = vsub.f32 %v7004, %v7144
    %v7146 = vand.u32 %v7145, 4294901760
    %v7147 = vsub.f32 %v7145, %v7146
    %v7148 = vand.u32 %v7147, 4294901760
    %7149 = vmatmul.f32.gmra.mxu0 %v7148
    %v7150 = vpop.f32.mrf.mxu0
    %v7151 = vadd.f32 %v6254, %v7150
    %7152 = vdwg.mxu0
    %7153 = vmatpush.msra.mxu0 0.0
    %7154 = vmatpush.msra.mxu0 0.0
    %7155 = vmatpush.msra.mxu0 0.0
    %7156 = vmatpush.msra.mxu0 0.0
    %7157 = vmatpush.msra.mxu0 0.0
    %7158 = vmatpush.msra.mxu0 0.0
    %7159 = vmatpush.msra.mxu0 0.0
    %7160 = vmatpush.msra.mxu0 0.0
    %7161 = vmatpush.msra.mxu0 0.0
    %7162 = vmatpush.msra.mxu0 0.0
    %7163 = vmatpush.msra.mxu0 0.0
    %7164 = vmatpush.msra.mxu0 0.0
    %7165 = vmatpush.msra.mxu0 0.0
    %7166 = vmatpush.msra.mxu0 0.0
    %v7167 = vand.u32 %v77, 4294901760
    %v7168 = vsub.f32 %v77, %v7167
    %v7169 = vand.u32 %v7168, 4294901760
    %v7170 = vsub.f32 %v7168, %v7169
    %v7171 = vand.u32 %v7170, 4294901760
    %7172 = vmatpush.msra.mxu0 %v7171
    %v7173 = vand.u32 %v76, 4294901760
    %v7174 = vsub.f32 %v76, %v7173
    %v7175 = vand.u32 %v7174, 4294901760
    %v7176 = vsub.f32 %v7174, %v7175
    %v7177 = vand.u32 %v7176, 4294901760
    %7178 = vmatpush.msra.mxu0 %v7177
    %v7179 = vand.u32 %v6959, 4294901760
    %7180 = vmatmul.f32.gmra.mxu0 %v7179
    %v7181 = vpop.f32.mrf.mxu0
    %v7182 = vadd.f32 %v7031, %v7181
    %v7183 = vand.u32 %v6962, 4294901760
    %7184 = vmatmul.f32.gmra.mxu0 %v7183
    %v7185 = vpop.f32.mrf.mxu0
    %v7186 = vadd.f32 %v7039, %v7185
    %v7187 = vand.u32 %v6965, 4294901760
    %7188 = vmatmul.f32.gmra.mxu0 %v7187
    %v7189 = vpop.f32.mrf.mxu0
    %v7190 = vadd.f32 %v7047, %v7189
    %v7191 = vand.u32 %v6968, 4294901760
    %7192 = vmatmul.f32.gmra.mxu0 %v7191
    %v7193 = vpop.f32.mrf.mxu0
    %v7194 = vadd.f32 %v7055, %v7193
    %v7195 = vand.u32 %v6971, 4294901760
    %7196 = vmatmul.f32.gmra.mxu0 %v7195
    %v7197 = vpop.f32.mrf.mxu0
    %v7198 = vadd.f32 %v7063, %v7197
    %v7199 = vand.u32 %v6974, 4294901760
    %7200 = vmatmul.f32.gmra.mxu0 %v7199
    %v7201 = vpop.f32.mrf.mxu0
    %v7202 = vadd.f32 %v7071, %v7201
    %v7203 = vand.u32 %v6977, 4294901760
    %7204 = vmatmul.f32.gmra.mxu0 %v7203
    %v7205 = vpop.f32.mrf.mxu0
    %v7206 = vadd.f32 %v7079, %v7205
    %v7207 = vand.u32 %v6980, 4294901760
    %7208 = vmatmul.f32.gmra.mxu0 %v7207
    %v7209 = vpop.f32.mrf.mxu0
    %v7210 = vadd.f32 %v7087, %v7209
    %v7211 = vand.u32 %v6983, 4294901760
    %7212 = vmatmul.f32.gmra.mxu0 %v7211
    %v7213 = vpop.f32.mrf.mxu0
    %v7214 = vadd.f32 %v7095, %v7213
    %v7215 = vand.u32 %v6986, 4294901760
    %7216 = vmatmul.f32.gmra.mxu0 %v7215
    %v7217 = vpop.f32.mrf.mxu0
    %v7218 = vadd.f32 %v7103, %v7217
    %v7219 = vand.u32 %v6989, 4294901760
    %7220 = vmatmul.f32.gmra.mxu0 %v7219
    %v7221 = vpop.f32.mrf.mxu0
    %v7222 = vadd.f32 %v7111, %v7221
    %v7223 = vand.u32 %v6992, 4294901760
    %7224 = vmatmul.f32.gmra.mxu0 %v7223
    %v7225 = vpop.f32.mrf.mxu0
    %v7226 = vadd.f32 %v7119, %v7225
    %v7227 = vand.u32 %v6995, 4294901760
    %7228 = vmatmul.f32.gmra.mxu0 %v7227
    %v7229 = vpop.f32.mrf.mxu0
    %v7230 = vadd.f32 %v7127, %v7229
    %v7231 = vand.u32 %v6998, 4294901760
    %7232 = vmatmul.f32.gmra.mxu0 %v7231
    %v7233 = vpop.f32.mrf.mxu0
    %v7234 = vadd.f32 %v7135, %v7233
    %v7235 = vand.u32 %v7001, 4294901760
    %7236 = vmatmul.f32.gmra.mxu0 %v7235
    %v7237 = vpop.f32.mrf.mxu0
    %v7238 = vadd.f32 %v7143, %v7237
    %v7239 = vand.u32 %v7004, 4294901760
    %7240 = vmatmul.f32.gmra.mxu0 %v7239
    %v7241 = vpop.f32.mrf.mxu0
    %v7242 = vadd.f32 %v7151, %v7241
    %7243 = vdwg.mxu0
    %7244 = vmatpush.msra.mxu0 0.0
    %7245 = vmatpush.msra.mxu0 0.0
    %7246 = vmatpush.msra.mxu0 0.0
    %7247 = vmatpush.msra.mxu0 0.0
    %7248 = vmatpush.msra.mxu0 0.0
    %7249 = vmatpush.msra.mxu0 0.0
    %7250 = vmatpush.msra.mxu0 0.0
    %7251 = vmatpush.msra.mxu0 0.0
    %7252 = vmatpush.msra.mxu0 0.0
    %7253 = vmatpush.msra.mxu0 0.0
    %7254 = vmatpush.msra.mxu0 0.0
    %7255 = vmatpush.msra.mxu0 0.0
    %7256 = vmatpush.msra.mxu0 0.0
    %7257 = vmatpush.msra.mxu0 0.0
    %v7258 = vand.u32 %v77, 4294901760
    %v7259 = vsub.f32 %v77, %v7258
    %7260 = vmatpush.msra.mxu0 %v7259
    %v7261 = vand.u32 %v76, 4294901760
    %v7262 = vsub.f32 %v76, %v7261
    %7263 = vmatpush.msra.mxu0 %v7262
    %v7264 = vand.u32 %v6959, 4294901760
    %v7265 = vsub.f32 %v6959, %v7264
    %7266 = vmatmul.f32.gmra.mxu0 %v7265
    %v7267 = vpop.f32.mrf.mxu0
    %v7268 = vadd.f32 %v7182, %v7267
    %v7269 = vand.u32 %v6962, 4294901760
    %v7270 = vsub.f32 %v6962, %v7269
    %7271 = vmatmul.f32.gmra.mxu0 %v7270
    %v7272 = vpop.f32.mrf.mxu0
    %v7273 = vadd.f32 %v7186, %v7272
    %v7274 = vand.u32 %v6965, 4294901760
    %v7275 = vsub.f32 %v6965, %v7274
    %7276 = vmatmul.f32.gmra.mxu0 %v7275
    %v7277 = vpop.f32.mrf.mxu0
    %v7278 = vadd.f32 %v7190, %v7277
    %v7279 = vand.u32 %v6968, 4294901760
    %v7280 = vsub.f32 %v6968, %v7279
    %7281 = vmatmul.f32.gmra.mxu0 %v7280
    %v7282 = vpop.f32.mrf.mxu0
    %v7283 = vadd.f32 %v7194, %v7282
    %v7284 = vand.u32 %v6971, 4294901760
    %v7285 = vsub.f32 %v6971, %v7284
    %7286 = vmatmul.f32.gmra.mxu0 %v7285
    %v7287 = vpop.f32.mrf.mxu0
    %v7288 = vadd.f32 %v7198, %v7287
    %v7289 = vand.u32 %v6974, 4294901760
    %v7290 = vsub.f32 %v6974, %v7289
    %7291 = vmatmul.f32.gmra.mxu0 %v7290
    %v7292 = vpop.f32.mrf.mxu0
    %v7293 = vadd.f32 %v7202, %v7292
    %v7294 = vand.u32 %v6977, 4294901760
    %v7295 = vsub.f32 %v6977, %v7294
    %7296 = vmatmul.f32.gmra.mxu0 %v7295
    %v7297 = vpop.f32.mrf.mxu0
    %v7298 = vadd.f32 %v7206, %v7297
    %v7299 = vand.u32 %v6980, 4294901760
    %v7300 = vsub.f32 %v6980, %v7299
    %7301 = vmatmul.f32.gmra.mxu0 %v7300
    %v7302 = vpop.f32.mrf.mxu0
    %v7303 = vadd.f32 %v7210, %v7302
    %v7304 = vand.u32 %v6983, 4294901760
    %v7305 = vsub.f32 %v6983, %v7304
    %7306 = vmatmul.f32.gmra.mxu0 %v7305
    %v7307 = vpop.f32.mrf.mxu0
    %v7308 = vadd.f32 %v7214, %v7307
    %v7309 = vand.u32 %v6986, 4294901760
    %v7310 = vsub.f32 %v6986, %v7309
    %7311 = vmatmul.f32.gmra.mxu0 %v7310
    %v7312 = vpop.f32.mrf.mxu0
    %v7313 = vadd.f32 %v7218, %v7312
    %v7314 = vand.u32 %v6989, 4294901760
    %v7315 = vsub.f32 %v6989, %v7314
    %7316 = vmatmul.f32.gmra.mxu0 %v7315
    %v7317 = vpop.f32.mrf.mxu0
    %v7318 = vadd.f32 %v7222, %v7317
    %v7319 = vand.u32 %v6992, 4294901760
    %v7320 = vsub.f32 %v6992, %v7319
    %7321 = vmatmul.f32.gmra.mxu0 %v7320
    %v7322 = vpop.f32.mrf.mxu0
    %v7323 = vadd.f32 %v7226, %v7322
    %v7324 = vand.u32 %v6995, 4294901760
    %v7325 = vsub.f32 %v6995, %v7324
    %7326 = vmatmul.f32.gmra.mxu0 %v7325
    %v7327 = vpop.f32.mrf.mxu0
    %v7328 = vadd.f32 %v7230, %v7327
    %v7329 = vand.u32 %v6998, 4294901760
    %v7330 = vsub.f32 %v6998, %v7329
    %7331 = vmatmul.f32.gmra.mxu0 %v7330
    %v7332 = vpop.f32.mrf.mxu0
    %v7333 = vadd.f32 %v7234, %v7332
    %v7334 = vand.u32 %v7001, 4294901760
    %v7335 = vsub.f32 %v7001, %v7334
    %7336 = vmatmul.f32.gmra.mxu0 %v7335
    %v7337 = vpop.f32.mrf.mxu0
    %v7338 = vadd.f32 %v7238, %v7337
    %v7339 = vand.u32 %v7004, 4294901760
    %v7340 = vsub.f32 %v7004, %v7339
    %7341 = vmatmul.f32.gmra.mxu0 %v7340
    %v7342 = vpop.f32.mrf.mxu0
    %v7343 = vadd.f32 %v7242, %v7342
    %7344 = vdwg.mxu0
    %7345 = vmatpush.msra.mxu0 0.0
    %7346 = vmatpush.msra.mxu0 0.0
    %7347 = vmatpush.msra.mxu0 0.0
    %7348 = vmatpush.msra.mxu0 0.0
    %7349 = vmatpush.msra.mxu0 0.0
    %7350 = vmatpush.msra.mxu0 0.0
    %7351 = vmatpush.msra.mxu0 0.0
    %7352 = vmatpush.msra.mxu0 0.0
    %7353 = vmatpush.msra.mxu0 0.0
    %7354 = vmatpush.msra.mxu0 0.0
    %7355 = vmatpush.msra.mxu0 0.0
    %7356 = vmatpush.msra.mxu0 0.0
    %7357 = vmatpush.msra.mxu0 0.0
    %7358 = vmatpush.msra.mxu0 0.0
    %v7359 = vand.u32 %v77, 4294901760
    %7360 = vmatpush.msra.mxu0 %v7359
    %v7361 = vand.u32 %v76, 4294901760
    %7362 = vmatpush.msra.mxu0 %v7361
    %v7363 = vand.u32 %v6959, 4294901760
    %v7364 = vsub.f32 %v6959, %v7363
    %v7365 = vand.u32 %v7364, 4294901760
    %7366 = vmatmul.f32.gmra.mxu0 %v7365
    %v7367 = vpop.f32.mrf.mxu0
    %v7368 = vadd.f32 %v7268, %v7367
    %v7369 = vand.u32 %v6962, 4294901760
    %v7370 = vsub.f32 %v6962, %v7369
    %v7371 = vand.u32 %v7370, 4294901760
    %7372 = vmatmul.f32.gmra.mxu0 %v7371
    %v7373 = vpop.f32.mrf.mxu0
    %v7374 = vadd.f32 %v7273, %v7373
    %v7375 = vand.u32 %v6965, 4294901760
    %v7376 = vsub.f32 %v6965, %v7375
    %v7377 = vand.u32 %v7376, 4294901760
    %7378 = vmatmul.f32.gmra.mxu0 %v7377
    %v7379 = vpop.f32.mrf.mxu0
    %v7380 = vadd.f32 %v7278, %v7379
    %v7381 = vand.u32 %v6968, 4294901760
    %v7382 = vsub.f32 %v6968, %v7381
    %v7383 = vand.u32 %v7382, 4294901760
    %7384 = vmatmul.f32.gmra.mxu0 %v7383
    %v7385 = vpop.f32.mrf.mxu0
    %v7386 = vadd.f32 %v7283, %v7385
    %v7387 = vand.u32 %v6971, 4294901760
    %v7388 = vsub.f32 %v6971, %v7387
    %v7389 = vand.u32 %v7388, 4294901760
    %7390 = vmatmul.f32.gmra.mxu0 %v7389
    %v7391 = vpop.f32.mrf.mxu0
    %v7392 = vadd.f32 %v7288, %v7391
    %v7393 = vand.u32 %v6974, 4294901760
    %v7394 = vsub.f32 %v6974, %v7393
    %v7395 = vand.u32 %v7394, 4294901760
    %7396 = vmatmul.f32.gmra.mxu0 %v7395
    %v7397 = vpop.f32.mrf.mxu0
    %v7398 = vadd.f32 %v7293, %v7397
    %v7399 = vand.u32 %v6977, 4294901760
    %v7400 = vsub.f32 %v6977, %v7399
    %v7401 = vand.u32 %v7400, 4294901760
    %7402 = vmatmul.f32.gmra.mxu0 %v7401
    %v7403 = vpop.f32.mrf.mxu0
    %v7404 = vadd.f32 %v7298, %v7403
    %v7405 = vand.u32 %v6980, 4294901760
    %v7406 = vsub.f32 %v6980, %v7405
    %v7407 = vand.u32 %v7406, 4294901760
    %7408 = vmatmul.f32.gmra.mxu0 %v7407
    %v7409 = vpop.f32.mrf.mxu0
    %v7410 = vadd.f32 %v7303, %v7409
    %v7411 = vand.u32 %v6983, 4294901760
    %v7412 = vsub.f32 %v6983, %v7411
    %v7413 = vand.u32 %v7412, 4294901760
    %7414 = vmatmul.f32.gmra.mxu0 %v7413
    %v7415 = vpop.f32.mrf.mxu0
    %v7416 = vadd.f32 %v7308, %v7415
    %v7417 = vand.u32 %v6986, 4294901760
    %v7418 = vsub.f32 %v6986, %v7417
    %v7419 = vand.u32 %v7418, 4294901760
    %7420 = vmatmul.f32.gmra.mxu0 %v7419
    %v7421 = vpop.f32.mrf.mxu0
    %v7422 = vadd.f32 %v7313, %v7421
    %v7423 = vand.u32 %v6989, 4294901760
    %v7424 = vsub.f32 %v6989, %v7423
    %v7425 = vand.u32 %v7424, 4294901760
    %7426 = vmatmul.f32.gmra.mxu0 %v7425
    %v7427 = vpop.f32.mrf.mxu0
    %v7428 = vadd.f32 %v7318, %v7427
    %v7429 = vand.u32 %v6992, 4294901760
    %v7430 = vsub.f32 %v6992, %v7429
    %v7431 = vand.u32 %v7430, 4294901760
    %7432 = vmatmul.f32.gmra.mxu0 %v7431
    %v7433 = vpop.f32.mrf.mxu0
    %v7434 = vadd.f32 %v7323, %v7433
    %v7435 = vand.u32 %v6995, 4294901760
    %v7436 = vsub.f32 %v6995, %v7435
    %v7437 = vand.u32 %v7436, 4294901760
    %7438 = vmatmul.f32.gmra.mxu0 %v7437
    %v7439 = vpop.f32.mrf.mxu0
    %v7440 = vadd.f32 %v7328, %v7439
    %v7441 = vand.u32 %v6998, 4294901760
    %v7442 = vsub.f32 %v6998, %v7441
    %v7443 = vand.u32 %v7442, 4294901760
    %7444 = vmatmul.f32.gmra.mxu0 %v7443
    %v7445 = vpop.f32.mrf.mxu0
    %v7446 = vadd.f32 %v7333, %v7445
    %v7447 = vand.u32 %v7001, 4294901760
    %v7448 = vsub.f32 %v7001, %v7447
    %v7449 = vand.u32 %v7448, 4294901760
    %7450 = vmatmul.f32.gmra.mxu0 %v7449
    %v7451 = vpop.f32.mrf.mxu0
    %v7452 = vadd.f32 %v7338, %v7451
    %v7453 = vand.u32 %v7004, 4294901760
    %v7454 = vsub.f32 %v7004, %v7453
    %v7455 = vand.u32 %v7454, 4294901760
    %7456 = vmatmul.f32.gmra.mxu0 %v7455
    %v7457 = vpop.f32.mrf.mxu0
    %v7458 = vadd.f32 %v7343, %v7457
    %7459 = vdwg.mxu0
    %7460 = vmatpush.msra.mxu0 0.0
    %7461 = vmatpush.msra.mxu0 0.0
    %7462 = vmatpush.msra.mxu0 0.0
    %7463 = vmatpush.msra.mxu0 0.0
    %7464 = vmatpush.msra.mxu0 0.0
    %7465 = vmatpush.msra.mxu0 0.0
    %7466 = vmatpush.msra.mxu0 0.0
    %7467 = vmatpush.msra.mxu0 0.0
    %7468 = vmatpush.msra.mxu0 0.0
    %7469 = vmatpush.msra.mxu0 0.0
    %7470 = vmatpush.msra.mxu0 0.0
    %7471 = vmatpush.msra.mxu0 0.0
    %7472 = vmatpush.msra.mxu0 0.0
    %7473 = vmatpush.msra.mxu0 0.0
    %v7474 = vand.u32 %v77, 4294901760
    %v7475 = vsub.f32 %v77, %v7474
    %v7476 = vand.u32 %v7475, 4294901760
    %7477 = vmatpush.msra.mxu0 %v7476
    %v7478 = vand.u32 %v76, 4294901760
    %v7479 = vsub.f32 %v76, %v7478
    %v7480 = vand.u32 %v7479, 4294901760
    %7481 = vmatpush.msra.mxu0 %v7480
    %v7482 = vand.u32 %v6959, 4294901760
    %7483 = vmatmul.f32.gmra.mxu0 %v7482
    %v7484 = vpop.f32.mrf.mxu0
    %v7485 = vadd.f32 %v7368, %v7484
    %v7486 = vand.u32 %v6962, 4294901760
    %7487 = vmatmul.f32.gmra.mxu0 %v7486
    %v7488 = vpop.f32.mrf.mxu0
    %v7489 = vadd.f32 %v7374, %v7488
    %v7490 = vand.u32 %v6965, 4294901760
    %7491 = vmatmul.f32.gmra.mxu0 %v7490
    %v7492 = vpop.f32.mrf.mxu0
    %v7493 = vadd.f32 %v7380, %v7492
    %v7494 = vand.u32 %v6968, 4294901760
    %7495 = vmatmul.f32.gmra.mxu0 %v7494
    %v7496 = vpop.f32.mrf.mxu0
    %v7497 = vadd.f32 %v7386, %v7496
    %v7498 = vand.u32 %v6971, 4294901760
    %7499 = vmatmul.f32.gmra.mxu0 %v7498
    %v7500 = vpop.f32.mrf.mxu0
    %v7501 = vadd.f32 %v7392, %v7500
    %v7502 = vand.u32 %v6974, 4294901760
    %7503 = vmatmul.f32.gmra.mxu0 %v7502
    %v7504 = vpop.f32.mrf.mxu0
    %v7505 = vadd.f32 %v7398, %v7504
    %v7506 = vand.u32 %v6977, 4294901760
    %7507 = vmatmul.f32.gmra.mxu0 %v7506
    %v7508 = vpop.f32.mrf.mxu0
    %v7509 = vadd.f32 %v7404, %v7508
    %v7510 = vand.u32 %v6980, 4294901760
    %7511 = vmatmul.f32.gmra.mxu0 %v7510
    %v7512 = vpop.f32.mrf.mxu0
    %v7513 = vadd.f32 %v7410, %v7512
    %v7514 = vand.u32 %v6983, 4294901760
    %7515 = vmatmul.f32.gmra.mxu0 %v7514
    %v7516 = vpop.f32.mrf.mxu0
    %v7517 = vadd.f32 %v7416, %v7516
    %v7518 = vand.u32 %v6986, 4294901760
    %7519 = vmatmul.f32.gmra.mxu0 %v7518
    %v7520 = vpop.f32.mrf.mxu0
    %v7521 = vadd.f32 %v7422, %v7520
    %v7522 = vand.u32 %v6989, 4294901760
    %7523 = vmatmul.f32.gmra.mxu0 %v7522
    %v7524 = vpop.f32.mrf.mxu0
    %v7525 = vadd.f32 %v7428, %v7524
    %v7526 = vand.u32 %v6992, 4294901760
    %7527 = vmatmul.f32.gmra.mxu0 %v7526
    %v7528 = vpop.f32.mrf.mxu0
    %v7529 = vadd.f32 %v7434, %v7528
    %v7530 = vand.u32 %v6995, 4294901760
    %7531 = vmatmul.f32.gmra.mxu0 %v7530
    %v7532 = vpop.f32.mrf.mxu0
    %v7533 = vadd.f32 %v7440, %v7532
    %v7534 = vand.u32 %v6998, 4294901760
    %7535 = vmatmul.f32.gmra.mxu0 %v7534
    %v7536 = vpop.f32.mrf.mxu0
    %v7537 = vadd.f32 %v7446, %v7536
    %v7538 = vand.u32 %v7001, 4294901760
    %7539 = vmatmul.f32.gmra.mxu0 %v7538
    %v7540 = vpop.f32.mrf.mxu0
    %v7541 = vadd.f32 %v7452, %v7540
    %v7542 = vand.u32 %v7004, 4294901760
    %7543 = vmatmul.f32.gmra.mxu0 %v7542
    %v7544 = vpop.f32.mrf.mxu0
    %v7545 = vadd.f32 %v7458, %v7544
    %7546 = vdwg.mxu0
    %7547 = vmatpush.msra.mxu0 0.0
    %7548 = vmatpush.msra.mxu0 0.0
    %7549 = vmatpush.msra.mxu0 0.0
    %7550 = vmatpush.msra.mxu0 0.0
    %7551 = vmatpush.msra.mxu0 0.0
    %7552 = vmatpush.msra.mxu0 0.0
    %7553 = vmatpush.msra.mxu0 0.0
    %7554 = vmatpush.msra.mxu0 0.0
    %7555 = vmatpush.msra.mxu0 0.0
    %7556 = vmatpush.msra.mxu0 0.0
    %7557 = vmatpush.msra.mxu0 0.0
    %7558 = vmatpush.msra.mxu0 0.0
    %7559 = vmatpush.msra.mxu0 0.0
    %7560 = vmatpush.msra.mxu0 0.0
    %v7561 = vand.u32 %v77, 4294901760
    %7562 = vmatpush.msra.mxu0 %v7561
    %v7563 = vand.u32 %v76, 4294901760
    %7564 = vmatpush.msra.mxu0 %v7563
    %v7565 = vand.u32 %v6959, 4294901760
    %7566 = vmatmul.f32.gmra.mxu0 %v7565
    %v7567 = vpop.f32.mrf.mxu0
    %v7568 = vadd.f32 %v7485, %v7567
    %v7569 = vand.u32 %v6962, 4294901760
    %7570 = vmatmul.f32.gmra.mxu0 %v7569
    %v7571 = vpop.f32.mrf.mxu0
    %v7572 = vadd.f32 %v7489, %v7571
    %v7573 = vand.u32 %v6965, 4294901760
    %7574 = vmatmul.f32.gmra.mxu0 %v7573
    %v7575 = vpop.f32.mrf.mxu0
    %v7576 = vadd.f32 %v7493, %v7575
    %v7577 = vand.u32 %v6968, 4294901760
    %7578 = vmatmul.f32.gmra.mxu0 %v7577
    %v7579 = vpop.f32.mrf.mxu0
    %v7580 = vadd.f32 %v7497, %v7579
    %v7581 = vand.u32 %v6971, 4294901760
    %7582 = vmatmul.f32.gmra.mxu0 %v7581
    %v7583 = vpop.f32.mrf.mxu0
    %v7584 = vadd.f32 %v7501, %v7583
    %v7585 = vand.u32 %v6974, 4294901760
    %7586 = vmatmul.f32.gmra.mxu0 %v7585
    %v7587 = vpop.f32.mrf.mxu0
    %v7588 = vadd.f32 %v7505, %v7587
    %v7589 = vand.u32 %v6977, 4294901760
    %7590 = vmatmul.f32.gmra.mxu0 %v7589
    %v7591 = vpop.f32.mrf.mxu0
    %v7592 = vadd.f32 %v7509, %v7591
    %v7593 = vand.u32 %v6980, 4294901760
    %7594 = vmatmul.f32.gmra.mxu0 %v7593
    %v7595 = vpop.f32.mrf.mxu0
    %v7596 = vadd.f32 %v7513, %v7595
    %v7597 = vand.u32 %v6983, 4294901760
    %7598 = vmatmul.f32.gmra.mxu0 %v7597
    %v7599 = vpop.f32.mrf.mxu0
    %v7600 = vadd.f32 %v7517, %v7599
    %v7601 = vand.u32 %v6986, 4294901760
    %7602 = vmatmul.f32.gmra.mxu0 %v7601
    %v7603 = vpop.f32.mrf.mxu0
    %v7604 = vadd.f32 %v7521, %v7603
    %v7605 = vand.u32 %v6989, 4294901760
    %7606 = vmatmul.f32.gmra.mxu0 %v7605
    %v7607 = vpop.f32.mrf.mxu0
    %v7608 = vadd.f32 %v7525, %v7607
    %v7609 = vand.u32 %v6992, 4294901760
    %7610 = vmatmul.f32.gmra.mxu0 %v7609
    %v7611 = vpop.f32.mrf.mxu0
    %v7612 = vadd.f32 %v7529, %v7611
    %v7613 = vand.u32 %v6995, 4294901760
    %7614 = vmatmul.f32.gmra.mxu0 %v7613
    %v7615 = vpop.f32.mrf.mxu0
    %v7616 = vadd.f32 %v7533, %v7615
    %v7617 = vand.u32 %v6998, 4294901760
    %7618 = vmatmul.f32.gmra.mxu0 %v7617
    %v7619 = vpop.f32.mrf.mxu0
    %v7620 = vadd.f32 %v7537, %v7619
    %v7621 = vand.u32 %v7001, 4294901760
    %7622 = vmatmul.f32.gmra.mxu0 %v7621
    %v7623 = vpop.f32.mrf.mxu0
    %v7624 = vadd.f32 %v7541, %v7623
    %v7625 = vand.u32 %v7004, 4294901760
    %7626 = vmatmul.f32.gmra.mxu0 %v7625
    %v7627 = vpop.f32.mrf.mxu0
    %v7628 = vadd.f32 %v7545, %v7627
    %7629 = vdwg.mxu0
    %v7631 = vsel %vm2368, %v6896, 0
    %v7634 = vsel %vm2368, %v6900, 0
    %v7637 = vsel %vm2368, %v6904, 0
    %v7640 = vsel %vm2368, %v6908, 0
    %v7643 = vsel %vm2368, %v6912, 0
    %v7646 = vsel %vm2368, %v6916, 0
    %v7649 = vsel %vm2368, %v6920, 0
    %v7652 = vsel %vm2368, %v6924, 0
    %v7655 = vsel %vm2368, %v6928, 0
    %v7658 = vsel %vm2368, %v6932, 0
    %v7661 = vsel %vm2368, %v6936, 0
    %v7664 = vsel %vm2368, %v6940, 0
    %v7667 = vsel %vm2368, %v6944, 0
    %v7670 = vsel %vm2368, %v6948, 0
    %v7673 = vsel %vm2368, %v6952, 0
    %v7676 = vsel %vm2368, %v6956, 0
    %7678 = vmatpush.msra.mxu0 0.0
    %7679 = vmatpush.msra.mxu0 0.0
    %7680 = vmatpush.msra.mxu0 0.0
    %7681 = vmatpush.msra.mxu0 0.0
    %7682 = vmatpush.msra.mxu0 0.0
    %7683 = vmatpush.msra.mxu0 0.0
    %7684 = vmatpush.msra.mxu0 0.0
    %7685 = vmatpush.msra.mxu0 0.0
    %7686 = vmatpush.msra.mxu0 0.0
    %7687 = vmatpush.msra.mxu0 0.0
    %7688 = vmatpush.msra.mxu0 0.0
    %7689 = vmatpush.msra.mxu0 0.0
    %7690 = vmatpush.msra.mxu0 0.0
    %7691 = vmatpush.msra.mxu0 0.0
    %v7692 = vand.u32 %v3046, 4294901760
    %7693 = vmatpush.msra.mxu0 %v7692
    %v7694 = vand.u32 %v3044, 4294901760
    %7695 = vmatpush.msra.mxu0 %v7694
    %v7696 = vand.u32 %v7631, 4294901760
    %v7697 = vsub.f32 %v7631, %v7696
    %v7698 = vand.u32 %v7697, 4294901760
    %v7699 = vsub.f32 %v7697, %v7698
    %v7700 = vand.u32 %v7699, 4294901760
    %7701 = vmatmul.f32.gmra.mxu0 %v7700
    %v7702 = vpop.f32.mrf.mxu0
    %v7703 = vadd.f32 0.0, %v7702
    %v7704 = vand.u32 %v7634, 4294901760
    %v7705 = vsub.f32 %v7634, %v7704
    %v7706 = vand.u32 %v7705, 4294901760
    %v7707 = vsub.f32 %v7705, %v7706
    %v7708 = vand.u32 %v7707, 4294901760
    %7709 = vmatmul.f32.gmra.mxu0 %v7708
    %v7710 = vpop.f32.mrf.mxu0
    %v7711 = vadd.f32 0.0, %v7710
    %v7712 = vand.u32 %v7637, 4294901760
    %v7713 = vsub.f32 %v7637, %v7712
    %v7714 = vand.u32 %v7713, 4294901760
    %v7715 = vsub.f32 %v7713, %v7714
    %v7716 = vand.u32 %v7715, 4294901760
    %7717 = vmatmul.f32.gmra.mxu0 %v7716
    %v7718 = vpop.f32.mrf.mxu0
    %v7719 = vadd.f32 0.0, %v7718
    %v7720 = vand.u32 %v7640, 4294901760
    %v7721 = vsub.f32 %v7640, %v7720
    %v7722 = vand.u32 %v7721, 4294901760
    %v7723 = vsub.f32 %v7721, %v7722
    %v7724 = vand.u32 %v7723, 4294901760
    %7725 = vmatmul.f32.gmra.mxu0 %v7724
    %v7726 = vpop.f32.mrf.mxu0
    %v7727 = vadd.f32 0.0, %v7726
    %v7728 = vand.u32 %v7643, 4294901760
    %v7729 = vsub.f32 %v7643, %v7728
    %v7730 = vand.u32 %v7729, 4294901760
    %v7731 = vsub.f32 %v7729, %v7730
    %v7732 = vand.u32 %v7731, 4294901760
    %7733 = vmatmul.f32.gmra.mxu0 %v7732
    %v7734 = vpop.f32.mrf.mxu0
    %v7735 = vadd.f32 0.0, %v7734
    %v7736 = vand.u32 %v7646, 4294901760
    %v7737 = vsub.f32 %v7646, %v7736
    %v7738 = vand.u32 %v7737, 4294901760
    %v7739 = vsub.f32 %v7737, %v7738
    %v7740 = vand.u32 %v7739, 4294901760
    %7741 = vmatmul.f32.gmra.mxu0 %v7740
    %v7742 = vpop.f32.mrf.mxu0
    %v7743 = vadd.f32 0.0, %v7742
    %v7744 = vand.u32 %v7649, 4294901760
    %v7745 = vsub.f32 %v7649, %v7744
    %v7746 = vand.u32 %v7745, 4294901760
    %v7747 = vsub.f32 %v7745, %v7746
    %v7748 = vand.u32 %v7747, 4294901760
    %7749 = vmatmul.f32.gmra.mxu0 %v7748
    %v7750 = vpop.f32.mrf.mxu0
    %v7751 = vadd.f32 0.0, %v7750
    %v7752 = vand.u32 %v7652, 4294901760
    %v7753 = vsub.f32 %v7652, %v7752
    %v7754 = vand.u32 %v7753, 4294901760
    %v7755 = vsub.f32 %v7753, %v7754
    %v7756 = vand.u32 %v7755, 4294901760
    %7757 = vmatmul.f32.gmra.mxu0 %v7756
    %v7758 = vpop.f32.mrf.mxu0
    %v7759 = vadd.f32 0.0, %v7758
    %v7760 = vand.u32 %v7655, 4294901760
    %v7761 = vsub.f32 %v7655, %v7760
    %v7762 = vand.u32 %v7761, 4294901760
    %v7763 = vsub.f32 %v7761, %v7762
    %v7764 = vand.u32 %v7763, 4294901760
    %7765 = vmatmul.f32.gmra.mxu0 %v7764
    %v7766 = vpop.f32.mrf.mxu0
    %v7767 = vadd.f32 0.0, %v7766
    %v7768 = vand.u32 %v7658, 4294901760
    %v7769 = vsub.f32 %v7658, %v7768
    %v7770 = vand.u32 %v7769, 4294901760
    %v7771 = vsub.f32 %v7769, %v7770
    %v7772 = vand.u32 %v7771, 4294901760
    %7773 = vmatmul.f32.gmra.mxu0 %v7772
    %v7774 = vpop.f32.mrf.mxu0
    %v7775 = vadd.f32 0.0, %v7774
    %v7776 = vand.u32 %v7661, 4294901760
    %v7777 = vsub.f32 %v7661, %v7776
    %v7778 = vand.u32 %v7777, 4294901760
    %v7779 = vsub.f32 %v7777, %v7778
    %v7780 = vand.u32 %v7779, 4294901760
    %7781 = vmatmul.f32.gmra.mxu0 %v7780
    %v7782 = vpop.f32.mrf.mxu0
    %v7783 = vadd.f32 0.0, %v7782
    %v7784 = vand.u32 %v7664, 4294901760
    %v7785 = vsub.f32 %v7664, %v7784
    %v7786 = vand.u32 %v7785, 4294901760
    %v7787 = vsub.f32 %v7785, %v7786
    %v7788 = vand.u32 %v7787, 4294901760
    %7789 = vmatmul.f32.gmra.mxu0 %v7788
    %v7790 = vpop.f32.mrf.mxu0
    %v7791 = vadd.f32 0.0, %v7790
    %v7792 = vand.u32 %v7667, 4294901760
    %v7793 = vsub.f32 %v7667, %v7792
    %v7794 = vand.u32 %v7793, 4294901760
    %v7795 = vsub.f32 %v7793, %v7794
    %v7796 = vand.u32 %v7795, 4294901760
    %7797 = vmatmul.f32.gmra.mxu0 %v7796
    %v7798 = vpop.f32.mrf.mxu0
    %v7799 = vadd.f32 0.0, %v7798
    %v7800 = vand.u32 %v7670, 4294901760
    %v7801 = vsub.f32 %v7670, %v7800
    %v7802 = vand.u32 %v7801, 4294901760
    %v7803 = vsub.f32 %v7801, %v7802
    %v7804 = vand.u32 %v7803, 4294901760
    %7805 = vmatmul.f32.gmra.mxu0 %v7804
    %v7806 = vpop.f32.mrf.mxu0
    %v7807 = vadd.f32 0.0, %v7806
    %v7808 = vand.u32 %v7673, 4294901760
    %v7809 = vsub.f32 %v7673, %v7808
    %v7810 = vand.u32 %v7809, 4294901760
    %v7811 = vsub.f32 %v7809, %v7810
    %v7812 = vand.u32 %v7811, 4294901760
    %7813 = vmatmul.f32.gmra.mxu0 %v7812
    %v7814 = vpop.f32.mrf.mxu0
    %v7815 = vadd.f32 0.0, %v7814
    %v7816 = vand.u32 %v7676, 4294901760
    %v7817 = vsub.f32 %v7676, %v7816
    %v7818 = vand.u32 %v7817, 4294901760
    %v7819 = vsub.f32 %v7817, %v7818
    %v7820 = vand.u32 %v7819, 4294901760
    %7821 = vmatmul.f32.gmra.mxu0 %v7820
    %v7822 = vpop.f32.mrf.mxu0
    %v7823 = vadd.f32 0.0, %v7822
    %7824 = vdwg.mxu0
    %7825 = vmatpush.msra.mxu0 0.0
    %7826 = vmatpush.msra.mxu0 0.0
    %7827 = vmatpush.msra.mxu0 0.0
    %7828 = vmatpush.msra.mxu0 0.0
    %7829 = vmatpush.msra.mxu0 0.0
    %7830 = vmatpush.msra.mxu0 0.0
    %7831 = vmatpush.msra.mxu0 0.0
    %7832 = vmatpush.msra.mxu0 0.0
    %7833 = vmatpush.msra.mxu0 0.0
    %7834 = vmatpush.msra.mxu0 0.0
    %7835 = vmatpush.msra.mxu0 0.0
    %7836 = vmatpush.msra.mxu0 0.0
    %7837 = vmatpush.msra.mxu0 0.0
    %7838 = vmatpush.msra.mxu0 0.0
    %v7839 = vand.u32 %v3046, 4294901760
    %v7840 = vsub.f32 %v3046, %v7839
    %v7841 = vand.u32 %v7840, 4294901760
    %v7842 = vsub.f32 %v7840, %v7841
    %v7843 = vand.u32 %v7842, 4294901760
    %7844 = vmatpush.msra.mxu0 %v7843
    %v7845 = vand.u32 %v3044, 4294901760
    %v7846 = vsub.f32 %v3044, %v7845
    %v7847 = vand.u32 %v7846, 4294901760
    %v7848 = vsub.f32 %v7846, %v7847
    %v7849 = vand.u32 %v7848, 4294901760
    %7850 = vmatpush.msra.mxu0 %v7849
    %v7851 = vand.u32 %v7631, 4294901760
    %7852 = vmatmul.f32.gmra.mxu0 %v7851
    %v7853 = vpop.f32.mrf.mxu0
    %v7854 = vadd.f32 %v7703, %v7853
    %v7855 = vand.u32 %v7634, 4294901760
    %7856 = vmatmul.f32.gmra.mxu0 %v7855
    %v7857 = vpop.f32.mrf.mxu0
    %v7858 = vadd.f32 %v7711, %v7857
    %v7859 = vand.u32 %v7637, 4294901760
    %7860 = vmatmul.f32.gmra.mxu0 %v7859
    %v7861 = vpop.f32.mrf.mxu0
    %v7862 = vadd.f32 %v7719, %v7861
    %v7863 = vand.u32 %v7640, 4294901760
    %7864 = vmatmul.f32.gmra.mxu0 %v7863
    %v7865 = vpop.f32.mrf.mxu0
    %v7866 = vadd.f32 %v7727, %v7865
    %v7867 = vand.u32 %v7643, 4294901760
    %7868 = vmatmul.f32.gmra.mxu0 %v7867
    %v7869 = vpop.f32.mrf.mxu0
    %v7870 = vadd.f32 %v7735, %v7869
    %v7871 = vand.u32 %v7646, 4294901760
    %7872 = vmatmul.f32.gmra.mxu0 %v7871
    %v7873 = vpop.f32.mrf.mxu0
    %v7874 = vadd.f32 %v7743, %v7873
    %v7875 = vand.u32 %v7649, 4294901760
    %7876 = vmatmul.f32.gmra.mxu0 %v7875
    %v7877 = vpop.f32.mrf.mxu0
    %v7878 = vadd.f32 %v7751, %v7877
    %v7879 = vand.u32 %v7652, 4294901760
    %7880 = vmatmul.f32.gmra.mxu0 %v7879
    %v7881 = vpop.f32.mrf.mxu0
    %v7882 = vadd.f32 %v7759, %v7881
    %v7883 = vand.u32 %v7655, 4294901760
    %7884 = vmatmul.f32.gmra.mxu0 %v7883
    %v7885 = vpop.f32.mrf.mxu0
    %v7886 = vadd.f32 %v7767, %v7885
    %v7887 = vand.u32 %v7658, 4294901760
    %7888 = vmatmul.f32.gmra.mxu0 %v7887
    %v7889 = vpop.f32.mrf.mxu0
    %v7890 = vadd.f32 %v7775, %v7889
    %v7891 = vand.u32 %v7661, 4294901760
    %7892 = vmatmul.f32.gmra.mxu0 %v7891
    %v7893 = vpop.f32.mrf.mxu0
    %v7894 = vadd.f32 %v7783, %v7893
    %v7895 = vand.u32 %v7664, 4294901760
    %7896 = vmatmul.f32.gmra.mxu0 %v7895
    %v7897 = vpop.f32.mrf.mxu0
    %v7898 = vadd.f32 %v7791, %v7897
    %v7899 = vand.u32 %v7667, 4294901760
    %7900 = vmatmul.f32.gmra.mxu0 %v7899
    %v7901 = vpop.f32.mrf.mxu0
    %v7902 = vadd.f32 %v7799, %v7901
    %v7903 = vand.u32 %v7670, 4294901760
    %7904 = vmatmul.f32.gmra.mxu0 %v7903
    %v7905 = vpop.f32.mrf.mxu0
    %v7906 = vadd.f32 %v7807, %v7905
    %v7907 = vand.u32 %v7673, 4294901760
    %7908 = vmatmul.f32.gmra.mxu0 %v7907
    %v7909 = vpop.f32.mrf.mxu0
    %v7910 = vadd.f32 %v7815, %v7909
    %v7911 = vand.u32 %v7676, 4294901760
    %7912 = vmatmul.f32.gmra.mxu0 %v7911
    %v7913 = vpop.f32.mrf.mxu0
    %v7914 = vadd.f32 %v7823, %v7913
    %7915 = vdwg.mxu0
    %7916 = vmatpush.msra.mxu0 0.0
    %7917 = vmatpush.msra.mxu0 0.0
    %7918 = vmatpush.msra.mxu0 0.0
    %7919 = vmatpush.msra.mxu0 0.0
    %7920 = vmatpush.msra.mxu0 0.0
    %7921 = vmatpush.msra.mxu0 0.0
    %7922 = vmatpush.msra.mxu0 0.0
    %7923 = vmatpush.msra.mxu0 0.0
    %7924 = vmatpush.msra.mxu0 0.0
    %7925 = vmatpush.msra.mxu0 0.0
    %7926 = vmatpush.msra.mxu0 0.0
    %7927 = vmatpush.msra.mxu0 0.0
    %7928 = vmatpush.msra.mxu0 0.0
    %7929 = vmatpush.msra.mxu0 0.0
    %v7930 = vand.u32 %v3046, 4294901760
    %v7931 = vsub.f32 %v3046, %v7930
    %7932 = vmatpush.msra.mxu0 %v7931
    %v7933 = vand.u32 %v3044, 4294901760
    %v7934 = vsub.f32 %v3044, %v7933
    %7935 = vmatpush.msra.mxu0 %v7934
    %v7936 = vand.u32 %v7631, 4294901760
    %v7937 = vsub.f32 %v7631, %v7936
    %7938 = vmatmul.f32.gmra.mxu0 %v7937
    %v7939 = vpop.f32.mrf.mxu0
    %v7940 = vadd.f32 %v7854, %v7939
    %v7941 = vand.u32 %v7634, 4294901760
    %v7942 = vsub.f32 %v7634, %v7941
    %7943 = vmatmul.f32.gmra.mxu0 %v7942
    %v7944 = vpop.f32.mrf.mxu0
    %v7945 = vadd.f32 %v7858, %v7944
    %v7946 = vand.u32 %v7637, 4294901760
    %v7947 = vsub.f32 %v7637, %v7946
    %7948 = vmatmul.f32.gmra.mxu0 %v7947
    %v7949 = vpop.f32.mrf.mxu0
    %v7950 = vadd.f32 %v7862, %v7949
    %v7951 = vand.u32 %v7640, 4294901760
    %v7952 = vsub.f32 %v7640, %v7951
    %7953 = vmatmul.f32.gmra.mxu0 %v7952
    %v7954 = vpop.f32.mrf.mxu0
    %v7955 = vadd.f32 %v7866, %v7954
    %v7956 = vand.u32 %v7643, 4294901760
    %v7957 = vsub.f32 %v7643, %v7956
    %7958 = vmatmul.f32.gmra.mxu0 %v7957
    %v7959 = vpop.f32.mrf.mxu0
    %v7960 = vadd.f32 %v7870, %v7959
    %v7961 = vand.u32 %v7646, 4294901760
    %v7962 = vsub.f32 %v7646, %v7961
    %7963 = vmatmul.f32.gmra.mxu0 %v7962
    %v7964 = vpop.f32.mrf.mxu0
    %v7965 = vadd.f32 %v7874, %v7964
    %v7966 = vand.u32 %v7649, 4294901760
    %v7967 = vsub.f32 %v7649, %v7966
    %7968 = vmatmul.f32.gmra.mxu0 %v7967
    %v7969 = vpop.f32.mrf.mxu0
    %v7970 = vadd.f32 %v7878, %v7969
    %v7971 = vand.u32 %v7652, 4294901760
    %v7972 = vsub.f32 %v7652, %v7971
    %7973 = vmatmul.f32.gmra.mxu0 %v7972
    %v7974 = vpop.f32.mrf.mxu0
    %v7975 = vadd.f32 %v7882, %v7974
    %v7976 = vand.u32 %v7655, 4294901760
    %v7977 = vsub.f32 %v7655, %v7976
    %7978 = vmatmul.f32.gmra.mxu0 %v7977
    %v7979 = vpop.f32.mrf.mxu0
    %v7980 = vadd.f32 %v7886, %v7979
    %v7981 = vand.u32 %v7658, 4294901760
    %v7982 = vsub.f32 %v7658, %v7981
    %7983 = vmatmul.f32.gmra.mxu0 %v7982
    %v7984 = vpop.f32.mrf.mxu0
    %v7985 = vadd.f32 %v7890, %v7984
    %v7986 = vand.u32 %v7661, 4294901760
    %v7987 = vsub.f32 %v7661, %v7986
    %7988 = vmatmul.f32.gmra.mxu0 %v7987
    %v7989 = vpop.f32.mrf.mxu0
    %v7990 = vadd.f32 %v7894, %v7989
    %v7991 = vand.u32 %v7664, 4294901760
    %v7992 = vsub.f32 %v7664, %v7991
    %7993 = vmatmul.f32.gmra.mxu0 %v7992
    %v7994 = vpop.f32.mrf.mxu0
    %v7995 = vadd.f32 %v7898, %v7994
    %v7996 = vand.u32 %v7667, 4294901760
    %v7997 = vsub.f32 %v7667, %v7996
    %7998 = vmatmul.f32.gmra.mxu0 %v7997
    %v7999 = vpop.f32.mrf.mxu0
    %v8000 = vadd.f32 %v7902, %v7999
    %v8001 = vand.u32 %v7670, 4294901760
    %v8002 = vsub.f32 %v7670, %v8001
    %8003 = vmatmul.f32.gmra.mxu0 %v8002
    %v8004 = vpop.f32.mrf.mxu0
    %v8005 = vadd.f32 %v7906, %v8004
    %v8006 = vand.u32 %v7673, 4294901760
    %v8007 = vsub.f32 %v7673, %v8006
    %8008 = vmatmul.f32.gmra.mxu0 %v8007
    %v8009 = vpop.f32.mrf.mxu0
    %v8010 = vadd.f32 %v7910, %v8009
    %v8011 = vand.u32 %v7676, 4294901760
    %v8012 = vsub.f32 %v7676, %v8011
    %8013 = vmatmul.f32.gmra.mxu0 %v8012
    %v8014 = vpop.f32.mrf.mxu0
    %v8015 = vadd.f32 %v7914, %v8014
    %8016 = vdwg.mxu0
    %8017 = vmatpush.msra.mxu0 0.0
    %8018 = vmatpush.msra.mxu0 0.0
    %8019 = vmatpush.msra.mxu0 0.0
    %8020 = vmatpush.msra.mxu0 0.0
    %8021 = vmatpush.msra.mxu0 0.0
    %8022 = vmatpush.msra.mxu0 0.0
    %8023 = vmatpush.msra.mxu0 0.0
    %8024 = vmatpush.msra.mxu0 0.0
    %8025 = vmatpush.msra.mxu0 0.0
    %8026 = vmatpush.msra.mxu0 0.0
    %8027 = vmatpush.msra.mxu0 0.0
    %8028 = vmatpush.msra.mxu0 0.0
    %8029 = vmatpush.msra.mxu0 0.0
    %8030 = vmatpush.msra.mxu0 0.0
    %v8031 = vand.u32 %v3046, 4294901760
    %8032 = vmatpush.msra.mxu0 %v8031
    %v8033 = vand.u32 %v3044, 4294901760
    %8034 = vmatpush.msra.mxu0 %v8033
    %v8035 = vand.u32 %v7631, 4294901760
    %v8036 = vsub.f32 %v7631, %v8035
    %v8037 = vand.u32 %v8036, 4294901760
    %8038 = vmatmul.f32.gmra.mxu0 %v8037
    %v8039 = vpop.f32.mrf.mxu0
    %v8040 = vadd.f32 %v7940, %v8039
    %v8041 = vand.u32 %v7634, 4294901760
    %v8042 = vsub.f32 %v7634, %v8041
    %v8043 = vand.u32 %v8042, 4294901760
    %8044 = vmatmul.f32.gmra.mxu0 %v8043
    %v8045 = vpop.f32.mrf.mxu0
    %v8046 = vadd.f32 %v7945, %v8045
    %v8047 = vand.u32 %v7637, 4294901760
    %v8048 = vsub.f32 %v7637, %v8047
    %v8049 = vand.u32 %v8048, 4294901760
    %8050 = vmatmul.f32.gmra.mxu0 %v8049
    %v8051 = vpop.f32.mrf.mxu0
    %v8052 = vadd.f32 %v7950, %v8051
    %v8053 = vand.u32 %v7640, 4294901760
    %v8054 = vsub.f32 %v7640, %v8053
    %v8055 = vand.u32 %v8054, 4294901760
    %8056 = vmatmul.f32.gmra.mxu0 %v8055
    %v8057 = vpop.f32.mrf.mxu0
    %v8058 = vadd.f32 %v7955, %v8057
    %v8059 = vand.u32 %v7643, 4294901760
    %v8060 = vsub.f32 %v7643, %v8059
    %v8061 = vand.u32 %v8060, 4294901760
    %8062 = vmatmul.f32.gmra.mxu0 %v8061
    %v8063 = vpop.f32.mrf.mxu0
    %v8064 = vadd.f32 %v7960, %v8063
    %v8065 = vand.u32 %v7646, 4294901760
    %v8066 = vsub.f32 %v7646, %v8065
    %v8067 = vand.u32 %v8066, 4294901760
    %8068 = vmatmul.f32.gmra.mxu0 %v8067
    %v8069 = vpop.f32.mrf.mxu0
    %v8070 = vadd.f32 %v7965, %v8069
    %v8071 = vand.u32 %v7649, 4294901760
    %v8072 = vsub.f32 %v7649, %v8071
    %v8073 = vand.u32 %v8072, 4294901760
    %8074 = vmatmul.f32.gmra.mxu0 %v8073
    %v8075 = vpop.f32.mrf.mxu0
    %v8076 = vadd.f32 %v7970, %v8075
    %v8077 = vand.u32 %v7652, 4294901760
    %v8078 = vsub.f32 %v7652, %v8077
    %v8079 = vand.u32 %v8078, 4294901760
    %8080 = vmatmul.f32.gmra.mxu0 %v8079
    %v8081 = vpop.f32.mrf.mxu0
    %v8082 = vadd.f32 %v7975, %v8081
    %v8083 = vand.u32 %v7655, 4294901760
    %v8084 = vsub.f32 %v7655, %v8083
    %v8085 = vand.u32 %v8084, 4294901760
    %8086 = vmatmul.f32.gmra.mxu0 %v8085
    %v8087 = vpop.f32.mrf.mxu0
    %v8088 = vadd.f32 %v7980, %v8087
    %v8089 = vand.u32 %v7658, 4294901760
    %v8090 = vsub.f32 %v7658, %v8089
    %v8091 = vand.u32 %v8090, 4294901760
    %8092 = vmatmul.f32.gmra.mxu0 %v8091
    %v8093 = vpop.f32.mrf.mxu0
    %v8094 = vadd.f32 %v7985, %v8093
    %v8095 = vand.u32 %v7661, 4294901760
    %v8096 = vsub.f32 %v7661, %v8095
    %v8097 = vand.u32 %v8096, 4294901760
    %8098 = vmatmul.f32.gmra.mxu0 %v8097
    %v8099 = vpop.f32.mrf.mxu0
    %v8100 = vadd.f32 %v7990, %v8099
    %v8101 = vand.u32 %v7664, 4294901760
    %v8102 = vsub.f32 %v7664, %v8101
    %v8103 = vand.u32 %v8102, 4294901760
    %8104 = vmatmul.f32.gmra.mxu0 %v8103
    %v8105 = vpop.f32.mrf.mxu0
    %v8106 = vadd.f32 %v7995, %v8105
    %v8107 = vand.u32 %v7667, 4294901760
    %v8108 = vsub.f32 %v7667, %v8107
    %v8109 = vand.u32 %v8108, 4294901760
    %8110 = vmatmul.f32.gmra.mxu0 %v8109
    %v8111 = vpop.f32.mrf.mxu0
    %v8112 = vadd.f32 %v8000, %v8111
    %v8113 = vand.u32 %v7670, 4294901760
    %v8114 = vsub.f32 %v7670, %v8113
    %v8115 = vand.u32 %v8114, 4294901760
    %8116 = vmatmul.f32.gmra.mxu0 %v8115
    %v8117 = vpop.f32.mrf.mxu0
    %v8118 = vadd.f32 %v8005, %v8117
    %v8119 = vand.u32 %v7673, 4294901760
    %v8120 = vsub.f32 %v7673, %v8119
    %v8121 = vand.u32 %v8120, 4294901760
    %8122 = vmatmul.f32.gmra.mxu0 %v8121
    %v8123 = vpop.f32.mrf.mxu0
    %v8124 = vadd.f32 %v8010, %v8123
    %v8125 = vand.u32 %v7676, 4294901760
    %v8126 = vsub.f32 %v7676, %v8125
    %v8127 = vand.u32 %v8126, 4294901760
    %8128 = vmatmul.f32.gmra.mxu0 %v8127
    %v8129 = vpop.f32.mrf.mxu0
    %v8130 = vadd.f32 %v8015, %v8129
    %8131 = vdwg.mxu0
    %8132 = vmatpush.msra.mxu0 0.0
    %8133 = vmatpush.msra.mxu0 0.0
    %8134 = vmatpush.msra.mxu0 0.0
    %8135 = vmatpush.msra.mxu0 0.0
    %8136 = vmatpush.msra.mxu0 0.0
    %8137 = vmatpush.msra.mxu0 0.0
    %8138 = vmatpush.msra.mxu0 0.0
    %8139 = vmatpush.msra.mxu0 0.0
    %8140 = vmatpush.msra.mxu0 0.0
    %8141 = vmatpush.msra.mxu0 0.0
    %8142 = vmatpush.msra.mxu0 0.0
    %8143 = vmatpush.msra.mxu0 0.0
    %8144 = vmatpush.msra.mxu0 0.0
    %8145 = vmatpush.msra.mxu0 0.0
    %v8146 = vand.u32 %v3046, 4294901760
    %v8147 = vsub.f32 %v3046, %v8146
    %v8148 = vand.u32 %v8147, 4294901760
    %8149 = vmatpush.msra.mxu0 %v8148
    %v8150 = vand.u32 %v3044, 4294901760
    %v8151 = vsub.f32 %v3044, %v8150
    %v8152 = vand.u32 %v8151, 4294901760
    %8153 = vmatpush.msra.mxu0 %v8152
    %v8154 = vand.u32 %v7631, 4294901760
    %8155 = vmatmul.f32.gmra.mxu0 %v8154
    %v8156 = vpop.f32.mrf.mxu0
    %v8157 = vadd.f32 %v8040, %v8156
    %v8158 = vand.u32 %v7634, 4294901760
    %8159 = vmatmul.f32.gmra.mxu0 %v8158
    %v8160 = vpop.f32.mrf.mxu0
    %v8161 = vadd.f32 %v8046, %v8160
    %v8162 = vand.u32 %v7637, 4294901760
    %8163 = vmatmul.f32.gmra.mxu0 %v8162
    %v8164 = vpop.f32.mrf.mxu0
    %v8165 = vadd.f32 %v8052, %v8164
    %v8166 = vand.u32 %v7640, 4294901760
    %8167 = vmatmul.f32.gmra.mxu0 %v8166
    %v8168 = vpop.f32.mrf.mxu0
    %v8169 = vadd.f32 %v8058, %v8168
    %v8170 = vand.u32 %v7643, 4294901760
    %8171 = vmatmul.f32.gmra.mxu0 %v8170
    %v8172 = vpop.f32.mrf.mxu0
    %v8173 = vadd.f32 %v8064, %v8172
    %v8174 = vand.u32 %v7646, 4294901760
    %8175 = vmatmul.f32.gmra.mxu0 %v8174
    %v8176 = vpop.f32.mrf.mxu0
    %v8177 = vadd.f32 %v8070, %v8176
    %v8178 = vand.u32 %v7649, 4294901760
    %8179 = vmatmul.f32.gmra.mxu0 %v8178
    %v8180 = vpop.f32.mrf.mxu0
    %v8181 = vadd.f32 %v8076, %v8180
    %v8182 = vand.u32 %v7652, 4294901760
    %8183 = vmatmul.f32.gmra.mxu0 %v8182
    %v8184 = vpop.f32.mrf.mxu0
    %v8185 = vadd.f32 %v8082, %v8184
    %v8186 = vand.u32 %v7655, 4294901760
    %8187 = vmatmul.f32.gmra.mxu0 %v8186
    %v8188 = vpop.f32.mrf.mxu0
    %v8189 = vadd.f32 %v8088, %v8188
    %v8190 = vand.u32 %v7658, 4294901760
    %8191 = vmatmul.f32.gmra.mxu0 %v8190
    %v8192 = vpop.f32.mrf.mxu0
    %v8193 = vadd.f32 %v8094, %v8192
    %v8194 = vand.u32 %v7661, 4294901760
    %8195 = vmatmul.f32.gmra.mxu0 %v8194
    %v8196 = vpop.f32.mrf.mxu0
    %v8197 = vadd.f32 %v8100, %v8196
    %v8198 = vand.u32 %v7664, 4294901760
    %8199 = vmatmul.f32.gmra.mxu0 %v8198
    %v8200 = vpop.f32.mrf.mxu0
    %v8201 = vadd.f32 %v8106, %v8200
    %v8202 = vand.u32 %v7667, 4294901760
    %8203 = vmatmul.f32.gmra.mxu0 %v8202
    %v8204 = vpop.f32.mrf.mxu0
    %v8205 = vadd.f32 %v8112, %v8204
    %v8206 = vand.u32 %v7670, 4294901760
    %8207 = vmatmul.f32.gmra.mxu0 %v8206
    %v8208 = vpop.f32.mrf.mxu0
    %v8209 = vadd.f32 %v8118, %v8208
    %v8210 = vand.u32 %v7673, 4294901760
    %8211 = vmatmul.f32.gmra.mxu0 %v8210
    %v8212 = vpop.f32.mrf.mxu0
    %v8213 = vadd.f32 %v8124, %v8212
    %v8214 = vand.u32 %v7676, 4294901760
    %8215 = vmatmul.f32.gmra.mxu0 %v8214
    %v8216 = vpop.f32.mrf.mxu0
    %v8217 = vadd.f32 %v8130, %v8216
    %8218 = vdwg.mxu0
    %8219 = vmatpush.msra.mxu0 0.0
    %8220 = vmatpush.msra.mxu0 0.0
    %8221 = vmatpush.msra.mxu0 0.0
    %8222 = vmatpush.msra.mxu0 0.0
    %8223 = vmatpush.msra.mxu0 0.0
    %8224 = vmatpush.msra.mxu0 0.0
    %8225 = vmatpush.msra.mxu0 0.0
    %8226 = vmatpush.msra.mxu0 0.0
    %8227 = vmatpush.msra.mxu0 0.0
    %8228 = vmatpush.msra.mxu0 0.0
    %8229 = vmatpush.msra.mxu0 0.0
    %8230 = vmatpush.msra.mxu0 0.0
    %8231 = vmatpush.msra.mxu0 0.0
    %8232 = vmatpush.msra.mxu0 0.0
    %v8233 = vand.u32 %v3046, 4294901760
    %8234 = vmatpush.msra.mxu0 %v8233
    %v8235 = vand.u32 %v3044, 4294901760
    %8236 = vmatpush.msra.mxu0 %v8235
    %v8237 = vand.u32 %v7631, 4294901760
    %8238 = vmatmul.f32.gmra.mxu0 %v8237
    %v8239 = vpop.f32.mrf.mxu0
    %v8240 = vadd.f32 %v8157, %v8239
    %v8241 = vand.u32 %v7634, 4294901760
    %8242 = vmatmul.f32.gmra.mxu0 %v8241
    %v8243 = vpop.f32.mrf.mxu0
    %v8244 = vadd.f32 %v8161, %v8243
    %v8245 = vand.u32 %v7637, 4294901760
    %8246 = vmatmul.f32.gmra.mxu0 %v8245
    %v8247 = vpop.f32.mrf.mxu0
    %v8248 = vadd.f32 %v8165, %v8247
    %v8249 = vand.u32 %v7640, 4294901760
    %8250 = vmatmul.f32.gmra.mxu0 %v8249
    %v8251 = vpop.f32.mrf.mxu0
    %v8252 = vadd.f32 %v8169, %v8251
    %v8253 = vand.u32 %v7643, 4294901760
    %8254 = vmatmul.f32.gmra.mxu0 %v8253
    %v8255 = vpop.f32.mrf.mxu0
    %v8256 = vadd.f32 %v8173, %v8255
    %v8257 = vand.u32 %v7646, 4294901760
    %8258 = vmatmul.f32.gmra.mxu0 %v8257
    %v8259 = vpop.f32.mrf.mxu0
    %v8260 = vadd.f32 %v8177, %v8259
    %v8261 = vand.u32 %v7649, 4294901760
    %8262 = vmatmul.f32.gmra.mxu0 %v8261
    %v8263 = vpop.f32.mrf.mxu0
    %v8264 = vadd.f32 %v8181, %v8263
    %v8265 = vand.u32 %v7652, 4294901760
    %8266 = vmatmul.f32.gmra.mxu0 %v8265
    %v8267 = vpop.f32.mrf.mxu0
    %v8268 = vadd.f32 %v8185, %v8267
    %v8269 = vand.u32 %v7655, 4294901760
    %8270 = vmatmul.f32.gmra.mxu0 %v8269
    %v8271 = vpop.f32.mrf.mxu0
    %v8272 = vadd.f32 %v8189, %v8271
    %v8273 = vand.u32 %v7658, 4294901760
    %8274 = vmatmul.f32.gmra.mxu0 %v8273
    %v8275 = vpop.f32.mrf.mxu0
    %v8276 = vadd.f32 %v8193, %v8275
    %v8277 = vand.u32 %v7661, 4294901760
    %8278 = vmatmul.f32.gmra.mxu0 %v8277
    %v8279 = vpop.f32.mrf.mxu0
    %v8280 = vadd.f32 %v8197, %v8279
    %v8281 = vand.u32 %v7664, 4294901760
    %8282 = vmatmul.f32.gmra.mxu0 %v8281
    %v8283 = vpop.f32.mrf.mxu0
    %v8284 = vadd.f32 %v8201, %v8283
    %v8285 = vand.u32 %v7667, 4294901760
    %8286 = vmatmul.f32.gmra.mxu0 %v8285
    %v8287 = vpop.f32.mrf.mxu0
    %v8288 = vadd.f32 %v8205, %v8287
    %v8289 = vand.u32 %v7670, 4294901760
    %8290 = vmatmul.f32.gmra.mxu0 %v8289
    %v8291 = vpop.f32.mrf.mxu0
    %v8292 = vadd.f32 %v8209, %v8291
    %v8293 = vand.u32 %v7673, 4294901760
    %8294 = vmatmul.f32.gmra.mxu0 %v8293
    %v8295 = vpop.f32.mrf.mxu0
    %v8296 = vadd.f32 %v8213, %v8295
    %v8297 = vand.u32 %v7676, 4294901760
    %8298 = vmatmul.f32.gmra.mxu0 %v8297
    %v8299 = vpop.f32.mrf.mxu0
    %v8300 = vadd.f32 %v8217, %v8299
    %8301 = vdwg.mxu0
    %v8302 = vadd.f32 %v7568, %v8240
    %v8303 = vadd.f32 %v7572, %v8244
    %v8304 = vadd.f32 %v7576, %v8248
    %v8305 = vadd.f32 %v7580, %v8252
    %v8306 = vadd.f32 %v7584, %v8256
    %v8307 = vadd.f32 %v7588, %v8260
    %v8308 = vadd.f32 %v7592, %v8264
    %v8309 = vadd.f32 %v7596, %v8268
    %v8310 = vadd.f32 %v7600, %v8272
    %v8311 = vadd.f32 %v7604, %v8276
    %v8312 = vadd.f32 %v7608, %v8280
    %v8313 = vadd.f32 %v7612, %v8284
    %v8314 = vadd.f32 %v7616, %v8288
    %v8315 = vadd.f32 %v7620, %v8292
    %v8316 = vadd.f32 %v7624, %v8296
    %v8317 = vadd.f32 %v7628, %v8300
    %v8318 = vadd.f32 %v8302, %v3739
    %v8319 = vadd.f32 %v8303, %v3743
    %v8320 = vadd.f32 %v8304, %v3747
    %v8321 = vadd.f32 %v8305, %v3751
    %v8322 = vadd.f32 %v8306, %v3755
    %v8323 = vadd.f32 %v8307, %v3759
    %v8324 = vadd.f32 %v8308, %v3763
    %v8325 = vadd.f32 %v8309, %v3767
    %v8326 = vadd.f32 %v8310, %v3771
    %v8327 = vadd.f32 %v8311, %v3775
    %v8328 = vadd.f32 %v8312, %v3779
    %v8329 = vadd.f32 %v8313, %v3783
    %v8330 = vadd.f32 %v8314, %v3787
    %v8331 = vadd.f32 %v8315, %v3791
    %v8332 = vadd.f32 %v8316, %v3795
    %v8333 = vadd.f32 %v8317, %v3799
    %v8334 = vmax.f32 %v8318, 0.0
    %v8335 = vmax.f32 %v8319, 0.0
    %v8336 = vmax.f32 %v8320, 0.0
    %v8337 = vmax.f32 %v8321, 0.0
    %v8338 = vmax.f32 %v8322, 0.0
    %v8339 = vmax.f32 %v8323, 0.0
    %v8340 = vmax.f32 %v8324, 0.0
    %v8341 = vmax.f32 %v8325, 0.0
    %v8342 = vmax.f32 %v8326, 0.0
    %v8343 = vmax.f32 %v8327, 0.0
    %v8344 = vmax.f32 %v8328, 0.0
    %v8345 = vmax.f32 %v8329, 0.0
    %v8346 = vmax.f32 %v8330, 0.0
    %v8347 = vmax.f32 %v8331, 0.0
    %v8348 = vmax.f32 %v8332, 0.0
    %v8349 = vmax.f32 %v8333, 0.0
    %v8351 = vsel %vm2368, %v8334, 0
    %v8354 = vsel %vm2368, %v8335, 0
    %v8357 = vsel %vm2368, %v8336, 0
    %v8360 = vsel %vm2368, %v8337, 0
    %v8363 = vsel %vm2368, %v8338, 0
    %v8366 = vsel %vm2368, %v8339, 0
    %v8369 = vsel %vm2368, %v8340, 0
    %v8372 = vsel %vm2368, %v8341, 0
    %v8375 = vsel %vm2368, %v8342, 0
    %v8378 = vsel %vm2368, %v8343, 0
    %v8381 = vsel %vm2368, %v8344, 0
    %v8384 = vsel %vm2368, %v8345, 0
    %v8387 = vsel %vm2368, %v8346, 0
    %v8390 = vsel %vm2368, %v8347, 0
    %v8393 = vsel %vm2368, %v8348, 0
    %v8396 = vsel %vm2368, %v8349, 0
    %8398 = vmatpush.msra.mxu0 0.0
    %8399 = vmatpush.msra.mxu0 0.0
    %8400 = vmatpush.msra.mxu0 0.0
    %8401 = vmatpush.msra.mxu0 0.0
    %8402 = vmatpush.msra.mxu0 0.0
    %8403 = vmatpush.msra.mxu0 0.0
    %8404 = vmatpush.msra.mxu0 0.0
    %8405 = vmatpush.msra.mxu0 0.0
    %8406 = vmatpush.msra.mxu0 0.0
    %8407 = vmatpush.msra.mxu0 0.0
    %8408 = vmatpush.msra.mxu0 0.0
    %8409 = vmatpush.msra.mxu0 0.0
    %8410 = vmatpush.msra.mxu0 0.0
    %8411 = vmatpush.msra.mxu0 0.0
    %v8412 = vand.u32 %v3836, 4294901760
    %8413 = vmatpush.msra.mxu0 %v8412
    %v8414 = vand.u32 %v3834, 4294901760
    %8415 = vmatpush.msra.mxu0 %v8414
    %v8416 = vand.u32 %v8351, 4294901760
    %v8417 = vsub.f32 %v8351, %v8416
    %v8418 = vand.u32 %v8417, 4294901760
    %v8419 = vsub.f32 %v8417, %v8418
    %v8420 = vand.u32 %v8419, 4294901760
    %8421 = vmatmul.f32.gmra.mxu0 %v8420
    %v8422 = vpop.f32.mrf.mxu0
    %v8423 = vadd.f32 0.0, %v8422
    %v8424 = vand.u32 %v8354, 4294901760
    %v8425 = vsub.f32 %v8354, %v8424
    %v8426 = vand.u32 %v8425, 4294901760
    %v8427 = vsub.f32 %v8425, %v8426
    %v8428 = vand.u32 %v8427, 4294901760
    %8429 = vmatmul.f32.gmra.mxu0 %v8428
    %v8430 = vpop.f32.mrf.mxu0
    %v8431 = vadd.f32 0.0, %v8430
    %v8432 = vand.u32 %v8357, 4294901760
    %v8433 = vsub.f32 %v8357, %v8432
    %v8434 = vand.u32 %v8433, 4294901760
    %v8435 = vsub.f32 %v8433, %v8434
    %v8436 = vand.u32 %v8435, 4294901760
    %8437 = vmatmul.f32.gmra.mxu0 %v8436
    %v8438 = vpop.f32.mrf.mxu0
    %v8439 = vadd.f32 0.0, %v8438
    %v8440 = vand.u32 %v8360, 4294901760
    %v8441 = vsub.f32 %v8360, %v8440
    %v8442 = vand.u32 %v8441, 4294901760
    %v8443 = vsub.f32 %v8441, %v8442
    %v8444 = vand.u32 %v8443, 4294901760
    %8445 = vmatmul.f32.gmra.mxu0 %v8444
    %v8446 = vpop.f32.mrf.mxu0
    %v8447 = vadd.f32 0.0, %v8446
    %v8448 = vand.u32 %v8363, 4294901760
    %v8449 = vsub.f32 %v8363, %v8448
    %v8450 = vand.u32 %v8449, 4294901760
    %v8451 = vsub.f32 %v8449, %v8450
    %v8452 = vand.u32 %v8451, 4294901760
    %8453 = vmatmul.f32.gmra.mxu0 %v8452
    %v8454 = vpop.f32.mrf.mxu0
    %v8455 = vadd.f32 0.0, %v8454
    %v8456 = vand.u32 %v8366, 4294901760
    %v8457 = vsub.f32 %v8366, %v8456
    %v8458 = vand.u32 %v8457, 4294901760
    %v8459 = vsub.f32 %v8457, %v8458
    %v8460 = vand.u32 %v8459, 4294901760
    %8461 = vmatmul.f32.gmra.mxu0 %v8460
    %v8462 = vpop.f32.mrf.mxu0
    %v8463 = vadd.f32 0.0, %v8462
    %v8464 = vand.u32 %v8369, 4294901760
    %v8465 = vsub.f32 %v8369, %v8464
    %v8466 = vand.u32 %v8465, 4294901760
    %v8467 = vsub.f32 %v8465, %v8466
    %v8468 = vand.u32 %v8467, 4294901760
    %8469 = vmatmul.f32.gmra.mxu0 %v8468
    %v8470 = vpop.f32.mrf.mxu0
    %v8471 = vadd.f32 0.0, %v8470
    %v8472 = vand.u32 %v8372, 4294901760
    %v8473 = vsub.f32 %v8372, %v8472
    %v8474 = vand.u32 %v8473, 4294901760
    %v8475 = vsub.f32 %v8473, %v8474
    %v8476 = vand.u32 %v8475, 4294901760
    %8477 = vmatmul.f32.gmra.mxu0 %v8476
    %v8478 = vpop.f32.mrf.mxu0
    %v8479 = vadd.f32 0.0, %v8478
    %v8480 = vand.u32 %v8375, 4294901760
    %v8481 = vsub.f32 %v8375, %v8480
    %v8482 = vand.u32 %v8481, 4294901760
    %v8483 = vsub.f32 %v8481, %v8482
    %v8484 = vand.u32 %v8483, 4294901760
    %8485 = vmatmul.f32.gmra.mxu0 %v8484
    %v8486 = vpop.f32.mrf.mxu0
    %v8487 = vadd.f32 0.0, %v8486
    %v8488 = vand.u32 %v8378, 4294901760
    %v8489 = vsub.f32 %v8378, %v8488
    %v8490 = vand.u32 %v8489, 4294901760
    %v8491 = vsub.f32 %v8489, %v8490
    %v8492 = vand.u32 %v8491, 4294901760
    %8493 = vmatmul.f32.gmra.mxu0 %v8492
    %v8494 = vpop.f32.mrf.mxu0
    %v8495 = vadd.f32 0.0, %v8494
    %v8496 = vand.u32 %v8381, 4294901760
    %v8497 = vsub.f32 %v8381, %v8496
    %v8498 = vand.u32 %v8497, 4294901760
    %v8499 = vsub.f32 %v8497, %v8498
    %v8500 = vand.u32 %v8499, 4294901760
    %8501 = vmatmul.f32.gmra.mxu0 %v8500
    %v8502 = vpop.f32.mrf.mxu0
    %v8503 = vadd.f32 0.0, %v8502
    %v8504 = vand.u32 %v8384, 4294901760
    %v8505 = vsub.f32 %v8384, %v8504
    %v8506 = vand.u32 %v8505, 4294901760
    %v8507 = vsub.f32 %v8505, %v8506
    %v8508 = vand.u32 %v8507, 4294901760
    %8509 = vmatmul.f32.gmra.mxu0 %v8508
    %v8510 = vpop.f32.mrf.mxu0
    %v8511 = vadd.f32 0.0, %v8510
    %v8512 = vand.u32 %v8387, 4294901760
    %v8513 = vsub.f32 %v8387, %v8512
    %v8514 = vand.u32 %v8513, 4294901760
    %v8515 = vsub.f32 %v8513, %v8514
    %v8516 = vand.u32 %v8515, 4294901760
    %8517 = vmatmul.f32.gmra.mxu0 %v8516
    %v8518 = vpop.f32.mrf.mxu0
    %v8519 = vadd.f32 0.0, %v8518
    %v8520 = vand.u32 %v8390, 4294901760
    %v8521 = vsub.f32 %v8390, %v8520
    %v8522 = vand.u32 %v8521, 4294901760
    %v8523 = vsub.f32 %v8521, %v8522
    %v8524 = vand.u32 %v8523, 4294901760
    %8525 = vmatmul.f32.gmra.mxu0 %v8524
    %v8526 = vpop.f32.mrf.mxu0
    %v8527 = vadd.f32 0.0, %v8526
    %v8528 = vand.u32 %v8393, 4294901760
    %v8529 = vsub.f32 %v8393, %v8528
    %v8530 = vand.u32 %v8529, 4294901760
    %v8531 = vsub.f32 %v8529, %v8530
    %v8532 = vand.u32 %v8531, 4294901760
    %8533 = vmatmul.f32.gmra.mxu0 %v8532
    %v8534 = vpop.f32.mrf.mxu0
    %v8535 = vadd.f32 0.0, %v8534
    %v8536 = vand.u32 %v8396, 4294901760
    %v8537 = vsub.f32 %v8396, %v8536
    %v8538 = vand.u32 %v8537, 4294901760
    %v8539 = vsub.f32 %v8537, %v8538
    %v8540 = vand.u32 %v8539, 4294901760
    %8541 = vmatmul.f32.gmra.mxu0 %v8540
    %v8542 = vpop.f32.mrf.mxu0
    %v8543 = vadd.f32 0.0, %v8542
    %8544 = vdwg.mxu0
    %8545 = vmatpush.msra.mxu0 0.0
    %8546 = vmatpush.msra.mxu0 0.0
    %8547 = vmatpush.msra.mxu0 0.0
    %8548 = vmatpush.msra.mxu0 0.0
    %8549 = vmatpush.msra.mxu0 0.0
    %8550 = vmatpush.msra.mxu0 0.0
    %8551 = vmatpush.msra.mxu0 0.0
    %8552 = vmatpush.msra.mxu0 0.0
    %8553 = vmatpush.msra.mxu0 0.0
    %8554 = vmatpush.msra.mxu0 0.0
    %8555 = vmatpush.msra.mxu0 0.0
    %8556 = vmatpush.msra.mxu0 0.0
    %8557 = vmatpush.msra.mxu0 0.0
    %8558 = vmatpush.msra.mxu0 0.0
    %v8559 = vand.u32 %v3836, 4294901760
    %v8560 = vsub.f32 %v3836, %v8559
    %v8561 = vand.u32 %v8560, 4294901760
    %v8562 = vsub.f32 %v8560, %v8561
    %v8563 = vand.u32 %v8562, 4294901760
    %8564 = vmatpush.msra.mxu0 %v8563
    %v8565 = vand.u32 %v3834, 4294901760
    %v8566 = vsub.f32 %v3834, %v8565
    %v8567 = vand.u32 %v8566, 4294901760
    %v8568 = vsub.f32 %v8566, %v8567
    %v8569 = vand.u32 %v8568, 4294901760
    %8570 = vmatpush.msra.mxu0 %v8569
    %v8571 = vand.u32 %v8351, 4294901760
    %8572 = vmatmul.f32.gmra.mxu0 %v8571
    %v8573 = vpop.f32.mrf.mxu0
    %v8574 = vadd.f32 %v8423, %v8573
    %v8575 = vand.u32 %v8354, 4294901760
    %8576 = vmatmul.f32.gmra.mxu0 %v8575
    %v8577 = vpop.f32.mrf.mxu0
    %v8578 = vadd.f32 %v8431, %v8577
    %v8579 = vand.u32 %v8357, 4294901760
    %8580 = vmatmul.f32.gmra.mxu0 %v8579
    %v8581 = vpop.f32.mrf.mxu0
    %v8582 = vadd.f32 %v8439, %v8581
    %v8583 = vand.u32 %v8360, 4294901760
    %8584 = vmatmul.f32.gmra.mxu0 %v8583
    %v8585 = vpop.f32.mrf.mxu0
    %v8586 = vadd.f32 %v8447, %v8585
    %v8587 = vand.u32 %v8363, 4294901760
    %8588 = vmatmul.f32.gmra.mxu0 %v8587
    %v8589 = vpop.f32.mrf.mxu0
    %v8590 = vadd.f32 %v8455, %v8589
    %v8591 = vand.u32 %v8366, 4294901760
    %8592 = vmatmul.f32.gmra.mxu0 %v8591
    %v8593 = vpop.f32.mrf.mxu0
    %v8594 = vadd.f32 %v8463, %v8593
    %v8595 = vand.u32 %v8369, 4294901760
    %8596 = vmatmul.f32.gmra.mxu0 %v8595
    %v8597 = vpop.f32.mrf.mxu0
    %v8598 = vadd.f32 %v8471, %v8597
    %v8599 = vand.u32 %v8372, 4294901760
    %8600 = vmatmul.f32.gmra.mxu0 %v8599
    %v8601 = vpop.f32.mrf.mxu0
    %v8602 = vadd.f32 %v8479, %v8601
    %v8603 = vand.u32 %v8375, 4294901760
    %8604 = vmatmul.f32.gmra.mxu0 %v8603
    %v8605 = vpop.f32.mrf.mxu0
    %v8606 = vadd.f32 %v8487, %v8605
    %v8607 = vand.u32 %v8378, 4294901760
    %8608 = vmatmul.f32.gmra.mxu0 %v8607
    %v8609 = vpop.f32.mrf.mxu0
    %v8610 = vadd.f32 %v8495, %v8609
    %v8611 = vand.u32 %v8381, 4294901760
    %8612 = vmatmul.f32.gmra.mxu0 %v8611
    %v8613 = vpop.f32.mrf.mxu0
    %v8614 = vadd.f32 %v8503, %v8613
    %v8615 = vand.u32 %v8384, 4294901760
    %8616 = vmatmul.f32.gmra.mxu0 %v8615
    %v8617 = vpop.f32.mrf.mxu0
    %v8618 = vadd.f32 %v8511, %v8617
    %v8619 = vand.u32 %v8387, 4294901760
    %8620 = vmatmul.f32.gmra.mxu0 %v8619
    %v8621 = vpop.f32.mrf.mxu0
    %v8622 = vadd.f32 %v8519, %v8621
    %v8623 = vand.u32 %v8390, 4294901760
    %8624 = vmatmul.f32.gmra.mxu0 %v8623
    %v8625 = vpop.f32.mrf.mxu0
    %v8626 = vadd.f32 %v8527, %v8625
    %v8627 = vand.u32 %v8393, 4294901760
    %8628 = vmatmul.f32.gmra.mxu0 %v8627
    %v8629 = vpop.f32.mrf.mxu0
    %v8630 = vadd.f32 %v8535, %v8629
    %v8631 = vand.u32 %v8396, 4294901760
    %8632 = vmatmul.f32.gmra.mxu0 %v8631
    %v8633 = vpop.f32.mrf.mxu0
    %v8634 = vadd.f32 %v8543, %v8633
    %8635 = vdwg.mxu0
    %8636 = vmatpush.msra.mxu0 0.0
    %8637 = vmatpush.msra.mxu0 0.0
    %8638 = vmatpush.msra.mxu0 0.0
    %8639 = vmatpush.msra.mxu0 0.0
    %8640 = vmatpush.msra.mxu0 0.0
    %8641 = vmatpush.msra.mxu0 0.0
    %8642 = vmatpush.msra.mxu0 0.0
    %8643 = vmatpush.msra.mxu0 0.0
    %8644 = vmatpush.msra.mxu0 0.0
    %8645 = vmatpush.msra.mxu0 0.0
    %8646 = vmatpush.msra.mxu0 0.0
    %8647 = vmatpush.msra.mxu0 0.0
    %8648 = vmatpush.msra.mxu0 0.0
    %8649 = vmatpush.msra.mxu0 0.0
    %v8650 = vand.u32 %v3836, 4294901760
    %v8651 = vsub.f32 %v3836, %v8650
    %8652 = vmatpush.msra.mxu0 %v8651
    %v8653 = vand.u32 %v3834, 4294901760
    %v8654 = vsub.f32 %v3834, %v8653
    %8655 = vmatpush.msra.mxu0 %v8654
    %v8656 = vand.u32 %v8351, 4294901760
    %v8657 = vsub.f32 %v8351, %v8656
    %8658 = vmatmul.f32.gmra.mxu0 %v8657
    %v8659 = vpop.f32.mrf.mxu0
    %v8660 = vadd.f32 %v8574, %v8659
    %v8661 = vand.u32 %v8354, 4294901760
    %v8662 = vsub.f32 %v8354, %v8661
    %8663 = vmatmul.f32.gmra.mxu0 %v8662
    %v8664 = vpop.f32.mrf.mxu0
    %v8665 = vadd.f32 %v8578, %v8664
    %v8666 = vand.u32 %v8357, 4294901760
    %v8667 = vsub.f32 %v8357, %v8666
    %8668 = vmatmul.f32.gmra.mxu0 %v8667
    %v8669 = vpop.f32.mrf.mxu0
    %v8670 = vadd.f32 %v8582, %v8669
    %v8671 = vand.u32 %v8360, 4294901760
    %v8672 = vsub.f32 %v8360, %v8671
    %8673 = vmatmul.f32.gmra.mxu0 %v8672
    %v8674 = vpop.f32.mrf.mxu0
    %v8675 = vadd.f32 %v8586, %v8674
    %v8676 = vand.u32 %v8363, 4294901760
    %v8677 = vsub.f32 %v8363, %v8676
    %8678 = vmatmul.f32.gmra.mxu0 %v8677
    %v8679 = vpop.f32.mrf.mxu0
    %v8680 = vadd.f32 %v8590, %v8679
    %v8681 = vand.u32 %v8366, 4294901760
    %v8682 = vsub.f32 %v8366, %v8681
    %8683 = vmatmul.f32.gmra.mxu0 %v8682
    %v8684 = vpop.f32.mrf.mxu0
    %v8685 = vadd.f32 %v8594, %v8684
    %v8686 = vand.u32 %v8369, 4294901760
    %v8687 = vsub.f32 %v8369, %v8686
    %8688 = vmatmul.f32.gmra.mxu0 %v8687
    %v8689 = vpop.f32.mrf.mxu0
    %v8690 = vadd.f32 %v8598, %v8689
    %v8691 = vand.u32 %v8372, 4294901760
    %v8692 = vsub.f32 %v8372, %v8691
    %8693 = vmatmul.f32.gmra.mxu0 %v8692
    %v8694 = vpop.f32.mrf.mxu0
    %v8695 = vadd.f32 %v8602, %v8694
    %v8696 = vand.u32 %v8375, 4294901760
    %v8697 = vsub.f32 %v8375, %v8696
    %8698 = vmatmul.f32.gmra.mxu0 %v8697
    %v8699 = vpop.f32.mrf.mxu0
    %v8700 = vadd.f32 %v8606, %v8699
    %v8701 = vand.u32 %v8378, 4294901760
    %v8702 = vsub.f32 %v8378, %v8701
    %8703 = vmatmul.f32.gmra.mxu0 %v8702
    %v8704 = vpop.f32.mrf.mxu0
    %v8705 = vadd.f32 %v8610, %v8704
    %v8706 = vand.u32 %v8381, 4294901760
    %v8707 = vsub.f32 %v8381, %v8706
    %8708 = vmatmul.f32.gmra.mxu0 %v8707
    %v8709 = vpop.f32.mrf.mxu0
    %v8710 = vadd.f32 %v8614, %v8709
    %v8711 = vand.u32 %v8384, 4294901760
    %v8712 = vsub.f32 %v8384, %v8711
    %8713 = vmatmul.f32.gmra.mxu0 %v8712
    %v8714 = vpop.f32.mrf.mxu0
    %v8715 = vadd.f32 %v8618, %v8714
    %v8716 = vand.u32 %v8387, 4294901760
    %v8717 = vsub.f32 %v8387, %v8716
    %8718 = vmatmul.f32.gmra.mxu0 %v8717
    %v8719 = vpop.f32.mrf.mxu0
    %v8720 = vadd.f32 %v8622, %v8719
    %v8721 = vand.u32 %v8390, 4294901760
    %v8722 = vsub.f32 %v8390, %v8721
    %8723 = vmatmul.f32.gmra.mxu0 %v8722
    %v8724 = vpop.f32.mrf.mxu0
    %v8725 = vadd.f32 %v8626, %v8724
    %v8726 = vand.u32 %v8393, 4294901760
    %v8727 = vsub.f32 %v8393, %v8726
    %8728 = vmatmul.f32.gmra.mxu0 %v8727
    %v8729 = vpop.f32.mrf.mxu0
    %v8730 = vadd.f32 %v8630, %v8729
    %v8731 = vand.u32 %v8396, 4294901760
    %v8732 = vsub.f32 %v8396, %v8731
    %8733 = vmatmul.f32.gmra.mxu0 %v8732
    %v8734 = vpop.f32.mrf.mxu0
    %v8735 = vadd.f32 %v8634, %v8734
    %8736 = vdwg.mxu0
    %8737 = vmatpush.msra.mxu0 0.0
    %8738 = vmatpush.msra.mxu0 0.0
    %8739 = vmatpush.msra.mxu0 0.0
    %8740 = vmatpush.msra.mxu0 0.0
    %8741 = vmatpush.msra.mxu0 0.0
    %8742 = vmatpush.msra.mxu0 0.0
    %8743 = vmatpush.msra.mxu0 0.0
    %8744 = vmatpush.msra.mxu0 0.0
    %8745 = vmatpush.msra.mxu0 0.0
    %8746 = vmatpush.msra.mxu0 0.0
    %8747 = vmatpush.msra.mxu0 0.0
    %8748 = vmatpush.msra.mxu0 0.0
    %8749 = vmatpush.msra.mxu0 0.0
    %8750 = vmatpush.msra.mxu0 0.0
    %v8751 = vand.u32 %v3836, 4294901760
    %8752 = vmatpush.msra.mxu0 %v8751
    %v8753 = vand.u32 %v3834, 4294901760
    %8754 = vmatpush.msra.mxu0 %v8753
    %v8755 = vand.u32 %v8351, 4294901760
    %v8756 = vsub.f32 %v8351, %v8755
    %v8757 = vand.u32 %v8756, 4294901760
    %8758 = vmatmul.f32.gmra.mxu0 %v8757
    %v8759 = vpop.f32.mrf.mxu0
    %v8760 = vadd.f32 %v8660, %v8759
    %v8761 = vand.u32 %v8354, 4294901760
    %v8762 = vsub.f32 %v8354, %v8761
    %v8763 = vand.u32 %v8762, 4294901760
    %8764 = vmatmul.f32.gmra.mxu0 %v8763
    %v8765 = vpop.f32.mrf.mxu0
    %v8766 = vadd.f32 %v8665, %v8765
    %v8767 = vand.u32 %v8357, 4294901760
    %v8768 = vsub.f32 %v8357, %v8767
    %v8769 = vand.u32 %v8768, 4294901760
    %8770 = vmatmul.f32.gmra.mxu0 %v8769
    %v8771 = vpop.f32.mrf.mxu0
    %v8772 = vadd.f32 %v8670, %v8771
    %v8773 = vand.u32 %v8360, 4294901760
    %v8774 = vsub.f32 %v8360, %v8773
    %v8775 = vand.u32 %v8774, 4294901760
    %8776 = vmatmul.f32.gmra.mxu0 %v8775
    %v8777 = vpop.f32.mrf.mxu0
    %v8778 = vadd.f32 %v8675, %v8777
    %v8779 = vand.u32 %v8363, 4294901760
    %v8780 = vsub.f32 %v8363, %v8779
    %v8781 = vand.u32 %v8780, 4294901760
    %8782 = vmatmul.f32.gmra.mxu0 %v8781
    %v8783 = vpop.f32.mrf.mxu0
    %v8784 = vadd.f32 %v8680, %v8783
    %v8785 = vand.u32 %v8366, 4294901760
    %v8786 = vsub.f32 %v8366, %v8785
    %v8787 = vand.u32 %v8786, 4294901760
    %8788 = vmatmul.f32.gmra.mxu0 %v8787
    %v8789 = vpop.f32.mrf.mxu0
    %v8790 = vadd.f32 %v8685, %v8789
    %v8791 = vand.u32 %v8369, 4294901760
    %v8792 = vsub.f32 %v8369, %v8791
    %v8793 = vand.u32 %v8792, 4294901760
    %8794 = vmatmul.f32.gmra.mxu0 %v8793
    %v8795 = vpop.f32.mrf.mxu0
    %v8796 = vadd.f32 %v8690, %v8795
    %v8797 = vand.u32 %v8372, 4294901760
    %v8798 = vsub.f32 %v8372, %v8797
    %v8799 = vand.u32 %v8798, 4294901760
    %8800 = vmatmul.f32.gmra.mxu0 %v8799
    %v8801 = vpop.f32.mrf.mxu0
    %v8802 = vadd.f32 %v8695, %v8801
    %v8803 = vand.u32 %v8375, 4294901760
    %v8804 = vsub.f32 %v8375, %v8803
    %v8805 = vand.u32 %v8804, 4294901760
    %8806 = vmatmul.f32.gmra.mxu0 %v8805
    %v8807 = vpop.f32.mrf.mxu0
    %v8808 = vadd.f32 %v8700, %v8807
    %v8809 = vand.u32 %v8378, 4294901760
    %v8810 = vsub.f32 %v8378, %v8809
    %v8811 = vand.u32 %v8810, 4294901760
    %8812 = vmatmul.f32.gmra.mxu0 %v8811
    %v8813 = vpop.f32.mrf.mxu0
    %v8814 = vadd.f32 %v8705, %v8813
    %v8815 = vand.u32 %v8381, 4294901760
    %v8816 = vsub.f32 %v8381, %v8815
    %v8817 = vand.u32 %v8816, 4294901760
    %8818 = vmatmul.f32.gmra.mxu0 %v8817
    %v8819 = vpop.f32.mrf.mxu0
    %v8820 = vadd.f32 %v8710, %v8819
    %v8821 = vand.u32 %v8384, 4294901760
    %v8822 = vsub.f32 %v8384, %v8821
    %v8823 = vand.u32 %v8822, 4294901760
    %8824 = vmatmul.f32.gmra.mxu0 %v8823
    %v8825 = vpop.f32.mrf.mxu0
    %v8826 = vadd.f32 %v8715, %v8825
    %v8827 = vand.u32 %v8387, 4294901760
    %v8828 = vsub.f32 %v8387, %v8827
    %v8829 = vand.u32 %v8828, 4294901760
    %8830 = vmatmul.f32.gmra.mxu0 %v8829
    %v8831 = vpop.f32.mrf.mxu0
    %v8832 = vadd.f32 %v8720, %v8831
    %v8833 = vand.u32 %v8390, 4294901760
    %v8834 = vsub.f32 %v8390, %v8833
    %v8835 = vand.u32 %v8834, 4294901760
    %8836 = vmatmul.f32.gmra.mxu0 %v8835
    %v8837 = vpop.f32.mrf.mxu0
    %v8838 = vadd.f32 %v8725, %v8837
    %v8839 = vand.u32 %v8393, 4294901760
    %v8840 = vsub.f32 %v8393, %v8839
    %v8841 = vand.u32 %v8840, 4294901760
    %8842 = vmatmul.f32.gmra.mxu0 %v8841
    %v8843 = vpop.f32.mrf.mxu0
    %v8844 = vadd.f32 %v8730, %v8843
    %v8845 = vand.u32 %v8396, 4294901760
    %v8846 = vsub.f32 %v8396, %v8845
    %v8847 = vand.u32 %v8846, 4294901760
    %8848 = vmatmul.f32.gmra.mxu0 %v8847
    %v8849 = vpop.f32.mrf.mxu0
    %v8850 = vadd.f32 %v8735, %v8849
    %8851 = vdwg.mxu0
    %8852 = vmatpush.msra.mxu0 0.0
    %8853 = vmatpush.msra.mxu0 0.0
    %8854 = vmatpush.msra.mxu0 0.0
    %8855 = vmatpush.msra.mxu0 0.0
    %8856 = vmatpush.msra.mxu0 0.0
    %8857 = vmatpush.msra.mxu0 0.0
    %8858 = vmatpush.msra.mxu0 0.0
    %8859 = vmatpush.msra.mxu0 0.0
    %8860 = vmatpush.msra.mxu0 0.0
    %8861 = vmatpush.msra.mxu0 0.0
    %8862 = vmatpush.msra.mxu0 0.0
    %8863 = vmatpush.msra.mxu0 0.0
    %8864 = vmatpush.msra.mxu0 0.0
    %8865 = vmatpush.msra.mxu0 0.0
    %v8866 = vand.u32 %v3836, 4294901760
    %v8867 = vsub.f32 %v3836, %v8866
    %v8868 = vand.u32 %v8867, 4294901760
    %8869 = vmatpush.msra.mxu0 %v8868
    %v8870 = vand.u32 %v3834, 4294901760
    %v8871 = vsub.f32 %v3834, %v8870
    %v8872 = vand.u32 %v8871, 4294901760
    %8873 = vmatpush.msra.mxu0 %v8872
    %v8874 = vand.u32 %v8351, 4294901760
    %8875 = vmatmul.f32.gmra.mxu0 %v8874
    %v8876 = vpop.f32.mrf.mxu0
    %v8877 = vadd.f32 %v8760, %v8876
    %v8878 = vand.u32 %v8354, 4294901760
    %8879 = vmatmul.f32.gmra.mxu0 %v8878
    %v8880 = vpop.f32.mrf.mxu0
    %v8881 = vadd.f32 %v8766, %v8880
    %v8882 = vand.u32 %v8357, 4294901760
    %8883 = vmatmul.f32.gmra.mxu0 %v8882
    %v8884 = vpop.f32.mrf.mxu0
    %v8885 = vadd.f32 %v8772, %v8884
    %v8886 = vand.u32 %v8360, 4294901760
    %8887 = vmatmul.f32.gmra.mxu0 %v8886
    %v8888 = vpop.f32.mrf.mxu0
    %v8889 = vadd.f32 %v8778, %v8888
    %v8890 = vand.u32 %v8363, 4294901760
    %8891 = vmatmul.f32.gmra.mxu0 %v8890
    %v8892 = vpop.f32.mrf.mxu0
    %v8893 = vadd.f32 %v8784, %v8892
    %v8894 = vand.u32 %v8366, 4294901760
    %8895 = vmatmul.f32.gmra.mxu0 %v8894
    %v8896 = vpop.f32.mrf.mxu0
    %v8897 = vadd.f32 %v8790, %v8896
    %v8898 = vand.u32 %v8369, 4294901760
    %8899 = vmatmul.f32.gmra.mxu0 %v8898
    %v8900 = vpop.f32.mrf.mxu0
    %v8901 = vadd.f32 %v8796, %v8900
    %v8902 = vand.u32 %v8372, 4294901760
    %8903 = vmatmul.f32.gmra.mxu0 %v8902
    %v8904 = vpop.f32.mrf.mxu0
    %v8905 = vadd.f32 %v8802, %v8904
    %v8906 = vand.u32 %v8375, 4294901760
    %8907 = vmatmul.f32.gmra.mxu0 %v8906
    %v8908 = vpop.f32.mrf.mxu0
    %v8909 = vadd.f32 %v8808, %v8908
    %v8910 = vand.u32 %v8378, 4294901760
    %8911 = vmatmul.f32.gmra.mxu0 %v8910
    %v8912 = vpop.f32.mrf.mxu0
    %v8913 = vadd.f32 %v8814, %v8912
    %v8914 = vand.u32 %v8381, 4294901760
    %8915 = vmatmul.f32.gmra.mxu0 %v8914
    %v8916 = vpop.f32.mrf.mxu0
    %v8917 = vadd.f32 %v8820, %v8916
    %v8918 = vand.u32 %v8384, 4294901760
    %8919 = vmatmul.f32.gmra.mxu0 %v8918
    %v8920 = vpop.f32.mrf.mxu0
    %v8921 = vadd.f32 %v8826, %v8920
    %v8922 = vand.u32 %v8387, 4294901760
    %8923 = vmatmul.f32.gmra.mxu0 %v8922
    %v8924 = vpop.f32.mrf.mxu0
    %v8925 = vadd.f32 %v8832, %v8924
    %v8926 = vand.u32 %v8390, 4294901760
    %8927 = vmatmul.f32.gmra.mxu0 %v8926
    %v8928 = vpop.f32.mrf.mxu0
    %v8929 = vadd.f32 %v8838, %v8928
    %v8930 = vand.u32 %v8393, 4294901760
    %8931 = vmatmul.f32.gmra.mxu0 %v8930
    %v8932 = vpop.f32.mrf.mxu0
    %v8933 = vadd.f32 %v8844, %v8932
    %v8934 = vand.u32 %v8396, 4294901760
    %8935 = vmatmul.f32.gmra.mxu0 %v8934
    %v8936 = vpop.f32.mrf.mxu0
    %v8937 = vadd.f32 %v8850, %v8936
    %8938 = vdwg.mxu0
    %8939 = vmatpush.msra.mxu0 0.0
    %8940 = vmatpush.msra.mxu0 0.0
    %8941 = vmatpush.msra.mxu0 0.0
    %8942 = vmatpush.msra.mxu0 0.0
    %8943 = vmatpush.msra.mxu0 0.0
    %8944 = vmatpush.msra.mxu0 0.0
    %8945 = vmatpush.msra.mxu0 0.0
    %8946 = vmatpush.msra.mxu0 0.0
    %8947 = vmatpush.msra.mxu0 0.0
    %8948 = vmatpush.msra.mxu0 0.0
    %8949 = vmatpush.msra.mxu0 0.0
    %8950 = vmatpush.msra.mxu0 0.0
    %8951 = vmatpush.msra.mxu0 0.0
    %8952 = vmatpush.msra.mxu0 0.0
    %v8953 = vand.u32 %v3836, 4294901760
    %8954 = vmatpush.msra.mxu0 %v8953
    %v8955 = vand.u32 %v3834, 4294901760
    %8956 = vmatpush.msra.mxu0 %v8955
    %v8957 = vand.u32 %v8351, 4294901760
    %8958 = vmatmul.f32.gmra.mxu0 %v8957
    %v8959 = vpop.f32.mrf.mxu0
    %v8960 = vadd.f32 %v8877, %v8959
    %v8961 = vand.u32 %v8354, 4294901760
    %8962 = vmatmul.f32.gmra.mxu0 %v8961
    %v8963 = vpop.f32.mrf.mxu0
    %v8964 = vadd.f32 %v8881, %v8963
    %v8965 = vand.u32 %v8357, 4294901760
    %8966 = vmatmul.f32.gmra.mxu0 %v8965
    %v8967 = vpop.f32.mrf.mxu0
    %v8968 = vadd.f32 %v8885, %v8967
    %v8969 = vand.u32 %v8360, 4294901760
    %8970 = vmatmul.f32.gmra.mxu0 %v8969
    %v8971 = vpop.f32.mrf.mxu0
    %v8972 = vadd.f32 %v8889, %v8971
    %v8973 = vand.u32 %v8363, 4294901760
    %8974 = vmatmul.f32.gmra.mxu0 %v8973
    %v8975 = vpop.f32.mrf.mxu0
    %v8976 = vadd.f32 %v8893, %v8975
    %v8977 = vand.u32 %v8366, 4294901760
    %8978 = vmatmul.f32.gmra.mxu0 %v8977
    %v8979 = vpop.f32.mrf.mxu0
    %v8980 = vadd.f32 %v8897, %v8979
    %v8981 = vand.u32 %v8369, 4294901760
    %8982 = vmatmul.f32.gmra.mxu0 %v8981
    %v8983 = vpop.f32.mrf.mxu0
    %v8984 = vadd.f32 %v8901, %v8983
    %v8985 = vand.u32 %v8372, 4294901760
    %8986 = vmatmul.f32.gmra.mxu0 %v8985
    %v8987 = vpop.f32.mrf.mxu0
    %v8988 = vadd.f32 %v8905, %v8987
    %v8989 = vand.u32 %v8375, 4294901760
    %8990 = vmatmul.f32.gmra.mxu0 %v8989
    %v8991 = vpop.f32.mrf.mxu0
    %v8992 = vadd.f32 %v8909, %v8991
    %v8993 = vand.u32 %v8378, 4294901760
    %8994 = vmatmul.f32.gmra.mxu0 %v8993
    %v8995 = vpop.f32.mrf.mxu0
    %v8996 = vadd.f32 %v8913, %v8995
    %v8997 = vand.u32 %v8381, 4294901760
    %8998 = vmatmul.f32.gmra.mxu0 %v8997
    %v8999 = vpop.f32.mrf.mxu0
    %v9000 = vadd.f32 %v8917, %v8999
    %v9001 = vand.u32 %v8384, 4294901760
    %9002 = vmatmul.f32.gmra.mxu0 %v9001
    %v9003 = vpop.f32.mrf.mxu0
    %v9004 = vadd.f32 %v8921, %v9003
    %v9005 = vand.u32 %v8387, 4294901760
    %9006 = vmatmul.f32.gmra.mxu0 %v9005
    %v9007 = vpop.f32.mrf.mxu0
    %v9008 = vadd.f32 %v8925, %v9007
    %v9009 = vand.u32 %v8390, 4294901760
    %9010 = vmatmul.f32.gmra.mxu0 %v9009
    %v9011 = vpop.f32.mrf.mxu0
    %v9012 = vadd.f32 %v8929, %v9011
    %v9013 = vand.u32 %v8393, 4294901760
    %9014 = vmatmul.f32.gmra.mxu0 %v9013
    %v9015 = vpop.f32.mrf.mxu0
    %v9016 = vadd.f32 %v8933, %v9015
    %v9017 = vand.u32 %v8396, 4294901760
    %9018 = vmatmul.f32.gmra.mxu0 %v9017
    %v9019 = vpop.f32.mrf.mxu0
    %v9020 = vadd.f32 %v8937, %v9019
    %9021 = vdwg.mxu0
    %v9022 = vand.u32 %v9020, 4294901760
    %9023 = vmatpush.msra.mxu0 %v9022
    %v9024 = vand.u32 %v9016, 4294901760
    %9025 = vmatpush.msra.mxu0 %v9024
    %v9026 = vand.u32 %v9012, 4294901760
    %9027 = vmatpush.msra.mxu0 %v9026
    %v9028 = vand.u32 %v9008, 4294901760
    %9029 = vmatpush.msra.mxu0 %v9028
    %v9030 = vand.u32 %v9004, 4294901760
    %9031 = vmatpush.msra.mxu0 %v9030
    %v9032 = vand.u32 %v9000, 4294901760
    %9033 = vmatpush.msra.mxu0 %v9032
    %v9034 = vand.u32 %v8996, 4294901760
    %9035 = vmatpush.msra.mxu0 %v9034
    %v9036 = vand.u32 %v8992, 4294901760
    %9037 = vmatpush.msra.mxu0 %v9036
    %v9038 = vand.u32 %v8988, 4294901760
    %9039 = vmatpush.msra.mxu0 %v9038
    %v9040 = vand.u32 %v8984, 4294901760
    %9041 = vmatpush.msra.mxu0 %v9040
    %v9042 = vand.u32 %v8980, 4294901760
    %9043 = vmatpush.msra.mxu0 %v9042
    %v9044 = vand.u32 %v8976, 4294901760
    %9045 = vmatpush.msra.mxu0 %v9044
    %v9046 = vand.u32 %v8972, 4294901760
    %9047 = vmatpush.msra.mxu0 %v9046
    %v9048 = vand.u32 %v8968, 4294901760
    %9049 = vmatpush.msra.mxu0 %v9048
    %v9050 = vand.u32 %v8964, 4294901760
    %9051 = vmatpush.msra.mxu0 %v9050
    %v9052 = vand.u32 %v8960, 4294901760
    %9053 = vmatpush.msra.mxu0 %v9052
    %v9054 = vand.u32 %v78, 4294901760
    %v9055 = vsub.f32 %v78, %v9054
    %v9056 = vand.u32 %v9055, 4294901760
    %v9057 = vsub.f32 %v9055, %v9056
    %v9058 = vand.u32 %v9057, 4294901760
    %9059 = vmatmul.f32.gmra.mxu0 %v9058
    %v9060 = vpop.f32.mrf.mxu0
    %v9061 = vadd.f32 0.0, %v9060
    %9062 = vdwg.mxu0
    %v9063 = vand.u32 %v9020, 4294901760
    %v9064 = vsub.f32 %v9020, %v9063
    %v9065 = vand.u32 %v9064, 4294901760
    %v9066 = vsub.f32 %v9064, %v9065
    %v9067 = vand.u32 %v9066, 4294901760
    %9068 = vmatpush.msra.mxu0 %v9067
    %v9069 = vand.u32 %v9016, 4294901760
    %v9070 = vsub.f32 %v9016, %v9069
    %v9071 = vand.u32 %v9070, 4294901760
    %v9072 = vsub.f32 %v9070, %v9071
    %v9073 = vand.u32 %v9072, 4294901760
    %9074 = vmatpush.msra.mxu0 %v9073
    %v9075 = vand.u32 %v9012, 4294901760
    %v9076 = vsub.f32 %v9012, %v9075
    %v9077 = vand.u32 %v9076, 4294901760
    %v9078 = vsub.f32 %v9076, %v9077
    %v9079 = vand.u32 %v9078, 4294901760
    %9080 = vmatpush.msra.mxu0 %v9079
    %v9081 = vand.u32 %v9008, 4294901760
    %v9082 = vsub.f32 %v9008, %v9081
    %v9083 = vand.u32 %v9082, 4294901760
    %v9084 = vsub.f32 %v9082, %v9083
    %v9085 = vand.u32 %v9084, 4294901760
    %9086 = vmatpush.msra.mxu0 %v9085
    %v9087 = vand.u32 %v9004, 4294901760
    %v9088 = vsub.f32 %v9004, %v9087
    %v9089 = vand.u32 %v9088, 4294901760
    %v9090 = vsub.f32 %v9088, %v9089
    %v9091 = vand.u32 %v9090, 4294901760
    %9092 = vmatpush.msra.mxu0 %v9091
    %v9093 = vand.u32 %v9000, 4294901760
    %v9094 = vsub.f32 %v9000, %v9093
    %v9095 = vand.u32 %v9094, 4294901760
    %v9096 = vsub.f32 %v9094, %v9095
    %v9097 = vand.u32 %v9096, 4294901760
    %9098 = vmatpush.msra.mxu0 %v9097
    %v9099 = vand.u32 %v8996, 4294901760
    %v9100 = vsub.f32 %v8996, %v9099
    %v9101 = vand.u32 %v9100, 4294901760
    %v9102 = vsub.f32 %v9100, %v9101
    %v9103 = vand.u32 %v9102, 4294901760
    %9104 = vmatpush.msra.mxu0 %v9103
    %v9105 = vand.u32 %v8992, 4294901760
    %v9106 = vsub.f32 %v8992, %v9105
    %v9107 = vand.u32 %v9106, 4294901760
    %v9108 = vsub.f32 %v9106, %v9107
    %v9109 = vand.u32 %v9108, 4294901760
    %9110 = vmatpush.msra.mxu0 %v9109
    %v9111 = vand.u32 %v8988, 4294901760
    %v9112 = vsub.f32 %v8988, %v9111
    %v9113 = vand.u32 %v9112, 4294901760
    %v9114 = vsub.f32 %v9112, %v9113
    %v9115 = vand.u32 %v9114, 4294901760
    %9116 = vmatpush.msra.mxu0 %v9115
    %v9117 = vand.u32 %v8984, 4294901760
    %v9118 = vsub.f32 %v8984, %v9117
    %v9119 = vand.u32 %v9118, 4294901760
    %v9120 = vsub.f32 %v9118, %v9119
    %v9121 = vand.u32 %v9120, 4294901760
    %9122 = vmatpush.msra.mxu0 %v9121
    %v9123 = vand.u32 %v8980, 4294901760
    %v9124 = vsub.f32 %v8980, %v9123
    %v9125 = vand.u32 %v9124, 4294901760
    %v9126 = vsub.f32 %v9124, %v9125
    %v9127 = vand.u32 %v9126, 4294901760
    %9128 = vmatpush.msra.mxu0 %v9127
    %v9129 = vand.u32 %v8976, 4294901760
    %v9130 = vsub.f32 %v8976, %v9129
    %v9131 = vand.u32 %v9130, 4294901760
    %v9132 = vsub.f32 %v9130, %v9131
    %v9133 = vand.u32 %v9132, 4294901760
    %9134 = vmatpush.msra.mxu0 %v9133
    %v9135 = vand.u32 %v8972, 4294901760
    %v9136 = vsub.f32 %v8972, %v9135
    %v9137 = vand.u32 %v9136, 4294901760
    %v9138 = vsub.f32 %v9136, %v9137
    %v9139 = vand.u32 %v9138, 4294901760
    %9140 = vmatpush.msra.mxu0 %v9139
    %v9141 = vand.u32 %v8968, 4294901760
    %v9142 = vsub.f32 %v8968, %v9141
    %v9143 = vand.u32 %v9142, 4294901760
    %v9144 = vsub.f32 %v9142, %v9143
    %v9145 = vand.u32 %v9144, 4294901760
    %9146 = vmatpush.msra.mxu0 %v9145
    %v9147 = vand.u32 %v8964, 4294901760
    %v9148 = vsub.f32 %v8964, %v9147
    %v9149 = vand.u32 %v9148, 4294901760
    %v9150 = vsub.f32 %v9148, %v9149
    %v9151 = vand.u32 %v9150, 4294901760
    %9152 = vmatpush.msra.mxu0 %v9151
    %v9153 = vand.u32 %v8960, 4294901760
    %v9154 = vsub.f32 %v8960, %v9153
    %v9155 = vand.u32 %v9154, 4294901760
    %v9156 = vsub.f32 %v9154, %v9155
    %v9157 = vand.u32 %v9156, 4294901760
    %9158 = vmatpush.msra.mxu0 %v9157
    %v9159 = vand.u32 %v78, 4294901760
    %9160 = vmatmul.f32.gmra.mxu0 %v9159
    %v9161 = vpop.f32.mrf.mxu0
    %v9162 = vadd.f32 %v9061, %v9161
    %9163 = vdwg.mxu0
    %v9164 = vand.u32 %v9020, 4294901760
    %v9165 = vsub.f32 %v9020, %v9164
    %9166 = vmatpush.msra.mxu0 %v9165
    %v9167 = vand.u32 %v9016, 4294901760
    %v9168 = vsub.f32 %v9016, %v9167
    %9169 = vmatpush.msra.mxu0 %v9168
    %v9170 = vand.u32 %v9012, 4294901760
    %v9171 = vsub.f32 %v9012, %v9170
    %9172 = vmatpush.msra.mxu0 %v9171
    %v9173 = vand.u32 %v9008, 4294901760
    %v9174 = vsub.f32 %v9008, %v9173
    %9175 = vmatpush.msra.mxu0 %v9174
    %v9176 = vand.u32 %v9004, 4294901760
    %v9177 = vsub.f32 %v9004, %v9176
    %9178 = vmatpush.msra.mxu0 %v9177
    %v9179 = vand.u32 %v9000, 4294901760
    %v9180 = vsub.f32 %v9000, %v9179
    %9181 = vmatpush.msra.mxu0 %v9180
    %v9182 = vand.u32 %v8996, 4294901760
    %v9183 = vsub.f32 %v8996, %v9182
    %9184 = vmatpush.msra.mxu0 %v9183
    %v9185 = vand.u32 %v8992, 4294901760
    %v9186 = vsub.f32 %v8992, %v9185
    %9187 = vmatpush.msra.mxu0 %v9186
    %v9188 = vand.u32 %v8988, 4294901760
    %v9189 = vsub.f32 %v8988, %v9188
    %9190 = vmatpush.msra.mxu0 %v9189
    %v9191 = vand.u32 %v8984, 4294901760
    %v9192 = vsub.f32 %v8984, %v9191
    %9193 = vmatpush.msra.mxu0 %v9192
    %v9194 = vand.u32 %v8980, 4294901760
    %v9195 = vsub.f32 %v8980, %v9194
    %9196 = vmatpush.msra.mxu0 %v9195
    %v9197 = vand.u32 %v8976, 4294901760
    %v9198 = vsub.f32 %v8976, %v9197
    %9199 = vmatpush.msra.mxu0 %v9198
    %v9200 = vand.u32 %v8972, 4294901760
    %v9201 = vsub.f32 %v8972, %v9200
    %9202 = vmatpush.msra.mxu0 %v9201
    %v9203 = vand.u32 %v8968, 4294901760
    %v9204 = vsub.f32 %v8968, %v9203
    %9205 = vmatpush.msra.mxu0 %v9204
    %v9206 = vand.u32 %v8964, 4294901760
    %v9207 = vsub.f32 %v8964, %v9206
    %9208 = vmatpush.msra.mxu0 %v9207
    %v9209 = vand.u32 %v8960, 4294901760
    %v9210 = vsub.f32 %v8960, %v9209
    %9211 = vmatpush.msra.mxu0 %v9210
    %v9212 = vand.u32 %v78, 4294901760
    %v9213 = vsub.f32 %v78, %v9212
    %9214 = vmatmul.f32.gmra.mxu0 %v9213
    %v9215 = vpop.f32.mrf.mxu0
    %v9216 = vadd.f32 %v9162, %v9215
    %9217 = vdwg.mxu0
    %v9218 = vand.u32 %v9020, 4294901760
    %9219 = vmatpush.msra.mxu0 %v9218
    %v9220 = vand.u32 %v9016, 4294901760
    %9221 = vmatpush.msra.mxu0 %v9220
    %v9222 = vand.u32 %v9012, 4294901760
    %9223 = vmatpush.msra.mxu0 %v9222
    %v9224 = vand.u32 %v9008, 4294901760
    %9225 = vmatpush.msra.mxu0 %v9224
    %v9226 = vand.u32 %v9004, 4294901760
    %9227 = vmatpush.msra.mxu0 %v9226
    %v9228 = vand.u32 %v9000, 4294901760
    %9229 = vmatpush.msra.mxu0 %v9228
    %v9230 = vand.u32 %v8996, 4294901760
    %9231 = vmatpush.msra.mxu0 %v9230
    %v9232 = vand.u32 %v8992, 4294901760
    %9233 = vmatpush.msra.mxu0 %v9232
    %v9234 = vand.u32 %v8988, 4294901760
    %9235 = vmatpush.msra.mxu0 %v9234
    %v9236 = vand.u32 %v8984, 4294901760
    %9237 = vmatpush.msra.mxu0 %v9236
    %v9238 = vand.u32 %v8980, 4294901760
    %9239 = vmatpush.msra.mxu0 %v9238
    %v9240 = vand.u32 %v8976, 4294901760
    %9241 = vmatpush.msra.mxu0 %v9240
    %v9242 = vand.u32 %v8972, 4294901760
    %9243 = vmatpush.msra.mxu0 %v9242
    %v9244 = vand.u32 %v8968, 4294901760
    %9245 = vmatpush.msra.mxu0 %v9244
    %v9246 = vand.u32 %v8964, 4294901760
    %9247 = vmatpush.msra.mxu0 %v9246
    %v9248 = vand.u32 %v8960, 4294901760
    %9249 = vmatpush.msra.mxu0 %v9248
    %v9250 = vand.u32 %v78, 4294901760
    %v9251 = vsub.f32 %v78, %v9250
    %v9252 = vand.u32 %v9251, 4294901760
    %9253 = vmatmul.f32.gmra.mxu0 %v9252
    %v9254 = vpop.f32.mrf.mxu0
    %v9255 = vadd.f32 %v9216, %v9254
    %9256 = vdwg.mxu0
    %v9257 = vand.u32 %v9020, 4294901760
    %v9258 = vsub.f32 %v9020, %v9257
    %v9259 = vand.u32 %v9258, 4294901760
    %9260 = vmatpush.msra.mxu0 %v9259
    %v9261 = vand.u32 %v9016, 4294901760
    %v9262 = vsub.f32 %v9016, %v9261
    %v9263 = vand.u32 %v9262, 4294901760
    %9264 = vmatpush.msra.mxu0 %v9263
    %v9265 = vand.u32 %v9012, 4294901760
    %v9266 = vsub.f32 %v9012, %v9265
    %v9267 = vand.u32 %v9266, 4294901760
    %9268 = vmatpush.msra.mxu0 %v9267
    %v9269 = vand.u32 %v9008, 4294901760
    %v9270 = vsub.f32 %v9008, %v9269
    %v9271 = vand.u32 %v9270, 4294901760
    %9272 = vmatpush.msra.mxu0 %v9271
    %v9273 = vand.u32 %v9004, 4294901760
    %v9274 = vsub.f32 %v9004, %v9273
    %v9275 = vand.u32 %v9274, 4294901760
    %9276 = vmatpush.msra.mxu0 %v9275
    %v9277 = vand.u32 %v9000, 4294901760
    %v9278 = vsub.f32 %v9000, %v9277
    %v9279 = vand.u32 %v9278, 4294901760
    %9280 = vmatpush.msra.mxu0 %v9279
    %v9281 = vand.u32 %v8996, 4294901760
    %v9282 = vsub.f32 %v8996, %v9281
    %v9283 = vand.u32 %v9282, 4294901760
    %9284 = vmatpush.msra.mxu0 %v9283
    %v9285 = vand.u32 %v8992, 4294901760
    %v9286 = vsub.f32 %v8992, %v9285
    %v9287 = vand.u32 %v9286, 4294901760
    %9288 = vmatpush.msra.mxu0 %v9287
    %v9289 = vand.u32 %v8988, 4294901760
    %v9290 = vsub.f32 %v8988, %v9289
    %v9291 = vand.u32 %v9290, 4294901760
    %9292 = vmatpush.msra.mxu0 %v9291
    %v9293 = vand.u32 %v8984, 4294901760
    %v9294 = vsub.f32 %v8984, %v9293
    %v9295 = vand.u32 %v9294, 4294901760
    %9296 = vmatpush.msra.mxu0 %v9295
    %v9297 = vand.u32 %v8980, 4294901760
    %v9298 = vsub.f32 %v8980, %v9297
    %v9299 = vand.u32 %v9298, 4294901760
    %9300 = vmatpush.msra.mxu0 %v9299
    %v9301 = vand.u32 %v8976, 4294901760
    %v9302 = vsub.f32 %v8976, %v9301
    %v9303 = vand.u32 %v9302, 4294901760
    %9304 = vmatpush.msra.mxu0 %v9303
    %v9305 = vand.u32 %v8972, 4294901760
    %v9306 = vsub.f32 %v8972, %v9305
    %v9307 = vand.u32 %v9306, 4294901760
    %9308 = vmatpush.msra.mxu0 %v9307
    %v9309 = vand.u32 %v8968, 4294901760
    %v9310 = vsub.f32 %v8968, %v9309
    %v9311 = vand.u32 %v9310, 4294901760
    %9312 = vmatpush.msra.mxu0 %v9311
    %v9313 = vand.u32 %v8964, 4294901760
    %v9314 = vsub.f32 %v8964, %v9313
    %v9315 = vand.u32 %v9314, 4294901760
    %9316 = vmatpush.msra.mxu0 %v9315
    %v9317 = vand.u32 %v8960, 4294901760
    %v9318 = vsub.f32 %v8960, %v9317
    %v9319 = vand.u32 %v9318, 4294901760
    %9320 = vmatpush.msra.mxu0 %v9319
    %v9321 = vand.u32 %v78, 4294901760
    %9322 = vmatmul.f32.gmra.mxu0 %v9321
    %v9323 = vpop.f32.mrf.mxu0
    %v9324 = vadd.f32 %v9255, %v9323
    %9325 = vdwg.mxu0
    %v9326 = vand.u32 %v9020, 4294901760
    %9327 = vmatpush.msra.mxu0 %v9326
    %v9328 = vand.u32 %v9016, 4294901760
    %9329 = vmatpush.msra.mxu0 %v9328
    %v9330 = vand.u32 %v9012, 4294901760
    %9331 = vmatpush.msra.mxu0 %v9330
    %v9332 = vand.u32 %v9008, 4294901760
    %9333 = vmatpush.msra.mxu0 %v9332
    %v9334 = vand.u32 %v9004, 4294901760
    %9335 = vmatpush.msra.mxu0 %v9334
    %v9336 = vand.u32 %v9000, 4294901760
    %9337 = vmatpush.msra.mxu0 %v9336
    %v9338 = vand.u32 %v8996, 4294901760
    %9339 = vmatpush.msra.mxu0 %v9338
    %v9340 = vand.u32 %v8992, 4294901760
    %9341 = vmatpush.msra.mxu0 %v9340
    %v9342 = vand.u32 %v8988, 4294901760
    %9343 = vmatpush.msra.mxu0 %v9342
    %v9344 = vand.u32 %v8984, 4294901760
    %9345 = vmatpush.msra.mxu0 %v9344
    %v9346 = vand.u32 %v8980, 4294901760
    %9347 = vmatpush.msra.mxu0 %v9346
    %v9348 = vand.u32 %v8976, 4294901760
    %9349 = vmatpush.msra.mxu0 %v9348
    %v9350 = vand.u32 %v8972, 4294901760
    %9351 = vmatpush.msra.mxu0 %v9350
    %v9352 = vand.u32 %v8968, 4294901760
    %9353 = vmatpush.msra.mxu0 %v9352
    %v9354 = vand.u32 %v8964, 4294901760
    %9355 = vmatpush.msra.mxu0 %v9354
    %v9356 = vand.u32 %v8960, 4294901760
    %9357 = vmatpush.msra.mxu0 %v9356
    %v9358 = vand.u32 %v78, 4294901760
    %9359 = vmatmul.f32.gmra.mxu0 %v9358
    %v9360 = vpop.f32.mrf.mxu0
    %v9361 = vadd.f32 %v9324, %v9360
    %9362 = vdwg.mxu0
    %9364 = vrot.lane.b32.xlu0 %v9361, 1
    %v9365 = vpop.permute.xlu0 %9364
    %vm9367 = vcmask 7168
    %v9368 = vsel %vm9367, %v4850, %v9365
    %9369 = vxpose.xlu0.b32.start [1/16] %v9368, 128
    %9370 = vxpose.xlu0.b32.cont [2/16] 0.0, 128
    %9371 = vxpose.xlu0.b32.cont [3/16] 0.0, 128
    %9372 = vxpose.xlu0.b32.cont [4/16] 0.0, 128
    %9373 = vxpose.xlu0.b32.cont [5/16] 0.0, 128
    %9374 = vxpose.xlu0.b32.cont [6/16] 0.0, 128
    %9375 = vxpose.xlu0.b32.cont [7/16] 0.0, 128
    %9376 = vxpose.xlu0.b32.cont [8/16] 0.0, 128
    %9377 = vxpose.xlu0.b32.cont [9/16] 0.0, 128
    %9378 = vxpose.xlu0.b32.cont [10/16] 0.0, 128
    %9379 = vxpose.xlu0.b32.cont [11/16] 0.0, 128
    %9380 = vxpose.xlu0.b32.cont [12/16] 0.0, 128
    %9381 = vxpose.xlu0.b32.cont [13/16] 0.0, 128
    %9382 = vxpose.xlu0.b32.cont [14/16] 0.0, 128
    %9383 = vxpose.xlu0.b32.cont [15/16] 0.0, 128
    %9384 = vxpose.xlu0.b32.end [16/16] 0.0, 128
    %v9385 = vpop.trf.xlu0
    %v9386 = vpop.trf.xlu0
    %v9387 = vpop.trf.xlu0
    %v9388 = vpop.trf.xlu0
    %v9389 = vpop.trf.xlu0
    %v9390 = vpop.trf.xlu0
    %v9391 = vpop.trf.xlu0
    %v9392 = vpop.trf.xlu0
    %v9393 = vpop.trf.xlu0
    %v9394 = vpop.trf.xlu0
    %v9395 = vpop.trf.xlu0
    %v9396 = vpop.trf.xlu0
    %v9397 = vpop.trf.xlu0
    %v9398 = vpop.trf.xlu0
    %v9399 = vpop.trf.xlu0
    %v9400 = vpop.trf.xlu0
    %v9401 = vperm.slane %v84, 0
    %vm9402 = vcmask 64512
    %v9404 = vsel %vm9402, %v9385, 0
    %9406 = vmatpush.msra.mxu0 0.0
    %9407 = vmatpush.msra.mxu0 0.0
    %9408 = vmatpush.msra.mxu0 0.0
    %9409 = vmatpush.msra.mxu0 0.0
    %9410 = vmatpush.msra.mxu0 0.0
    %9411 = vmatpush.msra.mxu0 0.0
    %9412 = vmatpush.msra.mxu0 0.0
    %9413 = vmatpush.msra.mxu0 0.0
    %9414 = vmatpush.msra.mxu0 0.0
    %9415 = vmatpush.msra.mxu0 0.0
    %9416 = vmatpush.msra.mxu0 0.0
    %9417 = vmatpush.msra.mxu0 0.0
    %9418 = vmatpush.msra.mxu0 0.0
    %9419 = vmatpush.msra.mxu0 0.0
    %9420 = vmatpush.msra.mxu0 0.0
    %v9421 = vand.u32 %v79, 4294901760
    %9422 = vmatpush.msra.mxu0 %v9421
    %v9423 = vand.u32 %v9404, 4294901760
    %v9424 = vsub.f32 %v9404, %v9423
    %v9425 = vand.u32 %v9424, 4294901760
    %v9426 = vsub.f32 %v9424, %v9425
    %v9427 = vand.u32 %v9426, 4294901760
    %9428 = vmatmul.f32.gmra.mxu0 %v9427
    %v9429 = vpop.f32.mrf.mxu0
    %v9430 = vadd.f32 %v9401, %v9429
    %9431 = vdwg.mxu0
    %9432 = vmatpush.msra.mxu0 0.0
    %9433 = vmatpush.msra.mxu0 0.0
    %9434 = vmatpush.msra.mxu0 0.0
    %9435 = vmatpush.msra.mxu0 0.0
    %9436 = vmatpush.msra.mxu0 0.0
    %9437 = vmatpush.msra.mxu0 0.0
    %9438 = vmatpush.msra.mxu0 0.0
    %9439 = vmatpush.msra.mxu0 0.0
    %9440 = vmatpush.msra.mxu0 0.0
    %9441 = vmatpush.msra.mxu0 0.0
    %9442 = vmatpush.msra.mxu0 0.0
    %9443 = vmatpush.msra.mxu0 0.0
    %9444 = vmatpush.msra.mxu0 0.0
    %9445 = vmatpush.msra.mxu0 0.0
    %9446 = vmatpush.msra.mxu0 0.0
    %v9447 = vand.u32 %v79, 4294901760
    %v9448 = vsub.f32 %v79, %v9447
    %v9449 = vand.u32 %v9448, 4294901760
    %v9450 = vsub.f32 %v9448, %v9449
    %v9451 = vand.u32 %v9450, 4294901760
    %9452 = vmatpush.msra.mxu0 %v9451
    %v9453 = vand.u32 %v9404, 4294901760
    %9454 = vmatmul.f32.gmra.mxu0 %v9453
    %v9455 = vpop.f32.mrf.mxu0
    %v9456 = vadd.f32 %v9430, %v9455
    %9457 = vdwg.mxu0
    %9458 = vmatpush.msra.mxu0 0.0
    %9459 = vmatpush.msra.mxu0 0.0
    %9460 = vmatpush.msra.mxu0 0.0
    %9461 = vmatpush.msra.mxu0 0.0
    %9462 = vmatpush.msra.mxu0 0.0
    %9463 = vmatpush.msra.mxu0 0.0
    %9464 = vmatpush.msra.mxu0 0.0
    %9465 = vmatpush.msra.mxu0 0.0
    %9466 = vmatpush.msra.mxu0 0.0
    %9467 = vmatpush.msra.mxu0 0.0
    %9468 = vmatpush.msra.mxu0 0.0
    %9469 = vmatpush.msra.mxu0 0.0
    %9470 = vmatpush.msra.mxu0 0.0
    %9471 = vmatpush.msra.mxu0 0.0
    %9472 = vmatpush.msra.mxu0 0.0
    %v9473 = vand.u32 %v79, 4294901760
    %v9474 = vsub.f32 %v79, %v9473
    %9475 = vmatpush.msra.mxu0 %v9474
    %v9476 = vand.u32 %v9404, 4294901760
    %v9477 = vsub.f32 %v9404, %v9476
    %9478 = vmatmul.f32.gmra.mxu0 %v9477
    %v9479 = vpop.f32.mrf.mxu0
    %v9480 = vadd.f32 %v9456, %v9479
    %9481 = vdwg.mxu0
    %9482 = vmatpush.msra.mxu0 0.0
    %9483 = vmatpush.msra.mxu0 0.0
    %9484 = vmatpush.msra.mxu0 0.0
    %9485 = vmatpush.msra.mxu0 0.0
    %9486 = vmatpush.msra.mxu0 0.0
    %9487 = vmatpush.msra.mxu0 0.0
    %9488 = vmatpush.msra.mxu0 0.0
    %9489 = vmatpush.msra.mxu0 0.0
    %9490 = vmatpush.msra.mxu0 0.0
    %9491 = vmatpush.msra.mxu0 0.0
    %9492 = vmatpush.msra.mxu0 0.0
    %9493 = vmatpush.msra.mxu0 0.0
    %9494 = vmatpush.msra.mxu0 0.0
    %9495 = vmatpush.msra.mxu0 0.0
    %9496 = vmatpush.msra.mxu0 0.0
    %v9497 = vand.u32 %v79, 4294901760
    %9498 = vmatpush.msra.mxu0 %v9497
    %v9499 = vand.u32 %v9404, 4294901760
    %v9500 = vsub.f32 %v9404, %v9499
    %v9501 = vand.u32 %v9500, 4294901760
    %9502 = vmatmul.f32.gmra.mxu0 %v9501
    %v9503 = vpop.f32.mrf.mxu0
    %v9504 = vadd.f32 %v9480, %v9503
    %9505 = vdwg.mxu0
    %9506 = vmatpush.msra.mxu0 0.0
    %9507 = vmatpush.msra.mxu0 0.0
    %9508 = vmatpush.msra.mxu0 0.0
    %9509 = vmatpush.msra.mxu0 0.0
    %9510 = vmatpush.msra.mxu0 0.0
    %9511 = vmatpush.msra.mxu0 0.0
    %9512 = vmatpush.msra.mxu0 0.0
    %9513 = vmatpush.msra.mxu0 0.0
    %9514 = vmatpush.msra.mxu0 0.0
    %9515 = vmatpush.msra.mxu0 0.0
    %9516 = vmatpush.msra.mxu0 0.0
    %9517 = vmatpush.msra.mxu0 0.0
    %9518 = vmatpush.msra.mxu0 0.0
    %9519 = vmatpush.msra.mxu0 0.0
    %9520 = vmatpush.msra.mxu0 0.0
    %v9521 = vand.u32 %v79, 4294901760
    %v9522 = vsub.f32 %v79, %v9521
    %v9523 = vand.u32 %v9522, 4294901760
    %9524 = vmatpush.msra.mxu0 %v9523
    %v9525 = vand.u32 %v9404, 4294901760
    %9526 = vmatmul.f32.gmra.mxu0 %v9525
    %v9527 = vpop.f32.mrf.mxu0
    %v9528 = vadd.f32 %v9504, %v9527
    %9529 = vdwg.mxu0
    %9530 = vmatpush.msra.mxu0 0.0
    %9531 = vmatpush.msra.mxu0 0.0
    %9532 = vmatpush.msra.mxu0 0.0
    %9533 = vmatpush.msra.mxu0 0.0
    %9534 = vmatpush.msra.mxu0 0.0
    %9535 = vmatpush.msra.mxu0 0.0
    %9536 = vmatpush.msra.mxu0 0.0
    %9537 = vmatpush.msra.mxu0 0.0
    %9538 = vmatpush.msra.mxu0 0.0
    %9539 = vmatpush.msra.mxu0 0.0
    %9540 = vmatpush.msra.mxu0 0.0
    %9541 = vmatpush.msra.mxu0 0.0
    %9542 = vmatpush.msra.mxu0 0.0
    %9543 = vmatpush.msra.mxu0 0.0
    %9544 = vmatpush.msra.mxu0 0.0
    %v9545 = vand.u32 %v79, 4294901760
    %9546 = vmatpush.msra.mxu0 %v9545
    %v9547 = vand.u32 %v9404, 4294901760
    %9548 = vmatmul.f32.gmra.mxu0 %v9547
    %v9549 = vpop.f32.mrf.mxu0
    %v9550 = vadd.f32 %v9528, %v9549
    %9551 = vdwg.mxu0
    %v9552 = vmax.f32 %v9550, 0.0
    %9554 = vrot.lane.b32.xlu0 %v9401, 96
    %v9555 = vpop.permute.xlu0 %9554
    %vm9557 = vcmask 261120
    %v9559 = vsel %vm9557, %v9552, 0
    %9561 = vmatpush.msra.mxu0 0.0
    %9562 = vmatpush.msra.mxu0 0.0
    %9563 = vmatpush.msra.mxu0 0.0
    %9564 = vmatpush.msra.mxu0 0.0
    %9565 = vmatpush.msra.mxu0 0.0
    %9566 = vmatpush.msra.mxu0 0.0
    %9567 = vmatpush.msra.mxu0 0.0
    %9568 = vmatpush.msra.mxu0 0.0
    %9569 = vmatpush.msra.mxu0 0.0
    %9570 = vmatpush.msra.mxu0 0.0
    %9571 = vmatpush.msra.mxu0 0.0
    %9572 = vmatpush.msra.mxu0 0.0
    %v9573 = vand.u32 %v83, 4294901760
    %9574 = vmatpush.msra.mxu0 %v9573
    %v9575 = vand.u32 %v82, 4294901760
    %9576 = vmatpush.msra.mxu0 %v9575
    %v9577 = vand.u32 %v81, 4294901760
    %9578 = vmatpush.msra.mxu0 %v9577
    %v9579 = vand.u32 %v80, 4294901760
    %9580 = vmatpush.msra.mxu0 %v9579
    %v9581 = vand.u32 %v9559, 4294901760
    %v9582 = vsub.f32 %v9559, %v9581
    %v9583 = vand.u32 %v9582, 4294901760
    %v9584 = vsub.f32 %v9582, %v9583
    %v9585 = vand.u32 %v9584, 4294901760
    %9586 = vmatmul.f32.gmra.mxu0 %v9585
    %v9587 = vpop.f32.mrf.mxu0
    %v9588 = vadd.f32 %v9555, %v9587
    %9589 = vdwg.mxu0
    %9590 = vmatpush.msra.mxu0 0.0
    %9591 = vmatpush.msra.mxu0 0.0
    %9592 = vmatpush.msra.mxu0 0.0
    %9593 = vmatpush.msra.mxu0 0.0
    %9594 = vmatpush.msra.mxu0 0.0
    %9595 = vmatpush.msra.mxu0 0.0
    %9596 = vmatpush.msra.mxu0 0.0
    %9597 = vmatpush.msra.mxu0 0.0
    %9598 = vmatpush.msra.mxu0 0.0
    %9599 = vmatpush.msra.mxu0 0.0
    %9600 = vmatpush.msra.mxu0 0.0
    %9601 = vmatpush.msra.mxu0 0.0
    %v9602 = vand.u32 %v83, 4294901760
    %v9603 = vsub.f32 %v83, %v9602
    %v9604 = vand.u32 %v9603, 4294901760
    %v9605 = vsub.f32 %v9603, %v9604
    %v9606 = vand.u32 %v9605, 4294901760
    %9607 = vmatpush.msra.mxu0 %v9606
    %v9608 = vand.u32 %v82, 4294901760
    %v9609 = vsub.f32 %v82, %v9608
    %v9610 = vand.u32 %v9609, 4294901760
    %v9611 = vsub.f32 %v9609, %v9610
    %v9612 = vand.u32 %v9611, 4294901760
    %9613 = vmatpush.msra.mxu0 %v9612
    %v9614 = vand.u32 %v81, 4294901760
    %v9615 = vsub.f32 %v81, %v9614
    %v9616 = vand.u32 %v9615, 4294901760
    %v9617 = vsub.f32 %v9615, %v9616
    %v9618 = vand.u32 %v9617, 4294901760
    %9619 = vmatpush.msra.mxu0 %v9618
    %v9620 = vand.u32 %v80, 4294901760
    %v9621 = vsub.f32 %v80, %v9620
    %v9622 = vand.u32 %v9621, 4294901760
    %v9623 = vsub.f32 %v9621, %v9622
    %v9624 = vand.u32 %v9623, 4294901760
    %9625 = vmatpush.msra.mxu0 %v9624
    %v9626 = vand.u32 %v9559, 4294901760
    %9627 = vmatmul.f32.gmra.mxu0 %v9626
    %v9628 = vpop.f32.mrf.mxu0
    %v9629 = vadd.f32 %v9588, %v9628
    %9630 = vdwg.mxu0
    %9631 = vmatpush.msra.mxu0 0.0
    %9632 = vmatpush.msra.mxu0 0.0
    %9633 = vmatpush.msra.mxu0 0.0
    %9634 = vmatpush.msra.mxu0 0.0
    %9635 = vmatpush.msra.mxu0 0.0
    %9636 = vmatpush.msra.mxu0 0.0
    %9637 = vmatpush.msra.mxu0 0.0
    %9638 = vmatpush.msra.mxu0 0.0
    %9639 = vmatpush.msra.mxu0 0.0
    %9640 = vmatpush.msra.mxu0 0.0
    %9641 = vmatpush.msra.mxu0 0.0
    %9642 = vmatpush.msra.mxu0 0.0
    %v9643 = vand.u32 %v83, 4294901760
    %v9644 = vsub.f32 %v83, %v9643
    %9645 = vmatpush.msra.mxu0 %v9644
    %v9646 = vand.u32 %v82, 4294901760
    %v9647 = vsub.f32 %v82, %v9646
    %9648 = vmatpush.msra.mxu0 %v9647
    %v9649 = vand.u32 %v81, 4294901760
    %v9650 = vsub.f32 %v81, %v9649
    %9651 = vmatpush.msra.mxu0 %v9650
    %v9652 = vand.u32 %v80, 4294901760
    %v9653 = vsub.f32 %v80, %v9652
    %9654 = vmatpush.msra.mxu0 %v9653
    %v9655 = vand.u32 %v9559, 4294901760
    %v9656 = vsub.f32 %v9559, %v9655
    %9657 = vmatmul.f32.gmra.mxu0 %v9656
    %v9658 = vpop.f32.mrf.mxu0
    %v9659 = vadd.f32 %v9629, %v9658
    %9660 = vdwg.mxu0
    %9661 = vmatpush.msra.mxu0 0.0
    %9662 = vmatpush.msra.mxu0 0.0
    %9663 = vmatpush.msra.mxu0 0.0
    %9664 = vmatpush.msra.mxu0 0.0
    %9665 = vmatpush.msra.mxu0 0.0
    %9666 = vmatpush.msra.mxu0 0.0
    %9667 = vmatpush.msra.mxu0 0.0
    %9668 = vmatpush.msra.mxu0 0.0
    %9669 = vmatpush.msra.mxu0 0.0
    %9670 = vmatpush.msra.mxu0 0.0
    %9671 = vmatpush.msra.mxu0 0.0
    %9672 = vmatpush.msra.mxu0 0.0
    %v9673 = vand.u32 %v83, 4294901760
    %9674 = vmatpush.msra.mxu0 %v9673
    %v9675 = vand.u32 %v82, 4294901760
    %9676 = vmatpush.msra.mxu0 %v9675
    %v9677 = vand.u32 %v81, 4294901760
    %9678 = vmatpush.msra.mxu0 %v9677
    %v9679 = vand.u32 %v80, 4294901760
    %9680 = vmatpush.msra.mxu0 %v9679
    %v9681 = vand.u32 %v9559, 4294901760
    %v9682 = vsub.f32 %v9559, %v9681
    %v9683 = vand.u32 %v9682, 4294901760
    %9684 = vmatmul.f32.gmra.mxu0 %v9683
    %v9685 = vpop.f32.mrf.mxu0
    %v9686 = vadd.f32 %v9659, %v9685
    %9687 = vdwg.mxu0
    %9688 = vmatpush.msra.mxu0 0.0
    %9689 = vmatpush.msra.mxu0 0.0
    %9690 = vmatpush.msra.mxu0 0.0
    %9691 = vmatpush.msra.mxu0 0.0
    %9692 = vmatpush.msra.mxu0 0.0
    %9693 = vmatpush.msra.mxu0 0.0
    %9694 = vmatpush.msra.mxu0 0.0
    %9695 = vmatpush.msra.mxu0 0.0
    %9696 = vmatpush.msra.mxu0 0.0
    %9697 = vmatpush.msra.mxu0 0.0
    %9698 = vmatpush.msra.mxu0 0.0
    %9699 = vmatpush.msra.mxu0 0.0
    %v9700 = vand.u32 %v83, 4294901760
    %v9701 = vsub.f32 %v83, %v9700
    %v9702 = vand.u32 %v9701, 4294901760
    %9703 = vmatpush.msra.mxu0 %v9702
    %v9704 = vand.u32 %v82, 4294901760
    %v9705 = vsub.f32 %v82, %v9704
    %v9706 = vand.u32 %v9705, 4294901760
    %9707 = vmatpush.msra.mxu0 %v9706
    %v9708 = vand.u32 %v81, 4294901760
    %v9709 = vsub.f32 %v81, %v9708
    %v9710 = vand.u32 %v9709, 4294901760
    %9711 = vmatpush.msra.mxu0 %v9710
    %v9712 = vand.u32 %v80, 4294901760
    %v9713 = vsub.f32 %v80, %v9712
    %v9714 = vand.u32 %v9713, 4294901760
    %9715 = vmatpush.msra.mxu0 %v9714
    %v9716 = vand.u32 %v9559, 4294901760
    %9717 = vmatmul.f32.gmra.mxu0 %v9716
    %v9718 = vpop.f32.mrf.mxu0
    %v9719 = vadd.f32 %v9686, %v9718
    %9720 = vdwg.mxu0
    %9721 = vmatpush.msra.mxu0 0.0
    %9722 = vmatpush.msra.mxu0 0.0
    %9723 = vmatpush.msra.mxu0 0.0
    %9724 = vmatpush.msra.mxu0 0.0
    %9725 = vmatpush.msra.mxu0 0.0
    %9726 = vmatpush.msra.mxu0 0.0
    %9727 = vmatpush.msra.mxu0 0.0
    %9728 = vmatpush.msra.mxu0 0.0
    %9729 = vmatpush.msra.mxu0 0.0
    %9730 = vmatpush.msra.mxu0 0.0
    %9731 = vmatpush.msra.mxu0 0.0
    %9732 = vmatpush.msra.mxu0 0.0
    %v9733 = vand.u32 %v83, 4294901760
    %9734 = vmatpush.msra.mxu0 %v9733
    %v9735 = vand.u32 %v82, 4294901760
    %9736 = vmatpush.msra.mxu0 %v9735
    %v9737 = vand.u32 %v81, 4294901760
    %9738 = vmatpush.msra.mxu0 %v9737
    %v9739 = vand.u32 %v80, 4294901760
    %9740 = vmatpush.msra.mxu0 %v9739
    %v9741 = vand.u32 %v9559, 4294901760
    %9742 = vmatmul.f32.gmra.mxu0 %v9741
    %v9743 = vpop.f32.mrf.mxu0
    %v9744 = vadd.f32 %v9719, %v9743
    %9745 = vdwg.mxu0
    %v9746 = vmul.f32 %v9744, %v9744
    %vm9747 = vcmask 123904
    %v9748 = vsel %vm9747, %v9746, 0.0
    %9749 = vadd.xlane.f32.xlu0 %v9748
    %v9750 = vpop.xlane.xlu0 %9749
    %v9751 = vmax.f32 %v9750, 1e-24
    %v9752 = vrsqrt.pop %v9751
    %v9753 = vmul.f32 %v9752, %v9751
    %v9754 = vmul.f32 %v9753, %v9752
    %v9755 = vmul.f32 0.5, %v9754
    %v9756 = vsub.f32 1.5, %v9755
    %v9757 = vmul.f32 %v9752, %v9756
    %vm9758 = vweird.f32 %v9751
    %vm9759 = vweird.f32 %v9752
    %vm9760 = vmor %vm9758, %vm9759
    %v9761 = vsel %vm9760, %v9752, %v9757
    %v9762 = vmul.f32 %v9744, %v9761
    %9763 = vst.msk [vmem:[#allocation7] sm:$0x3] %vm9747, %v9762
    // Predicated region
    $region18: #{contrastive_forward.1} parent=1 // pred_check
      _
    $region19: #{contrastive_forward.1} parent=1 // pred_check_branch
      %9765 = sbr.rel (0) target = $region21
    $region20: #{contrastive_forward.1} parent=1 // pred_region
      %9767 = vsyncadd [#allocation4], 0
      %s9769 = sshll.u32 [#allocation7], 4
      %s9770 = int_to_ptr.vmem [resolvable:$true] %s9769
      %s9771 = sshll.u32 %s2, 4
      %s9772 = int_to_ptr.hbm [resolvable:$true] %s9771
      %9774 = dma.vmem_to_hbm [thread:$0]  %s9770, 32, %s9772, [#allocation4]
    $region21: #{contrastive_forward.1} parent=1 // pred_fallthru
      _
    // Predicated region
    $region22: #{contrastive_forward.1} parent=1 // pred_check
      _
    $region23: #{contrastive_forward.1} parent=1 // pred_check_branch
      %9776 = sbr.rel (0) target = $region25
    $region24: #{contrastive_forward.1} parent=1 // pred_region
      %9778 = dma.done [#allocation4], 32
    $region25: #{contrastive_forward.1} parent=1 // pred_fallthru
      _
    %9779 = vsyncpa [#allocation3], 1
    %9780 = vsyncpa [#allocation6], 1
    %9781 = vsyncpa [#allocation4], 1

</llo_original>
